<compile_context>
chip_gen: v7x
topology: tpu7x:2x2x1
jax: 0.10.0
libtpu: 0.0.40
codegen_flags: <defaults>
</compile_context>

<pallas_src>
import math

import jax
import jax.numpy as jnp
from jax.experimental import pallas as pl
from jax.experimental.pallas import tpu as pltpu

# ----- synthetic BertConfig --------------------------------------------------
HIDDEN_SIZE = 32
NUM_HEADS = 4
HEAD_DIM = HIDDEN_SIZE // NUM_HEADS
INTERMEDIATE_SIZE = 128
NUM_LAYERS = 2
LAYER_NORM_EPS = 1e-12
ATTN_DROPOUT_PROB = 0.1     # TODO(synk): dropout is stochastic; kernel implements eval-mode (identity)
HIDDEN_DROPOUT_PROB = 0.1

BATCH = 2
SEQ = 8

# fp32 parity with the fp32 torch module; switch to DEFAULT for bf16 production weights
MM_PREC = jax.lax.Precision.HIGHEST


# ----- small math helpers (lower cleanly inside Mosaic) ----------------------
def _layer_norm(x, gamma, beta):
    mu = jnp.mean(x, axis=-1, keepdims=True)
    xc = x - mu
    var = jnp.mean(xc * xc, axis=-1, keepdims=True)
    return xc * jax.lax.rsqrt(var + LAYER_NORM_EPS) * gamma + beta


def _erf_poly(x):
    # Abramowitz & Stegun 7.1.26 rational approximation, max abs error ~1.5e-7.
    p = 0.3275911
    a1, a2, a3, a4, a5 = 0.254829592, -0.284496736, 1.421413741, -1.453152027, 1.061405429
    ax = jnp.abs(x)
    t = 1.0 / (1.0 + p * ax)
    poly = ((((a5 * t + a4) * t + a3) * t + a2) * t + a1) * t
    y = 1.0 - poly * jnp.exp(-ax * ax)
    return jnp.where(x >= 0, y, -y)


def _gelu_exact(x):
    # nn.GELU() default (approximate='none'): 0.5*x*(1+erf(x/sqrt(2)))
    return 0.5 * x * (1.0 + _erf_poly(x * (1.0 / math.sqrt(2.0))))


# ----- Pallas kernel: one grid step == one BertLayer --------------------------
def bert_layer_kernel(x_ref, mask_ref,
                      wqkv_ref, bqkv_ref, wo_ref, bo_ref, g1_ref, b1_ref,
                      wi_ref, bi_ref, wo2_ref, bo2_ref, g2_ref, b2_ref,
                      out_ref, ctx_ref):
    H = HIDDEN_SIZE
    scale = 1.0 / math.sqrt(HEAD_DIM)

    # layer 0: load the input hidden states into the resident output/state block
    @pl.when(pl.program_id(0) == 0)
    def _():
        out_ref[...] = x_ref[...]

    x = out_ref[...]                                   # (N, H) hidden states (carried in VMEM)

    # ---- fused QKV projection: one matmul for query/key/value --------------------------------
    qkv = jnp.dot(x, wqkv_ref[...], preferred_element_type=jnp.float32,
                  precision=MM_PREC) + bqkv_ref[...]   # (N, 3H)

    # ---- multi-head scaled-dot-product attention, statically unrolled over (batch, head) -----
    for b in range(BATCH):
        rows = slice(b * SEQ, (b + 1) * SEQ)
        mask_b = mask_ref[b:b + 1, :]                  # (1, S) additive float mask
        for h in range(NUM_HEADS):
            c0 = h * HEAD_DIM
            qh = qkv[rows, 0 * H + c0: 0 * H + c0 + HEAD_DIM]    # (S, hd)
            kh = qkv[rows, 1 * H + c0: 1 * H + c0 + HEAD_DIM]
            vh = qkv[rows, 2 * H + c0: 2 * H + c0 + HEAD_DIM]

            s = jnp.einsum("qd,kd->qk", qh, kh,
                           preferred_element_type=jnp.float32,
                           precision=MM_PREC) * scale            # (S, S)
            s = s + mask_b                                        # broadcast over query rows

            m = jnp.max(s, axis=-1, keepdims=True)
            p = jnp.exp(s - m)
            p = p / jnp.sum(p, axis=-1, keepdims=True)
            # TODO(synk): attention-probs dropout omitted (eval mode)

            ctx_ref[rows, c0:c0 + HEAD_DIM] = jnp.dot(
                p, vh, preferred_element_type=jnp.float32, precision=MM_PREC)

    # ---- attention output projection + dropout(identity) + residual + LayerNorm --------------
    attn = jnp.dot(ctx_ref[...], wo_ref[...], preferred_element_type=jnp.float32,
                   precision=MM_PREC) + bo_ref[...]
    a = _layer_norm(attn + x, g1_ref[...], b1_ref[...])

    # ---- FFN: dense -> exact GELU -> dense -> dropout(identity) -> residual -> LayerNorm -----
    mid = jnp.dot(a, wi_ref[...], preferred_element_type=jnp.float32,
                  precision=MM_PREC) + bi_ref[...]
    mid = _gelu_exact(mid)
    ffn = jnp.dot(mid, wo2_ref[...], preferred_element_type=jnp.float32,
                  precision=MM_PREC) + bo2_ref[...]
    y = _layer_norm(ffn + a, g2_ref[...], b2_ref[...])

    out_ref[...] = y.astype(out_ref.dtype)             # carried state; written back once at end


# ----- wrapper ---------------------------------------------------------------
def bert_encoder(hidden_states, attention_mask, layer_params):
    B, S, H = hidden_states.shape
    assert H % NUM_HEADS == 0, "hidden size must be a multiple of num heads"
    N = B * S
    L = len(layer_params)
    I = INTERMEDIATE_SIZE

    x2 = hidden_states.reshape(N, H).astype(jnp.float32)
    mask = attention_mask.astype(jnp.float32)          # (B, S) additive float mask

    def stacked(name):
        return jnp.stack([p[name] for p in layer_params], axis=0)

    wqkv, bqkv = stacked("wqkv"), stacked("bqkv")      # (L,H,3H), (L,1,3H)
    wo, bo = stacked("wo"), stacked("bo")              # (L,H,H), (L,1,H)
    g1, b1 = stacked("ln1_g"), stacked("ln1_b")        # (L,1,H)
    wi, bi = stacked("wi"), stacked("bi")              # (L,H,I), (L,1,I)
    wo2, bo2 = stacked("wo2"), stacked("bo2")          # (L,I,H), (L,1,H)
    g2, b2 = stacked("ln2_g"), stacked("ln2_b")        # (L,1,H)

    def full2d(arr):
        return pl.BlockSpec(arr.shape, lambda l: (0, 0))

    def per_layer(arr):
        # leading layer dim is squeezed; weight block for layer l is pipelined in per grid step
        return pl.BlockSpec((None,) + arr.shape[1:], lambda l: (l, 0, 0))

    out_flat = pl.pallas_call(
        bert_layer_kernel,
        out_shape=jax.ShapeDtypeStruct((N, H), jnp.float32),
        grid=(L,),
        in_specs=[
            full2d(x2), full2d(mask),
            per_layer(wqkv), per_layer(bqkv), per_layer(wo), per_layer(bo),
            per_layer(g1), per_layer(b1),
            per_layer(wi), per_layer(bi), per_layer(wo2), per_layer(bo2),
            per_layer(g2), per_layer(b2),
        ],
        out_specs=pl.BlockSpec((N, H), lambda l: (0, 0)),
        scratch_shapes=[pltpu.VMEM((N, H), jnp.float32)],   # per-head context assembly buffer
        compiler_params=pltpu.CompilerParams(dimension_semantics=("arbitrary",)),
    )(x2, mask, wqkv, bqkv, wo, bo, g1, b1, wi, bi, wo2, bo2, g2, b2)

    return out_flat.reshape(B, S, H)


# ----- pure-JAX reference (eval-mode BertEncoder) -----------------------------
def bert_encoder_ref(hidden_states, attention_mask, layer_params):
    B, S, H = hidden_states.shape
    nh, hd = NUM_HEADS, HEAD_DIM

    def ln(v, g, b):
        mu = v.mean(-1, keepdims=True)
        var = ((v - mu) ** 2).mean(-1, keepdims=True)
        return (v - mu) / jnp.sqrt(var + LAYER_NORM_EPS) * g + b

    h_states = hidden_states
    for p in layer_params:
        qkv = jnp.einsum("bsh,hd->bsd", h_states, p["wqkv"], precision=MM_PREC) + p["bqkv"][0]
        q, k, v = jnp.split(qkv, 3, axis=-1)
        to_heads = lambda t: t.reshape(B, S, nh, hd).transpose(0, 2, 1, 3)
        q, k, v = to_heads(q), to_heads(k), to_heads(v)

        s = jnp.einsum("bnqd,bnkd->bnqk", q, k, precision=MM_PREC) / math.sqrt(hd)
        s = s + attention_mask[:, None, None, :]
        probs = jax.nn.softmax(s, axis=-1)
        ctx = jnp.einsum("bnqk,bnkd->bnqd", probs, v, precision=MM_PREC)
        ctx = ctx.transpose(0, 2, 1, 3).reshape(B, S, H)

        attn = jnp.einsum("bsh,hd->bsd", ctx, p["wo"], precision=MM_PREC) + p["bo"][0]
        a = ln(attn + h_states, p["ln1_g"][0], p["ln1_b"][0])

        mid = jnp.einsum("bsh,hi->bsi", a, p["wi"], precision=MM_PREC) + p["bi"][0]
        mid = jax.nn.gelu(mid, approximate=False)
        ffn = jnp.einsum("bsi,ih->bsh", mid, p["wo2"], precision=MM_PREC) + p["bo2"][0]
        h_states = ln(ffn + a, p["ln2_g"][0], p["ln2_b"][0])
    return h_states


# ----- main ------------------------------------------------------------------
if __name__ == "__main__":
    B, S, H, I, L = BATCH, SEQ, HIDDEN_SIZE, INTERMEDIATE_SIZE, NUM_LAYERS
    root = jax.random.PRNGKey(0)
    kx, kparams = jax.random.split(root)

    layer_params = []
    for li in range(L):
        ks = jax.random.split(jax.random.fold_in(kparams, li), 12)
        wq = 0.02 * jax.random.normal(ks[0], (H, H), jnp.float32)
        wk = 0.02 * jax.random.normal(ks[1], (H, H), jnp.float32)
        wv = 0.02 * jax.random.normal(ks[2], (H, H), jnp.float32)
        bq = 0.01 * jax.random.normal(ks[3], (H,), jnp.float32)
        bk = 0.01 * jax.random.normal(ks[4], (H,), jnp.float32)
        bv = 0.01 * jax.random.normal(ks[5], (H,), jnp.float32)
        wo = 0.02 * jax.random.normal(ks[6], (H, H), jnp.float32)
        bo = 0.01 * jax.random.normal(ks[7], (H,), jnp.float32)
        wi = 0.02 * jax.random.normal(ks[8], (H, I), jnp.float32)
        bi = 0.01 * jax.random.normal(ks[9], (I,), jnp.float32)
        wo2 = 0.02 * jax.random.normal(ks[10], (I, H), jnp.float32)
        bo2 = 0.01 * jax.random.normal(ks[11], (H,), jnp.float32)
        layer_params.append(dict(
            wqkv=jnp.concatenate([wq, wk, wv], axis=1),
            bqkv=jnp.concatenate([bq, bk, bv]).reshape(1, 3 * H),
            wo=wo, bo=bo.reshape(1, H),
            ln1_g=jnp.ones((1, H), jnp.float32), ln1_b=jnp.zeros((1, H), jnp.float32),
            wi=wi, bi=bi.reshape(1, I),
            wo2=wo2, bo2=bo2.reshape(1, H),
            ln2_g=jnp.ones((1, H), jnp.float32), ln2_b=jnp.zeros((1, H), jnp.float32),
        ))

    hidden_states = jax.random.normal(kx, (B, S, H), jnp.float32)
    # additive float attention mask (0 = attend, -1e9 = masked); batch 1 has 2 padded positions
    lengths = jnp.array([S, S - 2], dtype=jnp.int32)
    attention_mask = jnp.where(jnp.arange(S)[None, :] < lengths[:, None], 0.0, -1e9).astype(jnp.float32)

    out = bert_encoder(hidden_states, attention_mask, layer_params)
    out = jax.block_until_ready(out)

    ref = bert_encoder_ref(hidden_states, attention_mask, layer_params)
    assert out.shape == (B, S, H)
    max_err = float(jnp.max(jnp.abs(out - ref)))
    assert jnp.allclose(out, ref, rtol=1e-3, atol=1e-3), f"mismatch vs reference, max abs err={max_err}"

    print("KERNEL_OK")
</pallas_src>

<mosaic_0001>
module attributes {stable_mosaic.version = 11 : i64} {
  func.func @bert_layer_kernel(%arg0: i32, %arg1: memref<16x32xf32, #tpu.memory_space<vmem>>, %arg2: memref<2x8xf32, #tpu.memory_space<vmem>>, %arg3: memref<1x32x96xf32, #tpu.memory_space<vmem>>, %arg4: memref<1x1x96xf32, #tpu.memory_space<vmem>>, %arg5: memref<1x32x32xf32, #tpu.memory_space<vmem>>, %arg6: memref<1x1x32xf32, #tpu.memory_space<vmem>>, %arg7: memref<1x1x32xf32, #tpu.memory_space<vmem>>, %arg8: memref<1x1x32xf32, #tpu.memory_space<vmem>>, %arg9: memref<1x32x128xf32, #tpu.memory_space<vmem>>, %arg10: memref<1x1x128xf32, #tpu.memory_space<vmem>>, %arg11: memref<1x128x32xf32, #tpu.memory_space<vmem>>, %arg12: memref<1x1x32xf32, #tpu.memory_space<vmem>>, %arg13: memref<1x1x32xf32, #tpu.memory_space<vmem>>, %arg14: memref<1x1x32xf32, #tpu.memory_space<vmem>>, %arg15: memref<16x32xf32, #tpu.memory_space<vmem>>, %arg16: memref<16x32xf32, #tpu.memory_space<vmem>>) attributes {dimension_semantics = [#tpu.dimension_semantics<arbitrary>], iteration_bounds = array<i64: 2>, scalar_prefetch = 0 : i64, scratch_operands = 1 : i64, tpu.core_type = #tpu.core_type<tc>, window_params = [{pipeline_mode = #tpu.pipeline_mode<synchronous>, transform_indices = @transform_0, window_bounds = array<i64: 16, 32>}, {pipeline_mode = #tpu.pipeline_mode<synchronous>, transform_indices = @transform_1, window_bounds = array<i64: 2, 8>}, {transform_indices = @transform_2, window_bounds = array<i64: 1, 32, 96>}, {transform_indices = @transform_3, window_bounds = array<i64: 1, 1, 96>}, {transform_indices = @transform_4, window_bounds = array<i64: 1, 32, 32>}, {transform_indices = @transform_5, window_bounds = array<i64: 1, 1, 32>}, {transform_indices = @transform_6, window_bounds = array<i64: 1, 1, 32>}, {transform_indices = @transform_7, window_bounds = array<i64: 1, 1, 32>}, {transform_indices = @transform_8, window_bounds = array<i64: 1, 32, 128>}, {transform_indices = @transform_9, window_bounds = array<i64: 1, 1, 128>}, {transform_indices = @transform_10, window_bounds = array<i64: 1, 128, 32>}, {transform_indices = @transform_11, window_bounds = array<i64: 1, 1, 32>}, {transform_indices = @transform_12, window_bounds = array<i64: 1, 1, 32>}, {transform_indices = @transform_13, window_bounds = array<i64: 1, 1, 32>}, {pipeline_mode = #tpu.pipeline_mode<synchronous>, transform_indices = @transform_14, window_bounds = array<i64: 16, 32>}]} {
    %c0_i32 = arith.constant 0 : i32
    %0 = arith.cmpi eq, %arg0, %c0_i32 : i32
    %1 = arith.extui %0 : i1 to i32
    %c0_i32_0 = arith.constant 0 : i32
    %2 = arith.cmpi ne, %1, %c0_i32_0 : i32
    scf.if %2 {
      %c0_126 = arith.constant 0 : index
      %c0_127 = arith.constant 0 : index
      %278 = vector.load %arg1[%c0_126, %c0_127] : memref<16x32xf32, #tpu.memory_space<vmem>>, vector<16x32xf32>
      %c0_128 = arith.constant 0 : index
      %c0_129 = arith.constant 0 : index
      %279 = vector.load %arg15[%c0_128, %c0_129] : memref<16x32xf32, #tpu.memory_space<vmem>>, vector<16x32xf32>
      tpu.vector_store %arg15[%c0_128, %c0_129], %278 {strides = array<i32>} : memref<16x32xf32, #tpu.memory_space<vmem>>, vector<16x32xf32>,
    } else {
    }
    %c0 = arith.constant 0 : index
    %c0_1 = arith.constant 0 : index
    %3 = vector.load %arg15[%c0, %c0_1] : memref<16x32xf32, #tpu.memory_space<vmem>>, vector<16x32xf32>
    %c0_2 = arith.constant 0 : index
    %c0_3 = arith.constant 0 : index
    %c0_4 = arith.constant 0 : index
    %4 = vector.load %arg3[%c0_2, %c0_3, %c0_4] : memref<1x32x96xf32, #tpu.memory_space<vmem>>, vector<1x32x96xf32>
    %5 = vector.shape_cast %4 : vector<1x32x96xf32> to vector<32x96xf32>
    %cst = arith.constant dense<0.000000e+00> : vector<16x96xf32>
    %6 = tpu.matmul %3, %5, %cst {dimension_numbers = #tpu.dot_dimension_numbers<[1], [0], [0], [1], [0, 0, 1, 1], [], []>, precision = #tpu.contract_precision<fp32>} : vector<16x32xf32>, vector<32x96xf32>, vector<16x96xf32> -> vector<16x96xf32>
    %c0_5 = arith.constant 0 : index
    %c0_6 = arith.constant 0 : index
    %c0_7 = arith.constant 0 : index
    %7 = vector.load %arg4[%c0_5, %c0_6, %c0_7] : memref<1x1x96xf32, #tpu.memory_space<vmem>>, vector<1x1x96xf32>
    %8 = vector.shape_cast %7 : vector<1x1x96xf32> to vector<1x96xf32>
    %9 = vector.broadcast %8 : vector<1x96xf32> to vector<16x96xf32>
    %10 = arith.addf %6, %9 : vector<16x96xf32>
    %c0_8 = arith.constant 0 : index
    %c0_9 = arith.constant 0 : index
    %11 = vector.load %arg2[%c0_8, %c0_9] : memref<2x8xf32, #tpu.memory_space<vmem>>, vector<1x8xf32>
    %12 = vector.extract_strided_slice %10 {offsets = [0, 0], sizes = [8, 8], strides = [1, 1]} : vector<16x96xf32> to vector<8x8xf32>
    %13 = vector.extract_strided_slice %10 {offsets = [0, 32], sizes = [8, 8], strides = [1, 1]} : vector<16x96xf32> to vector<8x8xf32>
    %14 = vector.extract_strided_slice %10 {offsets = [0, 64], sizes = [8, 8], strides = [1, 1]} : vector<16x96xf32> to vector<8x8xf32>
    "tpu.trace_start"() <{level = 10 : i32, message = "qd,kd->qk"}> : () -> ()
    %cst_10 = arith.constant dense<0.000000e+00> : vector<8x8xf32>
    %15 = tpu.matmul %12, %13, %cst_10 {dimension_numbers = #tpu.dot_dimension_numbers<[1], [1], [0], [0], [0, 0, 1, 0], [], []>, precision = #tpu.contract_precision<fp32>} : vector<8x8xf32>, vector<8x8xf32>, vector<8x8xf32> -> vector<8x8xf32>
    "tpu.trace_stop"() : () -> ()
    %cst_11 = arith.constant 0.353553385 : f32
    %16 = vector.broadcast %cst_11 : f32 to vector<8x8xf32>
    %17 = arith.mulf %15, %16 : vector<8x8xf32>
    %18 = vector.broadcast %11 : vector<1x8xf32> to vector<8x8xf32>
    %19 = arith.addf %17, %18 : vector<8x8xf32>
    %cst_12 = arith.constant dense<0xFF800000> : vector<8xf32>
    %20 = vector.multi_reduction <maximumf>, %19, %cst_12 [1] : vector<8x8xf32> to vector<8xf32>
    %21 = vector.shape_cast %20 : vector<8xf32> to vector<8x1xf32>
    %22 = vector.broadcast %21 : vector<8x1xf32> to vector<8x8xf32>
    %23 = arith.subf %19, %22 : vector<8x8xf32>
    %24 = math.exp %23 : vector<8x8xf32>
    %cst_13 = arith.constant dense<0.000000e+00> : vector<8xf32>
    %25 = vector.multi_reduction <add>, %24, %cst_13 [1] : vector<8x8xf32> to vector<8xf32>
    %26 = vector.shape_cast %25 : vector<8xf32> to vector<8x1xf32>
    %27 = vector.broadcast %26 : vector<8x1xf32> to vector<8x8xf32>
    %28 = arith.divf %24, %27 : vector<8x8xf32>
    %cst_14 = arith.constant dense<0.000000e+00> : vector<8x8xf32>
    %29 = tpu.matmul %28, %14, %cst_14 {dimension_numbers = #tpu.dot_dimension_numbers<[1], [0], [0], [1], [0, 0, 1, 1], [], []>, precision = #tpu.contract_precision<fp32>} : vector<8x8xf32>, vector<8x8xf32>, vector<8x8xf32> -> vector<8x8xf32>
    %c0_15 = arith.constant 0 : index
    %c0_16 = arith.constant 0 : index
    %30 = vector.load %arg16[%c0_15, %c0_16] : memref<16x32xf32, #tpu.memory_space<vmem>>, vector<8x8xf32>
    tpu.vector_store %arg16[%c0_15, %c0_16], %29 {strides = array<i32>} : memref<16x32xf32, #tpu.memory_space<vmem>>, vector<8x8xf32>,
    %31 = vector.extract_strided_slice %10 {offsets = [0, 8], sizes = [8, 8], strides = [1, 1]} : vector<16x96xf32> to vector<8x8xf32>
    %32 = vector.extract_strided_slice %10 {offsets = [0, 40], sizes = [8, 8], strides = [1, 1]} : vector<16x96xf32> to vector<8x8xf32>
    %33 = vector.extract_strided_slice %10 {offsets = [0, 72], sizes = [8, 8], strides = [1, 1]} : vector<16x96xf32> to vector<8x8xf32>
    "tpu.trace_start"() <{level = 10 : i32, message = "qd,kd->qk"}> : () -> ()
    %cst_17 = arith.constant dense<0.000000e+00> : vector<8x8xf32>
    %34 = tpu.matmul %31, %32, %cst_17 {dimension_numbers = #tpu.dot_dimension_numbers<[1], [1], [0], [0], [0, 0, 1, 0], [], []>, precision = #tpu.contract_precision<fp32>} : vector<8x8xf32>, vector<8x8xf32>, vector<8x8xf32> -> vector<8x8xf32>
    "tpu.trace_stop"() : () -> ()
    %cst_18 = arith.constant 0.353553385 : f32
    %35 = vector.broadcast %cst_18 : f32 to vector<8x8xf32>
    %36 = arith.mulf %34, %35 : vector<8x8xf32>
    %37 = vector.broadcast %11 : vector<1x8xf32> to vector<8x8xf32>
    %38 = arith.addf %36, %37 : vector<8x8xf32>
    %cst_19 = arith.constant dense<0xFF800000> : vector<8xf32>
    %39 = vector.multi_reduction <maximumf>, %38, %cst_19 [1] : vector<8x8xf32> to vector<8xf32>
    %40 = vector.shape_cast %39 : vector<8xf32> to vector<8x1xf32>
    %41 = vector.broadcast %40 : vector<8x1xf32> to vector<8x8xf32>
    %42 = arith.subf %38, %41 : vector<8x8xf32>
    %43 = math.exp %42 : vector<8x8xf32>
    %cst_20 = arith.constant dense<0.000000e+00> : vector<8xf32>
    %44 = vector.multi_reduction <add>, %43, %cst_20 [1] : vector<8x8xf32> to vector<8xf32>
    %45 = vector.shape_cast %44 : vector<8xf32> to vector<8x1xf32>
    %46 = vector.broadcast %45 : vector<8x1xf32> to vector<8x8xf32>
    %47 = arith.divf %43, %46 : vector<8x8xf32>
    %cst_21 = arith.constant dense<0.000000e+00> : vector<8x8xf32>
    %48 = tpu.matmul %47, %33, %cst_21 {dimension_numbers = #tpu.dot_dimension_numbers<[1], [0], [0], [1], [0, 0, 1, 1], [], []>, precision = #tpu.contract_precision<fp32>} : vector<8x8xf32>, vector<8x8xf32>, vector<8x8xf32> -> vector<8x8xf32>
    %c0_22 = arith.constant 0 : index
    %c8 = arith.constant 8 : index
    %49 = vector.load %arg16[%c0_22, %c8] : memref<16x32xf32, #tpu.memory_space<vmem>>, vector<8x8xf32>
    tpu.vector_store %arg16[%c0_22, %c8], %48 {strides = array<i32>} : memref<16x32xf32, #tpu.memory_space<vmem>>, vector<8x8xf32>,
    %50 = vector.extract_strided_slice %10 {offsets = [0, 16], sizes = [8, 8], strides = [1, 1]} : vector<16x96xf32> to vector<8x8xf32>
    %51 = vector.extract_strided_slice %10 {offsets = [0, 48], sizes = [8, 8], strides = [1, 1]} : vector<16x96xf32> to vector<8x8xf32>
    %52 = vector.extract_strided_slice %10 {offsets = [0, 80], sizes = [8, 8], strides = [1, 1]} : vector<16x96xf32> to vector<8x8xf32>
    "tpu.trace_start"() <{level = 10 : i32, message = "qd,kd->qk"}> : () -> ()
    %cst_23 = arith.constant dense<0.000000e+00> : vector<8x8xf32>
    %53 = tpu.matmul %50, %51, %cst_23 {dimension_numbers = #tpu.dot_dimension_numbers<[1], [1], [0], [0], [0, 0, 1, 0], [], []>, precision = #tpu.contract_precision<fp32>} : vector<8x8xf32>, vector<8x8xf32>, vector<8x8xf32> -> vector<8x8xf32>
    "tpu.trace_stop"() : () -> ()
    %cst_24 = arith.constant 0.353553385 : f32
    %54 = vector.broadcast %cst_24 : f32 to vector<8x8xf32>
    %55 = arith.mulf %53, %54 : vector<8x8xf32>
    %56 = vector.broadcast %11 : vector<1x8xf32> to vector<8x8xf32>
    %57 = arith.addf %55, %56 : vector<8x8xf32>
    %cst_25 = arith.constant dense<0xFF800000> : vector<8xf32>
    %58 = vector.multi_reduction <maximumf>, %57, %cst_25 [1] : vector<8x8xf32> to vector<8xf32>
    %59 = vector.shape_cast %58 : vector<8xf32> to vector<8x1xf32>
    %60 = vector.broadcast %59 : vector<8x1xf32> to vector<8x8xf32>
    %61 = arith.subf %57, %60 : vector<8x8xf32>
    %62 = math.exp %61 : vector<8x8xf32>
    %cst_26 = arith.constant dense<0.000000e+00> : vector<8xf32>
    %63 = vector.multi_reduction <add>, %62, %cst_26 [1] : vector<8x8xf32> to vector<8xf32>
    %64 = vector.shape_cast %63 : vector<8xf32> to vector<8x1xf32>
    %65 = vector.broadcast %64 : vector<8x1xf32> to vector<8x8xf32>
    %66 = arith.divf %62, %65 : vector<8x8xf32>
    %cst_27 = arith.constant dense<0.000000e+00> : vector<8x8xf32>
    %67 = tpu.matmul %66, %52, %cst_27 {dimension_numbers = #tpu.dot_dimension_numbers<[1], [0], [0], [1], [0, 0, 1, 1], [], []>, precision = #tpu.contract_precision<fp32>} : vector<8x8xf32>, vector<8x8xf32>, vector<8x8xf32> -> vector<8x8xf32>
    %c0_28 = arith.constant 0 : index
    %c16 = arith.constant 16 : index
    %68 = vector.load %arg16[%c0_28, %c16] : memref<16x32xf32, #tpu.memory_space<vmem>>, vector<8x8xf32>
    tpu.vector_store %arg16[%c0_28, %c16], %67 {strides = array<i32>} : memref<16x32xf32, #tpu.memory_space<vmem>>, vector<8x8xf32>,
    %69 = vector.extract_strided_slice %10 {offsets = [0, 24], sizes = [8, 8], strides = [1, 1]} : vector<16x96xf32> to vector<8x8xf32>
    %70 = vector.extract_strided_slice %10 {offsets = [0, 56], sizes = [8, 8], strides = [1, 1]} : vector<16x96xf32> to vector<8x8xf32>
    %71 = vector.extract_strided_slice %10 {offsets = [0, 88], sizes = [8, 8], strides = [1, 1]} : vector<16x96xf32> to vector<8x8xf32>
    "tpu.trace_start"() <{level = 10 : i32, message = "qd,kd->qk"}> : () -> ()
    %cst_29 = arith.constant dense<0.000000e+00> : vector<8x8xf32>
    %72 = tpu.matmul %69, %70, %cst_29 {dimension_numbers = #tpu.dot_dimension_numbers<[1], [1], [0], [0], [0, 0, 1, 0], [], []>, precision = #tpu.contract_precision<fp32>} : vector<8x8xf32>, vector<8x8xf32>, vector<8x8xf32> -> vector<8x8xf32>
    "tpu.trace_stop"() : () -> ()
    %cst_30 = arith.constant 0.353553385 : f32
    %73 = vector.broadcast %cst_30 : f32 to vector<8x8xf32>
    %74 = arith.mulf %72, %73 : vector<8x8xf32>
    %75 = vector.broadcast %11 : vector<1x8xf32> to vector<8x8xf32>
    %76 = arith.addf %74, %75 : vector<8x8xf32>
    %cst_31 = arith.constant dense<0xFF800000> : vector<8xf32>
    %77 = vector.multi_reduction <maximumf>, %76, %cst_31 [1] : vector<8x8xf32> to vector<8xf32>
    %78 = vector.shape_cast %77 : vector<8xf32> to vector<8x1xf32>
    %79 = vector.broadcast %78 : vector<8x1xf32> to vector<8x8xf32>
    %80 = arith.subf %76, %79 : vector<8x8xf32>
    %81 = math.exp %80 : vector<8x8xf32>
    %cst_32 = arith.constant dense<0.000000e+00> : vector<8xf32>
    %82 = vector.multi_reduction <add>, %81, %cst_32 [1] : vector<8x8xf32> to vector<8xf32>
    %83 = vector.shape_cast %82 : vector<8xf32> to vector<8x1xf32>
    %84 = vector.broadcast %83 : vector<8x1xf32> to vector<8x8xf32>
    %85 = arith.divf %81, %84 : vector<8x8xf32>
    %cst_33 = arith.constant dense<0.000000e+00> : vector<8x8xf32>
    %86 = tpu.matmul %85, %71, %cst_33 {dimension_numbers = #tpu.dot_dimension_numbers<[1], [0], [0], [1], [0, 0, 1, 1], [], []>, precision = #tpu.contract_precision<fp32>} : vector<8x8xf32>, vector<8x8xf32>, vector<8x8xf32> -> vector<8x8xf32>
    %c0_34 = arith.constant 0 : index
    %c24 = arith.constant 24 : index
    %87 = vector.load %arg16[%c0_34, %c24] : memref<16x32xf32, #tpu.memory_space<vmem>>, vector<8x8xf32>
    tpu.vector_store %arg16[%c0_34, %c24], %86 {strides = array<i32>} : memref<16x32xf32, #tpu.memory_space<vmem>>, vector<8x8xf32>,
    %c1 = arith.constant 1 : index
    %c0_35 = arith.constant 0 : index
    %88 = vector.load %arg2[%c1, %c0_35] : memref<2x8xf32, #tpu.memory_space<vmem>>, vector<1x8xf32>
    %89 = vector.extract_strided_slice %10 {offsets = [8, 0], sizes = [8, 8], strides = [1, 1]} : vector<16x96xf32> to vector<8x8xf32>
    %90 = vector.extract_strided_slice %10 {offsets = [8, 32], sizes = [8, 8], strides = [1, 1]} : vector<16x96xf32> to vector<8x8xf32>
    %91 = vector.extract_strided_slice %10 {offsets = [8, 64], sizes = [8, 8], strides = [1, 1]} : vector<16x96xf32> to vector<8x8xf32>
    "tpu.trace_start"() <{level = 10 : i32, message = "qd,kd->qk"}> : () -> ()
    %cst_36 = arith.constant dense<0.000000e+00> : vector<8x8xf32>
    %92 = tpu.matmul %89, %90, %cst_36 {dimension_numbers = #tpu.dot_dimension_numbers<[1], [1], [0], [0], [0, 0, 1, 0], [], []>, precision = #tpu.contract_precision<fp32>} : vector<8x8xf32>, vector<8x8xf32>, vector<8x8xf32> -> vector<8x8xf32>
    "tpu.trace_stop"() : () -> ()
    %cst_37 = arith.constant 0.353553385 : f32
    %93 = vector.broadcast %cst_37 : f32 to vector<8x8xf32>
    %94 = arith.mulf %92, %93 : vector<8x8xf32>
    %95 = vector.broadcast %88 : vector<1x8xf32> to vector<8x8xf32>
    %96 = arith.addf %94, %95 : vector<8x8xf32>
    %cst_38 = arith.constant dense<0xFF800000> : vector<8xf32>
    %97 = vector.multi_reduction <maximumf>, %96, %cst_38 [1] : vector<8x8xf32> to vector<8xf32>
    %98 = vector.shape_cast %97 : vector<8xf32> to vector<8x1xf32>
    %99 = vector.broadcast %98 : vector<8x1xf32> to vector<8x8xf32>
    %100 = arith.subf %96, %99 : vector<8x8xf32>
    %101 = math.exp %100 : vector<8x8xf32>
    %cst_39 = arith.constant dense<0.000000e+00> : vector<8xf32>
    %102 = vector.multi_reduction <add>, %101, %cst_39 [1] : vector<8x8xf32> to vector<8xf32>
    %103 = vector.shape_cast %102 : vector<8xf32> to vector<8x1xf32>
    %104 = vector.broadcast %103 : vector<8x1xf32> to vector<8x8xf32>
    %105 = arith.divf %101, %104 : vector<8x8xf32>
    %cst_40 = arith.constant dense<0.000000e+00> : vector<8x8xf32>
    %106 = tpu.matmul %105, %91, %cst_40 {dimension_numbers = #tpu.dot_dimension_numbers<[1], [0], [0], [1], [0, 0, 1, 1], [], []>, precision = #tpu.contract_precision<fp32>} : vector<8x8xf32>, vector<8x8xf32>, vector<8x8xf32> -> vector<8x8xf32>
    %c8_41 = arith.constant 8 : index
    %c0_42 = arith.constant 0 : index
    %107 = vector.load %arg16[%c8_41, %c0_42] : memref<16x32xf32, #tpu.memory_space<vmem>>, vector<8x8xf32>
    tpu.vector_store %arg16[%c8_41, %c0_42], %106 {strides = array<i32>} : memref<16x32xf32, #tpu.memory_space<vmem>>, vector<8x8xf32>,
    %108 = vector.extract_strided_slice %10 {offsets = [8, 8], sizes = [8, 8], strides = [1, 1]} : vector<16x96xf32> to vector<8x8xf32>
    %109 = vector.extract_strided_slice %10 {offsets = [8, 40], sizes = [8, 8], strides = [1, 1]} : vector<16x96xf32> to vector<8x8xf32>
    %110 = vector.extract_strided_slice %10 {offsets = [8, 72], sizes = [8, 8], strides = [1, 1]} : vector<16x96xf32> to vector<8x8xf32>
    "tpu.trace_start"() <{level = 10 : i32, message = "qd,kd->qk"}> : () -> ()
    %cst_43 = arith.constant dense<0.000000e+00> : vector<8x8xf32>
    %111 = tpu.matmul %108, %109, %cst_43 {dimension_numbers = #tpu.dot_dimension_numbers<[1], [1], [0], [0], [0, 0, 1, 0], [], []>, precision = #tpu.contract_precision<fp32>} : vector<8x8xf32>, vector<8x8xf32>, vector<8x8xf32> -> vector<8x8xf32>
    "tpu.trace_stop"() : () -> ()
    %cst_44 = arith.constant 0.353553385 : f32
    %112 = vector.broadcast %cst_44 : f32 to vector<8x8xf32>
    %113 = arith.mulf %111, %112 : vector<8x8xf32>
    %114 = vector.broadcast %88 : vector<1x8xf32> to vector<8x8xf32>
    %115 = arith.addf %113, %114 : vector<8x8xf32>
    %cst_45 = arith.constant dense<0xFF800000> : vector<8xf32>
    %116 = vector.multi_reduction <maximumf>, %115, %cst_45 [1] : vector<8x8xf32> to vector<8xf32>
    %117 = vector.shape_cast %116 : vector<8xf32> to vector<8x1xf32>
    %118 = vector.broadcast %117 : vector<8x1xf32> to vector<8x8xf32>
    %119 = arith.subf %115, %118 : vector<8x8xf32>
    %120 = math.exp %119 : vector<8x8xf32>
    %cst_46 = arith.constant dense<0.000000e+00> : vector<8xf32>
    %121 = vector.multi_reduction <add>, %120, %cst_46 [1] : vector<8x8xf32> to vector<8xf32>
    %122 = vector.shape_cast %121 : vector<8xf32> to vector<8x1xf32>
    %123 = vector.broadcast %122 : vector<8x1xf32> to vector<8x8xf32>
    %124 = arith.divf %120, %123 : vector<8x8xf32>
    %cst_47 = arith.constant dense<0.000000e+00> : vector<8x8xf32>
    %125 = tpu.matmul %124, %110, %cst_47 {dimension_numbers = #tpu.dot_dimension_numbers<[1], [0], [0], [1], [0, 0, 1, 1], [], []>, precision = #tpu.contract_precision<fp32>} : vector<8x8xf32>, vector<8x8xf32>, vector<8x8xf32> -> vector<8x8xf32>
    %c8_48 = arith.constant 8 : index
    %c8_49 = arith.constant 8 : index
    %126 = vector.load %arg16[%c8_48, %c8_49] : memref<16x32xf32, #tpu.memory_space<vmem>>, vector<8x8xf32>
    tpu.vector_store %arg16[%c8_48, %c8_49], %125 {strides = array<i32>} : memref<16x32xf32, #tpu.memory_space<vmem>>, vector<8x8xf32>,
    %127 = vector.extract_strided_slice %10 {offsets = [8, 16], sizes = [8, 8], strides = [1, 1]} : vector<16x96xf32> to vector<8x8xf32>
    %128 = vector.extract_strided_slice %10 {offsets = [8, 48], sizes = [8, 8], strides = [1, 1]} : vector<16x96xf32> to vector<8x8xf32>
    %129 = vector.extract_strided_slice %10 {offsets = [8, 80], sizes = [8, 8], strides = [1, 1]} : vector<16x96xf32> to vector<8x8xf32>
    "tpu.trace_start"() <{level = 10 : i32, message = "qd,kd->qk"}> : () -> ()
    %cst_50 = arith.constant dense<0.000000e+00> : vector<8x8xf32>
    %130 = tpu.matmul %127, %128, %cst_50 {dimension_numbers = #tpu.dot_dimension_numbers<[1], [1], [0], [0], [0, 0, 1, 0], [], []>, precision = #tpu.contract_precision<fp32>} : vector<8x8xf32>, vector<8x8xf32>, vector<8x8xf32> -> vector<8x8xf32>
    "tpu.trace_stop"() : () -> ()
    %cst_51 = arith.constant 0.353553385 : f32
    %131 = vector.broadcast %cst_51 : f32 to vector<8x8xf32>
    %132 = arith.mulf %130, %131 : vector<8x8xf32>
    %133 = vector.broadcast %88 : vector<1x8xf32> to vector<8x8xf32>
    %134 = arith.addf %132, %133 : vector<8x8xf32>
    %cst_52 = arith.constant dense<0xFF800000> : vector<8xf32>
    %135 = vector.multi_reduction <maximumf>, %134, %cst_52 [1] : vector<8x8xf32> to vector<8xf32>
    %136 = vector.shape_cast %135 : vector<8xf32> to vector<8x1xf32>
    %137 = vector.broadcast %136 : vector<8x1xf32> to vector<8x8xf32>
    %138 = arith.subf %134, %137 : vector<8x8xf32>
    %139 = math.exp %138 : vector<8x8xf32>
    %cst_53 = arith.constant dense<0.000000e+00> : vector<8xf32>
    %140 = vector.multi_reduction <add>, %139, %cst_53 [1] : vector<8x8xf32> to vector<8xf32>
    %141 = vector.shape_cast %140 : vector<8xf32> to vector<8x1xf32>
    %142 = vector.broadcast %141 : vector<8x1xf32> to vector<8x8xf32>
    %143 = arith.divf %139, %142 : vector<8x8xf32>
    %cst_54 = arith.constant dense<0.000000e+00> : vector<8x8xf32>
    %144 = tpu.matmul %143, %129, %cst_54 {dimension_numbers = #tpu.dot_dimension_numbers<[1], [0], [0], [1], [0, 0, 1, 1], [], []>, precision = #tpu.contract_precision<fp32>} : vector<8x8xf32>, vector<8x8xf32>, vector<8x8xf32> -> vector<8x8xf32>
    %c8_55 = arith.constant 8 : index
    %c16_56 = arith.constant 16 : index
    %145 = vector.load %arg16[%c8_55, %c16_56] : memref<16x32xf32, #tpu.memory_space<vmem>>, vector<8x8xf32>
    tpu.vector_store %arg16[%c8_55, %c16_56], %144 {strides = array<i32>} : memref<16x32xf32, #tpu.memory_space<vmem>>, vector<8x8xf32>,
    %146 = vector.extract_strided_slice %10 {offsets = [8, 24], sizes = [8, 8], strides = [1, 1]} : vector<16x96xf32> to vector<8x8xf32>
    %147 = vector.extract_strided_slice %10 {offsets = [8, 56], sizes = [8, 8], strides = [1, 1]} : vector<16x96xf32> to vector<8x8xf32>
    %148 = vector.extract_strided_slice %10 {offsets = [8, 88], sizes = [8, 8], strides = [1, 1]} : vector<16x96xf32> to vector<8x8xf32>
    "tpu.trace_start"() <{level = 10 : i32, message = "qd,kd->qk"}> : () -> ()
    %cst_57 = arith.constant dense<0.000000e+00> : vector<8x8xf32>
    %149 = tpu.matmul %146, %147, %cst_57 {dimension_numbers = #tpu.dot_dimension_numbers<[1], [1], [0], [0], [0, 0, 1, 0], [], []>, precision = #tpu.contract_precision<fp32>} : vector<8x8xf32>, vector<8x8xf32>, vector<8x8xf32> -> vector<8x8xf32>
    "tpu.trace_stop"() : () -> ()
    %cst_58 = arith.constant 0.353553385 : f32
    %150 = vector.broadcast %cst_58 : f32 to vector<8x8xf32>
    %151 = arith.mulf %149, %150 : vector<8x8xf32>
    %152 = vector.broadcast %88 : vector<1x8xf32> to vector<8x8xf32>
    %153 = arith.addf %151, %152 : vector<8x8xf32>
    %cst_59 = arith.constant dense<0xFF800000> : vector<8xf32>
    %154 = vector.multi_reduction <maximumf>, %153, %cst_59 [1] : vector<8x8xf32> to vector<8xf32>
    %155 = vector.shape_cast %154 : vector<8xf32> to vector<8x1xf32>
    %156 = vector.broadcast %155 : vector<8x1xf32> to vector<8x8xf32>
    %157 = arith.subf %153, %156 : vector<8x8xf32>
    %158 = math.exp %157 : vector<8x8xf32>
    %cst_60 = arith.constant dense<0.000000e+00> : vector<8xf32>
    %159 = vector.multi_reduction <add>, %158, %cst_60 [1] : vector<8x8xf32> to vector<8xf32>
    %160 = vector.shape_cast %159 : vector<8xf32> to vector<8x1xf32>
    %161 = vector.broadcast %160 : vector<8x1xf32> to vector<8x8xf32>
    %162 = arith.divf %158, %161 : vector<8x8xf32>
    %cst_61 = arith.constant dense<0.000000e+00> : vector<8x8xf32>
    %163 = tpu.matmul %162, %148, %cst_61 {dimension_numbers = #tpu.dot_dimension_numbers<[1], [0], [0], [1], [0, 0, 1, 1], [], []>, precision = #tpu.contract_precision<fp32>} : vector<8x8xf32>, vector<8x8xf32>, vector<8x8xf32> -> vector<8x8xf32>
    %c8_62 = arith.constant 8 : index
    %c24_63 = arith.constant 24 : index
    %164 = vector.load %arg16[%c8_62, %c24_63] : memref<16x32xf32, #tpu.memory_space<vmem>>, vector<8x8xf32>
    tpu.vector_store %arg16[%c8_62, %c24_63], %163 {strides = array<i32>} : memref<16x32xf32, #tpu.memory_space<vmem>>, vector<8x8xf32>,
    %c0_64 = arith.constant 0 : index
    %c0_65 = arith.constant 0 : index
    %165 = vector.load %arg16[%c0_64, %c0_65] : memref<16x32xf32, #tpu.memory_space<vmem>>, vector<16x32xf32>
    %c0_66 = arith.constant 0 : index
    %c0_67 = arith.constant 0 : index
    %c0_68 = arith.constant 0 : index
    %166 = vector.load %arg5[%c0_66, %c0_67, %c0_68] : memref<1x32x32xf32, #tpu.memory_space<vmem>>, vector<1x32x32xf32>
    %167 = vector.shape_cast %166 : vector<1x32x32xf32> to vector<32x32xf32>
    %cst_69 = arith.constant dense<0.000000e+00> : vector<16x32xf32>
    %168 = tpu.matmul %165, %167, %cst_69 {dimension_numbers = #tpu.dot_dimension_numbers<[1], [0], [0], [1], [0, 0, 1, 1], [], []>, precision = #tpu.contract_precision<fp32>} : vector<16x32xf32>, vector<32x32xf32>, vector<16x32xf32> -> vector<16x32xf32>
    %c0_70 = arith.constant 0 : index
    %c0_71 = arith.constant 0 : index
    %c0_72 = arith.constant 0 : index
    %169 = vector.load %arg6[%c0_70, %c0_71, %c0_72] : memref<1x1x32xf32, #tpu.memory_space<vmem>>, vector<1x1x32xf32>
    %170 = vector.shape_cast %169 : vector<1x1x32xf32> to vector<1x32xf32>
    %171 = vector.broadcast %170 : vector<1x32xf32> to vector<16x32xf32>
    %172 = arith.addf %168, %171 : vector<16x32xf32>
    %173 = arith.addf %172, %3 : vector<16x32xf32>
    %c0_73 = arith.constant 0 : index
    %c0_74 = arith.constant 0 : index
    %c0_75 = arith.constant 0 : index
    %174 = vector.load %arg7[%c0_73, %c0_74, %c0_75] : memref<1x1x32xf32, #tpu.memory_space<vmem>>, vector<1x1x32xf32>
    %175 = vector.shape_cast %174 : vector<1x1x32xf32> to vector<1x32xf32>
    %c0_76 = arith.constant 0 : index
    %c0_77 = arith.constant 0 : index
    %c0_78 = arith.constant 0 : index
    %176 = vector.load %arg8[%c0_76, %c0_77, %c0_78] : memref<1x1x32xf32, #tpu.memory_space<vmem>>, vector<1x1x32xf32>
    %177 = vector.shape_cast %176 : vector<1x1x32xf32> to vector<1x32xf32>
    %cst_79 = arith.constant dense<0.000000e+00> : vector<16xf32>
    %178 = vector.multi_reduction <add>, %173, %cst_79 [1] : vector<16x32xf32> to vector<16xf32>
    %179 = vector.shape_cast %178 : vector<16xf32> to vector<16x1xf32>
    %cst_80 = arith.constant 3.200000e+01 : f32
    %180 = vector.broadcast %cst_80 : f32 to vector<16x1xf32>
    %181 = arith.divf %179, %180 : vector<16x1xf32>
    %182 = vector.broadcast %181 : vector<16x1xf32> to vector<16x32xf32>
    %183 = arith.subf %173, %182 : vector<16x32xf32>
    %184 = arith.mulf %183, %183 : vector<16x32xf32>
    %cst_81 = arith.constant dense<0.000000e+00> : vector<16xf32>
    %185 = vector.multi_reduction <add>, %184, %cst_81 [1] : vector<16x32xf32> to vector<16xf32>
    %186 = vector.shape_cast %185 : vector<16xf32> to vector<16x1xf32>
    %cst_82 = arith.constant 3.200000e+01 : f32
    %187 = vector.broadcast %cst_82 : f32 to vector<16x1xf32>
    %188 = arith.divf %186, %187 : vector<16x1xf32>
    %cst_83 = arith.constant 9.99999996E-13 : f32
    %189 = vector.broadcast %cst_83 : f32 to vector<16x1xf32>
    %190 = arith.addf %188, %189 : vector<16x1xf32>
    %191 = math.rsqrt %190 : vector<16x1xf32>
    %192 = vector.broadcast %191 : vector<16x1xf32> to vector<16x32xf32>
    %193 = arith.mulf %183, %192 : vector<16x32xf32>
    %194 = vector.broadcast %175 : vector<1x32xf32> to vector<16x32xf32>
    %195 = arith.mulf %193, %194 : vector<16x32xf32>
    %196 = vector.broadcast %177 : vector<1x32xf32> to vector<16x32xf32>
    %197 = arith.addf %195, %196 : vector<16x32xf32>
    %c0_84 = arith.constant 0 : index
    %c0_85 = arith.constant 0 : index
    %c0_86 = arith.constant 0 : index
    %198 = vector.load %arg9[%c0_84, %c0_85, %c0_86] : memref<1x32x128xf32, #tpu.memory_space<vmem>>, vector<1x32x128xf32>
    %199 = vector.shape_cast %198 : vector<1x32x128xf32> to vector<32x128xf32>
    %cst_87 = arith.constant dense<0.000000e+00> : vector<16x128xf32>
    %200 = tpu.matmul %197, %199, %cst_87 {dimension_numbers = #tpu.dot_dimension_numbers<[1], [0], [0], [1], [0, 0, 1, 1], [], []>, precision = #tpu.contract_precision<fp32>} : vector<16x32xf32>, vector<32x128xf32>, vector<16x128xf32> -> vector<16x128xf32>
    %c0_88 = arith.constant 0 : index
    %c0_89 = arith.constant 0 : index
    %c0_90 = arith.constant 0 : index
    %201 = vector.load %arg10[%c0_88, %c0_89, %c0_90] : memref<1x1x128xf32, #tpu.memory_space<vmem>>, vector<1x1x128xf32>
    %202 = vector.shape_cast %201 : vector<1x1x128xf32> to vector<1x128xf32>
    %203 = vector.broadcast %202 : vector<1x128xf32> to vector<16x128xf32>
    %204 = arith.addf %200, %203 : vector<16x128xf32>
    %cst_91 = arith.constant 5.000000e-01 : f32
    %205 = vector.broadcast %cst_91 : f32 to vector<16x128xf32>
    %206 = arith.mulf %205, %204 : vector<16x128xf32>
    %cst_92 = arith.constant 0.707106769 : f32
    %207 = vector.broadcast %cst_92 : f32 to vector<16x128xf32>
    %208 = arith.mulf %204, %207 : vector<16x128xf32>
    %209 = math.absf %208 : vector<16x128xf32>
    %cst_93 = arith.constant 0.327591091 : f32
    %210 = vector.broadcast %cst_93 : f32 to vector<16x128xf32>
    %211 = arith.mulf %210, %209 : vector<16x128xf32>
    %cst_94 = arith.constant 1.000000e+00 : f32
    %212 = vector.broadcast %cst_94 : f32 to vector<16x128xf32>
    %213 = arith.addf %212, %211 : vector<16x128xf32>
    %cst_95 = arith.constant 1.000000e+00 : f32
    %214 = vector.broadcast %cst_95 : f32 to vector<16x128xf32>
    %215 = arith.divf %214, %213 : vector<16x128xf32>
    %cst_96 = arith.constant 1.06140542 : f32
    %216 = vector.broadcast %cst_96 : f32 to vector<16x128xf32>
    %217 = arith.mulf %216, %215 : vector<16x128xf32>
    %cst_97 = arith.constant -1.45315206 : f32
    %218 = vector.broadcast %cst_97 : f32 to vector<16x128xf32>
    %219 = arith.addf %217, %218 : vector<16x128xf32>
    %220 = arith.mulf %219, %215 : vector<16x128xf32>
    %cst_98 = arith.constant 1.42141378 : f32
    %221 = vector.broadcast %cst_98 : f32 to vector<16x128xf32>
    %222 = arith.addf %220, %221 : vector<16x128xf32>
    %223 = arith.mulf %222, %215 : vector<16x128xf32>
    %cst_99 = arith.constant -0.284496725 : f32
    %224 = vector.broadcast %cst_99 : f32 to vector<16x128xf32>
    %225 = arith.addf %223, %224 : vector<16x128xf32>
    %226 = arith.mulf %225, %215 : vector<16x128xf32>
    %cst_100 = arith.constant 0.254829586 : f32
    %227 = vector.broadcast %cst_100 : f32 to vector<16x128xf32>
    %228 = arith.addf %226, %227 : vector<16x128xf32>
    %229 = arith.mulf %228, %215 : vector<16x128xf32>
    %cst_101 = arith.constant 0.000000e+00 : f32
    %230 = vector.broadcast %cst_101 : f32 to vector<16x128xf32>
    %231 = arith.subf %230, %209 : vector<16x128xf32>
    %232 = arith.mulf %231, %209 : vector<16x128xf32>
    %233 = math.exp %232 : vector<16x128xf32>
    %234 = arith.mulf %229, %233 : vector<16x128xf32>
    %cst_102 = arith.constant 1.000000e+00 : f32
    %235 = vector.broadcast %cst_102 : f32 to vector<16x128xf32>
    %236 = arith.subf %235, %234 : vector<16x128xf32>
    %cst_103 = arith.constant 0.000000e+00 : f32
    %237 = vector.broadcast %cst_103 : f32 to vector<16x128xf32>
    %238 = arith.cmpf oge, %208, %237 : vector<16x128xf32>
    %cst_104 = arith.constant 0.000000e+00 : f32
    %239 = vector.broadcast %cst_104 : f32 to vector<16x128xf32>
    %240 = arith.subf %239, %236 : vector<16x128xf32>
    %241 = arith.select %238, %236, %240 : vector<16x128xi1>, vector<16x128xf32>
    %cst_105 = arith.constant 1.000000e+00 : f32
    %242 = vector.broadcast %cst_105 : f32 to vector<16x128xf32>
    %243 = arith.addf %242, %241 : vector<16x128xf32>
    %244 = arith.mulf %206, %243 : vector<16x128xf32>
    %c0_106 = arith.constant 0 : index
    %c0_107 = arith.constant 0 : index
    %c0_108 = arith.constant 0 : index
    %245 = vector.load %arg11[%c0_106, %c0_107, %c0_108] : memref<1x128x32xf32, #tpu.memory_space<vmem>>, vector<1x128x32xf32>
    %246 = vector.shape_cast %245 : vector<1x128x32xf32> to vector<128x32xf32>
    %cst_109 = arith.constant dense<0.000000e+00> : vector<16x32xf32>
    %247 = tpu.matmul %244, %246, %cst_109 {dimension_numbers = #tpu.dot_dimension_numbers<[1], [0], [0], [1], [0, 0, 1, 1], [], []>, precision = #tpu.contract_precision<fp32>} : vector<16x128xf32>, vector<128x32xf32>, vector<16x32xf32> -> vector<16x32xf32>
    %c0_110 = arith.constant 0 : index
    %c0_111 = arith.constant 0 : index
    %c0_112 = arith.constant 0 : index
    %248 = vector.load %arg12[%c0_110, %c0_111, %c0_112] : memref<1x1x32xf32, #tpu.memory_space<vmem>>, vector<1x1x32xf32>
    %249 = vector.shape_cast %248 : vector<1x1x32xf32> to vector<1x32xf32>
    %250 = vector.broadcast %249 : vector<1x32xf32> to vector<16x32xf32>
    %251 = arith.addf %247, %250 : vector<16x32xf32>
    %252 = arith.addf %251, %197 : vector<16x32xf32>
    %c0_113 = arith.constant 0 : index
    %c0_114 = arith.constant 0 : index
    %c0_115 = arith.constant 0 : index
    %253 = vector.load %arg13[%c0_113, %c0_114, %c0_115] : memref<1x1x32xf32, #tpu.memory_space<vmem>>, vector<1x1x32xf32>
    %254 = vector.shape_cast %253 : vector<1x1x32xf32> to vector<1x32xf32>
    %c0_116 = arith.constant 0 : index
    %c0_117 = arith.constant 0 : index
    %c0_118 = arith.constant 0 : index
    %255 = vector.load %arg14[%c0_116, %c0_117, %c0_118] : memref<1x1x32xf32, #tpu.memory_space<vmem>>, vector<1x1x32xf32>
    %256 = vector.shape_cast %255 : vector<1x1x32xf32> to vector<1x32xf32>
    %cst_119 = arith.constant dense<0.000000e+00> : vector<16xf32>
    %257 = vector.multi_reduction <add>, %252, %cst_119 [1] : vector<16x32xf32> to vector<16xf32>
    %258 = vector.shape_cast %257 : vector<16xf32> to vector<16x1xf32>
    %cst_120 = arith.constant 3.200000e+01 : f32
    %259 = vector.broadcast %cst_120 : f32 to vector<16x1xf32>
    %260 = arith.divf %258, %259 : vector<16x1xf32>
    %261 = vector.broadcast %260 : vector<16x1xf32> to vector<16x32xf32>
    %262 = arith.subf %252, %261 : vector<16x32xf32>
    %263 = arith.mulf %262, %262 : vector<16x32xf32>
    %cst_121 = arith.constant dense<0.000000e+00> : vector<16xf32>
    %264 = vector.multi_reduction <add>, %263, %cst_121 [1] : vector<16x32xf32> to vector<16xf32>
    %265 = vector.shape_cast %264 : vector<16xf32> to vector<16x1xf32>
    %cst_122 = arith.constant 3.200000e+01 : f32
    %266 = vector.broadcast %cst_122 : f32 to vector<16x1xf32>
    %267 = arith.divf %265, %266 : vector<16x1xf32>
    %cst_123 = arith.constant 9.99999996E-13 : f32
    %268 = vector.broadcast %cst_123 : f32 to vector<16x1xf32>
    %269 = arith.addf %267, %268 : vector<16x1xf32>
    %270 = math.rsqrt %269 : vector<16x1xf32>
    %271 = vector.broadcast %270 : vector<16x1xf32> to vector<16x32xf32>
    %272 = arith.mulf %262, %271 : vector<16x32xf32>
    %273 = vector.broadcast %254 : vector<1x32xf32> to vector<16x32xf32>
    %274 = arith.mulf %272, %273 : vector<16x32xf32>
    %275 = vector.broadcast %256 : vector<1x32xf32> to vector<16x32xf32>
    %276 = arith.addf %274, %275 : vector<16x32xf32>
    %c0_124 = arith.constant 0 : index
    %c0_125 = arith.constant 0 : index
    %277 = vector.load %arg15[%c0_124, %c0_125] : memref<16x32xf32, #tpu.memory_space<vmem>>, vector<16x32xf32>
    tpu.vector_store %arg15[%c0_124, %c0_125], %276 {strides = array<i32>} : memref<16x32xf32, #tpu.memory_space<vmem>>, vector<16x32xf32>,
    return
  }
  func.func @transform_0(%arg0: i32) -> (i32, i32) {
    %c0_i32 = arith.constant 0 : i32
    %c0_i32_0 = arith.constant 0 : i32
    %c0_i32_1 = arith.constant 0 : i32
    return %c0_i32, %c0_i32_0 : i32, i32
  }
  func.func @transform_1(%arg0: i32) -> (i32, i32) {
    %c0_i32 = arith.constant 0 : i32
    %c0_i32_0 = arith.constant 0 : i32
    %c0_i32_1 = arith.constant 0 : i32
    return %c0_i32, %c0_i32_0 : i32, i32
  }
  func.func @transform_2(%arg0: i32) -> (i32, i32, i32) {
    %c0_i32 = arith.constant 0 : i32
    %c0_i32_0 = arith.constant 0 : i32
    %c0_i32_1 = arith.constant 0 : i32
    return %arg0, %c0_i32, %c0_i32_0 : i32, i32, i32
  }
  func.func @transform_3(%arg0: i32) -> (i32, i32, i32) {
    %c0_i32 = arith.constant 0 : i32
    %c0_i32_0 = arith.constant 0 : i32
    %c0_i32_1 = arith.constant 0 : i32
    return %arg0, %c0_i32, %c0_i32_0 : i32, i32, i32
  }
  func.func @transform_4(%arg0: i32) -> (i32, i32, i32) {
    %c0_i32 = arith.constant 0 : i32
    %c0_i32_0 = arith.constant 0 : i32
    %c0_i32_1 = arith.constant 0 : i32
    return %arg0, %c0_i32, %c0_i32_0 : i32, i32, i32
  }
  func.func @transform_5(%arg0: i32) -> (i32, i32, i32) {
    %c0_i32 = arith.constant 0 : i32
    %c0_i32_0 = arith.constant 0 : i32
    %c0_i32_1 = arith.constant 0 : i32
    return %arg0, %c0_i32, %c0_i32_0 : i32, i32, i32
  }
  func.func @transform_6(%arg0: i32) -> (i32, i32, i32) {
    %c0_i32 = arith.constant 0 : i32
    %c0_i32_0 = arith.constant 0 : i32
    %c0_i32_1 = arith.constant 0 : i32
    return %arg0, %c0_i32, %c0_i32_0 : i32, i32, i32
  }
  func.func @transform_7(%arg0: i32) -> (i32, i32, i32) {
    %c0_i32 = arith.constant 0 : i32
    %c0_i32_0 = arith.constant 0 : i32
    %c0_i32_1 = arith.constant 0 : i32
    return %arg0, %c0_i32, %c0_i32_0 : i32, i32, i32
  }
  func.func @transform_8(%arg0: i32) -> (i32, i32, i32) {
    %c0_i32 = arith.constant 0 : i32
    %c0_i32_0 = arith.constant 0 : i32
    %c0_i32_1 = arith.constant 0 : i32
    return %arg0, %c0_i32, %c0_i32_0 : i32, i32, i32
  }
  func.func @transform_9(%arg0: i32) -> (i32, i32, i32) {
    %c0_i32 = arith.constant 0 : i32
    %c0_i32_0 = arith.constant 0 : i32
    %c0_i32_1 = arith.constant 0 : i32
    return %arg0, %c0_i32, %c0_i32_0 : i32, i32, i32
  }
  func.func @transform_10(%arg0: i32) -> (i32, i32, i32) {
    %c0_i32 = arith.constant 0 : i32
    %c0_i32_0 = arith.constant 0 : i32
    %c0_i32_1 = arith.constant 0 : i32
    return %arg0, %c0_i32, %c0_i32_0 : i32, i32, i32
  }
  func.func @transform_11(%arg0: i32) -> (i32, i32, i32) {
    %c0_i32 = arith.constant 0 : i32
    %c0_i32_0 = arith.constant 0 : i32
    %c0_i32_1 = arith.constant 0 : i32
    return %arg0, %c0_i32, %c0_i32_0 : i32, i32, i32
  }
  func.func @transform_12(%arg0: i32) -> (i32, i32, i32) {
    %c0_i32 = arith.constant 0 : i32
    %c0_i32_0 = arith.constant 0 : i32
    %c0_i32_1 = arith.constant 0 : i32
    return %arg0, %c0_i32, %c0_i32_0 : i32, i32, i32
  }
  func.func @transform_13(%arg0: i32) -> (i32, i32, i32) {
    %c0_i32 = arith.constant 0 : i32
    %c0_i32_0 = arith.constant 0 : i32
    %c0_i32_1 = arith.constant 0 : i32
    return %arg0, %c0_i32, %c0_i32_0 : i32, i32, i32
  }
  func.func @transform_14(%arg0: i32) -> (i32, i32) {
    %c0_i32 = arith.constant 0 : i32
    %c0_i32_0 = arith.constant 0 : i32
    %c0_i32_1 = arith.constant 0 : i32
    return %c0_i32, %c0_i32_0 : i32, i32
  }
}

</mosaic_0001>

<llo_original>
// kernel: tpu_custom_call.1
$region0: #{tpu_custom_call.1}
  #allocation0 [shape = 'u32[]', space=smem, size = 0x4, offset = 0x4, fixed_abs, tag = 'smem constant byte address 0x4 - core index']
  #allocation1 [shape = 'u32[144,128]{1,0:T(1,128)}', space=vmem, size = 0x12000, scoped, tag = 'internal scratch']
  #allocation2 [shape = 'f32[16,32]{1,0:T(8,128)}', space=vmem, size = 0x2000, scoped, tag = 'scratch operand']
  %s0 = inlined_call_operand.vmem [shape: f32[16,32], index: 0, kind: input, shape index: {}]
  %s1 = inlined_call_operand.vmem [shape: f32[2,8], index: 1, kind: input, shape index: {}]
  %s2 = inlined_call_operand.vmem [shape: f32[2,32,96], index: 2, kind: input, shape index: {}]
  %s3 = inlined_call_operand.vmem [shape: f32[2,1,96], index: 3, kind: input, shape index: {}]
  %s4 = inlined_call_operand.vmem [shape: f32[2,32,32], index: 4, kind: input, shape index: {}]
  %s5 = inlined_call_operand.vmem [shape: f32[2,1,32], index: 5, kind: input, shape index: {}]
  %s6 = inlined_call_operand.vmem [shape: f32[2,1,32], index: 6, kind: input, shape index: {}]
  %s7 = inlined_call_operand.vmem [shape: f32[2,1,32], index: 7, kind: input, shape index: {}]
  %s8 = inlined_call_operand.vmem [shape: f32[2,32,128], index: 8, kind: input, shape index: {}]
  %s9 = inlined_call_operand.vmem [shape: f32[2,1,128], index: 9, kind: input, shape index: {}]
  %s10 = inlined_call_operand.vmem [shape: f32[2,128,32], index: 10, kind: input, shape index: {}]
  %s11 = inlined_call_operand.vmem [shape: f32[2,1,32], index: 11, kind: input, shape index: {}]
  %s12 = inlined_call_operand.vmem [shape: f32[2,1,32], index: 12, kind: input, shape index: {}]
  %s13 = inlined_call_operand.vmem [shape: f32[2,1,32], index: 13, kind: input, shape index: {}]
  %s14 = inlined_call_operand.hbm [shape: f32[16,32], index: 14, kind: output, shape index: {}]
  %s15 = sld [smem:[#allocation0]]
  $region93: #{tpu_custom_call.1} parent=0
    _
  %s17 = ssub.s32 1, %s15
  %s18 = scalar_select 0, %s17, %s15
  $region1: #{tpu_custom_call.1} parent=0
    #allocation3 [shape = 'u8[8192]{0}', space=vmem, size = 0x2000, scoped, tag = 'output window, operand 0, single buffered']
    #allocation4 [shape = 's32[2]{0}', space=sflag, size = 0x8, scoped, tag = 'scoped memory for tpu_custom_call.1']
    %19 = vsyncpa [#allocation4], 0
    loop: start=0, step=1, limit=4
    $region2: #{tpu_custom_call.1} parent=1 // loop_pre_header
      _
    $region3: #{tpu_custom_call.1} parent=1 // loop_header
      %s21 = sphi 0, %s25
      %p22 = scmp.ge.s32.totalorder %s21, 4
      %s29 = sphi 0, %s29
      %s31 = sphi 0, %s29
      %s32 = sphi 0, %s31
      %s46 = sphi 0, %s32
      %s50 = sphi 0, %s50
      %s52 = sphi 0, %s50
      %s53 = sphi 0, %s52
      %s67 = sphi 0, %s53
      %s73 = sphi 0, %s75
      %s76 = sphi 0, %s73
      %s77 = sphi 0, %s76
      %s93 = sphi 0, %s77
      %s99 = sphi 0, %s101
      %s102 = sphi 0, %s99
      %s103 = sphi 0, %s102
      %s119 = sphi 0, %s103
      %s125 = sphi 0, %s127
      %s128 = sphi 0, %s125
      %s129 = sphi 0, %s128
      %s145 = sphi 0, %s129
      %s151 = sphi 0, %s153
      %s154 = sphi 0, %s151
      %s155 = sphi 0, %s154
      %s171 = sphi 0, %s155
      %s177 = sphi 0, %s179
      %s180 = sphi 0, %s177
      %s181 = sphi 0, %s180
      %s197 = sphi 0, %s181
      %s203 = sphi 0, %s205
      %s206 = sphi 0, %s203
      %s207 = sphi 0, %s206
      %s223 = sphi 0, %s207
      %s229 = sphi 0, %s231
      %s232 = sphi 0, %s229
      %s233 = sphi 0, %s232
      %s249 = sphi 0, %s233
      %s255 = sphi 0, %s257
      %s258 = sphi 0, %s255
      %s259 = sphi 0, %s258
      %s275 = sphi 0, %s259
      %s281 = sphi 0, %s283
      %s284 = sphi 0, %s281
      %s285 = sphi 0, %s284
      %s301 = sphi 0, %s285
      %s307 = sphi 0, %s309
      %s310 = sphi 0, %s307
      %s311 = sphi 0, %s310
      %s327 = sphi 0, %s311
      %s333 = sphi 0, %s335
      %s336 = sphi 0, %s333
      %s337 = sphi 0, %s336
      %s353 = sphi 0, %s337
      %s359 = sphi 0, %s361
      %s362 = sphi 0, %s359
      %s363 = sphi 0, %s362
      %s379 = sphi 0, %s363
      %s383 = sphi 0, %s383
      %s385 = sphi 0, %s383
      %s386 = sphi 0, %s385
      %s400 = sphi 0, %s386
    $region4: #{tpu_custom_call.1} parent=1 // loop_header_branch
      %24 = sbr.rel (%p22) target = $region8
    $region5: #{tpu_custom_call.1} parent=1 // loop_body
      %s26 = ssub.s32 %s21, 1
      %s27 = ssub.s32 %s21, 2
      %s28 = sadd.s32 %s21, 1
      %s30 = sadd.s32 %s29, 1
      %p33 = scmp.eq.s32.totalorder %s21, 1
      %p34 = scmp.ne.s32.totalorder %s29, %s31
      %p35 = scmp.eq.s32.totalorder %s21, 0
      %p36 = por %p34, %p35
      %p37 = scmp.ne.s32.totalorder %s29, %s31
      %p38 = scmp.eq.s32.totalorder %s26, 1
      %p39 = por %p37, %p38
      %p40 = scmp.ne.s32.totalorder %s31, %s32
      %p41 = scmp.eq.s32.totalorder %s26, 0
      %p42 = por %p40, %p41
      %p43 = scmp.ne.s32.totalorder %s31, %s32
      %p44 = scmp.eq.s32.totalorder %s27, 1
      %p45 = por %p43, %p44
      %p47 = scmp.ne.s32.totalorder %s32, %s46
      %p48 = scmp.eq.s32.totalorder %s27, 0
      %p49 = por %p47, %p48
      %s51 = sadd.s32 %s50, 1
      %p54 = scmp.eq.s32.totalorder %s21, 1
      %p55 = scmp.ne.s32.totalorder %s50, %s52
      %p56 = scmp.eq.s32.totalorder %s21, 0
      %p57 = por %p55, %p56
      %p58 = scmp.ne.s32.totalorder %s50, %s52
      %p59 = scmp.eq.s32.totalorder %s26, 1
      %p60 = por %p58, %p59
      %p61 = scmp.ne.s32.totalorder %s52, %s53
      %p62 = scmp.eq.s32.totalorder %s26, 0
      %p63 = por %p61, %p62
      %p64 = scmp.ne.s32.totalorder %s52, %s53
      %p65 = scmp.eq.s32.totalorder %s27, 1
      %p66 = por %p64, %p65
      %p68 = scmp.ne.s32.totalorder %s53, %s67
      %p69 = scmp.eq.s32.totalorder %s27, 0
      %p70 = por %p68, %p69
      %s71 = ssub.s32 %s21, %s28
      %p72 = scmp.eq.s32.totalorder %s71, 0
      %s74 = sadd.s32 %s73, 1
      %s75 = scalar_select %p72, %s73, %s74
      %p78 = pneg %p72
      %p79 = scmp.eq.s32.totalorder %s21, 1
      %p80 = por %p78, %p79
      %p81 = scmp.ne.s32.totalorder %s73, %s76
      %p82 = scmp.eq.s32.totalorder %s21, 0
      %p83 = por %p81, %p82
      %p84 = scmp.ne.s32.totalorder %s73, %s76
      %p85 = scmp.eq.s32.totalorder %s26, 1
      %p86 = por %p84, %p85
      %p87 = scmp.ne.s32.totalorder %s76, %s77
      %p88 = scmp.eq.s32.totalorder %s26, 0
      %p89 = por %p87, %p88
      %p90 = scmp.ne.s32.totalorder %s76, %s77
      %p91 = scmp.eq.s32.totalorder %s27, 1
      %p92 = por %p90, %p91
      %p94 = scmp.ne.s32.totalorder %s77, %s93
      %p95 = scmp.eq.s32.totalorder %s27, 0
      %p96 = por %p94, %p95
      %s97 = ssub.s32 %s21, %s28
      %p98 = scmp.eq.s32.totalorder %s97, 0
      %s100 = sadd.s32 %s99, 1
      %s101 = scalar_select %p98, %s99, %s100
      %p104 = pneg %p98
      %p105 = scmp.eq.s32.totalorder %s21, 1
      %p106 = por %p104, %p105
      %p107 = scmp.ne.s32.totalorder %s99, %s102
      %p108 = scmp.eq.s32.totalorder %s21, 0
      %p109 = por %p107, %p108
      %p110 = scmp.ne.s32.totalorder %s99, %s102
      %p111 = scmp.eq.s32.totalorder %s26, 1
      %p112 = por %p110, %p111
      %p113 = scmp.ne.s32.totalorder %s102, %s103
      %p114 = scmp.eq.s32.totalorder %s26, 0
      %p115 = por %p113, %p114
      %p116 = scmp.ne.s32.totalorder %s102, %s103
      %p117 = scmp.eq.s32.totalorder %s27, 1
      %p118 = por %p116, %p117
      %p120 = scmp.ne.s32.totalorder %s103, %s119
      %p121 = scmp.eq.s32.totalorder %s27, 0
      %p122 = por %p120, %p121
      %s123 = ssub.s32 %s21, %s28
      %p124 = scmp.eq.s32.totalorder %s123, 0
      %s126 = sadd.s32 %s125, 1
      %s127 = scalar_select %p124, %s125, %s126
      %p130 = pneg %p124
      %p131 = scmp.eq.s32.totalorder %s21, 1
      %p132 = por %p130, %p131
      %p133 = scmp.ne.s32.totalorder %s125, %s128
      %p134 = scmp.eq.s32.totalorder %s21, 0
      %p135 = por %p133, %p134
      %p136 = scmp.ne.s32.totalorder %s125, %s128
      %p137 = scmp.eq.s32.totalorder %s26, 1
      %p138 = por %p136, %p137
      %p139 = scmp.ne.s32.totalorder %s128, %s129
      %p140 = scmp.eq.s32.totalorder %s26, 0
      %p141 = por %p139, %p140
      %p142 = scmp.ne.s32.totalorder %s128, %s129
      %p143 = scmp.eq.s32.totalorder %s27, 1
      %p144 = por %p142, %p143
      %p146 = scmp.ne.s32.totalorder %s129, %s145
      %p147 = scmp.eq.s32.totalorder %s27, 0
      %p148 = por %p146, %p147
      %s149 = ssub.s32 %s21, %s28
      %p150 = scmp.eq.s32.totalorder %s149, 0
      %s152 = sadd.s32 %s151, 1
      %s153 = scalar_select %p150, %s151, %s152
      %p156 = pneg %p150
      %p157 = scmp.eq.s32.totalorder %s21, 1
      %p158 = por %p156, %p157
      %p159 = scmp.ne.s32.totalorder %s151, %s154
      %p160 = scmp.eq.s32.totalorder %s21, 0
      %p161 = por %p159, %p160
      %p162 = scmp.ne.s32.totalorder %s151, %s154
      %p163 = scmp.eq.s32.totalorder %s26, 1
      %p164 = por %p162, %p163
      %p165 = scmp.ne.s32.totalorder %s154, %s155
      %p166 = scmp.eq.s32.totalorder %s26, 0
      %p167 = por %p165, %p166
      %p168 = scmp.ne.s32.totalorder %s154, %s155
      %p169 = scmp.eq.s32.totalorder %s27, 1
      %p170 = por %p168, %p169
      %p172 = scmp.ne.s32.totalorder %s155, %s171
      %p173 = scmp.eq.s32.totalorder %s27, 0
      %p174 = por %p172, %p173
      %s175 = ssub.s32 %s21, %s28
      %p176 = scmp.eq.s32.totalorder %s175, 0
      %s178 = sadd.s32 %s177, 1
      %s179 = scalar_select %p176, %s177, %s178
      %p182 = pneg %p176
      %p183 = scmp.eq.s32.totalorder %s21, 1
      %p184 = por %p182, %p183
      %p185 = scmp.ne.s32.totalorder %s177, %s180
      %p186 = scmp.eq.s32.totalorder %s21, 0
      %p187 = por %p185, %p186
      %p188 = scmp.ne.s32.totalorder %s177, %s180
      %p189 = scmp.eq.s32.totalorder %s26, 1
      %p190 = por %p188, %p189
      %p191 = scmp.ne.s32.totalorder %s180, %s181
      %p192 = scmp.eq.s32.totalorder %s26, 0
      %p193 = por %p191, %p192
      %p194 = scmp.ne.s32.totalorder %s180, %s181
      %p195 = scmp.eq.s32.totalorder %s27, 1
      %p196 = por %p194, %p195
      %p198 = scmp.ne.s32.totalorder %s181, %s197
      %p199 = scmp.eq.s32.totalorder %s27, 0
      %p200 = por %p198, %p199
      %s201 = ssub.s32 %s21, %s28
      %p202 = scmp.eq.s32.totalorder %s201, 0
      %s204 = sadd.s32 %s203, 1
      %s205 = scalar_select %p202, %s203, %s204
      %p208 = pneg %p202
      %p209 = scmp.eq.s32.totalorder %s21, 1
      %p210 = por %p208, %p209
      %p211 = scmp.ne.s32.totalorder %s203, %s206
      %p212 = scmp.eq.s32.totalorder %s21, 0
      %p213 = por %p211, %p212
      %p214 = scmp.ne.s32.totalorder %s203, %s206
      %p215 = scmp.eq.s32.totalorder %s26, 1
      %p216 = por %p214, %p215
      %p217 = scmp.ne.s32.totalorder %s206, %s207
      %p218 = scmp.eq.s32.totalorder %s26, 0
      %p219 = por %p217, %p218
      %p220 = scmp.ne.s32.totalorder %s206, %s207
      %p221 = scmp.eq.s32.totalorder %s27, 1
      %p222 = por %p220, %p221
      %p224 = scmp.ne.s32.totalorder %s207, %s223
      %p225 = scmp.eq.s32.totalorder %s27, 0
      %p226 = por %p224, %p225
      %s227 = ssub.s32 %s21, %s28
      %p228 = scmp.eq.s32.totalorder %s227, 0
      %s230 = sadd.s32 %s229, 1
      %s231 = scalar_select %p228, %s229, %s230
      %p234 = pneg %p228
      %p235 = scmp.eq.s32.totalorder %s21, 1
      %p236 = por %p234, %p235
      %p237 = scmp.ne.s32.totalorder %s229, %s232
      %p238 = scmp.eq.s32.totalorder %s21, 0
      %p239 = por %p237, %p238
      %p240 = scmp.ne.s32.totalorder %s229, %s232
      %p241 = scmp.eq.s32.totalorder %s26, 1
      %p242 = por %p240, %p241
      %p243 = scmp.ne.s32.totalorder %s232, %s233
      %p244 = scmp.eq.s32.totalorder %s26, 0
      %p245 = por %p243, %p244
      %p246 = scmp.ne.s32.totalorder %s232, %s233
      %p247 = scmp.eq.s32.totalorder %s27, 1
      %p248 = por %p246, %p247
      %p250 = scmp.ne.s32.totalorder %s233, %s249
      %p251 = scmp.eq.s32.totalorder %s27, 0
      %p252 = por %p250, %p251
      %s253 = ssub.s32 %s21, %s28
      %p254 = scmp.eq.s32.totalorder %s253, 0
      %s256 = sadd.s32 %s255, 1
      %s257 = scalar_select %p254, %s255, %s256
      %p260 = pneg %p254
      %p261 = scmp.eq.s32.totalorder %s21, 1
      %p262 = por %p260, %p261
      %p263 = scmp.ne.s32.totalorder %s255, %s258
      %p264 = scmp.eq.s32.totalorder %s21, 0
      %p265 = por %p263, %p264
      %p266 = scmp.ne.s32.totalorder %s255, %s258
      %p267 = scmp.eq.s32.totalorder %s26, 1
      %p268 = por %p266, %p267
      %p269 = scmp.ne.s32.totalorder %s258, %s259
      %p270 = scmp.eq.s32.totalorder %s26, 0
      %p271 = por %p269, %p270
      %p272 = scmp.ne.s32.totalorder %s258, %s259
      %p273 = scmp.eq.s32.totalorder %s27, 1
      %p274 = por %p272, %p273
      %p276 = scmp.ne.s32.totalorder %s259, %s275
      %p277 = scmp.eq.s32.totalorder %s27, 0
      %p278 = por %p276, %p277
      %s279 = ssub.s32 %s21, %s28
      %p280 = scmp.eq.s32.totalorder %s279, 0
      %s282 = sadd.s32 %s281, 1
      %s283 = scalar_select %p280, %s281, %s282
      %p286 = pneg %p280
      %p287 = scmp.eq.s32.totalorder %s21, 1
      %p288 = por %p286, %p287
      %p289 = scmp.ne.s32.totalorder %s281, %s284
      %p290 = scmp.eq.s32.totalorder %s21, 0
      %p291 = por %p289, %p290
      %p292 = scmp.ne.s32.totalorder %s281, %s284
      %p293 = scmp.eq.s32.totalorder %s26, 1
      %p294 = por %p292, %p293
      %p295 = scmp.ne.s32.totalorder %s284, %s285
      %p296 = scmp.eq.s32.totalorder %s26, 0
      %p297 = por %p295, %p296
      %p298 = scmp.ne.s32.totalorder %s284, %s285
      %p299 = scmp.eq.s32.totalorder %s27, 1
      %p300 = por %p298, %p299
      %p302 = scmp.ne.s32.totalorder %s285, %s301
      %p303 = scmp.eq.s32.totalorder %s27, 0
      %p304 = por %p302, %p303
      %s305 = ssub.s32 %s21, %s28
      %p306 = scmp.eq.s32.totalorder %s305, 0
      %s308 = sadd.s32 %s307, 1
      %s309 = scalar_select %p306, %s307, %s308
      %p312 = pneg %p306
      %p313 = scmp.eq.s32.totalorder %s21, 1
      %p314 = por %p312, %p313
      %p315 = scmp.ne.s32.totalorder %s307, %s310
      %p316 = scmp.eq.s32.totalorder %s21, 0
      %p317 = por %p315, %p316
      %p318 = scmp.ne.s32.totalorder %s307, %s310
      %p319 = scmp.eq.s32.totalorder %s26, 1
      %p320 = por %p318, %p319
      %p321 = scmp.ne.s32.totalorder %s310, %s311
      %p322 = scmp.eq.s32.totalorder %s26, 0
      %p323 = por %p321, %p322
      %p324 = scmp.ne.s32.totalorder %s310, %s311
      %p325 = scmp.eq.s32.totalorder %s27, 1
      %p326 = por %p324, %p325
      %p328 = scmp.ne.s32.totalorder %s311, %s327
      %p329 = scmp.eq.s32.totalorder %s27, 0
      %p330 = por %p328, %p329
      %s331 = ssub.s32 %s21, %s28
      %p332 = scmp.eq.s32.totalorder %s331, 0
      %s334 = sadd.s32 %s333, 1
      %s335 = scalar_select %p332, %s333, %s334
      %p338 = pneg %p332
      %p339 = scmp.eq.s32.totalorder %s21, 1
      %p340 = por %p338, %p339
      %p341 = scmp.ne.s32.totalorder %s333, %s336
      %p342 = scmp.eq.s32.totalorder %s21, 0
      %p343 = por %p341, %p342
      %p344 = scmp.ne.s32.totalorder %s333, %s336
      %p345 = scmp.eq.s32.totalorder %s26, 1
      %p346 = por %p344, %p345
      %p347 = scmp.ne.s32.totalorder %s336, %s337
      %p348 = scmp.eq.s32.totalorder %s26, 0
      %p349 = por %p347, %p348
      %p350 = scmp.ne.s32.totalorder %s336, %s337
      %p351 = scmp.eq.s32.totalorder %s27, 1
      %p352 = por %p350, %p351
      %p354 = scmp.ne.s32.totalorder %s337, %s353
      %p355 = scmp.eq.s32.totalorder %s27, 0
      %p356 = por %p354, %p355
      %s357 = ssub.s32 %s21, %s28
      %p358 = scmp.eq.s32.totalorder %s357, 0
      %s360 = sadd.s32 %s359, 1
      %s361 = scalar_select %p358, %s359, %s360
      %p364 = pneg %p358
      %p365 = scmp.eq.s32.totalorder %s21, 1
      %p366 = por %p364, %p365
      %p367 = scmp.ne.s32.totalorder %s359, %s362
      %p368 = scmp.eq.s32.totalorder %s21, 0
      %p369 = por %p367, %p368
      %p370 = scmp.ne.s32.totalorder %s359, %s362
      %p371 = scmp.eq.s32.totalorder %s26, 1
      %p372 = por %p370, %p371
      %p373 = scmp.ne.s32.totalorder %s362, %s363
      %p374 = scmp.eq.s32.totalorder %s26, 0
      %p375 = por %p373, %p374
      %p376 = scmp.ne.s32.totalorder %s362, %s363
      %p377 = scmp.eq.s32.totalorder %s27, 1
      %p378 = por %p376, %p377
      %p380 = scmp.ne.s32.totalorder %s363, %s379
      %p381 = scmp.eq.s32.totalorder %s27, 0
      %p382 = por %p380, %p381
      %s384 = sadd.s32 %s383, 1
      %p387 = scmp.eq.s32.totalorder %s21, 1
      %p388 = scmp.ne.s32.totalorder %s383, %s385
      %p389 = scmp.eq.s32.totalorder %s21, 0
      %p390 = por %p388, %p389
      %p391 = scmp.ne.s32.totalorder %s383, %s385
      %p392 = scmp.eq.s32.totalorder %s26, 1
      %p393 = por %p391, %p392
      %p394 = scmp.ne.s32.totalorder %s385, %s386
      %p395 = scmp.eq.s32.totalorder %s26, 0
      %p396 = por %p394, %p395
      %p397 = scmp.ne.s32.totalorder %s385, %s386
      %p398 = scmp.eq.s32.totalorder %s27, 1
      %p399 = por %p397, %p398
      %p401 = scmp.ne.s32.totalorder %s386, %s400
      %p402 = scmp.eq.s32.totalorder %s27, 0
      %p403 = por %p401, %p402
      %p404 = scmp.le.s32.totalorder 1, %s21
      %p405 = scmp.lt.s32.totalorder %s21, 3
      %p406 = pnand %p404, %p405
      %p407 = pneg %p406
      // Predicated region
      $region9: #{tpu_custom_call.1} parent=5 // pred_check
        _
      $region10: #{tpu_custom_call.1} parent=5 // pred_check_branch
        %409 = sbr.rel (%p406) target = $region12
      $region11: #{tpu_custom_call.1} parent=5 // pred_region
        %s410 = ssub.s32 %s21, 1
        // Predicated region
        $region13: #{tpu_custom_call.1} parent=11 // pred_check
          %p411 = pneg %p42
        $region14: #{tpu_custom_call.1} parent=11 // pred_check_branch
          %413 = sbr.rel (%p411) target = $region16
        $region15: #{tpu_custom_call.1} parent=11 // pred_region
          _
        $region16: #{tpu_custom_call.1} parent=11 // pred_fallthru
          _
        // Predicated region
        $region17: #{tpu_custom_call.1} parent=11 // pred_check
          %p414 = pneg %p63
        $region18: #{tpu_custom_call.1} parent=11 // pred_check_branch
          %416 = sbr.rel (%p414) target = $region20
        $region19: #{tpu_custom_call.1} parent=11 // pred_region
          _
        $region20: #{tpu_custom_call.1} parent=11 // pred_fallthru
          _
      $region12: #{tpu_custom_call.1} parent=5 // pred_fallthru
        _
      %p417 = scmp.lt.s32.totalorder %s21, 2
      // Predicated region
      $region21: #{tpu_custom_call.1} parent=5 // pred_check
        %p418 = pneg %p417
      $region22: #{tpu_custom_call.1} parent=5 // pred_check_branch
        %420 = sbr.rel (%p418) target = $region24
      $region23: #{tpu_custom_call.1} parent=5 // pred_region
        // Predicated region
        $region25: #{tpu_custom_call.1} parent=23 // pred_check
          %p421 = pneg %p83
        $region26: #{tpu_custom_call.1} parent=23 // pred_check_branch
          %423 = sbr.rel (%p421) target = $region28
        $region27: #{tpu_custom_call.1} parent=23 // pred_region
          %p424 = scmp.lt.s32.totalorder %s21, 1
          %s425 = scalar_select %p424, %s21, 1
          %s426 = smul.addr %s425, 4
          %s427 = smul.addr %s426, 8
          %s428 = scalar_lea.vmem %s2, %s427
        $region28: #{tpu_custom_call.1} parent=23 // pred_fallthru
          _
        // Predicated region
        $region29: #{tpu_custom_call.1} parent=23 // pred_check
          %p429 = pneg %p109
        $region30: #{tpu_custom_call.1} parent=23 // pred_check_branch
          %431 = sbr.rel (%p429) target = $region32
        $region31: #{tpu_custom_call.1} parent=23 // pred_region
          %p432 = scmp.lt.s32.totalorder %s21, 1
          %s433 = scalar_select %p432, %s21, 1
          %s434 = scalar_lea.vmem %s3, %s433
        $region32: #{tpu_custom_call.1} parent=23 // pred_fallthru
          _
        // Predicated region
        $region33: #{tpu_custom_call.1} parent=23 // pred_check
          %p435 = pneg %p135
        $region34: #{tpu_custom_call.1} parent=23 // pred_check_branch
          %437 = sbr.rel (%p435) target = $region36
        $region35: #{tpu_custom_call.1} parent=23 // pred_region
          %p438 = scmp.lt.s32.totalorder %s21, 1
          %s439 = scalar_select %p438, %s21, 1
          %s440 = smul.addr %s439, 4
          %s441 = smul.addr %s440, 8
          %s442 = scalar_lea.vmem %s4, %s441
        $region36: #{tpu_custom_call.1} parent=23 // pred_fallthru
          _
        // Predicated region
        $region37: #{tpu_custom_call.1} parent=23 // pred_check
          %p443 = pneg %p161
        $region38: #{tpu_custom_call.1} parent=23 // pred_check_branch
          %445 = sbr.rel (%p443) target = $region40
        $region39: #{tpu_custom_call.1} parent=23 // pred_region
          %p446 = scmp.lt.s32.totalorder %s21, 1
          %s447 = scalar_select %p446, %s21, 1
          %s448 = scalar_lea.vmem %s5, %s447
        $region40: #{tpu_custom_call.1} parent=23 // pred_fallthru
          _
        // Predicated region
        $region41: #{tpu_custom_call.1} parent=23 // pred_check
          %p449 = pneg %p187
        $region42: #{tpu_custom_call.1} parent=23 // pred_check_branch
          %451 = sbr.rel (%p449) target = $region44
        $region43: #{tpu_custom_call.1} parent=23 // pred_region
          %p452 = scmp.lt.s32.totalorder %s21, 1
          %s453 = scalar_select %p452, %s21, 1
          %s454 = scalar_lea.vmem %s6, %s453
        $region44: #{tpu_custom_call.1} parent=23 // pred_fallthru
          _
        // Predicated region
        $region45: #{tpu_custom_call.1} parent=23 // pred_check
          %p455 = pneg %p213
        $region46: #{tpu_custom_call.1} parent=23 // pred_check_branch
          %457 = sbr.rel (%p455) target = $region48
        $region47: #{tpu_custom_call.1} parent=23 // pred_region
          %p458 = scmp.lt.s32.totalorder %s21, 1
          %s459 = scalar_select %p458, %s21, 1
          %s460 = scalar_lea.vmem %s7, %s459
        $region48: #{tpu_custom_call.1} parent=23 // pred_fallthru
          _
        // Predicated region
        $region49: #{tpu_custom_call.1} parent=23 // pred_check
          %p461 = pneg %p239
        $region50: #{tpu_custom_call.1} parent=23 // pred_check_branch
          %463 = sbr.rel (%p461) target = $region52
        $region51: #{tpu_custom_call.1} parent=23 // pred_region
          %p464 = scmp.lt.s32.totalorder %s21, 1
          %s465 = scalar_select %p464, %s21, 1
          %s466 = smul.addr %s465, 4
          %s467 = smul.addr %s466, 8
          %s468 = scalar_lea.vmem %s8, %s467
        $region52: #{tpu_custom_call.1} parent=23 // pred_fallthru
          _
        // Predicated region
        $region53: #{tpu_custom_call.1} parent=23 // pred_check
          %p469 = pneg %p265
        $region54: #{tpu_custom_call.1} parent=23 // pred_check_branch
          %471 = sbr.rel (%p469) target = $region56
        $region55: #{tpu_custom_call.1} parent=23 // pred_region
          %p472 = scmp.lt.s32.totalorder %s21, 1
          %s473 = scalar_select %p472, %s21, 1
          %s474 = scalar_lea.vmem %s9, %s473
        $region56: #{tpu_custom_call.1} parent=23 // pred_fallthru
          _
        // Predicated region
        $region57: #{tpu_custom_call.1} parent=23 // pred_check
          %p475 = pneg %p291
        $region58: #{tpu_custom_call.1} parent=23 // pred_check_branch
          %477 = sbr.rel (%p475) target = $region60
        $region59: #{tpu_custom_call.1} parent=23 // pred_region
          %p478 = scmp.lt.s32.totalorder %s21, 1
          %s479 = scalar_select %p478, %s21, 1
          %s480 = smul.addr %s479, 16
          %s481 = smul.addr %s480, 8
          %s482 = scalar_lea.vmem %s10, %s481
        $region60: #{tpu_custom_call.1} parent=23 // pred_fallthru
          _
        // Predicated region
        $region61: #{tpu_custom_call.1} parent=23 // pred_check
          %p483 = pneg %p317
        $region62: #{tpu_custom_call.1} parent=23 // pred_check_branch
          %485 = sbr.rel (%p483) target = $region64
        $region63: #{tpu_custom_call.1} parent=23 // pred_region
          %p486 = scmp.lt.s32.totalorder %s21, 1
          %s487 = scalar_select %p486, %s21, 1
          %s488 = scalar_lea.vmem %s11, %s487
        $region64: #{tpu_custom_call.1} parent=23 // pred_fallthru
          _
        // Predicated region
        $region65: #{tpu_custom_call.1} parent=23 // pred_check
          %p489 = pneg %p343
        $region66: #{tpu_custom_call.1} parent=23 // pred_check_branch
          %491 = sbr.rel (%p489) target = $region68
        $region67: #{tpu_custom_call.1} parent=23 // pred_region
          %p492 = scmp.lt.s32.totalorder %s21, 1
          %s493 = scalar_select %p492, %s21, 1
          %s494 = scalar_lea.vmem %s12, %s493
        $region68: #{tpu_custom_call.1} parent=23 // pred_fallthru
          _
        // Predicated region
        $region69: #{tpu_custom_call.1} parent=23 // pred_check
          %p495 = pneg %p369
        $region70: #{tpu_custom_call.1} parent=23 // pred_check_branch
          %497 = sbr.rel (%p495) target = $region72
        $region71: #{tpu_custom_call.1} parent=23 // pred_region
          %p498 = scmp.lt.s32.totalorder %s21, 1
          %s499 = scalar_select %p498, %s21, 1
          %s500 = scalar_lea.vmem %s13, %s499
        $region72: #{tpu_custom_call.1} parent=23 // pred_fallthru
          _
      $region24: #{tpu_custom_call.1} parent=5 // pred_fallthru
        _
      %p501 = scmp.le.s32.totalorder 1, %s21
      %p502 = scmp.lt.s32.totalorder %s21, 3
      %p503 = pnand %p501, %p502
      %p504 = pneg %p503
      // Predicated region
      $region73: #{tpu_custom_call.1} parent=5 // pred_check
        _
      $region74: #{tpu_custom_call.1} parent=5 // pred_check_branch
        %506 = sbr.rel (%p503) target = $region76
      $region75: #{tpu_custom_call.1} parent=5 // pred_region
        %s507 = ssub.s32 %s21, 1
        %p508 = pneg %p42
        %p509 = pneg %p39
        %p510 = pneg %p63
        %p511 = pneg %p60
        %p512 = scmp.lt.s32.totalorder %s26, 1
        %s513 = scalar_select %p512, %s26, 1
        %s514 = smul.addr %s513, 4
        %s515 = smul.addr %s514, 8
        %s516 = scalar_lea.vmem %s2, %s515
        %p517 = pneg %p89
        %p518 = pneg %p86
        %p519 = scmp.lt.s32.totalorder %s26, 1
        %s520 = scalar_select %p519, %s26, 1
        %s521 = scalar_lea.vmem %s3, %s520
        %p522 = pneg %p115
        %p523 = pneg %p112
        %p524 = scmp.lt.s32.totalorder %s26, 1
        %s525 = scalar_select %p524, %s26, 1
        %s526 = smul.addr %s525, 4
        %s527 = smul.addr %s526, 8
        %s528 = scalar_lea.vmem %s4, %s527
        %p529 = pneg %p141
        %p530 = pneg %p138
        %p531 = scmp.lt.s32.totalorder %s26, 1
        %s532 = scalar_select %p531, %s26, 1
        %s533 = scalar_lea.vmem %s5, %s532
        %p534 = pneg %p167
        %p535 = pneg %p164
        %p536 = scmp.lt.s32.totalorder %s26, 1
        %s537 = scalar_select %p536, %s26, 1
        %s538 = scalar_lea.vmem %s6, %s537
        %p539 = pneg %p193
        %p540 = pneg %p190
        %p541 = scmp.lt.s32.totalorder %s26, 1
        %s542 = scalar_select %p541, %s26, 1
        %s543 = scalar_lea.vmem %s7, %s542
        %p544 = pneg %p219
        %p545 = pneg %p216
        %p546 = scmp.lt.s32.totalorder %s26, 1
        %s547 = scalar_select %p546, %s26, 1
        %s548 = smul.addr %s547, 4
        %s549 = smul.addr %s548, 8
        %s550 = scalar_lea.vmem %s8, %s549
        %p551 = pneg %p245
        %p552 = pneg %p242
        %p553 = scmp.lt.s32.totalorder %s26, 1
        %s554 = scalar_select %p553, %s26, 1
        %s555 = scalar_lea.vmem %s9, %s554
        %p556 = pneg %p271
        %p557 = pneg %p268
        %p558 = scmp.lt.s32.totalorder %s26, 1
        %s559 = scalar_select %p558, %s26, 1
        %s560 = smul.addr %s559, 16
        %s561 = smul.addr %s560, 8
        %s562 = scalar_lea.vmem %s10, %s561
        %p563 = pneg %p297
        %p564 = pneg %p294
        %p565 = scmp.lt.s32.totalorder %s26, 1
        %s566 = scalar_select %p565, %s26, 1
        %s567 = scalar_lea.vmem %s11, %s566
        %p568 = pneg %p323
        %p569 = pneg %p320
        %p570 = scmp.lt.s32.totalorder %s26, 1
        %s571 = scalar_select %p570, %s26, 1
        %s572 = scalar_lea.vmem %s12, %s571
        %p573 = pneg %p349
        %p574 = pneg %p346
        %p575 = scmp.lt.s32.totalorder %s26, 1
        %s576 = scalar_select %p575, %s26, 1
        %s577 = scalar_lea.vmem %s13, %s576
        %p578 = pneg %p375
        %p579 = pneg %p372
        %p580 = pneg %p396
        %p581 = pneg %p393
        %p582 = scmp.lt.s32.totalorder %s26, 1
        %s583 = scalar_select %p582, %s26, 1
        %s584 = smul.addr %s583, 4
        %s585 = smul.addr %s584, 8
        %s586 = scalar_lea.vmem %s2, %s585
        %p587 = scmp.lt.s32.totalorder %s26, 1
        %s588 = scalar_select %p587, %s26, 1
        %s589 = scalar_lea.vmem %s3, %s588
        %p590 = scmp.lt.s32.totalorder %s26, 1
        %s591 = scalar_select %p590, %s26, 1
        %s592 = smul.addr %s591, 4
        %s593 = smul.addr %s592, 8
        %s594 = scalar_lea.vmem %s4, %s593
        %p595 = scmp.lt.s32.totalorder %s26, 1
        %s596 = scalar_select %p595, %s26, 1
        %s597 = scalar_lea.vmem %s5, %s596
        %p598 = scmp.lt.s32.totalorder %s26, 1
        %s599 = scalar_select %p598, %s26, 1
        %s600 = scalar_lea.vmem %s6, %s599
        %p601 = scmp.lt.s32.totalorder %s26, 1
        %s602 = scalar_select %p601, %s26, 1
        %s603 = scalar_lea.vmem %s7, %s602
        %p604 = scmp.lt.s32.totalorder %s26, 1
        %s605 = scalar_select %p604, %s26, 1
        %s606 = smul.addr %s605, 4
        %s607 = smul.addr %s606, 8
        %s608 = scalar_lea.vmem %s8, %s607
        %p609 = scmp.lt.s32.totalorder %s26, 1
        %s610 = scalar_select %p609, %s26, 1
        %s611 = scalar_lea.vmem %s9, %s610
        %p612 = scmp.lt.s32.totalorder %s26, 1
        %s613 = scalar_select %p612, %s26, 1
        %s614 = smul.addr %s613, 16
        %s615 = smul.addr %s614, 8
        %s616 = scalar_lea.vmem %s10, %s615
        %p617 = scmp.lt.s32.totalorder %s26, 1
        %s618 = scalar_select %p617, %s26, 1
        %s619 = scalar_lea.vmem %s11, %s618
        %p620 = scmp.lt.s32.totalorder %s26, 1
        %s621 = scalar_select %p620, %s26, 1
        %s622 = scalar_lea.vmem %s12, %s621
        %p623 = scmp.lt.s32.totalorder %s26, 1
        %s624 = scalar_select %p623, %s26, 1
        %s625 = scalar_lea.vmem %s13, %s624
        %p626 = scmp.eq.s32.totalorder %s26, 0
        // Predicated region
        $region77: #{tpu_custom_call.1} parent=75 // pred_check
          %p627 = pneg %p626
        $region78: #{tpu_custom_call.1} parent=75 // pred_check_branch
          %629 = sbr.rel (%p627) target = $region80
        $region79: #{tpu_custom_call.1} parent=75 // pred_region
          %v630 = vld [vmem:[%s0] sm:$0xff]
          %v631 = vld [vmem:[%s0 + $0x8] sm:$0xff]
          %vm632 = vcmask 261120
          %633 = vst.msk [vmem:[#allocation3] sm:$0xff] %vm632, %v630
          %634 = vst.msk [vmem:[#allocation3 + $0x8] sm:$0xff] %vm632, %v631
        $region80: #{tpu_custom_call.1} parent=75 // pred_fallthru
          _
        %v635 = vld [vmem:[#allocation3] sm:$0xff]
        %v636 = vld [vmem:[#allocation3 + $0x8] sm:$0xff]
        %v637 = vld [vmem:[%s586] sm:$0xff]
        %v638 = vld [vmem:[%s586 + $0x8] sm:$0xff]
        %v639 = vld [vmem:[%s586 + $0x10] sm:$0xff]
        %v640 = vld [vmem:[%s586 + $0x18] sm:$0xff]
        %v641 = vld [vmem:[%s589] sm:$0x1]
        %v643 = vlaneseq
        %v644 = vshrl.u32 %v643, 7
        %v645 = vsub.s32 0, %v644
        %v646 = vrot.slane %v641, %v645
        %vm648 = vcmask 261120
        %v650 = vsel %vm648, %v635, 0
        %v653 = vsel %vm648, %v636, 0
        %655 = vmatprep.subr.mxu0 0.0
        %v656 = vand.u32 %v637, 4294901760
        %657 = vmatpush1.msra.mxu0 %v656
        %658 = vmatprep.subr.mxu0 0.0
        %v659 = vand.u32 %v638, 4294901760
        %660 = vmatpush1.msra.mxu0 %v659
        %661 = vmatprep.subr.mxu0 0.0
        %v662 = vand.u32 %v639, 4294901760
        %663 = vmatpush1.msra.mxu0 %v662
        %664 = vmatprep.subr.mxu0 0.0
        %v665 = vand.u32 %v640, 4294901760
        %666 = vmatpush1.msra.mxu0 %v665
        %667 = vmatprep.subr.mxu0 0.0
        %668 = vmatpush1.msra.mxu0 0.0
        %669 = vmatprep.subr.mxu0 0.0
        %670 = vmatpush1.msra.mxu0 0.0
        %671 = vmatprep.subr.mxu0 0.0
        %672 = vmatpush1.msra.mxu0 0.0
        %673 = vmatprep.subr.mxu0 0.0
        %674 = vmatpush1.msra.mxu0 0.0
        %675 = vmatprep.subr.mxu0 0.0
        %676 = vmatpush1.msra.mxu0 0.0
        %677 = vmatprep.subr.mxu0 0.0
        %678 = vmatpush1.msra.mxu0 0.0
        %679 = vmatprep.subr.mxu0 0.0
        %680 = vmatpush1.msra.mxu0 0.0
        %681 = vmatprep.subr.mxu0 0.0
        %682 = vmatpush1.msra.mxu0 0.0
        %683 = vmatprep.subr.mxu0 0.0
        %684 = vmatpush1.msra.mxu0 0.0
        %685 = vmatprep.subr.mxu0 0.0
        %686 = vmatpush1.msra.mxu0 0.0
        %687 = vmatprep.subr.mxu0 0.0
        %688 = vmatpush1.msra.mxu0 0.0
        %689 = vmatprep.subr.mxu0 0.0
        %690 = vmatpush1.msra.mxu0 0.0
        %691 = vmatprep.subr.mxu0 0.0
        %692 = vmatpush1.msra.mxu0 0.0
        %693 = vmatprep.subr.mxu0 0.0
        %694 = vmatpush1.msra.mxu0 0.0
        %695 = vmatprep.subr.mxu0 0.0
        %696 = vmatpush1.msra.mxu0 0.0
        %697 = vmatprep.subr.mxu0 0.0
        %698 = vmatpush1.msra.mxu0 0.0
        %699 = vmatprep.subr.mxu0 0.0
        %700 = vmatpush1.msra.mxu0 0.0
        %701 = vmatprep.subr.mxu0 0.0
        %702 = vmatpush1.msra.mxu0 0.0
        %703 = vmatprep.subr.mxu0 0.0
        %704 = vmatpush1.msra.mxu0 0.0
        %705 = vmatprep.subr.mxu0 0.0
        %706 = vmatpush1.msra.mxu0 0.0
        %707 = vmatprep.subr.mxu0 0.0
        %708 = vmatpush1.msra.mxu0 0.0
        %709 = vmatprep.subr.mxu0 0.0
        %710 = vmatpush1.msra.mxu0 0.0
        %711 = vmatprep.subr.mxu0 0.0
        %712 = vmatpush1.msra.mxu0 0.0
        %713 = vmatprep.subr.mxu0 0.0
        %714 = vmatpush1.msra.mxu0 0.0
        %715 = vmatprep.subr.mxu0 0.0
        %716 = vmatpush1.msra.mxu0 0.0
        %717 = vmatprep.subr.mxu0 0.0
        %718 = vmatpush1.msra.mxu0 0.0
        %719 = vmatprep.subr.mxu0 0.0
        %720 = vmatpush1.msra.mxu0 0.0
        %721 = vmatprep.subr.mxu0 0.0
        %722 = vmatpush1.msra.mxu0 0.0
        %723 = vmatprep.mubr.f32.mxu0 0.0
        %v724 = vand.u32 %v650, 4294901760
        %v725 = vsub.f32 %v650, %v724
        %v726 = vand.u32 %v725, 4294901760
        %v727 = vsub.f32 %v725, %v726
        %v728 = vand.u32 %v727, 4294901760
        %729 = vmatmul.mubr.f32.gmra.mrb[0].mxu0 %v728
        %v730 = vpop.f32.mrb[0].mxu0
        %v731 = vadd.f32 %v646, %v730
        %v732 = vpop.f32.mrb[0].mxu0
        %733 = vmatprep.mubr.f32.mxu0 0.0
        %v734 = vand.u32 %v653, 4294901760
        %v735 = vsub.f32 %v653, %v734
        %v736 = vand.u32 %v735, 4294901760
        %v737 = vsub.f32 %v735, %v736
        %v738 = vand.u32 %v737, 4294901760
        %739 = vmatmul.mubr.f32.gmra.mrb[0].mxu0 %v738
        %v740 = vpop.f32.mrb[0].mxu0
        %v741 = vadd.f32 %v646, %v740
        %v742 = vpop.f32.mrb[0].mxu0
        %743 = vdwg.mxu0
        %744 = vmatprep.subr.mxu0 0.0
        %v745 = vand.u32 %v637, 4294901760
        %v746 = vsub.f32 %v637, %v745
        %v747 = vand.u32 %v746, 4294901760
        %v748 = vsub.f32 %v746, %v747
        %v749 = vand.u32 %v748, 4294901760
        %750 = vmatpush1.msra.mxu0 %v749
        %751 = vmatprep.subr.mxu0 0.0
        %v752 = vand.u32 %v638, 4294901760
        %v753 = vsub.f32 %v638, %v752
        %v754 = vand.u32 %v753, 4294901760
        %v755 = vsub.f32 %v753, %v754
        %v756 = vand.u32 %v755, 4294901760
        %757 = vmatpush1.msra.mxu0 %v756
        %758 = vmatprep.subr.mxu0 0.0
        %v759 = vand.u32 %v639, 4294901760
        %v760 = vsub.f32 %v639, %v759
        %v761 = vand.u32 %v760, 4294901760
        %v762 = vsub.f32 %v760, %v761
        %v763 = vand.u32 %v762, 4294901760
        %764 = vmatpush1.msra.mxu0 %v763
        %765 = vmatprep.subr.mxu0 0.0
        %v766 = vand.u32 %v640, 4294901760
        %v767 = vsub.f32 %v640, %v766
        %v768 = vand.u32 %v767, 4294901760
        %v769 = vsub.f32 %v767, %v768
        %v770 = vand.u32 %v769, 4294901760
        %771 = vmatpush1.msra.mxu0 %v770
        %772 = vmatprep.subr.mxu0 0.0
        %773 = vmatpush1.msra.mxu0 0.0
        %774 = vmatprep.subr.mxu0 0.0
        %775 = vmatpush1.msra.mxu0 0.0
        %776 = vmatprep.subr.mxu0 0.0
        %777 = vmatpush1.msra.mxu0 0.0
        %778 = vmatprep.subr.mxu0 0.0
        %779 = vmatpush1.msra.mxu0 0.0
        %780 = vmatprep.subr.mxu0 0.0
        %781 = vmatpush1.msra.mxu0 0.0
        %782 = vmatprep.subr.mxu0 0.0
        %783 = vmatpush1.msra.mxu0 0.0
        %784 = vmatprep.subr.mxu0 0.0
        %785 = vmatpush1.msra.mxu0 0.0
        %786 = vmatprep.subr.mxu0 0.0
        %787 = vmatpush1.msra.mxu0 0.0
        %788 = vmatprep.subr.mxu0 0.0
        %789 = vmatpush1.msra.mxu0 0.0
        %790 = vmatprep.subr.mxu0 0.0
        %791 = vmatpush1.msra.mxu0 0.0
        %792 = vmatprep.subr.mxu0 0.0
        %793 = vmatpush1.msra.mxu0 0.0
        %794 = vmatprep.subr.mxu0 0.0
        %795 = vmatpush1.msra.mxu0 0.0
        %796 = vmatprep.subr.mxu0 0.0
        %797 = vmatpush1.msra.mxu0 0.0
        %798 = vmatprep.subr.mxu0 0.0
        %799 = vmatpush1.msra.mxu0 0.0
        %800 = vmatprep.subr.mxu0 0.0
        %801 = vmatpush1.msra.mxu0 0.0
        %802 = vmatprep.subr.mxu0 0.0
        %803 = vmatpush1.msra.mxu0 0.0
        %804 = vmatprep.subr.mxu0 0.0
        %805 = vmatpush1.msra.mxu0 0.0
        %806 = vmatprep.subr.mxu0 0.0
        %807 = vmatpush1.msra.mxu0 0.0
        %808 = vmatprep.subr.mxu0 0.0
        %809 = vmatpush1.msra.mxu0 0.0
        %810 = vmatprep.subr.mxu0 0.0
        %811 = vmatpush1.msra.mxu0 0.0
        %812 = vmatprep.subr.mxu0 0.0
        %813 = vmatpush1.msra.mxu0 0.0
        %814 = vmatprep.subr.mxu0 0.0
        %815 = vmatpush1.msra.mxu0 0.0
        %816 = vmatprep.subr.mxu0 0.0
        %817 = vmatpush1.msra.mxu0 0.0
        %818 = vmatprep.subr.mxu0 0.0
        %819 = vmatpush1.msra.mxu0 0.0
        %820 = vmatprep.subr.mxu0 0.0
        %821 = vmatpush1.msra.mxu0 0.0
        %822 = vmatprep.subr.mxu0 0.0
        %823 = vmatpush1.msra.mxu0 0.0
        %824 = vmatprep.subr.mxu0 0.0
        %825 = vmatpush1.msra.mxu0 0.0
        %826 = vmatprep.subr.mxu0 0.0
        %827 = vmatpush1.msra.mxu0 0.0
        %828 = vmatprep.mubr.f32.mxu0 0.0
        %v829 = vand.u32 %v650, 4294901760
        %830 = vmatmul.mubr.f32.gmra.mrb[0].mxu0 %v829
        %v831 = vpop.f32.mrb[0].mxu0
        %v832 = vadd.f32 %v731, %v831
        %v833 = vpop.f32.mrb[0].mxu0
        %834 = vmatprep.mubr.f32.mxu0 0.0
        %v835 = vand.u32 %v653, 4294901760
        %836 = vmatmul.mubr.f32.gmra.mrb[0].mxu0 %v835
        %v837 = vpop.f32.mrb[0].mxu0
        %v838 = vadd.f32 %v741, %v837
        %v839 = vpop.f32.mrb[0].mxu0
        %840 = vdwg.mxu0
        %841 = vmatprep.subr.mxu0 0.0
        %v842 = vand.u32 %v637, 4294901760
        %v843 = vsub.f32 %v637, %v842
        %844 = vmatpush1.msra.mxu0 %v843
        %845 = vmatprep.subr.mxu0 0.0
        %v846 = vand.u32 %v638, 4294901760
        %v847 = vsub.f32 %v638, %v846
        %848 = vmatpush1.msra.mxu0 %v847
        %849 = vmatprep.subr.mxu0 0.0
        %v850 = vand.u32 %v639, 4294901760
        %v851 = vsub.f32 %v639, %v850
        %852 = vmatpush1.msra.mxu0 %v851
        %853 = vmatprep.subr.mxu0 0.0
        %v854 = vand.u32 %v640, 4294901760
        %v855 = vsub.f32 %v640, %v854
        %856 = vmatpush1.msra.mxu0 %v855
        %857 = vmatprep.subr.mxu0 0.0
        %858 = vmatpush1.msra.mxu0 0.0
        %859 = vmatprep.subr.mxu0 0.0
        %860 = vmatpush1.msra.mxu0 0.0
        %861 = vmatprep.subr.mxu0 0.0
        %862 = vmatpush1.msra.mxu0 0.0
        %863 = vmatprep.subr.mxu0 0.0
        %864 = vmatpush1.msra.mxu0 0.0
        %865 = vmatprep.subr.mxu0 0.0
        %866 = vmatpush1.msra.mxu0 0.0
        %867 = vmatprep.subr.mxu0 0.0
        %868 = vmatpush1.msra.mxu0 0.0
        %869 = vmatprep.subr.mxu0 0.0
        %870 = vmatpush1.msra.mxu0 0.0
        %871 = vmatprep.subr.mxu0 0.0
        %872 = vmatpush1.msra.mxu0 0.0
        %873 = vmatprep.subr.mxu0 0.0
        %874 = vmatpush1.msra.mxu0 0.0
        %875 = vmatprep.subr.mxu0 0.0
        %876 = vmatpush1.msra.mxu0 0.0
        %877 = vmatprep.subr.mxu0 0.0
        %878 = vmatpush1.msra.mxu0 0.0
        %879 = vmatprep.subr.mxu0 0.0
        %880 = vmatpush1.msra.mxu0 0.0
        %881 = vmatprep.subr.mxu0 0.0
        %882 = vmatpush1.msra.mxu0 0.0
        %883 = vmatprep.subr.mxu0 0.0
        %884 = vmatpush1.msra.mxu0 0.0
        %885 = vmatprep.subr.mxu0 0.0
        %886 = vmatpush1.msra.mxu0 0.0
        %887 = vmatprep.subr.mxu0 0.0
        %888 = vmatpush1.msra.mxu0 0.0
        %889 = vmatprep.subr.mxu0 0.0
        %890 = vmatpush1.msra.mxu0 0.0
        %891 = vmatprep.subr.mxu0 0.0
        %892 = vmatpush1.msra.mxu0 0.0
        %893 = vmatprep.subr.mxu0 0.0
        %894 = vmatpush1.msra.mxu0 0.0
        %895 = vmatprep.subr.mxu0 0.0
        %896 = vmatpush1.msra.mxu0 0.0
        %897 = vmatprep.subr.mxu0 0.0
        %898 = vmatpush1.msra.mxu0 0.0
        %899 = vmatprep.subr.mxu0 0.0
        %900 = vmatpush1.msra.mxu0 0.0
        %901 = vmatprep.subr.mxu0 0.0
        %902 = vmatpush1.msra.mxu0 0.0
        %903 = vmatprep.subr.mxu0 0.0
        %904 = vmatpush1.msra.mxu0 0.0
        %905 = vmatprep.subr.mxu0 0.0
        %906 = vmatpush1.msra.mxu0 0.0
        %907 = vmatprep.subr.mxu0 0.0
        %908 = vmatpush1.msra.mxu0 0.0
        %909 = vmatprep.subr.mxu0 0.0
        %910 = vmatpush1.msra.mxu0 0.0
        %911 = vmatprep.subr.mxu0 0.0
        %912 = vmatpush1.msra.mxu0 0.0
        %913 = vmatprep.mubr.f32.mxu0 0.0
        %v914 = vand.u32 %v650, 4294901760
        %v915 = vsub.f32 %v650, %v914
        %916 = vmatmul.mubr.f32.gmra.mrb[0].mxu0 %v915
        %v917 = vpop.f32.mrb[0].mxu0
        %v918 = vadd.f32 %v832, %v917
        %v919 = vpop.f32.mrb[0].mxu0
        %920 = vmatprep.mubr.f32.mxu0 0.0
        %v921 = vand.u32 %v653, 4294901760
        %v922 = vsub.f32 %v653, %v921
        %923 = vmatmul.mubr.f32.gmra.mrb[0].mxu0 %v922
        %v924 = vpop.f32.mrb[0].mxu0
        %v925 = vadd.f32 %v838, %v924
        %v926 = vpop.f32.mrb[0].mxu0
        %927 = vdwg.mxu0
        %928 = vmatprep.subr.mxu0 0.0
        %v929 = vand.u32 %v637, 4294901760
        %930 = vmatpush1.msra.mxu0 %v929
        %931 = vmatprep.subr.mxu0 0.0
        %v932 = vand.u32 %v638, 4294901760
        %933 = vmatpush1.msra.mxu0 %v932
        %934 = vmatprep.subr.mxu0 0.0
        %v935 = vand.u32 %v639, 4294901760
        %936 = vmatpush1.msra.mxu0 %v935
        %937 = vmatprep.subr.mxu0 0.0
        %v938 = vand.u32 %v640, 4294901760
        %939 = vmatpush1.msra.mxu0 %v938
        %940 = vmatprep.subr.mxu0 0.0
        %941 = vmatpush1.msra.mxu0 0.0
        %942 = vmatprep.subr.mxu0 0.0
        %943 = vmatpush1.msra.mxu0 0.0
        %944 = vmatprep.subr.mxu0 0.0
        %945 = vmatpush1.msra.mxu0 0.0
        %946 = vmatprep.subr.mxu0 0.0
        %947 = vmatpush1.msra.mxu0 0.0
        %948 = vmatprep.subr.mxu0 0.0
        %949 = vmatpush1.msra.mxu0 0.0
        %950 = vmatprep.subr.mxu0 0.0
        %951 = vmatpush1.msra.mxu0 0.0
        %952 = vmatprep.subr.mxu0 0.0
        %953 = vmatpush1.msra.mxu0 0.0
        %954 = vmatprep.subr.mxu0 0.0
        %955 = vmatpush1.msra.mxu0 0.0
        %956 = vmatprep.subr.mxu0 0.0
        %957 = vmatpush1.msra.mxu0 0.0
        %958 = vmatprep.subr.mxu0 0.0
        %959 = vmatpush1.msra.mxu0 0.0
        %960 = vmatprep.subr.mxu0 0.0
        %961 = vmatpush1.msra.mxu0 0.0
        %962 = vmatprep.subr.mxu0 0.0
        %963 = vmatpush1.msra.mxu0 0.0
        %964 = vmatprep.subr.mxu0 0.0
        %965 = vmatpush1.msra.mxu0 0.0
        %966 = vmatprep.subr.mxu0 0.0
        %967 = vmatpush1.msra.mxu0 0.0
        %968 = vmatprep.subr.mxu0 0.0
        %969 = vmatpush1.msra.mxu0 0.0
        %970 = vmatprep.subr.mxu0 0.0
        %971 = vmatpush1.msra.mxu0 0.0
        %972 = vmatprep.subr.mxu0 0.0
        %973 = vmatpush1.msra.mxu0 0.0
        %974 = vmatprep.subr.mxu0 0.0
        %975 = vmatpush1.msra.mxu0 0.0
        %976 = vmatprep.subr.mxu0 0.0
        %977 = vmatpush1.msra.mxu0 0.0
        %978 = vmatprep.subr.mxu0 0.0
        %979 = vmatpush1.msra.mxu0 0.0
        %980 = vmatprep.subr.mxu0 0.0
        %981 = vmatpush1.msra.mxu0 0.0
        %982 = vmatprep.subr.mxu0 0.0
        %983 = vmatpush1.msra.mxu0 0.0
        %984 = vmatprep.subr.mxu0 0.0
        %985 = vmatpush1.msra.mxu0 0.0
        %986 = vmatprep.subr.mxu0 0.0
        %987 = vmatpush1.msra.mxu0 0.0
        %988 = vmatprep.subr.mxu0 0.0
        %989 = vmatpush1.msra.mxu0 0.0
        %990 = vmatprep.subr.mxu0 0.0
        %991 = vmatpush1.msra.mxu0 0.0
        %992 = vmatprep.subr.mxu0 0.0
        %993 = vmatpush1.msra.mxu0 0.0
        %994 = vmatprep.subr.mxu0 0.0
        %995 = vmatpush1.msra.mxu0 0.0
        %996 = vmatprep.mubr.f32.mxu0 0.0
        %v997 = vand.u32 %v650, 4294901760
        %v998 = vsub.f32 %v650, %v997
        %v999 = vand.u32 %v998, 4294901760
        %1000 = vmatmul.mubr.f32.gmra.mrb[0].mxu0 %v999
        %v1001 = vpop.f32.mrb[0].mxu0
        %v1002 = vadd.f32 %v918, %v1001
        %v1003 = vpop.f32.mrb[0].mxu0
        %1004 = vmatprep.mubr.f32.mxu0 0.0
        %v1005 = vand.u32 %v653, 4294901760
        %v1006 = vsub.f32 %v653, %v1005
        %v1007 = vand.u32 %v1006, 4294901760
        %1008 = vmatmul.mubr.f32.gmra.mrb[0].mxu0 %v1007
        %v1009 = vpop.f32.mrb[0].mxu0
        %v1010 = vadd.f32 %v925, %v1009
        %v1011 = vpop.f32.mrb[0].mxu0
        %1012 = vdwg.mxu0
        %1013 = vmatprep.subr.mxu0 0.0
        %v1014 = vand.u32 %v637, 4294901760
        %v1015 = vsub.f32 %v637, %v1014
        %v1016 = vand.u32 %v1015, 4294901760
        %1017 = vmatpush1.msra.mxu0 %v1016
        %1018 = vmatprep.subr.mxu0 0.0
        %v1019 = vand.u32 %v638, 4294901760
        %v1020 = vsub.f32 %v638, %v1019
        %v1021 = vand.u32 %v1020, 4294901760
        %1022 = vmatpush1.msra.mxu0 %v1021
        %1023 = vmatprep.subr.mxu0 0.0
        %v1024 = vand.u32 %v639, 4294901760
        %v1025 = vsub.f32 %v639, %v1024
        %v1026 = vand.u32 %v1025, 4294901760
        %1027 = vmatpush1.msra.mxu0 %v1026
        %1028 = vmatprep.subr.mxu0 0.0
        %v1029 = vand.u32 %v640, 4294901760
        %v1030 = vsub.f32 %v640, %v1029
        %v1031 = vand.u32 %v1030, 4294901760
        %1032 = vmatpush1.msra.mxu0 %v1031
        %1033 = vmatprep.subr.mxu0 0.0
        %1034 = vmatpush1.msra.mxu0 0.0
        %1035 = vmatprep.subr.mxu0 0.0
        %1036 = vmatpush1.msra.mxu0 0.0
        %1037 = vmatprep.subr.mxu0 0.0
        %1038 = vmatpush1.msra.mxu0 0.0
        %1039 = vmatprep.subr.mxu0 0.0
        %1040 = vmatpush1.msra.mxu0 0.0
        %1041 = vmatprep.subr.mxu0 0.0
        %1042 = vmatpush1.msra.mxu0 0.0
        %1043 = vmatprep.subr.mxu0 0.0
        %1044 = vmatpush1.msra.mxu0 0.0
        %1045 = vmatprep.subr.mxu0 0.0
        %1046 = vmatpush1.msra.mxu0 0.0
        %1047 = vmatprep.subr.mxu0 0.0
        %1048 = vmatpush1.msra.mxu0 0.0
        %1049 = vmatprep.subr.mxu0 0.0
        %1050 = vmatpush1.msra.mxu0 0.0
        %1051 = vmatprep.subr.mxu0 0.0
        %1052 = vmatpush1.msra.mxu0 0.0
        %1053 = vmatprep.subr.mxu0 0.0
        %1054 = vmatpush1.msra.mxu0 0.0
        %1055 = vmatprep.subr.mxu0 0.0
        %1056 = vmatpush1.msra.mxu0 0.0
        %1057 = vmatprep.subr.mxu0 0.0
        %1058 = vmatpush1.msra.mxu0 0.0
        %1059 = vmatprep.subr.mxu0 0.0
        %1060 = vmatpush1.msra.mxu0 0.0
        %1061 = vmatprep.subr.mxu0 0.0
        %1062 = vmatpush1.msra.mxu0 0.0
        %1063 = vmatprep.subr.mxu0 0.0
        %1064 = vmatpush1.msra.mxu0 0.0
        %1065 = vmatprep.subr.mxu0 0.0
        %1066 = vmatpush1.msra.mxu0 0.0
        %1067 = vmatprep.subr.mxu0 0.0
        %1068 = vmatpush1.msra.mxu0 0.0
        %1069 = vmatprep.subr.mxu0 0.0
        %1070 = vmatpush1.msra.mxu0 0.0
        %1071 = vmatprep.subr.mxu0 0.0
        %1072 = vmatpush1.msra.mxu0 0.0
        %1073 = vmatprep.subr.mxu0 0.0
        %1074 = vmatpush1.msra.mxu0 0.0
        %1075 = vmatprep.subr.mxu0 0.0
        %1076 = vmatpush1.msra.mxu0 0.0
        %1077 = vmatprep.subr.mxu0 0.0
        %1078 = vmatpush1.msra.mxu0 0.0
        %1079 = vmatprep.subr.mxu0 0.0
        %1080 = vmatpush1.msra.mxu0 0.0
        %1081 = vmatprep.subr.mxu0 0.0
        %1082 = vmatpush1.msra.mxu0 0.0
        %1083 = vmatprep.subr.mxu0 0.0
        %1084 = vmatpush1.msra.mxu0 0.0
        %1085 = vmatprep.subr.mxu0 0.0
        %1086 = vmatpush1.msra.mxu0 0.0
        %1087 = vmatprep.subr.mxu0 0.0
        %1088 = vmatpush1.msra.mxu0 0.0
        %1089 = vmatprep.mubr.f32.mxu0 0.0
        %v1090 = vand.u32 %v650, 4294901760
        %1091 = vmatmul.mubr.f32.gmra.mrb[0].mxu0 %v1090
        %v1092 = vpop.f32.mrb[0].mxu0
        %v1093 = vadd.f32 %v1002, %v1092
        %v1094 = vpop.f32.mrb[0].mxu0
        %1095 = vmatprep.mubr.f32.mxu0 0.0
        %v1096 = vand.u32 %v653, 4294901760
        %1097 = vmatmul.mubr.f32.gmra.mrb[0].mxu0 %v1096
        %v1098 = vpop.f32.mrb[0].mxu0
        %v1099 = vadd.f32 %v1010, %v1098
        %v1100 = vpop.f32.mrb[0].mxu0
        %1101 = vdwg.mxu0
        %1102 = vmatprep.subr.mxu0 0.0
        %v1103 = vand.u32 %v637, 4294901760
        %1104 = vmatpush1.msra.mxu0 %v1103
        %1105 = vmatprep.subr.mxu0 0.0
        %v1106 = vand.u32 %v638, 4294901760
        %1107 = vmatpush1.msra.mxu0 %v1106
        %1108 = vmatprep.subr.mxu0 0.0
        %v1109 = vand.u32 %v639, 4294901760
        %1110 = vmatpush1.msra.mxu0 %v1109
        %1111 = vmatprep.subr.mxu0 0.0
        %v1112 = vand.u32 %v640, 4294901760
        %1113 = vmatpush1.msra.mxu0 %v1112
        %1114 = vmatprep.subr.mxu0 0.0
        %1115 = vmatpush1.msra.mxu0 0.0
        %1116 = vmatprep.subr.mxu0 0.0
        %1117 = vmatpush1.msra.mxu0 0.0
        %1118 = vmatprep.subr.mxu0 0.0
        %1119 = vmatpush1.msra.mxu0 0.0
        %1120 = vmatprep.subr.mxu0 0.0
        %1121 = vmatpush1.msra.mxu0 0.0
        %1122 = vmatprep.subr.mxu0 0.0
        %1123 = vmatpush1.msra.mxu0 0.0
        %1124 = vmatprep.subr.mxu0 0.0
        %1125 = vmatpush1.msra.mxu0 0.0
        %1126 = vmatprep.subr.mxu0 0.0
        %1127 = vmatpush1.msra.mxu0 0.0
        %1128 = vmatprep.subr.mxu0 0.0
        %1129 = vmatpush1.msra.mxu0 0.0
        %1130 = vmatprep.subr.mxu0 0.0
        %1131 = vmatpush1.msra.mxu0 0.0
        %1132 = vmatprep.subr.mxu0 0.0
        %1133 = vmatpush1.msra.mxu0 0.0
        %1134 = vmatprep.subr.mxu0 0.0
        %1135 = vmatpush1.msra.mxu0 0.0
        %1136 = vmatprep.subr.mxu0 0.0
        %1137 = vmatpush1.msra.mxu0 0.0
        %1138 = vmatprep.subr.mxu0 0.0
        %1139 = vmatpush1.msra.mxu0 0.0
        %1140 = vmatprep.subr.mxu0 0.0
        %1141 = vmatpush1.msra.mxu0 0.0
        %1142 = vmatprep.subr.mxu0 0.0
        %1143 = vmatpush1.msra.mxu0 0.0
        %1144 = vmatprep.subr.mxu0 0.0
        %1145 = vmatpush1.msra.mxu0 0.0
        %1146 = vmatprep.subr.mxu0 0.0
        %1147 = vmatpush1.msra.mxu0 0.0
        %1148 = vmatprep.subr.mxu0 0.0
        %1149 = vmatpush1.msra.mxu0 0.0
        %1150 = vmatprep.subr.mxu0 0.0
        %1151 = vmatpush1.msra.mxu0 0.0
        %1152 = vmatprep.subr.mxu0 0.0
        %1153 = vmatpush1.msra.mxu0 0.0
        %1154 = vmatprep.subr.mxu0 0.0
        %1155 = vmatpush1.msra.mxu0 0.0
        %1156 = vmatprep.subr.mxu0 0.0
        %1157 = vmatpush1.msra.mxu0 0.0
        %1158 = vmatprep.subr.mxu0 0.0
        %1159 = vmatpush1.msra.mxu0 0.0
        %1160 = vmatprep.subr.mxu0 0.0
        %1161 = vmatpush1.msra.mxu0 0.0
        %1162 = vmatprep.subr.mxu0 0.0
        %1163 = vmatpush1.msra.mxu0 0.0
        %1164 = vmatprep.subr.mxu0 0.0
        %1165 = vmatpush1.msra.mxu0 0.0
        %1166 = vmatprep.subr.mxu0 0.0
        %1167 = vmatpush1.msra.mxu0 0.0
        %1168 = vmatprep.subr.mxu0 0.0
        %1169 = vmatpush1.msra.mxu0 0.0
        %1170 = vmatprep.mubr.f32.mxu0 0.0
        %v1171 = vand.u32 %v650, 4294901760
        %1172 = vmatmul.mubr.f32.gmra.mrb[0].mxu0 %v1171
        %v1173 = vpop.f32.mrb[0].mxu0
        %v1174 = vadd.f32 %v1093, %v1173
        %v1175 = vpop.f32.mrb[0].mxu0
        %1176 = vmatprep.mubr.f32.mxu0 0.0
        %v1177 = vand.u32 %v653, 4294901760
        %1178 = vmatmul.mubr.f32.gmra.mrb[0].mxu0 %v1177
        %v1179 = vpop.f32.mrb[0].mxu0
        %v1180 = vadd.f32 %v1099, %v1179
        %v1181 = vpop.f32.mrb[0].mxu0
        %1182 = vdwg.mxu0
        %v1183 = vld [vmem:[%s1] sm:$0x1]
        %1185 = vrot.lane.b32.xlu0 %v1174, 96
        %v1186 = vpop.permute.xlu0 %1185
        %vm1187 = vcmask 64512
        %v1188 = vsel %vm1187, %v1174, 0
        %v1190 = vsel %vm1187, %v1186, 0
        %1192 = vmatprep.subr.mxu0 0.0
        %v1193 = vand.u32 %v1190, 4294901760
        %1194 = vmatpush1.xpose.msra.mxu0 %v1193
        %1195 = vmatprep.subr.mxu0 0.0
        %1196 = vmatpush1.xpose.msra.mxu0 0.0
        %1197 = vmatprep.subr.mxu0 0.0
        %1198 = vmatpush1.xpose.msra.mxu0 0.0
        %1199 = vmatprep.subr.mxu0 0.0
        %1200 = vmatpush1.xpose.msra.mxu0 0.0
        %1201 = vmatprep.subr.mxu0 0.0
        %1202 = vmatpush1.xpose.msra.mxu0 0.0
        %1203 = vmatprep.subr.mxu0 0.0
        %1204 = vmatpush1.xpose.msra.mxu0 0.0
        %1205 = vmatprep.subr.mxu0 0.0
        %1206 = vmatpush1.xpose.msra.mxu0 0.0
        %1207 = vmatprep.subr.mxu0 0.0
        %1208 = vmatpush1.xpose.msra.mxu0 0.0
        %1209 = vmatprep.subr.mxu0 0.0
        %1210 = vmatpush1.xpose.msra.mxu0 0.0
        %1211 = vmatprep.subr.mxu0 0.0
        %1212 = vmatpush1.xpose.msra.mxu0 0.0
        %1213 = vmatprep.subr.mxu0 0.0
        %1214 = vmatpush1.xpose.msra.mxu0 0.0
        %1215 = vmatprep.subr.mxu0 0.0
        %1216 = vmatpush1.xpose.msra.mxu0 0.0
        %1217 = vmatprep.subr.mxu0 0.0
        %1218 = vmatpush1.xpose.msra.mxu0 0.0
        %1219 = vmatprep.subr.mxu0 0.0
        %1220 = vmatpush1.xpose.msra.mxu0 0.0
        %1221 = vmatprep.subr.mxu0 0.0
        %1222 = vmatpush1.xpose.msra.mxu0 0.0
        %1223 = vmatprep.subr.mxu0 0.0
        %1224 = vmatpush1.xpose.msra.mxu0 0.0
        %1225 = vmatprep.subr.mxu0 0.0
        %1226 = vmatpush1.xpose.msra.mxu0 0.0
        %1227 = vmatprep.subr.mxu0 0.0
        %1228 = vmatpush1.xpose.msra.mxu0 0.0
        %1229 = vmatprep.subr.mxu0 0.0
        %1230 = vmatpush1.xpose.msra.mxu0 0.0
        %1231 = vmatprep.subr.mxu0 0.0
        %1232 = vmatpush1.xpose.msra.mxu0 0.0
        %1233 = vmatprep.subr.mxu0 0.0
        %1234 = vmatpush1.xpose.msra.mxu0 0.0
        %1235 = vmatprep.subr.mxu0 0.0
        %1236 = vmatpush1.xpose.msra.mxu0 0.0
        %1237 = vmatprep.subr.mxu0 0.0
        %1238 = vmatpush1.xpose.msra.mxu0 0.0
        %1239 = vmatprep.subr.mxu0 0.0
        %1240 = vmatpush1.xpose.msra.mxu0 0.0
        %1241 = vmatprep.subr.mxu0 0.0
        %1242 = vmatpush1.xpose.msra.mxu0 0.0
        %1243 = vmatprep.subr.mxu0 0.0
        %1244 = vmatpush1.xpose.msra.mxu0 0.0
        %1245 = vmatprep.subr.mxu0 0.0
        %1246 = vmatpush1.xpose.msra.mxu0 0.0
        %1247 = vmatprep.subr.mxu0 0.0
        %1248 = vmatpush1.xpose.msra.mxu0 0.0
        %1249 = vmatprep.subr.mxu0 0.0
        %1250 = vmatpush1.xpose.msra.mxu0 0.0
        %1251 = vmatprep.subr.mxu0 0.0
        %1252 = vmatpush1.xpose.msra.mxu0 0.0
        %1253 = vmatprep.subr.mxu0 0.0
        %1254 = vmatpush1.xpose.msra.mxu0 0.0
        %1255 = vmatprep.subr.mxu0 0.0
        %1256 = vmatpush1.xpose.msra.mxu0 0.0
        %1257 = vmatprep.mubr.f32.mxu0 0.0
        %v1258 = vand.u32 %v1188, 4294901760
        %v1259 = vsub.f32 %v1188, %v1258
        %v1260 = vand.u32 %v1259, 4294901760
        %v1261 = vsub.f32 %v1259, %v1260
        %v1262 = vand.u32 %v1261, 4294901760
        %1263 = vmatmul.mubr.f32.gmra.mrb[0].mxu0 %v1262
        %v1264 = vpop.f32.mrb[0].mxu0
        %v1265 = vadd.f32 0.0, %v1264
        %v1266 = vpop.f32.mrb[0].mxu0
        %1267 = vdwg.mxu0
        %1268 = vmatprep.subr.mxu0 0.0
        %v1269 = vand.u32 %v1190, 4294901760
        %v1270 = vsub.f32 %v1190, %v1269
        %v1271 = vand.u32 %v1270, 4294901760
        %v1272 = vsub.f32 %v1270, %v1271
        %v1273 = vand.u32 %v1272, 4294901760
        %1274 = vmatpush1.xpose.msra.mxu0 %v1273
        %1275 = vmatprep.subr.mxu0 0.0
        %1276 = vmatpush1.xpose.msra.mxu0 0.0
        %1277 = vmatprep.subr.mxu0 0.0
        %1278 = vmatpush1.xpose.msra.mxu0 0.0
        %1279 = vmatprep.subr.mxu0 0.0
        %1280 = vmatpush1.xpose.msra.mxu0 0.0
        %1281 = vmatprep.subr.mxu0 0.0
        %1282 = vmatpush1.xpose.msra.mxu0 0.0
        %1283 = vmatprep.subr.mxu0 0.0
        %1284 = vmatpush1.xpose.msra.mxu0 0.0
        %1285 = vmatprep.subr.mxu0 0.0
        %1286 = vmatpush1.xpose.msra.mxu0 0.0
        %1287 = vmatprep.subr.mxu0 0.0
        %1288 = vmatpush1.xpose.msra.mxu0 0.0
        %1289 = vmatprep.subr.mxu0 0.0
        %1290 = vmatpush1.xpose.msra.mxu0 0.0
        %1291 = vmatprep.subr.mxu0 0.0
        %1292 = vmatpush1.xpose.msra.mxu0 0.0
        %1293 = vmatprep.subr.mxu0 0.0
        %1294 = vmatpush1.xpose.msra.mxu0 0.0
        %1295 = vmatprep.subr.mxu0 0.0
        %1296 = vmatpush1.xpose.msra.mxu0 0.0
        %1297 = vmatprep.subr.mxu0 0.0
        %1298 = vmatpush1.xpose.msra.mxu0 0.0
        %1299 = vmatprep.subr.mxu0 0.0
        %1300 = vmatpush1.xpose.msra.mxu0 0.0
        %1301 = vmatprep.subr.mxu0 0.0
        %1302 = vmatpush1.xpose.msra.mxu0 0.0
        %1303 = vmatprep.subr.mxu0 0.0
        %1304 = vmatpush1.xpose.msra.mxu0 0.0
        %1305 = vmatprep.subr.mxu0 0.0
        %1306 = vmatpush1.xpose.msra.mxu0 0.0
        %1307 = vmatprep.subr.mxu0 0.0
        %1308 = vmatpush1.xpose.msra.mxu0 0.0
        %1309 = vmatprep.subr.mxu0 0.0
        %1310 = vmatpush1.xpose.msra.mxu0 0.0
        %1311 = vmatprep.subr.mxu0 0.0
        %1312 = vmatpush1.xpose.msra.mxu0 0.0
        %1313 = vmatprep.subr.mxu0 0.0
        %1314 = vmatpush1.xpose.msra.mxu0 0.0
        %1315 = vmatprep.subr.mxu0 0.0
        %1316 = vmatpush1.xpose.msra.mxu0 0.0
        %1317 = vmatprep.subr.mxu0 0.0
        %1318 = vmatpush1.xpose.msra.mxu0 0.0
        %1319 = vmatprep.subr.mxu0 0.0
        %1320 = vmatpush1.xpose.msra.mxu0 0.0
        %1321 = vmatprep.subr.mxu0 0.0
        %1322 = vmatpush1.xpose.msra.mxu0 0.0
        %1323 = vmatprep.subr.mxu0 0.0
        %1324 = vmatpush1.xpose.msra.mxu0 0.0
        %1325 = vmatprep.subr.mxu0 0.0
        %1326 = vmatpush1.xpose.msra.mxu0 0.0
        %1327 = vmatprep.subr.mxu0 0.0
        %1328 = vmatpush1.xpose.msra.mxu0 0.0
        %1329 = vmatprep.subr.mxu0 0.0
        %1330 = vmatpush1.xpose.msra.mxu0 0.0
        %1331 = vmatprep.subr.mxu0 0.0
        %1332 = vmatpush1.xpose.msra.mxu0 0.0
        %1333 = vmatprep.subr.mxu0 0.0
        %1334 = vmatpush1.xpose.msra.mxu0 0.0
        %1335 = vmatprep.subr.mxu0 0.0
        %1336 = vmatpush1.xpose.msra.mxu0 0.0
        %1337 = vmatprep.mubr.f32.mxu0 0.0
        %v1338 = vand.u32 %v1188, 4294901760
        %1339 = vmatmul.mubr.f32.gmra.mrb[0].mxu0 %v1338
        %v1340 = vpop.f32.mrb[0].mxu0
        %v1341 = vadd.f32 %v1265, %v1340
        %v1342 = vpop.f32.mrb[0].mxu0
        %1343 = vdwg.mxu0
        %1344 = vmatprep.subr.mxu0 0.0
        %v1345 = vand.u32 %v1190, 4294901760
        %v1346 = vsub.f32 %v1190, %v1345
        %1347 = vmatpush1.xpose.msra.mxu0 %v1346
        %1348 = vmatprep.subr.mxu0 0.0
        %1349 = vmatpush1.xpose.msra.mxu0 0.0
        %1350 = vmatprep.subr.mxu0 0.0
        %1351 = vmatpush1.xpose.msra.mxu0 0.0
        %1352 = vmatprep.subr.mxu0 0.0
        %1353 = vmatpush1.xpose.msra.mxu0 0.0
        %1354 = vmatprep.subr.mxu0 0.0
        %1355 = vmatpush1.xpose.msra.mxu0 0.0
        %1356 = vmatprep.subr.mxu0 0.0
        %1357 = vmatpush1.xpose.msra.mxu0 0.0
        %1358 = vmatprep.subr.mxu0 0.0
        %1359 = vmatpush1.xpose.msra.mxu0 0.0
        %1360 = vmatprep.subr.mxu0 0.0
        %1361 = vmatpush1.xpose.msra.mxu0 0.0
        %1362 = vmatprep.subr.mxu0 0.0
        %1363 = vmatpush1.xpose.msra.mxu0 0.0
        %1364 = vmatprep.subr.mxu0 0.0
        %1365 = vmatpush1.xpose.msra.mxu0 0.0
        %1366 = vmatprep.subr.mxu0 0.0
        %1367 = vmatpush1.xpose.msra.mxu0 0.0
        %1368 = vmatprep.subr.mxu0 0.0
        %1369 = vmatpush1.xpose.msra.mxu0 0.0
        %1370 = vmatprep.subr.mxu0 0.0
        %1371 = vmatpush1.xpose.msra.mxu0 0.0
        %1372 = vmatprep.subr.mxu0 0.0
        %1373 = vmatpush1.xpose.msra.mxu0 0.0
        %1374 = vmatprep.subr.mxu0 0.0
        %1375 = vmatpush1.xpose.msra.mxu0 0.0
        %1376 = vmatprep.subr.mxu0 0.0
        %1377 = vmatpush1.xpose.msra.mxu0 0.0
        %1378 = vmatprep.subr.mxu0 0.0
        %1379 = vmatpush1.xpose.msra.mxu0 0.0
        %1380 = vmatprep.subr.mxu0 0.0
        %1381 = vmatpush1.xpose.msra.mxu0 0.0
        %1382 = vmatprep.subr.mxu0 0.0
        %1383 = vmatpush1.xpose.msra.mxu0 0.0
        %1384 = vmatprep.subr.mxu0 0.0
        %1385 = vmatpush1.xpose.msra.mxu0 0.0
        %1386 = vmatprep.subr.mxu0 0.0
        %1387 = vmatpush1.xpose.msra.mxu0 0.0
        %1388 = vmatprep.subr.mxu0 0.0
        %1389 = vmatpush1.xpose.msra.mxu0 0.0
        %1390 = vmatprep.subr.mxu0 0.0
        %1391 = vmatpush1.xpose.msra.mxu0 0.0
        %1392 = vmatprep.subr.mxu0 0.0
        %1393 = vmatpush1.xpose.msra.mxu0 0.0
        %1394 = vmatprep.subr.mxu0 0.0
        %1395 = vmatpush1.xpose.msra.mxu0 0.0
        %1396 = vmatprep.subr.mxu0 0.0
        %1397 = vmatpush1.xpose.msra.mxu0 0.0
        %1398 = vmatprep.subr.mxu0 0.0
        %1399 = vmatpush1.xpose.msra.mxu0 0.0
        %1400 = vmatprep.subr.mxu0 0.0
        %1401 = vmatpush1.xpose.msra.mxu0 0.0
        %1402 = vmatprep.subr.mxu0 0.0
        %1403 = vmatpush1.xpose.msra.mxu0 0.0
        %1404 = vmatprep.subr.mxu0 0.0
        %1405 = vmatpush1.xpose.msra.mxu0 0.0
        %1406 = vmatprep.subr.mxu0 0.0
        %1407 = vmatpush1.xpose.msra.mxu0 0.0
        %1408 = vmatprep.subr.mxu0 0.0
        %1409 = vmatpush1.xpose.msra.mxu0 0.0
        %1410 = vmatprep.mubr.f32.mxu0 0.0
        %v1411 = vand.u32 %v1188, 4294901760
        %v1412 = vsub.f32 %v1188, %v1411
        %1413 = vmatmul.mubr.f32.gmra.mrb[0].mxu0 %v1412
        %v1414 = vpop.f32.mrb[0].mxu0
        %v1415 = vadd.f32 %v1341, %v1414
        %v1416 = vpop.f32.mrb[0].mxu0
        %1417 = vdwg.mxu0
        %1418 = vmatprep.subr.mxu0 0.0
        %v1419 = vand.u32 %v1190, 4294901760
        %1420 = vmatpush1.xpose.msra.mxu0 %v1419
        %1421 = vmatprep.subr.mxu0 0.0
        %1422 = vmatpush1.xpose.msra.mxu0 0.0
        %1423 = vmatprep.subr.mxu0 0.0
        %1424 = vmatpush1.xpose.msra.mxu0 0.0
        %1425 = vmatprep.subr.mxu0 0.0
        %1426 = vmatpush1.xpose.msra.mxu0 0.0
        %1427 = vmatprep.subr.mxu0 0.0
        %1428 = vmatpush1.xpose.msra.mxu0 0.0
        %1429 = vmatprep.subr.mxu0 0.0
        %1430 = vmatpush1.xpose.msra.mxu0 0.0
        %1431 = vmatprep.subr.mxu0 0.0
        %1432 = vmatpush1.xpose.msra.mxu0 0.0
        %1433 = vmatprep.subr.mxu0 0.0
        %1434 = vmatpush1.xpose.msra.mxu0 0.0
        %1435 = vmatprep.subr.mxu0 0.0
        %1436 = vmatpush1.xpose.msra.mxu0 0.0
        %1437 = vmatprep.subr.mxu0 0.0
        %1438 = vmatpush1.xpose.msra.mxu0 0.0
        %1439 = vmatprep.subr.mxu0 0.0
        %1440 = vmatpush1.xpose.msra.mxu0 0.0
        %1441 = vmatprep.subr.mxu0 0.0
        %1442 = vmatpush1.xpose.msra.mxu0 0.0
        %1443 = vmatprep.subr.mxu0 0.0
        %1444 = vmatpush1.xpose.msra.mxu0 0.0
        %1445 = vmatprep.subr.mxu0 0.0
        %1446 = vmatpush1.xpose.msra.mxu0 0.0
        %1447 = vmatprep.subr.mxu0 0.0
        %1448 = vmatpush1.xpose.msra.mxu0 0.0
        %1449 = vmatprep.subr.mxu0 0.0
        %1450 = vmatpush1.xpose.msra.mxu0 0.0
        %1451 = vmatprep.subr.mxu0 0.0
        %1452 = vmatpush1.xpose.msra.mxu0 0.0
        %1453 = vmatprep.subr.mxu0 0.0
        %1454 = vmatpush1.xpose.msra.mxu0 0.0
        %1455 = vmatprep.subr.mxu0 0.0
        %1456 = vmatpush1.xpose.msra.mxu0 0.0
        %1457 = vmatprep.subr.mxu0 0.0
        %1458 = vmatpush1.xpose.msra.mxu0 0.0
        %1459 = vmatprep.subr.mxu0 0.0
        %1460 = vmatpush1.xpose.msra.mxu0 0.0
        %1461 = vmatprep.subr.mxu0 0.0
        %1462 = vmatpush1.xpose.msra.mxu0 0.0
        %1463 = vmatprep.subr.mxu0 0.0
        %1464 = vmatpush1.xpose.msra.mxu0 0.0
        %1465 = vmatprep.subr.mxu0 0.0
        %1466 = vmatpush1.xpose.msra.mxu0 0.0
        %1467 = vmatprep.subr.mxu0 0.0
        %1468 = vmatpush1.xpose.msra.mxu0 0.0
        %1469 = vmatprep.subr.mxu0 0.0
        %1470 = vmatpush1.xpose.msra.mxu0 0.0
        %1471 = vmatprep.subr.mxu0 0.0
        %1472 = vmatpush1.xpose.msra.mxu0 0.0
        %1473 = vmatprep.subr.mxu0 0.0
        %1474 = vmatpush1.xpose.msra.mxu0 0.0
        %1475 = vmatprep.subr.mxu0 0.0
        %1476 = vmatpush1.xpose.msra.mxu0 0.0
        %1477 = vmatprep.subr.mxu0 0.0
        %1478 = vmatpush1.xpose.msra.mxu0 0.0
        %1479 = vmatprep.subr.mxu0 0.0
        %1480 = vmatpush1.xpose.msra.mxu0 0.0
        %1481 = vmatprep.subr.mxu0 0.0
        %1482 = vmatpush1.xpose.msra.mxu0 0.0
        %1483 = vmatprep.mubr.f32.mxu0 0.0
        %v1484 = vand.u32 %v1188, 4294901760
        %v1485 = vsub.f32 %v1188, %v1484
        %v1486 = vand.u32 %v1485, 4294901760
        %1487 = vmatmul.mubr.f32.gmra.mrb[0].mxu0 %v1486
        %v1488 = vpop.f32.mrb[0].mxu0
        %v1489 = vadd.f32 %v1415, %v1488
        %v1490 = vpop.f32.mrb[0].mxu0
        %1491 = vdwg.mxu0
        %1492 = vmatprep.subr.mxu0 0.0
        %v1493 = vand.u32 %v1190, 4294901760
        %v1494 = vsub.f32 %v1190, %v1493
        %v1495 = vand.u32 %v1494, 4294901760
        %1496 = vmatpush1.xpose.msra.mxu0 %v1495
        %1497 = vmatprep.subr.mxu0 0.0
        %1498 = vmatpush1.xpose.msra.mxu0 0.0
        %1499 = vmatprep.subr.mxu0 0.0
        %1500 = vmatpush1.xpose.msra.mxu0 0.0
        %1501 = vmatprep.subr.mxu0 0.0
        %1502 = vmatpush1.xpose.msra.mxu0 0.0
        %1503 = vmatprep.subr.mxu0 0.0
        %1504 = vmatpush1.xpose.msra.mxu0 0.0
        %1505 = vmatprep.subr.mxu0 0.0
        %1506 = vmatpush1.xpose.msra.mxu0 0.0
        %1507 = vmatprep.subr.mxu0 0.0
        %1508 = vmatpush1.xpose.msra.mxu0 0.0
        %1509 = vmatprep.subr.mxu0 0.0
        %1510 = vmatpush1.xpose.msra.mxu0 0.0
        %1511 = vmatprep.subr.mxu0 0.0
        %1512 = vmatpush1.xpose.msra.mxu0 0.0
        %1513 = vmatprep.subr.mxu0 0.0
        %1514 = vmatpush1.xpose.msra.mxu0 0.0
        %1515 = vmatprep.subr.mxu0 0.0
        %1516 = vmatpush1.xpose.msra.mxu0 0.0
        %1517 = vmatprep.subr.mxu0 0.0
        %1518 = vmatpush1.xpose.msra.mxu0 0.0
        %1519 = vmatprep.subr.mxu0 0.0
        %1520 = vmatpush1.xpose.msra.mxu0 0.0
        %1521 = vmatprep.subr.mxu0 0.0
        %1522 = vmatpush1.xpose.msra.mxu0 0.0
        %1523 = vmatprep.subr.mxu0 0.0
        %1524 = vmatpush1.xpose.msra.mxu0 0.0
        %1525 = vmatprep.subr.mxu0 0.0
        %1526 = vmatpush1.xpose.msra.mxu0 0.0
        %1527 = vmatprep.subr.mxu0 0.0
        %1528 = vmatpush1.xpose.msra.mxu0 0.0
        %1529 = vmatprep.subr.mxu0 0.0
        %1530 = vmatpush1.xpose.msra.mxu0 0.0
        %1531 = vmatprep.subr.mxu0 0.0
        %1532 = vmatpush1.xpose.msra.mxu0 0.0
        %1533 = vmatprep.subr.mxu0 0.0
        %1534 = vmatpush1.xpose.msra.mxu0 0.0
        %1535 = vmatprep.subr.mxu0 0.0
        %1536 = vmatpush1.xpose.msra.mxu0 0.0
        %1537 = vmatprep.subr.mxu0 0.0
        %1538 = vmatpush1.xpose.msra.mxu0 0.0
        %1539 = vmatprep.subr.mxu0 0.0
        %1540 = vmatpush1.xpose.msra.mxu0 0.0
        %1541 = vmatprep.subr.mxu0 0.0
        %1542 = vmatpush1.xpose.msra.mxu0 0.0
        %1543 = vmatprep.subr.mxu0 0.0
        %1544 = vmatpush1.xpose.msra.mxu0 0.0
        %1545 = vmatprep.subr.mxu0 0.0
        %1546 = vmatpush1.xpose.msra.mxu0 0.0
        %1547 = vmatprep.subr.mxu0 0.0
        %1548 = vmatpush1.xpose.msra.mxu0 0.0
        %1549 = vmatprep.subr.mxu0 0.0
        %1550 = vmatpush1.xpose.msra.mxu0 0.0
        %1551 = vmatprep.subr.mxu0 0.0
        %1552 = vmatpush1.xpose.msra.mxu0 0.0
        %1553 = vmatprep.subr.mxu0 0.0
        %1554 = vmatpush1.xpose.msra.mxu0 0.0
        %1555 = vmatprep.subr.mxu0 0.0
        %1556 = vmatpush1.xpose.msra.mxu0 0.0
        %1557 = vmatprep.subr.mxu0 0.0
        %1558 = vmatpush1.xpose.msra.mxu0 0.0
        %1559 = vmatprep.mubr.f32.mxu0 0.0
        %v1560 = vand.u32 %v1188, 4294901760
        %1561 = vmatmul.mubr.f32.gmra.mrb[0].mxu0 %v1560
        %v1562 = vpop.f32.mrb[0].mxu0
        %v1563 = vadd.f32 %v1489, %v1562
        %v1564 = vpop.f32.mrb[0].mxu0
        %1565 = vdwg.mxu0
        %1566 = vmatprep.subr.mxu0 0.0
        %v1567 = vand.u32 %v1190, 4294901760
        %1568 = vmatpush1.xpose.msra.mxu0 %v1567
        %1569 = vmatprep.subr.mxu0 0.0
        %1570 = vmatpush1.xpose.msra.mxu0 0.0
        %1571 = vmatprep.subr.mxu0 0.0
        %1572 = vmatpush1.xpose.msra.mxu0 0.0
        %1573 = vmatprep.subr.mxu0 0.0
        %1574 = vmatpush1.xpose.msra.mxu0 0.0
        %1575 = vmatprep.subr.mxu0 0.0
        %1576 = vmatpush1.xpose.msra.mxu0 0.0
        %1577 = vmatprep.subr.mxu0 0.0
        %1578 = vmatpush1.xpose.msra.mxu0 0.0
        %1579 = vmatprep.subr.mxu0 0.0
        %1580 = vmatpush1.xpose.msra.mxu0 0.0
        %1581 = vmatprep.subr.mxu0 0.0
        %1582 = vmatpush1.xpose.msra.mxu0 0.0
        %1583 = vmatprep.subr.mxu0 0.0
        %1584 = vmatpush1.xpose.msra.mxu0 0.0
        %1585 = vmatprep.subr.mxu0 0.0
        %1586 = vmatpush1.xpose.msra.mxu0 0.0
        %1587 = vmatprep.subr.mxu0 0.0
        %1588 = vmatpush1.xpose.msra.mxu0 0.0
        %1589 = vmatprep.subr.mxu0 0.0
        %1590 = vmatpush1.xpose.msra.mxu0 0.0
        %1591 = vmatprep.subr.mxu0 0.0
        %1592 = vmatpush1.xpose.msra.mxu0 0.0
        %1593 = vmatprep.subr.mxu0 0.0
        %1594 = vmatpush1.xpose.msra.mxu0 0.0
        %1595 = vmatprep.subr.mxu0 0.0
        %1596 = vmatpush1.xpose.msra.mxu0 0.0
        %1597 = vmatprep.subr.mxu0 0.0
        %1598 = vmatpush1.xpose.msra.mxu0 0.0
        %1599 = vmatprep.subr.mxu0 0.0
        %1600 = vmatpush1.xpose.msra.mxu0 0.0
        %1601 = vmatprep.subr.mxu0 0.0
        %1602 = vmatpush1.xpose.msra.mxu0 0.0
        %1603 = vmatprep.subr.mxu0 0.0
        %1604 = vmatpush1.xpose.msra.mxu0 0.0
        %1605 = vmatprep.subr.mxu0 0.0
        %1606 = vmatpush1.xpose.msra.mxu0 0.0
        %1607 = vmatprep.subr.mxu0 0.0
        %1608 = vmatpush1.xpose.msra.mxu0 0.0
        %1609 = vmatprep.subr.mxu0 0.0
        %1610 = vmatpush1.xpose.msra.mxu0 0.0
        %1611 = vmatprep.subr.mxu0 0.0
        %1612 = vmatpush1.xpose.msra.mxu0 0.0
        %1613 = vmatprep.subr.mxu0 0.0
        %1614 = vmatpush1.xpose.msra.mxu0 0.0
        %1615 = vmatprep.subr.mxu0 0.0
        %1616 = vmatpush1.xpose.msra.mxu0 0.0
        %1617 = vmatprep.subr.mxu0 0.0
        %1618 = vmatpush1.xpose.msra.mxu0 0.0
        %1619 = vmatprep.subr.mxu0 0.0
        %1620 = vmatpush1.xpose.msra.mxu0 0.0
        %1621 = vmatprep.subr.mxu0 0.0
        %1622 = vmatpush1.xpose.msra.mxu0 0.0
        %1623 = vmatprep.subr.mxu0 0.0
        %1624 = vmatpush1.xpose.msra.mxu0 0.0
        %1625 = vmatprep.subr.mxu0 0.0
        %1626 = vmatpush1.xpose.msra.mxu0 0.0
        %1627 = vmatprep.subr.mxu0 0.0
        %1628 = vmatpush1.xpose.msra.mxu0 0.0
        %1629 = vmatprep.subr.mxu0 0.0
        %1630 = vmatpush1.xpose.msra.mxu0 0.0
        %1631 = vmatprep.mubr.f32.mxu0 0.0
        %v1632 = vand.u32 %v1188, 4294901760
        %1633 = vmatmul.mubr.f32.gmra.mrb[0].mxu0 %v1632
        %v1634 = vpop.f32.mrb[0].mxu0
        %v1635 = vadd.f32 %v1563, %v1634
        %v1636 = vpop.f32.mrb[0].mxu0
        %1637 = vdwg.mxu0
        %v1638 = vmul.f32 %v1635, 0.35355338
        %v1639 = vlaneseq
        %v1640 = vshrl.u32 %v1639, 7
        %v1641 = vsub.s32 0, %v1640
        %v1642 = vrot.slane %v1183, %v1641
        %v1643 = vadd.f32 %v1638, %v1642
        %v1644 = vsel %vm1187, %v1643, -inf
        %1645 = vmax.xlane.f32.xlu0 %v1644
        %v1646 = vpop.xlane.xlu0 %1645
        %v1647 = vsub.f32 %v1643, %v1646
        %v1648 = vmul.f32 %v1647, 1.442695
        %v1649 = vpow.pop %v1648
        %v1650 = vsel %vm1187, %v1649, 0.0
        %1651 = vadd.xlane.f32.xlu0 %v1650
        %v1652 = vpop.xlane.xlu0 %1651
        %v1653 = vrcp.pop %v1652
        %v1654 = vmul.f32 %v1649, %v1653
        %1655 = vrot.lane.b32.xlu0 %v1174, 64
        %v1656 = vpop.permute.xlu0 %1655
        %v1659 = vsel %vm1187, %v1654, 0
        %1661 = vmatprep.subr.mxu0 0.0
        %v1662 = vand.u32 %v1656, 4294901760
        %1663 = vmatpush1.msra.mxu0 %v1662
        %1664 = vmatprep.subr.mxu0 0.0
        %1665 = vmatpush1.msra.mxu0 0.0
        %1666 = vmatprep.subr.mxu0 0.0
        %1667 = vmatpush1.msra.mxu0 0.0
        %1668 = vmatprep.subr.mxu0 0.0
        %1669 = vmatpush1.msra.mxu0 0.0
        %1670 = vmatprep.subr.mxu0 0.0
        %1671 = vmatpush1.msra.mxu0 0.0
        %1672 = vmatprep.subr.mxu0 0.0
        %1673 = vmatpush1.msra.mxu0 0.0
        %1674 = vmatprep.subr.mxu0 0.0
        %1675 = vmatpush1.msra.mxu0 0.0
        %1676 = vmatprep.subr.mxu0 0.0
        %1677 = vmatpush1.msra.mxu0 0.0
        %1678 = vmatprep.subr.mxu0 0.0
        %1679 = vmatpush1.msra.mxu0 0.0
        %1680 = vmatprep.subr.mxu0 0.0
        %1681 = vmatpush1.msra.mxu0 0.0
        %1682 = vmatprep.subr.mxu0 0.0
        %1683 = vmatpush1.msra.mxu0 0.0
        %1684 = vmatprep.subr.mxu0 0.0
        %1685 = vmatpush1.msra.mxu0 0.0
        %1686 = vmatprep.subr.mxu0 0.0
        %1687 = vmatpush1.msra.mxu0 0.0
        %1688 = vmatprep.subr.mxu0 0.0
        %1689 = vmatpush1.msra.mxu0 0.0
        %1690 = vmatprep.subr.mxu0 0.0
        %1691 = vmatpush1.msra.mxu0 0.0
        %1692 = vmatprep.subr.mxu0 0.0
        %1693 = vmatpush1.msra.mxu0 0.0
        %1694 = vmatprep.subr.mxu0 0.0
        %1695 = vmatpush1.msra.mxu0 0.0
        %1696 = vmatprep.subr.mxu0 0.0
        %1697 = vmatpush1.msra.mxu0 0.0
        %1698 = vmatprep.subr.mxu0 0.0
        %1699 = vmatpush1.msra.mxu0 0.0
        %1700 = vmatprep.subr.mxu0 0.0
        %1701 = vmatpush1.msra.mxu0 0.0
        %1702 = vmatprep.subr.mxu0 0.0
        %1703 = vmatpush1.msra.mxu0 0.0
        %1704 = vmatprep.subr.mxu0 0.0
        %1705 = vmatpush1.msra.mxu0 0.0
        %1706 = vmatprep.subr.mxu0 0.0
        %1707 = vmatpush1.msra.mxu0 0.0
        %1708 = vmatprep.subr.mxu0 0.0
        %1709 = vmatpush1.msra.mxu0 0.0
        %1710 = vmatprep.subr.mxu0 0.0
        %1711 = vmatpush1.msra.mxu0 0.0
        %1712 = vmatprep.subr.mxu0 0.0
        %1713 = vmatpush1.msra.mxu0 0.0
        %1714 = vmatprep.subr.mxu0 0.0
        %1715 = vmatpush1.msra.mxu0 0.0
        %1716 = vmatprep.subr.mxu0 0.0
        %1717 = vmatpush1.msra.mxu0 0.0
        %1718 = vmatprep.subr.mxu0 0.0
        %1719 = vmatpush1.msra.mxu0 0.0
        %1720 = vmatprep.subr.mxu0 0.0
        %1721 = vmatpush1.msra.mxu0 0.0
        %1722 = vmatprep.subr.mxu0 0.0
        %1723 = vmatpush1.msra.mxu0 0.0
        %1724 = vmatprep.subr.mxu0 0.0
        %1725 = vmatpush1.msra.mxu0 0.0
        %1726 = vmatprep.mubr.f32.mxu0 0.0
        %v1727 = vand.u32 %v1659, 4294901760
        %v1728 = vsub.f32 %v1659, %v1727
        %v1729 = vand.u32 %v1728, 4294901760
        %v1730 = vsub.f32 %v1728, %v1729
        %v1731 = vand.u32 %v1730, 4294901760
        %1732 = vmatmul.mubr.f32.gmra.mrb[0].mxu0 %v1731
        %v1733 = vpop.f32.mrb[0].mxu0
        %v1734 = vadd.f32 0.0, %v1733
        %v1735 = vpop.f32.mrb[0].mxu0
        %1736 = vdwg.mxu0
        %1737 = vmatprep.subr.mxu0 0.0
        %v1738 = vand.u32 %v1656, 4294901760
        %v1739 = vsub.f32 %v1656, %v1738
        %v1740 = vand.u32 %v1739, 4294901760
        %v1741 = vsub.f32 %v1739, %v1740
        %v1742 = vand.u32 %v1741, 4294901760
        %1743 = vmatpush1.msra.mxu0 %v1742
        %1744 = vmatprep.subr.mxu0 0.0
        %1745 = vmatpush1.msra.mxu0 0.0
        %1746 = vmatprep.subr.mxu0 0.0
        %1747 = vmatpush1.msra.mxu0 0.0
        %1748 = vmatprep.subr.mxu0 0.0
        %1749 = vmatpush1.msra.mxu0 0.0
        %1750 = vmatprep.subr.mxu0 0.0
        %1751 = vmatpush1.msra.mxu0 0.0
        %1752 = vmatprep.subr.mxu0 0.0
        %1753 = vmatpush1.msra.mxu0 0.0
        %1754 = vmatprep.subr.mxu0 0.0
        %1755 = vmatpush1.msra.mxu0 0.0
        %1756 = vmatprep.subr.mxu0 0.0
        %1757 = vmatpush1.msra.mxu0 0.0
        %1758 = vmatprep.subr.mxu0 0.0
        %1759 = vmatpush1.msra.mxu0 0.0
        %1760 = vmatprep.subr.mxu0 0.0
        %1761 = vmatpush1.msra.mxu0 0.0
        %1762 = vmatprep.subr.mxu0 0.0
        %1763 = vmatpush1.msra.mxu0 0.0
        %1764 = vmatprep.subr.mxu0 0.0
        %1765 = vmatpush1.msra.mxu0 0.0
        %1766 = vmatprep.subr.mxu0 0.0
        %1767 = vmatpush1.msra.mxu0 0.0
        %1768 = vmatprep.subr.mxu0 0.0
        %1769 = vmatpush1.msra.mxu0 0.0
        %1770 = vmatprep.subr.mxu0 0.0
        %1771 = vmatpush1.msra.mxu0 0.0
        %1772 = vmatprep.subr.mxu0 0.0
        %1773 = vmatpush1.msra.mxu0 0.0
        %1774 = vmatprep.subr.mxu0 0.0
        %1775 = vmatpush1.msra.mxu0 0.0
        %1776 = vmatprep.subr.mxu0 0.0
        %1777 = vmatpush1.msra.mxu0 0.0
        %1778 = vmatprep.subr.mxu0 0.0
        %1779 = vmatpush1.msra.mxu0 0.0
        %1780 = vmatprep.subr.mxu0 0.0
        %1781 = vmatpush1.msra.mxu0 0.0
        %1782 = vmatprep.subr.mxu0 0.0
        %1783 = vmatpush1.msra.mxu0 0.0
        %1784 = vmatprep.subr.mxu0 0.0
        %1785 = vmatpush1.msra.mxu0 0.0
        %1786 = vmatprep.subr.mxu0 0.0
        %1787 = vmatpush1.msra.mxu0 0.0
        %1788 = vmatprep.subr.mxu0 0.0
        %1789 = vmatpush1.msra.mxu0 0.0
        %1790 = vmatprep.subr.mxu0 0.0
        %1791 = vmatpush1.msra.mxu0 0.0
        %1792 = vmatprep.subr.mxu0 0.0
        %1793 = vmatpush1.msra.mxu0 0.0
        %1794 = vmatprep.subr.mxu0 0.0
        %1795 = vmatpush1.msra.mxu0 0.0
        %1796 = vmatprep.subr.mxu0 0.0
        %1797 = vmatpush1.msra.mxu0 0.0
        %1798 = vmatprep.subr.mxu0 0.0
        %1799 = vmatpush1.msra.mxu0 0.0
        %1800 = vmatprep.subr.mxu0 0.0
        %1801 = vmatpush1.msra.mxu0 0.0
        %1802 = vmatprep.subr.mxu0 0.0
        %1803 = vmatpush1.msra.mxu0 0.0
        %1804 = vmatprep.subr.mxu0 0.0
        %1805 = vmatpush1.msra.mxu0 0.0
        %1806 = vmatprep.mubr.f32.mxu0 0.0
        %v1807 = vand.u32 %v1659, 4294901760
        %1808 = vmatmul.mubr.f32.gmra.mrb[0].mxu0 %v1807
        %v1809 = vpop.f32.mrb[0].mxu0
        %v1810 = vadd.f32 %v1734, %v1809
        %v1811 = vpop.f32.mrb[0].mxu0
        %1812 = vdwg.mxu0
        %1813 = vmatprep.subr.mxu0 0.0
        %v1814 = vand.u32 %v1656, 4294901760
        %v1815 = vsub.f32 %v1656, %v1814
        %1816 = vmatpush1.msra.mxu0 %v1815
        %1817 = vmatprep.subr.mxu0 0.0
        %1818 = vmatpush1.msra.mxu0 0.0
        %1819 = vmatprep.subr.mxu0 0.0
        %1820 = vmatpush1.msra.mxu0 0.0
        %1821 = vmatprep.subr.mxu0 0.0
        %1822 = vmatpush1.msra.mxu0 0.0
        %1823 = vmatprep.subr.mxu0 0.0
        %1824 = vmatpush1.msra.mxu0 0.0
        %1825 = vmatprep.subr.mxu0 0.0
        %1826 = vmatpush1.msra.mxu0 0.0
        %1827 = vmatprep.subr.mxu0 0.0
        %1828 = vmatpush1.msra.mxu0 0.0
        %1829 = vmatprep.subr.mxu0 0.0
        %1830 = vmatpush1.msra.mxu0 0.0
        %1831 = vmatprep.subr.mxu0 0.0
        %1832 = vmatpush1.msra.mxu0 0.0
        %1833 = vmatprep.subr.mxu0 0.0
        %1834 = vmatpush1.msra.mxu0 0.0
        %1835 = vmatprep.subr.mxu0 0.0
        %1836 = vmatpush1.msra.mxu0 0.0
        %1837 = vmatprep.subr.mxu0 0.0
        %1838 = vmatpush1.msra.mxu0 0.0
        %1839 = vmatprep.subr.mxu0 0.0
        %1840 = vmatpush1.msra.mxu0 0.0
        %1841 = vmatprep.subr.mxu0 0.0
        %1842 = vmatpush1.msra.mxu0 0.0
        %1843 = vmatprep.subr.mxu0 0.0
        %1844 = vmatpush1.msra.mxu0 0.0
        %1845 = vmatprep.subr.mxu0 0.0
        %1846 = vmatpush1.msra.mxu0 0.0
        %1847 = vmatprep.subr.mxu0 0.0
        %1848 = vmatpush1.msra.mxu0 0.0
        %1849 = vmatprep.subr.mxu0 0.0
        %1850 = vmatpush1.msra.mxu0 0.0
        %1851 = vmatprep.subr.mxu0 0.0
        %1852 = vmatpush1.msra.mxu0 0.0
        %1853 = vmatprep.subr.mxu0 0.0
        %1854 = vmatpush1.msra.mxu0 0.0
        %1855 = vmatprep.subr.mxu0 0.0
        %1856 = vmatpush1.msra.mxu0 0.0
        %1857 = vmatprep.subr.mxu0 0.0
        %1858 = vmatpush1.msra.mxu0 0.0
        %1859 = vmatprep.subr.mxu0 0.0
        %1860 = vmatpush1.msra.mxu0 0.0
        %1861 = vmatprep.subr.mxu0 0.0
        %1862 = vmatpush1.msra.mxu0 0.0
        %1863 = vmatprep.subr.mxu0 0.0
        %1864 = vmatpush1.msra.mxu0 0.0
        %1865 = vmatprep.subr.mxu0 0.0
        %1866 = vmatpush1.msra.mxu0 0.0
        %1867 = vmatprep.subr.mxu0 0.0
        %1868 = vmatpush1.msra.mxu0 0.0
        %1869 = vmatprep.subr.mxu0 0.0
        %1870 = vmatpush1.msra.mxu0 0.0
        %1871 = vmatprep.subr.mxu0 0.0
        %1872 = vmatpush1.msra.mxu0 0.0
        %1873 = vmatprep.subr.mxu0 0.0
        %1874 = vmatpush1.msra.mxu0 0.0
        %1875 = vmatprep.subr.mxu0 0.0
        %1876 = vmatpush1.msra.mxu0 0.0
        %1877 = vmatprep.subr.mxu0 0.0
        %1878 = vmatpush1.msra.mxu0 0.0
        %1879 = vmatprep.mubr.f32.mxu0 0.0
        %v1880 = vand.u32 %v1659, 4294901760
        %v1881 = vsub.f32 %v1659, %v1880
        %1882 = vmatmul.mubr.f32.gmra.mrb[0].mxu0 %v1881
        %v1883 = vpop.f32.mrb[0].mxu0
        %v1884 = vadd.f32 %v1810, %v1883
        %v1885 = vpop.f32.mrb[0].mxu0
        %1886 = vdwg.mxu0
        %1887 = vmatprep.subr.mxu0 0.0
        %v1888 = vand.u32 %v1656, 4294901760
        %1889 = vmatpush1.msra.mxu0 %v1888
        %1890 = vmatprep.subr.mxu0 0.0
        %1891 = vmatpush1.msra.mxu0 0.0
        %1892 = vmatprep.subr.mxu0 0.0
        %1893 = vmatpush1.msra.mxu0 0.0
        %1894 = vmatprep.subr.mxu0 0.0
        %1895 = vmatpush1.msra.mxu0 0.0
        %1896 = vmatprep.subr.mxu0 0.0
        %1897 = vmatpush1.msra.mxu0 0.0
        %1898 = vmatprep.subr.mxu0 0.0
        %1899 = vmatpush1.msra.mxu0 0.0
        %1900 = vmatprep.subr.mxu0 0.0
        %1901 = vmatpush1.msra.mxu0 0.0
        %1902 = vmatprep.subr.mxu0 0.0
        %1903 = vmatpush1.msra.mxu0 0.0
        %1904 = vmatprep.subr.mxu0 0.0
        %1905 = vmatpush1.msra.mxu0 0.0
        %1906 = vmatprep.subr.mxu0 0.0
        %1907 = vmatpush1.msra.mxu0 0.0
        %1908 = vmatprep.subr.mxu0 0.0
        %1909 = vmatpush1.msra.mxu0 0.0
        %1910 = vmatprep.subr.mxu0 0.0
        %1911 = vmatpush1.msra.mxu0 0.0
        %1912 = vmatprep.subr.mxu0 0.0
        %1913 = vmatpush1.msra.mxu0 0.0
        %1914 = vmatprep.subr.mxu0 0.0
        %1915 = vmatpush1.msra.mxu0 0.0
        %1916 = vmatprep.subr.mxu0 0.0
        %1917 = vmatpush1.msra.mxu0 0.0
        %1918 = vmatprep.subr.mxu0 0.0
        %1919 = vmatpush1.msra.mxu0 0.0
        %1920 = vmatprep.subr.mxu0 0.0
        %1921 = vmatpush1.msra.mxu0 0.0
        %1922 = vmatprep.subr.mxu0 0.0
        %1923 = vmatpush1.msra.mxu0 0.0
        %1924 = vmatprep.subr.mxu0 0.0
        %1925 = vmatpush1.msra.mxu0 0.0
        %1926 = vmatprep.subr.mxu0 0.0
        %1927 = vmatpush1.msra.mxu0 0.0
        %1928 = vmatprep.subr.mxu0 0.0
        %1929 = vmatpush1.msra.mxu0 0.0
        %1930 = vmatprep.subr.mxu0 0.0
        %1931 = vmatpush1.msra.mxu0 0.0
        %1932 = vmatprep.subr.mxu0 0.0
        %1933 = vmatpush1.msra.mxu0 0.0
        %1934 = vmatprep.subr.mxu0 0.0
        %1935 = vmatpush1.msra.mxu0 0.0
        %1936 = vmatprep.subr.mxu0 0.0
        %1937 = vmatpush1.msra.mxu0 0.0
        %1938 = vmatprep.subr.mxu0 0.0
        %1939 = vmatpush1.msra.mxu0 0.0
        %1940 = vmatprep.subr.mxu0 0.0
        %1941 = vmatpush1.msra.mxu0 0.0
        %1942 = vmatprep.subr.mxu0 0.0
        %1943 = vmatpush1.msra.mxu0 0.0
        %1944 = vmatprep.subr.mxu0 0.0
        %1945 = vmatpush1.msra.mxu0 0.0
        %1946 = vmatprep.subr.mxu0 0.0
        %1947 = vmatpush1.msra.mxu0 0.0
        %1948 = vmatprep.subr.mxu0 0.0
        %1949 = vmatpush1.msra.mxu0 0.0
        %1950 = vmatprep.subr.mxu0 0.0
        %1951 = vmatpush1.msra.mxu0 0.0
        %1952 = vmatprep.mubr.f32.mxu0 0.0
        %v1953 = vand.u32 %v1659, 4294901760
        %v1954 = vsub.f32 %v1659, %v1953
        %v1955 = vand.u32 %v1954, 4294901760
        %1956 = vmatmul.mubr.f32.gmra.mrb[0].mxu0 %v1955
        %v1957 = vpop.f32.mrb[0].mxu0
        %v1958 = vadd.f32 %v1884, %v1957
        %v1959 = vpop.f32.mrb[0].mxu0
        %1960 = vdwg.mxu0
        %1961 = vmatprep.subr.mxu0 0.0
        %v1962 = vand.u32 %v1656, 4294901760
        %v1963 = vsub.f32 %v1656, %v1962
        %v1964 = vand.u32 %v1963, 4294901760
        %1965 = vmatpush1.msra.mxu0 %v1964
        %1966 = vmatprep.subr.mxu0 0.0
        %1967 = vmatpush1.msra.mxu0 0.0
        %1968 = vmatprep.subr.mxu0 0.0
        %1969 = vmatpush1.msra.mxu0 0.0
        %1970 = vmatprep.subr.mxu0 0.0
        %1971 = vmatpush1.msra.mxu0 0.0
        %1972 = vmatprep.subr.mxu0 0.0
        %1973 = vmatpush1.msra.mxu0 0.0
        %1974 = vmatprep.subr.mxu0 0.0
        %1975 = vmatpush1.msra.mxu0 0.0
        %1976 = vmatprep.subr.mxu0 0.0
        %1977 = vmatpush1.msra.mxu0 0.0
        %1978 = vmatprep.subr.mxu0 0.0
        %1979 = vmatpush1.msra.mxu0 0.0
        %1980 = vmatprep.subr.mxu0 0.0
        %1981 = vmatpush1.msra.mxu0 0.0
        %1982 = vmatprep.subr.mxu0 0.0
        %1983 = vmatpush1.msra.mxu0 0.0
        %1984 = vmatprep.subr.mxu0 0.0
        %1985 = vmatpush1.msra.mxu0 0.0
        %1986 = vmatprep.subr.mxu0 0.0
        %1987 = vmatpush1.msra.mxu0 0.0
        %1988 = vmatprep.subr.mxu0 0.0
        %1989 = vmatpush1.msra.mxu0 0.0
        %1990 = vmatprep.subr.mxu0 0.0
        %1991 = vmatpush1.msra.mxu0 0.0
        %1992 = vmatprep.subr.mxu0 0.0
        %1993 = vmatpush1.msra.mxu0 0.0
        %1994 = vmatprep.subr.mxu0 0.0
        %1995 = vmatpush1.msra.mxu0 0.0
        %1996 = vmatprep.subr.mxu0 0.0
        %1997 = vmatpush1.msra.mxu0 0.0
        %1998 = vmatprep.subr.mxu0 0.0
        %1999 = vmatpush1.msra.mxu0 0.0
        %2000 = vmatprep.subr.mxu0 0.0
        %2001 = vmatpush1.msra.mxu0 0.0
        %2002 = vmatprep.subr.mxu0 0.0
        %2003 = vmatpush1.msra.mxu0 0.0
        %2004 = vmatprep.subr.mxu0 0.0
        %2005 = vmatpush1.msra.mxu0 0.0
        %2006 = vmatprep.subr.mxu0 0.0
        %2007 = vmatpush1.msra.mxu0 0.0
        %2008 = vmatprep.subr.mxu0 0.0
        %2009 = vmatpush1.msra.mxu0 0.0
        %2010 = vmatprep.subr.mxu0 0.0
        %2011 = vmatpush1.msra.mxu0 0.0
        %2012 = vmatprep.subr.mxu0 0.0
        %2013 = vmatpush1.msra.mxu0 0.0
        %2014 = vmatprep.subr.mxu0 0.0
        %2015 = vmatpush1.msra.mxu0 0.0
        %2016 = vmatprep.subr.mxu0 0.0
        %2017 = vmatpush1.msra.mxu0 0.0
        %2018 = vmatprep.subr.mxu0 0.0
        %2019 = vmatpush1.msra.mxu0 0.0
        %2020 = vmatprep.subr.mxu0 0.0
        %2021 = vmatpush1.msra.mxu0 0.0
        %2022 = vmatprep.subr.mxu0 0.0
        %2023 = vmatpush1.msra.mxu0 0.0
        %2024 = vmatprep.subr.mxu0 0.0
        %2025 = vmatpush1.msra.mxu0 0.0
        %2026 = vmatprep.subr.mxu0 0.0
        %2027 = vmatpush1.msra.mxu0 0.0
        %2028 = vmatprep.mubr.f32.mxu0 0.0
        %v2029 = vand.u32 %v1659, 4294901760
        %2030 = vmatmul.mubr.f32.gmra.mrb[0].mxu0 %v2029
        %v2031 = vpop.f32.mrb[0].mxu0
        %v2032 = vadd.f32 %v1958, %v2031
        %v2033 = vpop.f32.mrb[0].mxu0
        %2034 = vdwg.mxu0
        %2035 = vmatprep.subr.mxu0 0.0
        %v2036 = vand.u32 %v1656, 4294901760
        %2037 = vmatpush1.msra.mxu0 %v2036
        %2038 = vmatprep.subr.mxu0 0.0
        %2039 = vmatpush1.msra.mxu0 0.0
        %2040 = vmatprep.subr.mxu0 0.0
        %2041 = vmatpush1.msra.mxu0 0.0
        %2042 = vmatprep.subr.mxu0 0.0
        %2043 = vmatpush1.msra.mxu0 0.0
        %2044 = vmatprep.subr.mxu0 0.0
        %2045 = vmatpush1.msra.mxu0 0.0
        %2046 = vmatprep.subr.mxu0 0.0
        %2047 = vmatpush1.msra.mxu0 0.0
        %2048 = vmatprep.subr.mxu0 0.0
        %2049 = vmatpush1.msra.mxu0 0.0
        %2050 = vmatprep.subr.mxu0 0.0
        %2051 = vmatpush1.msra.mxu0 0.0
        %2052 = vmatprep.subr.mxu0 0.0
        %2053 = vmatpush1.msra.mxu0 0.0
        %2054 = vmatprep.subr.mxu0 0.0
        %2055 = vmatpush1.msra.mxu0 0.0
        %2056 = vmatprep.subr.mxu0 0.0
        %2057 = vmatpush1.msra.mxu0 0.0
        %2058 = vmatprep.subr.mxu0 0.0
        %2059 = vmatpush1.msra.mxu0 0.0
        %2060 = vmatprep.subr.mxu0 0.0
        %2061 = vmatpush1.msra.mxu0 0.0
        %2062 = vmatprep.subr.mxu0 0.0
        %2063 = vmatpush1.msra.mxu0 0.0
        %2064 = vmatprep.subr.mxu0 0.0
        %2065 = vmatpush1.msra.mxu0 0.0
        %2066 = vmatprep.subr.mxu0 0.0
        %2067 = vmatpush1.msra.mxu0 0.0
        %2068 = vmatprep.subr.mxu0 0.0
        %2069 = vmatpush1.msra.mxu0 0.0
        %2070 = vmatprep.subr.mxu0 0.0
        %2071 = vmatpush1.msra.mxu0 0.0
        %2072 = vmatprep.subr.mxu0 0.0
        %2073 = vmatpush1.msra.mxu0 0.0
        %2074 = vmatprep.subr.mxu0 0.0
        %2075 = vmatpush1.msra.mxu0 0.0
        %2076 = vmatprep.subr.mxu0 0.0
        %2077 = vmatpush1.msra.mxu0 0.0
        %2078 = vmatprep.subr.mxu0 0.0
        %2079 = vmatpush1.msra.mxu0 0.0
        %2080 = vmatprep.subr.mxu0 0.0
        %2081 = vmatpush1.msra.mxu0 0.0
        %2082 = vmatprep.subr.mxu0 0.0
        %2083 = vmatpush1.msra.mxu0 0.0
        %2084 = vmatprep.subr.mxu0 0.0
        %2085 = vmatpush1.msra.mxu0 0.0
        %2086 = vmatprep.subr.mxu0 0.0
        %2087 = vmatpush1.msra.mxu0 0.0
        %2088 = vmatprep.subr.mxu0 0.0
        %2089 = vmatpush1.msra.mxu0 0.0
        %2090 = vmatprep.subr.mxu0 0.0
        %2091 = vmatpush1.msra.mxu0 0.0
        %2092 = vmatprep.subr.mxu0 0.0
        %2093 = vmatpush1.msra.mxu0 0.0
        %2094 = vmatprep.subr.mxu0 0.0
        %2095 = vmatpush1.msra.mxu0 0.0
        %2096 = vmatprep.subr.mxu0 0.0
        %2097 = vmatpush1.msra.mxu0 0.0
        %2098 = vmatprep.subr.mxu0 0.0
        %2099 = vmatpush1.msra.mxu0 0.0
        %2100 = vmatprep.mubr.f32.mxu0 0.0
        %v2101 = vand.u32 %v1659, 4294901760
        %2102 = vmatmul.mubr.f32.gmra.mrb[0].mxu0 %v2101
        %v2103 = vpop.f32.mrb[0].mxu0
        %v2104 = vadd.f32 %v2032, %v2103
        %v2105 = vpop.f32.mrb[0].mxu0
        %2106 = vdwg.mxu0
        %2107 = vst.msk [vmem:[#allocation2] sm:$0xff] %vm1187, %v2104
        %2108 = vrot.lane.b32.xlu0 %v1174, 120
        %v2109 = vpop.permute.xlu0 %2108
        %2110 = vrot.lane.b32.xlu0 %v1174, 88
        %v2111 = vpop.permute.xlu0 %2110
        %v2112 = vsel %vm1187, %v2109, 0
        %v2114 = vsel %vm1187, %v2111, 0
        %2116 = vmatprep.subr.mxu0 0.0
        %v2117 = vand.u32 %v2114, 4294901760
        %2118 = vmatpush1.xpose.msra.mxu0 %v2117
        %2119 = vmatprep.subr.mxu0 0.0
        %2120 = vmatpush1.xpose.msra.mxu0 0.0
        %2121 = vmatprep.subr.mxu0 0.0
        %2122 = vmatpush1.xpose.msra.mxu0 0.0
        %2123 = vmatprep.subr.mxu0 0.0
        %2124 = vmatpush1.xpose.msra.mxu0 0.0
        %2125 = vmatprep.subr.mxu0 0.0
        %2126 = vmatpush1.xpose.msra.mxu0 0.0
        %2127 = vmatprep.subr.mxu0 0.0
        %2128 = vmatpush1.xpose.msra.mxu0 0.0
        %2129 = vmatprep.subr.mxu0 0.0
        %2130 = vmatpush1.xpose.msra.mxu0 0.0
        %2131 = vmatprep.subr.mxu0 0.0
        %2132 = vmatpush1.xpose.msra.mxu0 0.0
        %2133 = vmatprep.subr.mxu0 0.0
        %2134 = vmatpush1.xpose.msra.mxu0 0.0
        %2135 = vmatprep.subr.mxu0 0.0
        %2136 = vmatpush1.xpose.msra.mxu0 0.0
        %2137 = vmatprep.subr.mxu0 0.0
        %2138 = vmatpush1.xpose.msra.mxu0 0.0
        %2139 = vmatprep.subr.mxu0 0.0
        %2140 = vmatpush1.xpose.msra.mxu0 0.0
        %2141 = vmatprep.subr.mxu0 0.0
        %2142 = vmatpush1.xpose.msra.mxu0 0.0
        %2143 = vmatprep.subr.mxu0 0.0
        %2144 = vmatpush1.xpose.msra.mxu0 0.0
        %2145 = vmatprep.subr.mxu0 0.0
        %2146 = vmatpush1.xpose.msra.mxu0 0.0
        %2147 = vmatprep.subr.mxu0 0.0
        %2148 = vmatpush1.xpose.msra.mxu0 0.0
        %2149 = vmatprep.subr.mxu0 0.0
        %2150 = vmatpush1.xpose.msra.mxu0 0.0
        %2151 = vmatprep.subr.mxu0 0.0
        %2152 = vmatpush1.xpose.msra.mxu0 0.0
        %2153 = vmatprep.subr.mxu0 0.0
        %2154 = vmatpush1.xpose.msra.mxu0 0.0
        %2155 = vmatprep.subr.mxu0 0.0
        %2156 = vmatpush1.xpose.msra.mxu0 0.0
        %2157 = vmatprep.subr.mxu0 0.0
        %2158 = vmatpush1.xpose.msra.mxu0 0.0
        %2159 = vmatprep.subr.mxu0 0.0
        %2160 = vmatpush1.xpose.msra.mxu0 0.0
        %2161 = vmatprep.subr.mxu0 0.0
        %2162 = vmatpush1.xpose.msra.mxu0 0.0
        %2163 = vmatprep.subr.mxu0 0.0
        %2164 = vmatpush1.xpose.msra.mxu0 0.0
        %2165 = vmatprep.subr.mxu0 0.0
        %2166 = vmatpush1.xpose.msra.mxu0 0.0
        %2167 = vmatprep.subr.mxu0 0.0
        %2168 = vmatpush1.xpose.msra.mxu0 0.0
        %2169 = vmatprep.subr.mxu0 0.0
        %2170 = vmatpush1.xpose.msra.mxu0 0.0
        %2171 = vmatprep.subr.mxu0 0.0
        %2172 = vmatpush1.xpose.msra.mxu0 0.0
        %2173 = vmatprep.subr.mxu0 0.0
        %2174 = vmatpush1.xpose.msra.mxu0 0.0
        %2175 = vmatprep.subr.mxu0 0.0
        %2176 = vmatpush1.xpose.msra.mxu0 0.0
        %2177 = vmatprep.subr.mxu0 0.0
        %2178 = vmatpush1.xpose.msra.mxu0 0.0
        %2179 = vmatprep.subr.mxu0 0.0
        %2180 = vmatpush1.xpose.msra.mxu0 0.0
        %2181 = vmatprep.mubr.f32.mxu0 0.0
        %v2182 = vand.u32 %v2112, 4294901760
        %v2183 = vsub.f32 %v2112, %v2182
        %v2184 = vand.u32 %v2183, 4294901760
        %v2185 = vsub.f32 %v2183, %v2184
        %v2186 = vand.u32 %v2185, 4294901760
        %2187 = vmatmul.mubr.f32.gmra.mrb[0].mxu0 %v2186
        %v2188 = vpop.f32.mrb[0].mxu0
        %v2189 = vadd.f32 0.0, %v2188
        %v2190 = vpop.f32.mrb[0].mxu0
        %2191 = vdwg.mxu0
        %2192 = vmatprep.subr.mxu0 0.0
        %v2193 = vand.u32 %v2114, 4294901760
        %v2194 = vsub.f32 %v2114, %v2193
        %v2195 = vand.u32 %v2194, 4294901760
        %v2196 = vsub.f32 %v2194, %v2195
        %v2197 = vand.u32 %v2196, 4294901760
        %2198 = vmatpush1.xpose.msra.mxu0 %v2197
        %2199 = vmatprep.subr.mxu0 0.0
        %2200 = vmatpush1.xpose.msra.mxu0 0.0
        %2201 = vmatprep.subr.mxu0 0.0
        %2202 = vmatpush1.xpose.msra.mxu0 0.0
        %2203 = vmatprep.subr.mxu0 0.0
        %2204 = vmatpush1.xpose.msra.mxu0 0.0
        %2205 = vmatprep.subr.mxu0 0.0
        %2206 = vmatpush1.xpose.msra.mxu0 0.0
        %2207 = vmatprep.subr.mxu0 0.0
        %2208 = vmatpush1.xpose.msra.mxu0 0.0
        %2209 = vmatprep.subr.mxu0 0.0
        %2210 = vmatpush1.xpose.msra.mxu0 0.0
        %2211 = vmatprep.subr.mxu0 0.0
        %2212 = vmatpush1.xpose.msra.mxu0 0.0
        %2213 = vmatprep.subr.mxu0 0.0
        %2214 = vmatpush1.xpose.msra.mxu0 0.0
        %2215 = vmatprep.subr.mxu0 0.0
        %2216 = vmatpush1.xpose.msra.mxu0 0.0
        %2217 = vmatprep.subr.mxu0 0.0
        %2218 = vmatpush1.xpose.msra.mxu0 0.0
        %2219 = vmatprep.subr.mxu0 0.0
        %2220 = vmatpush1.xpose.msra.mxu0 0.0
        %2221 = vmatprep.subr.mxu0 0.0
        %2222 = vmatpush1.xpose.msra.mxu0 0.0
        %2223 = vmatprep.subr.mxu0 0.0
        %2224 = vmatpush1.xpose.msra.mxu0 0.0
        %2225 = vmatprep.subr.mxu0 0.0
        %2226 = vmatpush1.xpose.msra.mxu0 0.0
        %2227 = vmatprep.subr.mxu0 0.0
        %2228 = vmatpush1.xpose.msra.mxu0 0.0
        %2229 = vmatprep.subr.mxu0 0.0
        %2230 = vmatpush1.xpose.msra.mxu0 0.0
        %2231 = vmatprep.subr.mxu0 0.0
        %2232 = vmatpush1.xpose.msra.mxu0 0.0
        %2233 = vmatprep.subr.mxu0 0.0
        %2234 = vmatpush1.xpose.msra.mxu0 0.0
        %2235 = vmatprep.subr.mxu0 0.0
        %2236 = vmatpush1.xpose.msra.mxu0 0.0
        %2237 = vmatprep.subr.mxu0 0.0
        %2238 = vmatpush1.xpose.msra.mxu0 0.0
        %2239 = vmatprep.subr.mxu0 0.0
        %2240 = vmatpush1.xpose.msra.mxu0 0.0
        %2241 = vmatprep.subr.mxu0 0.0
        %2242 = vmatpush1.xpose.msra.mxu0 0.0
        %2243 = vmatprep.subr.mxu0 0.0
        %2244 = vmatpush1.xpose.msra.mxu0 0.0
        %2245 = vmatprep.subr.mxu0 0.0
        %2246 = vmatpush1.xpose.msra.mxu0 0.0
        %2247 = vmatprep.subr.mxu0 0.0
        %2248 = vmatpush1.xpose.msra.mxu0 0.0
        %2249 = vmatprep.subr.mxu0 0.0
        %2250 = vmatpush1.xpose.msra.mxu0 0.0
        %2251 = vmatprep.subr.mxu0 0.0
        %2252 = vmatpush1.xpose.msra.mxu0 0.0
        %2253 = vmatprep.subr.mxu0 0.0
        %2254 = vmatpush1.xpose.msra.mxu0 0.0
        %2255 = vmatprep.subr.mxu0 0.0
        %2256 = vmatpush1.xpose.msra.mxu0 0.0
        %2257 = vmatprep.subr.mxu0 0.0
        %2258 = vmatpush1.xpose.msra.mxu0 0.0
        %2259 = vmatprep.subr.mxu0 0.0
        %2260 = vmatpush1.xpose.msra.mxu0 0.0
        %2261 = vmatprep.mubr.f32.mxu0 0.0
        %v2262 = vand.u32 %v2112, 4294901760
        %2263 = vmatmul.mubr.f32.gmra.mrb[0].mxu0 %v2262
        %v2264 = vpop.f32.mrb[0].mxu0
        %v2265 = vadd.f32 %v2189, %v2264
        %v2266 = vpop.f32.mrb[0].mxu0
        %2267 = vdwg.mxu0
        %2268 = vmatprep.subr.mxu0 0.0
        %v2269 = vand.u32 %v2114, 4294901760
        %v2270 = vsub.f32 %v2114, %v2269
        %2271 = vmatpush1.xpose.msra.mxu0 %v2270
        %2272 = vmatprep.subr.mxu0 0.0
        %2273 = vmatpush1.xpose.msra.mxu0 0.0
        %2274 = vmatprep.subr.mxu0 0.0
        %2275 = vmatpush1.xpose.msra.mxu0 0.0
        %2276 = vmatprep.subr.mxu0 0.0
        %2277 = vmatpush1.xpose.msra.mxu0 0.0
        %2278 = vmatprep.subr.mxu0 0.0
        %2279 = vmatpush1.xpose.msra.mxu0 0.0
        %2280 = vmatprep.subr.mxu0 0.0
        %2281 = vmatpush1.xpose.msra.mxu0 0.0
        %2282 = vmatprep.subr.mxu0 0.0
        %2283 = vmatpush1.xpose.msra.mxu0 0.0
        %2284 = vmatprep.subr.mxu0 0.0
        %2285 = vmatpush1.xpose.msra.mxu0 0.0
        %2286 = vmatprep.subr.mxu0 0.0
        %2287 = vmatpush1.xpose.msra.mxu0 0.0
        %2288 = vmatprep.subr.mxu0 0.0
        %2289 = vmatpush1.xpose.msra.mxu0 0.0
        %2290 = vmatprep.subr.mxu0 0.0
        %2291 = vmatpush1.xpose.msra.mxu0 0.0
        %2292 = vmatprep.subr.mxu0 0.0
        %2293 = vmatpush1.xpose.msra.mxu0 0.0
        %2294 = vmatprep.subr.mxu0 0.0
        %2295 = vmatpush1.xpose.msra.mxu0 0.0
        %2296 = vmatprep.subr.mxu0 0.0
        %2297 = vmatpush1.xpose.msra.mxu0 0.0
        %2298 = vmatprep.subr.mxu0 0.0
        %2299 = vmatpush1.xpose.msra.mxu0 0.0
        %2300 = vmatprep.subr.mxu0 0.0
        %2301 = vmatpush1.xpose.msra.mxu0 0.0
        %2302 = vmatprep.subr.mxu0 0.0
        %2303 = vmatpush1.xpose.msra.mxu0 0.0
        %2304 = vmatprep.subr.mxu0 0.0
        %2305 = vmatpush1.xpose.msra.mxu0 0.0
        %2306 = vmatprep.subr.mxu0 0.0
        %2307 = vmatpush1.xpose.msra.mxu0 0.0
        %2308 = vmatprep.subr.mxu0 0.0
        %2309 = vmatpush1.xpose.msra.mxu0 0.0
        %2310 = vmatprep.subr.mxu0 0.0
        %2311 = vmatpush1.xpose.msra.mxu0 0.0
        %2312 = vmatprep.subr.mxu0 0.0
        %2313 = vmatpush1.xpose.msra.mxu0 0.0
        %2314 = vmatprep.subr.mxu0 0.0
        %2315 = vmatpush1.xpose.msra.mxu0 0.0
        %2316 = vmatprep.subr.mxu0 0.0
        %2317 = vmatpush1.xpose.msra.mxu0 0.0
        %2318 = vmatprep.subr.mxu0 0.0
        %2319 = vmatpush1.xpose.msra.mxu0 0.0
        %2320 = vmatprep.subr.mxu0 0.0
        %2321 = vmatpush1.xpose.msra.mxu0 0.0
        %2322 = vmatprep.subr.mxu0 0.0
        %2323 = vmatpush1.xpose.msra.mxu0 0.0
        %2324 = vmatprep.subr.mxu0 0.0
        %2325 = vmatpush1.xpose.msra.mxu0 0.0
        %2326 = vmatprep.subr.mxu0 0.0
        %2327 = vmatpush1.xpose.msra.mxu0 0.0
        %2328 = vmatprep.subr.mxu0 0.0
        %2329 = vmatpush1.xpose.msra.mxu0 0.0
        %2330 = vmatprep.subr.mxu0 0.0
        %2331 = vmatpush1.xpose.msra.mxu0 0.0
        %2332 = vmatprep.subr.mxu0 0.0
        %2333 = vmatpush1.xpose.msra.mxu0 0.0
        %2334 = vmatprep.mubr.f32.mxu0 0.0
        %v2335 = vand.u32 %v2112, 4294901760
        %v2336 = vsub.f32 %v2112, %v2335
        %2337 = vmatmul.mubr.f32.gmra.mrb[0].mxu0 %v2336
        %v2338 = vpop.f32.mrb[0].mxu0
        %v2339 = vadd.f32 %v2265, %v2338
        %v2340 = vpop.f32.mrb[0].mxu0
        %2341 = vdwg.mxu0
        %2342 = vmatprep.subr.mxu0 0.0
        %v2343 = vand.u32 %v2114, 4294901760
        %2344 = vmatpush1.xpose.msra.mxu0 %v2343
        %2345 = vmatprep.subr.mxu0 0.0
        %2346 = vmatpush1.xpose.msra.mxu0 0.0
        %2347 = vmatprep.subr.mxu0 0.0
        %2348 = vmatpush1.xpose.msra.mxu0 0.0
        %2349 = vmatprep.subr.mxu0 0.0
        %2350 = vmatpush1.xpose.msra.mxu0 0.0
        %2351 = vmatprep.subr.mxu0 0.0
        %2352 = vmatpush1.xpose.msra.mxu0 0.0
        %2353 = vmatprep.subr.mxu0 0.0
        %2354 = vmatpush1.xpose.msra.mxu0 0.0
        %2355 = vmatprep.subr.mxu0 0.0
        %2356 = vmatpush1.xpose.msra.mxu0 0.0
        %2357 = vmatprep.subr.mxu0 0.0
        %2358 = vmatpush1.xpose.msra.mxu0 0.0
        %2359 = vmatprep.subr.mxu0 0.0
        %2360 = vmatpush1.xpose.msra.mxu0 0.0
        %2361 = vmatprep.subr.mxu0 0.0
        %2362 = vmatpush1.xpose.msra.mxu0 0.0
        %2363 = vmatprep.subr.mxu0 0.0
        %2364 = vmatpush1.xpose.msra.mxu0 0.0
        %2365 = vmatprep.subr.mxu0 0.0
        %2366 = vmatpush1.xpose.msra.mxu0 0.0
        %2367 = vmatprep.subr.mxu0 0.0
        %2368 = vmatpush1.xpose.msra.mxu0 0.0
        %2369 = vmatprep.subr.mxu0 0.0
        %2370 = vmatpush1.xpose.msra.mxu0 0.0
        %2371 = vmatprep.subr.mxu0 0.0
        %2372 = vmatpush1.xpose.msra.mxu0 0.0
        %2373 = vmatprep.subr.mxu0 0.0
        %2374 = vmatpush1.xpose.msra.mxu0 0.0
        %2375 = vmatprep.subr.mxu0 0.0
        %2376 = vmatpush1.xpose.msra.mxu0 0.0
        %2377 = vmatprep.subr.mxu0 0.0
        %2378 = vmatpush1.xpose.msra.mxu0 0.0
        %2379 = vmatprep.subr.mxu0 0.0
        %2380 = vmatpush1.xpose.msra.mxu0 0.0
        %2381 = vmatprep.subr.mxu0 0.0
        %2382 = vmatpush1.xpose.msra.mxu0 0.0
        %2383 = vmatprep.subr.mxu0 0.0
        %2384 = vmatpush1.xpose.msra.mxu0 0.0
        %2385 = vmatprep.subr.mxu0 0.0
        %2386 = vmatpush1.xpose.msra.mxu0 0.0
        %2387 = vmatprep.subr.mxu0 0.0
        %2388 = vmatpush1.xpose.msra.mxu0 0.0
        %2389 = vmatprep.subr.mxu0 0.0
        %2390 = vmatpush1.xpose.msra.mxu0 0.0
        %2391 = vmatprep.subr.mxu0 0.0
        %2392 = vmatpush1.xpose.msra.mxu0 0.0
        %2393 = vmatprep.subr.mxu0 0.0
        %2394 = vmatpush1.xpose.msra.mxu0 0.0
        %2395 = vmatprep.subr.mxu0 0.0
        %2396 = vmatpush1.xpose.msra.mxu0 0.0
        %2397 = vmatprep.subr.mxu0 0.0
        %2398 = vmatpush1.xpose.msra.mxu0 0.0
        %2399 = vmatprep.subr.mxu0 0.0
        %2400 = vmatpush1.xpose.msra.mxu0 0.0
        %2401 = vmatprep.subr.mxu0 0.0
        %2402 = vmatpush1.xpose.msra.mxu0 0.0
        %2403 = vmatprep.subr.mxu0 0.0
        %2404 = vmatpush1.xpose.msra.mxu0 0.0
        %2405 = vmatprep.subr.mxu0 0.0
        %2406 = vmatpush1.xpose.msra.mxu0 0.0
        %2407 = vmatprep.mubr.f32.mxu0 0.0
        %v2408 = vand.u32 %v2112, 4294901760
        %v2409 = vsub.f32 %v2112, %v2408
        %v2410 = vand.u32 %v2409, 4294901760
        %2411 = vmatmul.mubr.f32.gmra.mrb[0].mxu0 %v2410
        %v2412 = vpop.f32.mrb[0].mxu0
        %v2413 = vadd.f32 %v2339, %v2412
        %v2414 = vpop.f32.mrb[0].mxu0
        %2415 = vdwg.mxu0
        %2416 = vmatprep.subr.mxu0 0.0
        %v2417 = vand.u32 %v2114, 4294901760
        %v2418 = vsub.f32 %v2114, %v2417
        %v2419 = vand.u32 %v2418, 4294901760
        %2420 = vmatpush1.xpose.msra.mxu0 %v2419
        %2421 = vmatprep.subr.mxu0 0.0
        %2422 = vmatpush1.xpose.msra.mxu0 0.0
        %2423 = vmatprep.subr.mxu0 0.0
        %2424 = vmatpush1.xpose.msra.mxu0 0.0
        %2425 = vmatprep.subr.mxu0 0.0
        %2426 = vmatpush1.xpose.msra.mxu0 0.0
        %2427 = vmatprep.subr.mxu0 0.0
        %2428 = vmatpush1.xpose.msra.mxu0 0.0
        %2429 = vmatprep.subr.mxu0 0.0
        %2430 = vmatpush1.xpose.msra.mxu0 0.0
        %2431 = vmatprep.subr.mxu0 0.0
        %2432 = vmatpush1.xpose.msra.mxu0 0.0
        %2433 = vmatprep.subr.mxu0 0.0
        %2434 = vmatpush1.xpose.msra.mxu0 0.0
        %2435 = vmatprep.subr.mxu0 0.0
        %2436 = vmatpush1.xpose.msra.mxu0 0.0
        %2437 = vmatprep.subr.mxu0 0.0
        %2438 = vmatpush1.xpose.msra.mxu0 0.0
        %2439 = vmatprep.subr.mxu0 0.0
        %2440 = vmatpush1.xpose.msra.mxu0 0.0
        %2441 = vmatprep.subr.mxu0 0.0
        %2442 = vmatpush1.xpose.msra.mxu0 0.0
        %2443 = vmatprep.subr.mxu0 0.0
        %2444 = vmatpush1.xpose.msra.mxu0 0.0
        %2445 = vmatprep.subr.mxu0 0.0
        %2446 = vmatpush1.xpose.msra.mxu0 0.0
        %2447 = vmatprep.subr.mxu0 0.0
        %2448 = vmatpush1.xpose.msra.mxu0 0.0
        %2449 = vmatprep.subr.mxu0 0.0
        %2450 = vmatpush1.xpose.msra.mxu0 0.0
        %2451 = vmatprep.subr.mxu0 0.0
        %2452 = vmatpush1.xpose.msra.mxu0 0.0
        %2453 = vmatprep.subr.mxu0 0.0
        %2454 = vmatpush1.xpose.msra.mxu0 0.0
        %2455 = vmatprep.subr.mxu0 0.0
        %2456 = vmatpush1.xpose.msra.mxu0 0.0
        %2457 = vmatprep.subr.mxu0 0.0
        %2458 = vmatpush1.xpose.msra.mxu0 0.0
        %2459 = vmatprep.subr.mxu0 0.0
        %2460 = vmatpush1.xpose.msra.mxu0 0.0
        %2461 = vmatprep.subr.mxu0 0.0
        %2462 = vmatpush1.xpose.msra.mxu0 0.0
        %2463 = vmatprep.subr.mxu0 0.0
        %2464 = vmatpush1.xpose.msra.mxu0 0.0
        %2465 = vmatprep.subr.mxu0 0.0
        %2466 = vmatpush1.xpose.msra.mxu0 0.0
        %2467 = vmatprep.subr.mxu0 0.0
        %2468 = vmatpush1.xpose.msra.mxu0 0.0
        %2469 = vmatprep.subr.mxu0 0.0
        %2470 = vmatpush1.xpose.msra.mxu0 0.0
        %2471 = vmatprep.subr.mxu0 0.0
        %2472 = vmatpush1.xpose.msra.mxu0 0.0
        %2473 = vmatprep.subr.mxu0 0.0
        %2474 = vmatpush1.xpose.msra.mxu0 0.0
        %2475 = vmatprep.subr.mxu0 0.0
        %2476 = vmatpush1.xpose.msra.mxu0 0.0
        %2477 = vmatprep.subr.mxu0 0.0
        %2478 = vmatpush1.xpose.msra.mxu0 0.0
        %2479 = vmatprep.subr.mxu0 0.0
        %2480 = vmatpush1.xpose.msra.mxu0 0.0
        %2481 = vmatprep.subr.mxu0 0.0
        %2482 = vmatpush1.xpose.msra.mxu0 0.0
        %2483 = vmatprep.mubr.f32.mxu0 0.0
        %v2484 = vand.u32 %v2112, 4294901760
        %2485 = vmatmul.mubr.f32.gmra.mrb[0].mxu0 %v2484
        %v2486 = vpop.f32.mrb[0].mxu0
        %v2487 = vadd.f32 %v2413, %v2486
        %v2488 = vpop.f32.mrb[0].mxu0
        %2489 = vdwg.mxu0
        %2490 = vmatprep.subr.mxu0 0.0
        %v2491 = vand.u32 %v2114, 4294901760
        %2492 = vmatpush1.xpose.msra.mxu0 %v2491
        %2493 = vmatprep.subr.mxu0 0.0
        %2494 = vmatpush1.xpose.msra.mxu0 0.0
        %2495 = vmatprep.subr.mxu0 0.0
        %2496 = vmatpush1.xpose.msra.mxu0 0.0
        %2497 = vmatprep.subr.mxu0 0.0
        %2498 = vmatpush1.xpose.msra.mxu0 0.0
        %2499 = vmatprep.subr.mxu0 0.0
        %2500 = vmatpush1.xpose.msra.mxu0 0.0
        %2501 = vmatprep.subr.mxu0 0.0
        %2502 = vmatpush1.xpose.msra.mxu0 0.0
        %2503 = vmatprep.subr.mxu0 0.0
        %2504 = vmatpush1.xpose.msra.mxu0 0.0
        %2505 = vmatprep.subr.mxu0 0.0
        %2506 = vmatpush1.xpose.msra.mxu0 0.0
        %2507 = vmatprep.subr.mxu0 0.0
        %2508 = vmatpush1.xpose.msra.mxu0 0.0
        %2509 = vmatprep.subr.mxu0 0.0
        %2510 = vmatpush1.xpose.msra.mxu0 0.0
        %2511 = vmatprep.subr.mxu0 0.0
        %2512 = vmatpush1.xpose.msra.mxu0 0.0
        %2513 = vmatprep.subr.mxu0 0.0
        %2514 = vmatpush1.xpose.msra.mxu0 0.0
        %2515 = vmatprep.subr.mxu0 0.0
        %2516 = vmatpush1.xpose.msra.mxu0 0.0
        %2517 = vmatprep.subr.mxu0 0.0
        %2518 = vmatpush1.xpose.msra.mxu0 0.0
        %2519 = vmatprep.subr.mxu0 0.0
        %2520 = vmatpush1.xpose.msra.mxu0 0.0
        %2521 = vmatprep.subr.mxu0 0.0
        %2522 = vmatpush1.xpose.msra.mxu0 0.0
        %2523 = vmatprep.subr.mxu0 0.0
        %2524 = vmatpush1.xpose.msra.mxu0 0.0
        %2525 = vmatprep.subr.mxu0 0.0
        %2526 = vmatpush1.xpose.msra.mxu0 0.0
        %2527 = vmatprep.subr.mxu0 0.0
        %2528 = vmatpush1.xpose.msra.mxu0 0.0
        %2529 = vmatprep.subr.mxu0 0.0
        %2530 = vmatpush1.xpose.msra.mxu0 0.0
        %2531 = vmatprep.subr.mxu0 0.0
        %2532 = vmatpush1.xpose.msra.mxu0 0.0
        %2533 = vmatprep.subr.mxu0 0.0
        %2534 = vmatpush1.xpose.msra.mxu0 0.0
        %2535 = vmatprep.subr.mxu0 0.0
        %2536 = vmatpush1.xpose.msra.mxu0 0.0
        %2537 = vmatprep.subr.mxu0 0.0
        %2538 = vmatpush1.xpose.msra.mxu0 0.0
        %2539 = vmatprep.subr.mxu0 0.0
        %2540 = vmatpush1.xpose.msra.mxu0 0.0
        %2541 = vmatprep.subr.mxu0 0.0
        %2542 = vmatpush1.xpose.msra.mxu0 0.0
        %2543 = vmatprep.subr.mxu0 0.0
        %2544 = vmatpush1.xpose.msra.mxu0 0.0
        %2545 = vmatprep.subr.mxu0 0.0
        %2546 = vmatpush1.xpose.msra.mxu0 0.0
        %2547 = vmatprep.subr.mxu0 0.0
        %2548 = vmatpush1.xpose.msra.mxu0 0.0
        %2549 = vmatprep.subr.mxu0 0.0
        %2550 = vmatpush1.xpose.msra.mxu0 0.0
        %2551 = vmatprep.subr.mxu0 0.0
        %2552 = vmatpush1.xpose.msra.mxu0 0.0
        %2553 = vmatprep.subr.mxu0 0.0
        %2554 = vmatpush1.xpose.msra.mxu0 0.0
        %2555 = vmatprep.mubr.f32.mxu0 0.0
        %v2556 = vand.u32 %v2112, 4294901760
        %2557 = vmatmul.mubr.f32.gmra.mrb[0].mxu0 %v2556
        %v2558 = vpop.f32.mrb[0].mxu0
        %v2559 = vadd.f32 %v2487, %v2558
        %v2560 = vpop.f32.mrb[0].mxu0
        %2561 = vdwg.mxu0
        %v2562 = vmul.f32 %v2559, 0.35355338
        %v2563 = vadd.f32 %v2562, %v1642
        %v2564 = vsel %vm1187, %v2563, -inf
        %2565 = vmax.xlane.f32.xlu0 %v2564
        %v2566 = vpop.xlane.xlu0 %2565
        %v2567 = vsub.f32 %v2563, %v2566
        %v2568 = vmul.f32 %v2567, 1.442695
        %v2569 = vpow.pop %v2568
        %v2570 = vsel %vm1187, %v2569, 0.0
        %2571 = vadd.xlane.f32.xlu0 %v2570
        %v2572 = vpop.xlane.xlu0 %2571
        %v2573 = vrcp.pop %v2572
        %v2574 = vmul.f32 %v2569, %v2573
        %2575 = vrot.lane.b32.xlu0 %v1174, 56
        %v2576 = vpop.permute.xlu0 %2575
        %v2579 = vsel %vm1187, %v2574, 0
        %2581 = vmatprep.subr.mxu0 0.0
        %v2582 = vand.u32 %v2576, 4294901760
        %2583 = vmatpush1.msra.mxu0 %v2582
        %2584 = vmatprep.subr.mxu0 0.0
        %2585 = vmatpush1.msra.mxu0 0.0
        %2586 = vmatprep.subr.mxu0 0.0
        %2587 = vmatpush1.msra.mxu0 0.0
        %2588 = vmatprep.subr.mxu0 0.0
        %2589 = vmatpush1.msra.mxu0 0.0
        %2590 = vmatprep.subr.mxu0 0.0
        %2591 = vmatpush1.msra.mxu0 0.0
        %2592 = vmatprep.subr.mxu0 0.0
        %2593 = vmatpush1.msra.mxu0 0.0
        %2594 = vmatprep.subr.mxu0 0.0
        %2595 = vmatpush1.msra.mxu0 0.0
        %2596 = vmatprep.subr.mxu0 0.0
        %2597 = vmatpush1.msra.mxu0 0.0
        %2598 = vmatprep.subr.mxu0 0.0
        %2599 = vmatpush1.msra.mxu0 0.0
        %2600 = vmatprep.subr.mxu0 0.0
        %2601 = vmatpush1.msra.mxu0 0.0
        %2602 = vmatprep.subr.mxu0 0.0
        %2603 = vmatpush1.msra.mxu0 0.0
        %2604 = vmatprep.subr.mxu0 0.0
        %2605 = vmatpush1.msra.mxu0 0.0
        %2606 = vmatprep.subr.mxu0 0.0
        %2607 = vmatpush1.msra.mxu0 0.0
        %2608 = vmatprep.subr.mxu0 0.0
        %2609 = vmatpush1.msra.mxu0 0.0
        %2610 = vmatprep.subr.mxu0 0.0
        %2611 = vmatpush1.msra.mxu0 0.0
        %2612 = vmatprep.subr.mxu0 0.0
        %2613 = vmatpush1.msra.mxu0 0.0
        %2614 = vmatprep.subr.mxu0 0.0
        %2615 = vmatpush1.msra.mxu0 0.0
        %2616 = vmatprep.subr.mxu0 0.0
        %2617 = vmatpush1.msra.mxu0 0.0
        %2618 = vmatprep.subr.mxu0 0.0
        %2619 = vmatpush1.msra.mxu0 0.0
        %2620 = vmatprep.subr.mxu0 0.0
        %2621 = vmatpush1.msra.mxu0 0.0
        %2622 = vmatprep.subr.mxu0 0.0
        %2623 = vmatpush1.msra.mxu0 0.0
        %2624 = vmatprep.subr.mxu0 0.0
        %2625 = vmatpush1.msra.mxu0 0.0
        %2626 = vmatprep.subr.mxu0 0.0
        %2627 = vmatpush1.msra.mxu0 0.0
        %2628 = vmatprep.subr.mxu0 0.0
        %2629 = vmatpush1.msra.mxu0 0.0
        %2630 = vmatprep.subr.mxu0 0.0
        %2631 = vmatpush1.msra.mxu0 0.0
        %2632 = vmatprep.subr.mxu0 0.0
        %2633 = vmatpush1.msra.mxu0 0.0
        %2634 = vmatprep.subr.mxu0 0.0
        %2635 = vmatpush1.msra.mxu0 0.0
        %2636 = vmatprep.subr.mxu0 0.0
        %2637 = vmatpush1.msra.mxu0 0.0
        %2638 = vmatprep.subr.mxu0 0.0
        %2639 = vmatpush1.msra.mxu0 0.0
        %2640 = vmatprep.subr.mxu0 0.0
        %2641 = vmatpush1.msra.mxu0 0.0
        %2642 = vmatprep.subr.mxu0 0.0
        %2643 = vmatpush1.msra.mxu0 0.0
        %2644 = vmatprep.subr.mxu0 0.0
        %2645 = vmatpush1.msra.mxu0 0.0
        %2646 = vmatprep.mubr.f32.mxu0 0.0
        %v2647 = vand.u32 %v2579, 4294901760
        %v2648 = vsub.f32 %v2579, %v2647
        %v2649 = vand.u32 %v2648, 4294901760
        %v2650 = vsub.f32 %v2648, %v2649
        %v2651 = vand.u32 %v2650, 4294901760
        %2652 = vmatmul.mubr.f32.gmra.mrb[0].mxu0 %v2651
        %v2653 = vpop.f32.mrb[0].mxu0
        %v2654 = vadd.f32 0.0, %v2653
        %v2655 = vpop.f32.mrb[0].mxu0
        %2656 = vdwg.mxu0
        %2657 = vmatprep.subr.mxu0 0.0
        %v2658 = vand.u32 %v2576, 4294901760
        %v2659 = vsub.f32 %v2576, %v2658
        %v2660 = vand.u32 %v2659, 4294901760
        %v2661 = vsub.f32 %v2659, %v2660
        %v2662 = vand.u32 %v2661, 4294901760
        %2663 = vmatpush1.msra.mxu0 %v2662
        %2664 = vmatprep.subr.mxu0 0.0
        %2665 = vmatpush1.msra.mxu0 0.0
        %2666 = vmatprep.subr.mxu0 0.0
        %2667 = vmatpush1.msra.mxu0 0.0
        %2668 = vmatprep.subr.mxu0 0.0
        %2669 = vmatpush1.msra.mxu0 0.0
        %2670 = vmatprep.subr.mxu0 0.0
        %2671 = vmatpush1.msra.mxu0 0.0
        %2672 = vmatprep.subr.mxu0 0.0
        %2673 = vmatpush1.msra.mxu0 0.0
        %2674 = vmatprep.subr.mxu0 0.0
        %2675 = vmatpush1.msra.mxu0 0.0
        %2676 = vmatprep.subr.mxu0 0.0
        %2677 = vmatpush1.msra.mxu0 0.0
        %2678 = vmatprep.subr.mxu0 0.0
        %2679 = vmatpush1.msra.mxu0 0.0
        %2680 = vmatprep.subr.mxu0 0.0
        %2681 = vmatpush1.msra.mxu0 0.0
        %2682 = vmatprep.subr.mxu0 0.0
        %2683 = vmatpush1.msra.mxu0 0.0
        %2684 = vmatprep.subr.mxu0 0.0
        %2685 = vmatpush1.msra.mxu0 0.0
        %2686 = vmatprep.subr.mxu0 0.0
        %2687 = vmatpush1.msra.mxu0 0.0
        %2688 = vmatprep.subr.mxu0 0.0
        %2689 = vmatpush1.msra.mxu0 0.0
        %2690 = vmatprep.subr.mxu0 0.0
        %2691 = vmatpush1.msra.mxu0 0.0
        %2692 = vmatprep.subr.mxu0 0.0
        %2693 = vmatpush1.msra.mxu0 0.0
        %2694 = vmatprep.subr.mxu0 0.0
        %2695 = vmatpush1.msra.mxu0 0.0
        %2696 = vmatprep.subr.mxu0 0.0
        %2697 = vmatpush1.msra.mxu0 0.0
        %2698 = vmatprep.subr.mxu0 0.0
        %2699 = vmatpush1.msra.mxu0 0.0
        %2700 = vmatprep.subr.mxu0 0.0
        %2701 = vmatpush1.msra.mxu0 0.0
        %2702 = vmatprep.subr.mxu0 0.0
        %2703 = vmatpush1.msra.mxu0 0.0
        %2704 = vmatprep.subr.mxu0 0.0
        %2705 = vmatpush1.msra.mxu0 0.0
        %2706 = vmatprep.subr.mxu0 0.0
        %2707 = vmatpush1.msra.mxu0 0.0
        %2708 = vmatprep.subr.mxu0 0.0
        %2709 = vmatpush1.msra.mxu0 0.0
        %2710 = vmatprep.subr.mxu0 0.0
        %2711 = vmatpush1.msra.mxu0 0.0
        %2712 = vmatprep.subr.mxu0 0.0
        %2713 = vmatpush1.msra.mxu0 0.0
        %2714 = vmatprep.subr.mxu0 0.0
        %2715 = vmatpush1.msra.mxu0 0.0
        %2716 = vmatprep.subr.mxu0 0.0
        %2717 = vmatpush1.msra.mxu0 0.0
        %2718 = vmatprep.subr.mxu0 0.0
        %2719 = vmatpush1.msra.mxu0 0.0
        %2720 = vmatprep.subr.mxu0 0.0
        %2721 = vmatpush1.msra.mxu0 0.0
        %2722 = vmatprep.subr.mxu0 0.0
        %2723 = vmatpush1.msra.mxu0 0.0
        %2724 = vmatprep.subr.mxu0 0.0
        %2725 = vmatpush1.msra.mxu0 0.0
        %2726 = vmatprep.mubr.f32.mxu0 0.0
        %v2727 = vand.u32 %v2579, 4294901760
        %2728 = vmatmul.mubr.f32.gmra.mrb[0].mxu0 %v2727
        %v2729 = vpop.f32.mrb[0].mxu0
        %v2730 = vadd.f32 %v2654, %v2729
        %v2731 = vpop.f32.mrb[0].mxu0
        %2732 = vdwg.mxu0
        %2733 = vmatprep.subr.mxu0 0.0
        %v2734 = vand.u32 %v2576, 4294901760
        %v2735 = vsub.f32 %v2576, %v2734
        %2736 = vmatpush1.msra.mxu0 %v2735
        %2737 = vmatprep.subr.mxu0 0.0
        %2738 = vmatpush1.msra.mxu0 0.0
        %2739 = vmatprep.subr.mxu0 0.0
        %2740 = vmatpush1.msra.mxu0 0.0
        %2741 = vmatprep.subr.mxu0 0.0
        %2742 = vmatpush1.msra.mxu0 0.0
        %2743 = vmatprep.subr.mxu0 0.0
        %2744 = vmatpush1.msra.mxu0 0.0
        %2745 = vmatprep.subr.mxu0 0.0
        %2746 = vmatpush1.msra.mxu0 0.0
        %2747 = vmatprep.subr.mxu0 0.0
        %2748 = vmatpush1.msra.mxu0 0.0
        %2749 = vmatprep.subr.mxu0 0.0
        %2750 = vmatpush1.msra.mxu0 0.0
        %2751 = vmatprep.subr.mxu0 0.0
        %2752 = vmatpush1.msra.mxu0 0.0
        %2753 = vmatprep.subr.mxu0 0.0
        %2754 = vmatpush1.msra.mxu0 0.0
        %2755 = vmatprep.subr.mxu0 0.0
        %2756 = vmatpush1.msra.mxu0 0.0
        %2757 = vmatprep.subr.mxu0 0.0
        %2758 = vmatpush1.msra.mxu0 0.0
        %2759 = vmatprep.subr.mxu0 0.0
        %2760 = vmatpush1.msra.mxu0 0.0
        %2761 = vmatprep.subr.mxu0 0.0
        %2762 = vmatpush1.msra.mxu0 0.0
        %2763 = vmatprep.subr.mxu0 0.0
        %2764 = vmatpush1.msra.mxu0 0.0
        %2765 = vmatprep.subr.mxu0 0.0
        %2766 = vmatpush1.msra.mxu0 0.0
        %2767 = vmatprep.subr.mxu0 0.0
        %2768 = vmatpush1.msra.mxu0 0.0
        %2769 = vmatprep.subr.mxu0 0.0
        %2770 = vmatpush1.msra.mxu0 0.0
        %2771 = vmatprep.subr.mxu0 0.0
        %2772 = vmatpush1.msra.mxu0 0.0
        %2773 = vmatprep.subr.mxu0 0.0
        %2774 = vmatpush1.msra.mxu0 0.0
        %2775 = vmatprep.subr.mxu0 0.0
        %2776 = vmatpush1.msra.mxu0 0.0
        %2777 = vmatprep.subr.mxu0 0.0
        %2778 = vmatpush1.msra.mxu0 0.0
        %2779 = vmatprep.subr.mxu0 0.0
        %2780 = vmatpush1.msra.mxu0 0.0
        %2781 = vmatprep.subr.mxu0 0.0
        %2782 = vmatpush1.msra.mxu0 0.0
        %2783 = vmatprep.subr.mxu0 0.0
        %2784 = vmatpush1.msra.mxu0 0.0
        %2785 = vmatprep.subr.mxu0 0.0
        %2786 = vmatpush1.msra.mxu0 0.0
        %2787 = vmatprep.subr.mxu0 0.0
        %2788 = vmatpush1.msra.mxu0 0.0
        %2789 = vmatprep.subr.mxu0 0.0
        %2790 = vmatpush1.msra.mxu0 0.0
        %2791 = vmatprep.subr.mxu0 0.0
        %2792 = vmatpush1.msra.mxu0 0.0
        %2793 = vmatprep.subr.mxu0 0.0
        %2794 = vmatpush1.msra.mxu0 0.0
        %2795 = vmatprep.subr.mxu0 0.0
        %2796 = vmatpush1.msra.mxu0 0.0
        %2797 = vmatprep.subr.mxu0 0.0
        %2798 = vmatpush1.msra.mxu0 0.0
        %2799 = vmatprep.mubr.f32.mxu0 0.0
        %v2800 = vand.u32 %v2579, 4294901760
        %v2801 = vsub.f32 %v2579, %v2800
        %2802 = vmatmul.mubr.f32.gmra.mrb[0].mxu0 %v2801
        %v2803 = vpop.f32.mrb[0].mxu0
        %v2804 = vadd.f32 %v2730, %v2803
        %v2805 = vpop.f32.mrb[0].mxu0
        %2806 = vdwg.mxu0
        %2807 = vmatprep.subr.mxu0 0.0
        %v2808 = vand.u32 %v2576, 4294901760
        %2809 = vmatpush1.msra.mxu0 %v2808
        %2810 = vmatprep.subr.mxu0 0.0
        %2811 = vmatpush1.msra.mxu0 0.0
        %2812 = vmatprep.subr.mxu0 0.0
        %2813 = vmatpush1.msra.mxu0 0.0
        %2814 = vmatprep.subr.mxu0 0.0
        %2815 = vmatpush1.msra.mxu0 0.0
        %2816 = vmatprep.subr.mxu0 0.0
        %2817 = vmatpush1.msra.mxu0 0.0
        %2818 = vmatprep.subr.mxu0 0.0
        %2819 = vmatpush1.msra.mxu0 0.0
        %2820 = vmatprep.subr.mxu0 0.0
        %2821 = vmatpush1.msra.mxu0 0.0
        %2822 = vmatprep.subr.mxu0 0.0
        %2823 = vmatpush1.msra.mxu0 0.0
        %2824 = vmatprep.subr.mxu0 0.0
        %2825 = vmatpush1.msra.mxu0 0.0
        %2826 = vmatprep.subr.mxu0 0.0
        %2827 = vmatpush1.msra.mxu0 0.0
        %2828 = vmatprep.subr.mxu0 0.0
        %2829 = vmatpush1.msra.mxu0 0.0
        %2830 = vmatprep.subr.mxu0 0.0
        %2831 = vmatpush1.msra.mxu0 0.0
        %2832 = vmatprep.subr.mxu0 0.0
        %2833 = vmatpush1.msra.mxu0 0.0
        %2834 = vmatprep.subr.mxu0 0.0
        %2835 = vmatpush1.msra.mxu0 0.0
        %2836 = vmatprep.subr.mxu0 0.0
        %2837 = vmatpush1.msra.mxu0 0.0
        %2838 = vmatprep.subr.mxu0 0.0
        %2839 = vmatpush1.msra.mxu0 0.0
        %2840 = vmatprep.subr.mxu0 0.0
        %2841 = vmatpush1.msra.mxu0 0.0
        %2842 = vmatprep.subr.mxu0 0.0
        %2843 = vmatpush1.msra.mxu0 0.0
        %2844 = vmatprep.subr.mxu0 0.0
        %2845 = vmatpush1.msra.mxu0 0.0
        %2846 = vmatprep.subr.mxu0 0.0
        %2847 = vmatpush1.msra.mxu0 0.0
        %2848 = vmatprep.subr.mxu0 0.0
        %2849 = vmatpush1.msra.mxu0 0.0
        %2850 = vmatprep.subr.mxu0 0.0
        %2851 = vmatpush1.msra.mxu0 0.0
        %2852 = vmatprep.subr.mxu0 0.0
        %2853 = vmatpush1.msra.mxu0 0.0
        %2854 = vmatprep.subr.mxu0 0.0
        %2855 = vmatpush1.msra.mxu0 0.0
        %2856 = vmatprep.subr.mxu0 0.0
        %2857 = vmatpush1.msra.mxu0 0.0
        %2858 = vmatprep.subr.mxu0 0.0
        %2859 = vmatpush1.msra.mxu0 0.0
        %2860 = vmatprep.subr.mxu0 0.0
        %2861 = vmatpush1.msra.mxu0 0.0
        %2862 = vmatprep.subr.mxu0 0.0
        %2863 = vmatpush1.msra.mxu0 0.0
        %2864 = vmatprep.subr.mxu0 0.0
        %2865 = vmatpush1.msra.mxu0 0.0
        %2866 = vmatprep.subr.mxu0 0.0
        %2867 = vmatpush1.msra.mxu0 0.0
        %2868 = vmatprep.subr.mxu0 0.0
        %2869 = vmatpush1.msra.mxu0 0.0
        %2870 = vmatprep.subr.mxu0 0.0
        %2871 = vmatpush1.msra.mxu0 0.0
        %2872 = vmatprep.mubr.f32.mxu0 0.0
        %v2873 = vand.u32 %v2579, 4294901760
        %v2874 = vsub.f32 %v2579, %v2873
        %v2875 = vand.u32 %v2874, 4294901760
        %2876 = vmatmul.mubr.f32.gmra.mrb[0].mxu0 %v2875
        %v2877 = vpop.f32.mrb[0].mxu0
        %v2878 = vadd.f32 %v2804, %v2877
        %v2879 = vpop.f32.mrb[0].mxu0
        %2880 = vdwg.mxu0
        %2881 = vmatprep.subr.mxu0 0.0
        %v2882 = vand.u32 %v2576, 4294901760
        %v2883 = vsub.f32 %v2576, %v2882
        %v2884 = vand.u32 %v2883, 4294901760
        %2885 = vmatpush1.msra.mxu0 %v2884
        %2886 = vmatprep.subr.mxu0 0.0
        %2887 = vmatpush1.msra.mxu0 0.0
        %2888 = vmatprep.subr.mxu0 0.0
        %2889 = vmatpush1.msra.mxu0 0.0
        %2890 = vmatprep.subr.mxu0 0.0
        %2891 = vmatpush1.msra.mxu0 0.0
        %2892 = vmatprep.subr.mxu0 0.0
        %2893 = vmatpush1.msra.mxu0 0.0
        %2894 = vmatprep.subr.mxu0 0.0
        %2895 = vmatpush1.msra.mxu0 0.0
        %2896 = vmatprep.subr.mxu0 0.0
        %2897 = vmatpush1.msra.mxu0 0.0
        %2898 = vmatprep.subr.mxu0 0.0
        %2899 = vmatpush1.msra.mxu0 0.0
        %2900 = vmatprep.subr.mxu0 0.0
        %2901 = vmatpush1.msra.mxu0 0.0
        %2902 = vmatprep.subr.mxu0 0.0
        %2903 = vmatpush1.msra.mxu0 0.0
        %2904 = vmatprep.subr.mxu0 0.0
        %2905 = vmatpush1.msra.mxu0 0.0
        %2906 = vmatprep.subr.mxu0 0.0
        %2907 = vmatpush1.msra.mxu0 0.0
        %2908 = vmatprep.subr.mxu0 0.0
        %2909 = vmatpush1.msra.mxu0 0.0
        %2910 = vmatprep.subr.mxu0 0.0
        %2911 = vmatpush1.msra.mxu0 0.0
        %2912 = vmatprep.subr.mxu0 0.0
        %2913 = vmatpush1.msra.mxu0 0.0
        %2914 = vmatprep.subr.mxu0 0.0
        %2915 = vmatpush1.msra.mxu0 0.0
        %2916 = vmatprep.subr.mxu0 0.0
        %2917 = vmatpush1.msra.mxu0 0.0
        %2918 = vmatprep.subr.mxu0 0.0
        %2919 = vmatpush1.msra.mxu0 0.0
        %2920 = vmatprep.subr.mxu0 0.0
        %2921 = vmatpush1.msra.mxu0 0.0
        %2922 = vmatprep.subr.mxu0 0.0
        %2923 = vmatpush1.msra.mxu0 0.0
        %2924 = vmatprep.subr.mxu0 0.0
        %2925 = vmatpush1.msra.mxu0 0.0
        %2926 = vmatprep.subr.mxu0 0.0
        %2927 = vmatpush1.msra.mxu0 0.0
        %2928 = vmatprep.subr.mxu0 0.0
        %2929 = vmatpush1.msra.mxu0 0.0
        %2930 = vmatprep.subr.mxu0 0.0
        %2931 = vmatpush1.msra.mxu0 0.0
        %2932 = vmatprep.subr.mxu0 0.0
        %2933 = vmatpush1.msra.mxu0 0.0
        %2934 = vmatprep.subr.mxu0 0.0
        %2935 = vmatpush1.msra.mxu0 0.0
        %2936 = vmatprep.subr.mxu0 0.0
        %2937 = vmatpush1.msra.mxu0 0.0
        %2938 = vmatprep.subr.mxu0 0.0
        %2939 = vmatpush1.msra.mxu0 0.0
        %2940 = vmatprep.subr.mxu0 0.0
        %2941 = vmatpush1.msra.mxu0 0.0
        %2942 = vmatprep.subr.mxu0 0.0
        %2943 = vmatpush1.msra.mxu0 0.0
        %2944 = vmatprep.subr.mxu0 0.0
        %2945 = vmatpush1.msra.mxu0 0.0
        %2946 = vmatprep.subr.mxu0 0.0
        %2947 = vmatpush1.msra.mxu0 0.0
        %2948 = vmatprep.mubr.f32.mxu0 0.0
        %v2949 = vand.u32 %v2579, 4294901760
        %2950 = vmatmul.mubr.f32.gmra.mrb[0].mxu0 %v2949
        %v2951 = vpop.f32.mrb[0].mxu0
        %v2952 = vadd.f32 %v2878, %v2951
        %v2953 = vpop.f32.mrb[0].mxu0
        %2954 = vdwg.mxu0
        %2955 = vmatprep.subr.mxu0 0.0
        %v2956 = vand.u32 %v2576, 4294901760
        %2957 = vmatpush1.msra.mxu0 %v2956
        %2958 = vmatprep.subr.mxu0 0.0
        %2959 = vmatpush1.msra.mxu0 0.0
        %2960 = vmatprep.subr.mxu0 0.0
        %2961 = vmatpush1.msra.mxu0 0.0
        %2962 = vmatprep.subr.mxu0 0.0
        %2963 = vmatpush1.msra.mxu0 0.0
        %2964 = vmatprep.subr.mxu0 0.0
        %2965 = vmatpush1.msra.mxu0 0.0
        %2966 = vmatprep.subr.mxu0 0.0
        %2967 = vmatpush1.msra.mxu0 0.0
        %2968 = vmatprep.subr.mxu0 0.0
        %2969 = vmatpush1.msra.mxu0 0.0
        %2970 = vmatprep.subr.mxu0 0.0
        %2971 = vmatpush1.msra.mxu0 0.0
        %2972 = vmatprep.subr.mxu0 0.0
        %2973 = vmatpush1.msra.mxu0 0.0
        %2974 = vmatprep.subr.mxu0 0.0
        %2975 = vmatpush1.msra.mxu0 0.0
        %2976 = vmatprep.subr.mxu0 0.0
        %2977 = vmatpush1.msra.mxu0 0.0
        %2978 = vmatprep.subr.mxu0 0.0
        %2979 = vmatpush1.msra.mxu0 0.0
        %2980 = vmatprep.subr.mxu0 0.0
        %2981 = vmatpush1.msra.mxu0 0.0
        %2982 = vmatprep.subr.mxu0 0.0
        %2983 = vmatpush1.msra.mxu0 0.0
        %2984 = vmatprep.subr.mxu0 0.0
        %2985 = vmatpush1.msra.mxu0 0.0
        %2986 = vmatprep.subr.mxu0 0.0
        %2987 = vmatpush1.msra.mxu0 0.0
        %2988 = vmatprep.subr.mxu0 0.0
        %2989 = vmatpush1.msra.mxu0 0.0
        %2990 = vmatprep.subr.mxu0 0.0
        %2991 = vmatpush1.msra.mxu0 0.0
        %2992 = vmatprep.subr.mxu0 0.0
        %2993 = vmatpush1.msra.mxu0 0.0
        %2994 = vmatprep.subr.mxu0 0.0
        %2995 = vmatpush1.msra.mxu0 0.0
        %2996 = vmatprep.subr.mxu0 0.0
        %2997 = vmatpush1.msra.mxu0 0.0
        %2998 = vmatprep.subr.mxu0 0.0
        %2999 = vmatpush1.msra.mxu0 0.0
        %3000 = vmatprep.subr.mxu0 0.0
        %3001 = vmatpush1.msra.mxu0 0.0
        %3002 = vmatprep.subr.mxu0 0.0
        %3003 = vmatpush1.msra.mxu0 0.0
        %3004 = vmatprep.subr.mxu0 0.0
        %3005 = vmatpush1.msra.mxu0 0.0
        %3006 = vmatprep.subr.mxu0 0.0
        %3007 = vmatpush1.msra.mxu0 0.0
        %3008 = vmatprep.subr.mxu0 0.0
        %3009 = vmatpush1.msra.mxu0 0.0
        %3010 = vmatprep.subr.mxu0 0.0
        %3011 = vmatpush1.msra.mxu0 0.0
        %3012 = vmatprep.subr.mxu0 0.0
        %3013 = vmatpush1.msra.mxu0 0.0
        %3014 = vmatprep.subr.mxu0 0.0
        %3015 = vmatpush1.msra.mxu0 0.0
        %3016 = vmatprep.subr.mxu0 0.0
        %3017 = vmatpush1.msra.mxu0 0.0
        %3018 = vmatprep.subr.mxu0 0.0
        %3019 = vmatpush1.msra.mxu0 0.0
        %3020 = vmatprep.mubr.f32.mxu0 0.0
        %v3021 = vand.u32 %v2579, 4294901760
        %3022 = vmatmul.mubr.f32.gmra.mrb[0].mxu0 %v3021
        %v3023 = vpop.f32.mrb[0].mxu0
        %v3024 = vadd.f32 %v2952, %v3023
        %v3025 = vpop.f32.mrb[0].mxu0
        %3026 = vdwg.mxu0
        %3028 = vrot.lane.b32.xlu0 %v3024, 8
        %v3029 = vpop.permute.xlu0 %3028
        %vm3031 = vcmask 130112
        %3032 = vst.msk [vmem:[#allocation2] sm:$0xff] %vm3031, %v3029
        %3033 = vrot.lane.b32.xlu0 %v1174, 112
        %v3034 = vpop.permute.xlu0 %3033
        %3035 = vrot.lane.b32.xlu0 %v1174, 80
        %v3036 = vpop.permute.xlu0 %3035
        %v3037 = vsel %vm1187, %v3034, 0
        %v3039 = vsel %vm1187, %v3036, 0
        %3041 = vmatprep.subr.mxu0 0.0
        %v3042 = vand.u32 %v3039, 4294901760
        %3043 = vmatpush1.xpose.msra.mxu0 %v3042
        %3044 = vmatprep.subr.mxu0 0.0
        %3045 = vmatpush1.xpose.msra.mxu0 0.0
        %3046 = vmatprep.subr.mxu0 0.0
        %3047 = vmatpush1.xpose.msra.mxu0 0.0
        %3048 = vmatprep.subr.mxu0 0.0
        %3049 = vmatpush1.xpose.msra.mxu0 0.0
        %3050 = vmatprep.subr.mxu0 0.0
        %3051 = vmatpush1.xpose.msra.mxu0 0.0
        %3052 = vmatprep.subr.mxu0 0.0
        %3053 = vmatpush1.xpose.msra.mxu0 0.0
        %3054 = vmatprep.subr.mxu0 0.0
        %3055 = vmatpush1.xpose.msra.mxu0 0.0
        %3056 = vmatprep.subr.mxu0 0.0
        %3057 = vmatpush1.xpose.msra.mxu0 0.0
        %3058 = vmatprep.subr.mxu0 0.0
        %3059 = vmatpush1.xpose.msra.mxu0 0.0
        %3060 = vmatprep.subr.mxu0 0.0
        %3061 = vmatpush1.xpose.msra.mxu0 0.0
        %3062 = vmatprep.subr.mxu0 0.0
        %3063 = vmatpush1.xpose.msra.mxu0 0.0
        %3064 = vmatprep.subr.mxu0 0.0
        %3065 = vmatpush1.xpose.msra.mxu0 0.0
        %3066 = vmatprep.subr.mxu0 0.0
        %3067 = vmatpush1.xpose.msra.mxu0 0.0
        %3068 = vmatprep.subr.mxu0 0.0
        %3069 = vmatpush1.xpose.msra.mxu0 0.0
        %3070 = vmatprep.subr.mxu0 0.0
        %3071 = vmatpush1.xpose.msra.mxu0 0.0
        %3072 = vmatprep.subr.mxu0 0.0
        %3073 = vmatpush1.xpose.msra.mxu0 0.0
        %3074 = vmatprep.subr.mxu0 0.0
        %3075 = vmatpush1.xpose.msra.mxu0 0.0
        %3076 = vmatprep.subr.mxu0 0.0
        %3077 = vmatpush1.xpose.msra.mxu0 0.0
        %3078 = vmatprep.subr.mxu0 0.0
        %3079 = vmatpush1.xpose.msra.mxu0 0.0
        %3080 = vmatprep.subr.mxu0 0.0
        %3081 = vmatpush1.xpose.msra.mxu0 0.0
        %3082 = vmatprep.subr.mxu0 0.0
        %3083 = vmatpush1.xpose.msra.mxu0 0.0
        %3084 = vmatprep.subr.mxu0 0.0
        %3085 = vmatpush1.xpose.msra.mxu0 0.0
        %3086 = vmatprep.subr.mxu0 0.0
        %3087 = vmatpush1.xpose.msra.mxu0 0.0
        %3088 = vmatprep.subr.mxu0 0.0
        %3089 = vmatpush1.xpose.msra.mxu0 0.0
        %3090 = vmatprep.subr.mxu0 0.0
        %3091 = vmatpush1.xpose.msra.mxu0 0.0
        %3092 = vmatprep.subr.mxu0 0.0
        %3093 = vmatpush1.xpose.msra.mxu0 0.0
        %3094 = vmatprep.subr.mxu0 0.0
        %3095 = vmatpush1.xpose.msra.mxu0 0.0
        %3096 = vmatprep.subr.mxu0 0.0
        %3097 = vmatpush1.xpose.msra.mxu0 0.0
        %3098 = vmatprep.subr.mxu0 0.0
        %3099 = vmatpush1.xpose.msra.mxu0 0.0
        %3100 = vmatprep.subr.mxu0 0.0
        %3101 = vmatpush1.xpose.msra.mxu0 0.0
        %3102 = vmatprep.subr.mxu0 0.0
        %3103 = vmatpush1.xpose.msra.mxu0 0.0
        %3104 = vmatprep.subr.mxu0 0.0
        %3105 = vmatpush1.xpose.msra.mxu0 0.0
        %3106 = vmatprep.mubr.f32.mxu0 0.0
        %v3107 = vand.u32 %v3037, 4294901760
        %v3108 = vsub.f32 %v3037, %v3107
        %v3109 = vand.u32 %v3108, 4294901760
        %v3110 = vsub.f32 %v3108, %v3109
        %v3111 = vand.u32 %v3110, 4294901760
        %3112 = vmatmul.mubr.f32.gmra.mrb[0].mxu0 %v3111
        %v3113 = vpop.f32.mrb[0].mxu0
        %v3114 = vadd.f32 0.0, %v3113
        %v3115 = vpop.f32.mrb[0].mxu0
        %3116 = vdwg.mxu0
        %3117 = vmatprep.subr.mxu0 0.0
        %v3118 = vand.u32 %v3039, 4294901760
        %v3119 = vsub.f32 %v3039, %v3118
        %v3120 = vand.u32 %v3119, 4294901760
        %v3121 = vsub.f32 %v3119, %v3120
        %v3122 = vand.u32 %v3121, 4294901760
        %3123 = vmatpush1.xpose.msra.mxu0 %v3122
        %3124 = vmatprep.subr.mxu0 0.0
        %3125 = vmatpush1.xpose.msra.mxu0 0.0
        %3126 = vmatprep.subr.mxu0 0.0
        %3127 = vmatpush1.xpose.msra.mxu0 0.0
        %3128 = vmatprep.subr.mxu0 0.0
        %3129 = vmatpush1.xpose.msra.mxu0 0.0
        %3130 = vmatprep.subr.mxu0 0.0
        %3131 = vmatpush1.xpose.msra.mxu0 0.0
        %3132 = vmatprep.subr.mxu0 0.0
        %3133 = vmatpush1.xpose.msra.mxu0 0.0
        %3134 = vmatprep.subr.mxu0 0.0
        %3135 = vmatpush1.xpose.msra.mxu0 0.0
        %3136 = vmatprep.subr.mxu0 0.0
        %3137 = vmatpush1.xpose.msra.mxu0 0.0
        %3138 = vmatprep.subr.mxu0 0.0
        %3139 = vmatpush1.xpose.msra.mxu0 0.0
        %3140 = vmatprep.subr.mxu0 0.0
        %3141 = vmatpush1.xpose.msra.mxu0 0.0
        %3142 = vmatprep.subr.mxu0 0.0
        %3143 = vmatpush1.xpose.msra.mxu0 0.0
        %3144 = vmatprep.subr.mxu0 0.0
        %3145 = vmatpush1.xpose.msra.mxu0 0.0
        %3146 = vmatprep.subr.mxu0 0.0
        %3147 = vmatpush1.xpose.msra.mxu0 0.0
        %3148 = vmatprep.subr.mxu0 0.0
        %3149 = vmatpush1.xpose.msra.mxu0 0.0
        %3150 = vmatprep.subr.mxu0 0.0
        %3151 = vmatpush1.xpose.msra.mxu0 0.0
        %3152 = vmatprep.subr.mxu0 0.0
        %3153 = vmatpush1.xpose.msra.mxu0 0.0
        %3154 = vmatprep.subr.mxu0 0.0
        %3155 = vmatpush1.xpose.msra.mxu0 0.0
        %3156 = vmatprep.subr.mxu0 0.0
        %3157 = vmatpush1.xpose.msra.mxu0 0.0
        %3158 = vmatprep.subr.mxu0 0.0
        %3159 = vmatpush1.xpose.msra.mxu0 0.0
        %3160 = vmatprep.subr.mxu0 0.0
        %3161 = vmatpush1.xpose.msra.mxu0 0.0
        %3162 = vmatprep.subr.mxu0 0.0
        %3163 = vmatpush1.xpose.msra.mxu0 0.0
        %3164 = vmatprep.subr.mxu0 0.0
        %3165 = vmatpush1.xpose.msra.mxu0 0.0
        %3166 = vmatprep.subr.mxu0 0.0
        %3167 = vmatpush1.xpose.msra.mxu0 0.0
        %3168 = vmatprep.subr.mxu0 0.0
        %3169 = vmatpush1.xpose.msra.mxu0 0.0
        %3170 = vmatprep.subr.mxu0 0.0
        %3171 = vmatpush1.xpose.msra.mxu0 0.0
        %3172 = vmatprep.subr.mxu0 0.0
        %3173 = vmatpush1.xpose.msra.mxu0 0.0
        %3174 = vmatprep.subr.mxu0 0.0
        %3175 = vmatpush1.xpose.msra.mxu0 0.0
        %3176 = vmatprep.subr.mxu0 0.0
        %3177 = vmatpush1.xpose.msra.mxu0 0.0
        %3178 = vmatprep.subr.mxu0 0.0
        %3179 = vmatpush1.xpose.msra.mxu0 0.0
        %3180 = vmatprep.subr.mxu0 0.0
        %3181 = vmatpush1.xpose.msra.mxu0 0.0
        %3182 = vmatprep.subr.mxu0 0.0
        %3183 = vmatpush1.xpose.msra.mxu0 0.0
        %3184 = vmatprep.subr.mxu0 0.0
        %3185 = vmatpush1.xpose.msra.mxu0 0.0
        %3186 = vmatprep.mubr.f32.mxu0 0.0
        %v3187 = vand.u32 %v3037, 4294901760
        %3188 = vmatmul.mubr.f32.gmra.mrb[0].mxu0 %v3187
        %v3189 = vpop.f32.mrb[0].mxu0
        %v3190 = vadd.f32 %v3114, %v3189
        %v3191 = vpop.f32.mrb[0].mxu0
        %3192 = vdwg.mxu0
        %3193 = vmatprep.subr.mxu0 0.0
        %v3194 = vand.u32 %v3039, 4294901760
        %v3195 = vsub.f32 %v3039, %v3194
        %3196 = vmatpush1.xpose.msra.mxu0 %v3195
        %3197 = vmatprep.subr.mxu0 0.0
        %3198 = vmatpush1.xpose.msra.mxu0 0.0
        %3199 = vmatprep.subr.mxu0 0.0
        %3200 = vmatpush1.xpose.msra.mxu0 0.0
        %3201 = vmatprep.subr.mxu0 0.0
        %3202 = vmatpush1.xpose.msra.mxu0 0.0
        %3203 = vmatprep.subr.mxu0 0.0
        %3204 = vmatpush1.xpose.msra.mxu0 0.0
        %3205 = vmatprep.subr.mxu0 0.0
        %3206 = vmatpush1.xpose.msra.mxu0 0.0
        %3207 = vmatprep.subr.mxu0 0.0
        %3208 = vmatpush1.xpose.msra.mxu0 0.0
        %3209 = vmatprep.subr.mxu0 0.0
        %3210 = vmatpush1.xpose.msra.mxu0 0.0
        %3211 = vmatprep.subr.mxu0 0.0
        %3212 = vmatpush1.xpose.msra.mxu0 0.0
        %3213 = vmatprep.subr.mxu0 0.0
        %3214 = vmatpush1.xpose.msra.mxu0 0.0
        %3215 = vmatprep.subr.mxu0 0.0
        %3216 = vmatpush1.xpose.msra.mxu0 0.0
        %3217 = vmatprep.subr.mxu0 0.0
        %3218 = vmatpush1.xpose.msra.mxu0 0.0
        %3219 = vmatprep.subr.mxu0 0.0
        %3220 = vmatpush1.xpose.msra.mxu0 0.0
        %3221 = vmatprep.subr.mxu0 0.0
        %3222 = vmatpush1.xpose.msra.mxu0 0.0
        %3223 = vmatprep.subr.mxu0 0.0
        %3224 = vmatpush1.xpose.msra.mxu0 0.0
        %3225 = vmatprep.subr.mxu0 0.0
        %3226 = vmatpush1.xpose.msra.mxu0 0.0
        %3227 = vmatprep.subr.mxu0 0.0
        %3228 = vmatpush1.xpose.msra.mxu0 0.0
        %3229 = vmatprep.subr.mxu0 0.0
        %3230 = vmatpush1.xpose.msra.mxu0 0.0
        %3231 = vmatprep.subr.mxu0 0.0
        %3232 = vmatpush1.xpose.msra.mxu0 0.0
        %3233 = vmatprep.subr.mxu0 0.0
        %3234 = vmatpush1.xpose.msra.mxu0 0.0
        %3235 = vmatprep.subr.mxu0 0.0
        %3236 = vmatpush1.xpose.msra.mxu0 0.0
        %3237 = vmatprep.subr.mxu0 0.0
        %3238 = vmatpush1.xpose.msra.mxu0 0.0
        %3239 = vmatprep.subr.mxu0 0.0
        %3240 = vmatpush1.xpose.msra.mxu0 0.0
        %3241 = vmatprep.subr.mxu0 0.0
        %3242 = vmatpush1.xpose.msra.mxu0 0.0
        %3243 = vmatprep.subr.mxu0 0.0
        %3244 = vmatpush1.xpose.msra.mxu0 0.0
        %3245 = vmatprep.subr.mxu0 0.0
        %3246 = vmatpush1.xpose.msra.mxu0 0.0
        %3247 = vmatprep.subr.mxu0 0.0
        %3248 = vmatpush1.xpose.msra.mxu0 0.0
        %3249 = vmatprep.subr.mxu0 0.0
        %3250 = vmatpush1.xpose.msra.mxu0 0.0
        %3251 = vmatprep.subr.mxu0 0.0
        %3252 = vmatpush1.xpose.msra.mxu0 0.0
        %3253 = vmatprep.subr.mxu0 0.0
        %3254 = vmatpush1.xpose.msra.mxu0 0.0
        %3255 = vmatprep.subr.mxu0 0.0
        %3256 = vmatpush1.xpose.msra.mxu0 0.0
        %3257 = vmatprep.subr.mxu0 0.0
        %3258 = vmatpush1.xpose.msra.mxu0 0.0
        %3259 = vmatprep.mubr.f32.mxu0 0.0
        %v3260 = vand.u32 %v3037, 4294901760
        %v3261 = vsub.f32 %v3037, %v3260
        %3262 = vmatmul.mubr.f32.gmra.mrb[0].mxu0 %v3261
        %v3263 = vpop.f32.mrb[0].mxu0
        %v3264 = vadd.f32 %v3190, %v3263
        %v3265 = vpop.f32.mrb[0].mxu0
        %3266 = vdwg.mxu0
        %3267 = vmatprep.subr.mxu0 0.0
        %v3268 = vand.u32 %v3039, 4294901760
        %3269 = vmatpush1.xpose.msra.mxu0 %v3268
        %3270 = vmatprep.subr.mxu0 0.0
        %3271 = vmatpush1.xpose.msra.mxu0 0.0
        %3272 = vmatprep.subr.mxu0 0.0
        %3273 = vmatpush1.xpose.msra.mxu0 0.0
        %3274 = vmatprep.subr.mxu0 0.0
        %3275 = vmatpush1.xpose.msra.mxu0 0.0
        %3276 = vmatprep.subr.mxu0 0.0
        %3277 = vmatpush1.xpose.msra.mxu0 0.0
        %3278 = vmatprep.subr.mxu0 0.0
        %3279 = vmatpush1.xpose.msra.mxu0 0.0
        %3280 = vmatprep.subr.mxu0 0.0
        %3281 = vmatpush1.xpose.msra.mxu0 0.0
        %3282 = vmatprep.subr.mxu0 0.0
        %3283 = vmatpush1.xpose.msra.mxu0 0.0
        %3284 = vmatprep.subr.mxu0 0.0
        %3285 = vmatpush1.xpose.msra.mxu0 0.0
        %3286 = vmatprep.subr.mxu0 0.0
        %3287 = vmatpush1.xpose.msra.mxu0 0.0
        %3288 = vmatprep.subr.mxu0 0.0
        %3289 = vmatpush1.xpose.msra.mxu0 0.0
        %3290 = vmatprep.subr.mxu0 0.0
        %3291 = vmatpush1.xpose.msra.mxu0 0.0
        %3292 = vmatprep.subr.mxu0 0.0
        %3293 = vmatpush1.xpose.msra.mxu0 0.0
        %3294 = vmatprep.subr.mxu0 0.0
        %3295 = vmatpush1.xpose.msra.mxu0 0.0
        %3296 = vmatprep.subr.mxu0 0.0
        %3297 = vmatpush1.xpose.msra.mxu0 0.0
        %3298 = vmatprep.subr.mxu0 0.0
        %3299 = vmatpush1.xpose.msra.mxu0 0.0
        %3300 = vmatprep.subr.mxu0 0.0
        %3301 = vmatpush1.xpose.msra.mxu0 0.0
        %3302 = vmatprep.subr.mxu0 0.0
        %3303 = vmatpush1.xpose.msra.mxu0 0.0
        %3304 = vmatprep.subr.mxu0 0.0
        %3305 = vmatpush1.xpose.msra.mxu0 0.0
        %3306 = vmatprep.subr.mxu0 0.0
        %3307 = vmatpush1.xpose.msra.mxu0 0.0
        %3308 = vmatprep.subr.mxu0 0.0
        %3309 = vmatpush1.xpose.msra.mxu0 0.0
        %3310 = vmatprep.subr.mxu0 0.0
        %3311 = vmatpush1.xpose.msra.mxu0 0.0
        %3312 = vmatprep.subr.mxu0 0.0
        %3313 = vmatpush1.xpose.msra.mxu0 0.0
        %3314 = vmatprep.subr.mxu0 0.0
        %3315 = vmatpush1.xpose.msra.mxu0 0.0
        %3316 = vmatprep.subr.mxu0 0.0
        %3317 = vmatpush1.xpose.msra.mxu0 0.0
        %3318 = vmatprep.subr.mxu0 0.0
        %3319 = vmatpush1.xpose.msra.mxu0 0.0
        %3320 = vmatprep.subr.mxu0 0.0
        %3321 = vmatpush1.xpose.msra.mxu0 0.0
        %3322 = vmatprep.subr.mxu0 0.0
        %3323 = vmatpush1.xpose.msra.mxu0 0.0
        %3324 = vmatprep.subr.mxu0 0.0
        %3325 = vmatpush1.xpose.msra.mxu0 0.0
        %3326 = vmatprep.subr.mxu0 0.0
        %3327 = vmatpush1.xpose.msra.mxu0 0.0
        %3328 = vmatprep.subr.mxu0 0.0
        %3329 = vmatpush1.xpose.msra.mxu0 0.0
        %3330 = vmatprep.subr.mxu0 0.0
        %3331 = vmatpush1.xpose.msra.mxu0 0.0
        %3332 = vmatprep.mubr.f32.mxu0 0.0
        %v3333 = vand.u32 %v3037, 4294901760
        %v3334 = vsub.f32 %v3037, %v3333
        %v3335 = vand.u32 %v3334, 4294901760
        %3336 = vmatmul.mubr.f32.gmra.mrb[0].mxu0 %v3335
        %v3337 = vpop.f32.mrb[0].mxu0
        %v3338 = vadd.f32 %v3264, %v3337
        %v3339 = vpop.f32.mrb[0].mxu0
        %3340 = vdwg.mxu0
        %3341 = vmatprep.subr.mxu0 0.0
        %v3342 = vand.u32 %v3039, 4294901760
        %v3343 = vsub.f32 %v3039, %v3342
        %v3344 = vand.u32 %v3343, 4294901760
        %3345 = vmatpush1.xpose.msra.mxu0 %v3344
        %3346 = vmatprep.subr.mxu0 0.0
        %3347 = vmatpush1.xpose.msra.mxu0 0.0
        %3348 = vmatprep.subr.mxu0 0.0
        %3349 = vmatpush1.xpose.msra.mxu0 0.0
        %3350 = vmatprep.subr.mxu0 0.0
        %3351 = vmatpush1.xpose.msra.mxu0 0.0
        %3352 = vmatprep.subr.mxu0 0.0
        %3353 = vmatpush1.xpose.msra.mxu0 0.0
        %3354 = vmatprep.subr.mxu0 0.0
        %3355 = vmatpush1.xpose.msra.mxu0 0.0
        %3356 = vmatprep.subr.mxu0 0.0
        %3357 = vmatpush1.xpose.msra.mxu0 0.0
        %3358 = vmatprep.subr.mxu0 0.0
        %3359 = vmatpush1.xpose.msra.mxu0 0.0
        %3360 = vmatprep.subr.mxu0 0.0
        %3361 = vmatpush1.xpose.msra.mxu0 0.0
        %3362 = vmatprep.subr.mxu0 0.0
        %3363 = vmatpush1.xpose.msra.mxu0 0.0
        %3364 = vmatprep.subr.mxu0 0.0
        %3365 = vmatpush1.xpose.msra.mxu0 0.0
        %3366 = vmatprep.subr.mxu0 0.0
        %3367 = vmatpush1.xpose.msra.mxu0 0.0
        %3368 = vmatprep.subr.mxu0 0.0
        %3369 = vmatpush1.xpose.msra.mxu0 0.0
        %3370 = vmatprep.subr.mxu0 0.0
        %3371 = vmatpush1.xpose.msra.mxu0 0.0
        %3372 = vmatprep.subr.mxu0 0.0
        %3373 = vmatpush1.xpose.msra.mxu0 0.0
        %3374 = vmatprep.subr.mxu0 0.0
        %3375 = vmatpush1.xpose.msra.mxu0 0.0
        %3376 = vmatprep.subr.mxu0 0.0
        %3377 = vmatpush1.xpose.msra.mxu0 0.0
        %3378 = vmatprep.subr.mxu0 0.0
        %3379 = vmatpush1.xpose.msra.mxu0 0.0
        %3380 = vmatprep.subr.mxu0 0.0
        %3381 = vmatpush1.xpose.msra.mxu0 0.0
        %3382 = vmatprep.subr.mxu0 0.0
        %3383 = vmatpush1.xpose.msra.mxu0 0.0
        %3384 = vmatprep.subr.mxu0 0.0
        %3385 = vmatpush1.xpose.msra.mxu0 0.0
        %3386 = vmatprep.subr.mxu0 0.0
        %3387 = vmatpush1.xpose.msra.mxu0 0.0
        %3388 = vmatprep.subr.mxu0 0.0
        %3389 = vmatpush1.xpose.msra.mxu0 0.0
        %3390 = vmatprep.subr.mxu0 0.0
        %3391 = vmatpush1.xpose.msra.mxu0 0.0
        %3392 = vmatprep.subr.mxu0 0.0
        %3393 = vmatpush1.xpose.msra.mxu0 0.0
        %3394 = vmatprep.subr.mxu0 0.0
        %3395 = vmatpush1.xpose.msra.mxu0 0.0
        %3396 = vmatprep.subr.mxu0 0.0
        %3397 = vmatpush1.xpose.msra.mxu0 0.0
        %3398 = vmatprep.subr.mxu0 0.0
        %3399 = vmatpush1.xpose.msra.mxu0 0.0
        %3400 = vmatprep.subr.mxu0 0.0
        %3401 = vmatpush1.xpose.msra.mxu0 0.0
        %3402 = vmatprep.subr.mxu0 0.0
        %3403 = vmatpush1.xpose.msra.mxu0 0.0
        %3404 = vmatprep.subr.mxu0 0.0
        %3405 = vmatpush1.xpose.msra.mxu0 0.0
        %3406 = vmatprep.subr.mxu0 0.0
        %3407 = vmatpush1.xpose.msra.mxu0 0.0
        %3408 = vmatprep.mubr.f32.mxu0 0.0
        %v3409 = vand.u32 %v3037, 4294901760
        %3410 = vmatmul.mubr.f32.gmra.mrb[0].mxu0 %v3409
        %v3411 = vpop.f32.mrb[0].mxu0
        %v3412 = vadd.f32 %v3338, %v3411
        %v3413 = vpop.f32.mrb[0].mxu0
        %3414 = vdwg.mxu0
        %3415 = vmatprep.subr.mxu0 0.0
        %v3416 = vand.u32 %v3039, 4294901760
        %3417 = vmatpush1.xpose.msra.mxu0 %v3416
        %3418 = vmatprep.subr.mxu0 0.0
        %3419 = vmatpush1.xpose.msra.mxu0 0.0
        %3420 = vmatprep.subr.mxu0 0.0
        %3421 = vmatpush1.xpose.msra.mxu0 0.0
        %3422 = vmatprep.subr.mxu0 0.0
        %3423 = vmatpush1.xpose.msra.mxu0 0.0
        %3424 = vmatprep.subr.mxu0 0.0
        %3425 = vmatpush1.xpose.msra.mxu0 0.0
        %3426 = vmatprep.subr.mxu0 0.0
        %3427 = vmatpush1.xpose.msra.mxu0 0.0
        %3428 = vmatprep.subr.mxu0 0.0
        %3429 = vmatpush1.xpose.msra.mxu0 0.0
        %3430 = vmatprep.subr.mxu0 0.0
        %3431 = vmatpush1.xpose.msra.mxu0 0.0
        %3432 = vmatprep.subr.mxu0 0.0
        %3433 = vmatpush1.xpose.msra.mxu0 0.0
        %3434 = vmatprep.subr.mxu0 0.0
        %3435 = vmatpush1.xpose.msra.mxu0 0.0
        %3436 = vmatprep.subr.mxu0 0.0
        %3437 = vmatpush1.xpose.msra.mxu0 0.0
        %3438 = vmatprep.subr.mxu0 0.0
        %3439 = vmatpush1.xpose.msra.mxu0 0.0
        %3440 = vmatprep.subr.mxu0 0.0
        %3441 = vmatpush1.xpose.msra.mxu0 0.0
        %3442 = vmatprep.subr.mxu0 0.0
        %3443 = vmatpush1.xpose.msra.mxu0 0.0
        %3444 = vmatprep.subr.mxu0 0.0
        %3445 = vmatpush1.xpose.msra.mxu0 0.0
        %3446 = vmatprep.subr.mxu0 0.0
        %3447 = vmatpush1.xpose.msra.mxu0 0.0
        %3448 = vmatprep.subr.mxu0 0.0
        %3449 = vmatpush1.xpose.msra.mxu0 0.0
        %3450 = vmatprep.subr.mxu0 0.0
        %3451 = vmatpush1.xpose.msra.mxu0 0.0
        %3452 = vmatprep.subr.mxu0 0.0
        %3453 = vmatpush1.xpose.msra.mxu0 0.0
        %3454 = vmatprep.subr.mxu0 0.0
        %3455 = vmatpush1.xpose.msra.mxu0 0.0
        %3456 = vmatprep.subr.mxu0 0.0
        %3457 = vmatpush1.xpose.msra.mxu0 0.0
        %3458 = vmatprep.subr.mxu0 0.0
        %3459 = vmatpush1.xpose.msra.mxu0 0.0
        %3460 = vmatprep.subr.mxu0 0.0
        %3461 = vmatpush1.xpose.msra.mxu0 0.0
        %3462 = vmatprep.subr.mxu0 0.0
        %3463 = vmatpush1.xpose.msra.mxu0 0.0
        %3464 = vmatprep.subr.mxu0 0.0
        %3465 = vmatpush1.xpose.msra.mxu0 0.0
        %3466 = vmatprep.subr.mxu0 0.0
        %3467 = vmatpush1.xpose.msra.mxu0 0.0
        %3468 = vmatprep.subr.mxu0 0.0
        %3469 = vmatpush1.xpose.msra.mxu0 0.0
        %3470 = vmatprep.subr.mxu0 0.0
        %3471 = vmatpush1.xpose.msra.mxu0 0.0
        %3472 = vmatprep.subr.mxu0 0.0
        %3473 = vmatpush1.xpose.msra.mxu0 0.0
        %3474 = vmatprep.subr.mxu0 0.0
        %3475 = vmatpush1.xpose.msra.mxu0 0.0
        %3476 = vmatprep.subr.mxu0 0.0
        %3477 = vmatpush1.xpose.msra.mxu0 0.0
        %3478 = vmatprep.subr.mxu0 0.0
        %3479 = vmatpush1.xpose.msra.mxu0 0.0
        %3480 = vmatprep.mubr.f32.mxu0 0.0
        %v3481 = vand.u32 %v3037, 4294901760
        %3482 = vmatmul.mubr.f32.gmra.mrb[0].mxu0 %v3481
        %v3483 = vpop.f32.mrb[0].mxu0
        %v3484 = vadd.f32 %v3412, %v3483
        %v3485 = vpop.f32.mrb[0].mxu0
        %3486 = vdwg.mxu0
        %v3487 = vmul.f32 %v3484, 0.35355338
        %v3488 = vadd.f32 %v3487, %v1642
        %v3489 = vsel %vm1187, %v3488, -inf
        %3490 = vmax.xlane.f32.xlu0 %v3489
        %v3491 = vpop.xlane.xlu0 %3490
        %v3492 = vsub.f32 %v3488, %v3491
        %v3493 = vmul.f32 %v3492, 1.442695
        %v3494 = vpow.pop %v3493
        %v3495 = vsel %vm1187, %v3494, 0.0
        %3496 = vadd.xlane.f32.xlu0 %v3495
        %v3497 = vpop.xlane.xlu0 %3496
        %v3498 = vrcp.pop %v3497
        %v3499 = vmul.f32 %v3494, %v3498
        %3500 = vrot.lane.b32.xlu0 %v1174, 48
        %v3501 = vpop.permute.xlu0 %3500
        %v3504 = vsel %vm1187, %v3499, 0
        %3506 = vmatprep.subr.mxu0 0.0
        %v3507 = vand.u32 %v3501, 4294901760
        %3508 = vmatpush1.msra.mxu0 %v3507
        %3509 = vmatprep.subr.mxu0 0.0
        %3510 = vmatpush1.msra.mxu0 0.0
        %3511 = vmatprep.subr.mxu0 0.0
        %3512 = vmatpush1.msra.mxu0 0.0
        %3513 = vmatprep.subr.mxu0 0.0
        %3514 = vmatpush1.msra.mxu0 0.0
        %3515 = vmatprep.subr.mxu0 0.0
        %3516 = vmatpush1.msra.mxu0 0.0
        %3517 = vmatprep.subr.mxu0 0.0
        %3518 = vmatpush1.msra.mxu0 0.0
        %3519 = vmatprep.subr.mxu0 0.0
        %3520 = vmatpush1.msra.mxu0 0.0
        %3521 = vmatprep.subr.mxu0 0.0
        %3522 = vmatpush1.msra.mxu0 0.0
        %3523 = vmatprep.subr.mxu0 0.0
        %3524 = vmatpush1.msra.mxu0 0.0
        %3525 = vmatprep.subr.mxu0 0.0
        %3526 = vmatpush1.msra.mxu0 0.0
        %3527 = vmatprep.subr.mxu0 0.0
        %3528 = vmatpush1.msra.mxu0 0.0
        %3529 = vmatprep.subr.mxu0 0.0
        %3530 = vmatpush1.msra.mxu0 0.0
        %3531 = vmatprep.subr.mxu0 0.0
        %3532 = vmatpush1.msra.mxu0 0.0
        %3533 = vmatprep.subr.mxu0 0.0
        %3534 = vmatpush1.msra.mxu0 0.0
        %3535 = vmatprep.subr.mxu0 0.0
        %3536 = vmatpush1.msra.mxu0 0.0
        %3537 = vmatprep.subr.mxu0 0.0
        %3538 = vmatpush1.msra.mxu0 0.0
        %3539 = vmatprep.subr.mxu0 0.0
        %3540 = vmatpush1.msra.mxu0 0.0
        %3541 = vmatprep.subr.mxu0 0.0
        %3542 = vmatpush1.msra.mxu0 0.0
        %3543 = vmatprep.subr.mxu0 0.0
        %3544 = vmatpush1.msra.mxu0 0.0
        %3545 = vmatprep.subr.mxu0 0.0
        %3546 = vmatpush1.msra.mxu0 0.0
        %3547 = vmatprep.subr.mxu0 0.0
        %3548 = vmatpush1.msra.mxu0 0.0
        %3549 = vmatprep.subr.mxu0 0.0
        %3550 = vmatpush1.msra.mxu0 0.0
        %3551 = vmatprep.subr.mxu0 0.0
        %3552 = vmatpush1.msra.mxu0 0.0
        %3553 = vmatprep.subr.mxu0 0.0
        %3554 = vmatpush1.msra.mxu0 0.0
        %3555 = vmatprep.subr.mxu0 0.0
        %3556 = vmatpush1.msra.mxu0 0.0
        %3557 = vmatprep.subr.mxu0 0.0
        %3558 = vmatpush1.msra.mxu0 0.0
        %3559 = vmatprep.subr.mxu0 0.0
        %3560 = vmatpush1.msra.mxu0 0.0
        %3561 = vmatprep.subr.mxu0 0.0
        %3562 = vmatpush1.msra.mxu0 0.0
        %3563 = vmatprep.subr.mxu0 0.0
        %3564 = vmatpush1.msra.mxu0 0.0
        %3565 = vmatprep.subr.mxu0 0.0
        %3566 = vmatpush1.msra.mxu0 0.0
        %3567 = vmatprep.subr.mxu0 0.0
        %3568 = vmatpush1.msra.mxu0 0.0
        %3569 = vmatprep.subr.mxu0 0.0
        %3570 = vmatpush1.msra.mxu0 0.0
        %3571 = vmatprep.mubr.f32.mxu0 0.0
        %v3572 = vand.u32 %v3504, 4294901760
        %v3573 = vsub.f32 %v3504, %v3572
        %v3574 = vand.u32 %v3573, 4294901760
        %v3575 = vsub.f32 %v3573, %v3574
        %v3576 = vand.u32 %v3575, 4294901760
        %3577 = vmatmul.mubr.f32.gmra.mrb[0].mxu0 %v3576
        %v3578 = vpop.f32.mrb[0].mxu0
        %v3579 = vadd.f32 0.0, %v3578
        %v3580 = vpop.f32.mrb[0].mxu0
        %3581 = vdwg.mxu0
        %3582 = vmatprep.subr.mxu0 0.0
        %v3583 = vand.u32 %v3501, 4294901760
        %v3584 = vsub.f32 %v3501, %v3583
        %v3585 = vand.u32 %v3584, 4294901760
        %v3586 = vsub.f32 %v3584, %v3585
        %v3587 = vand.u32 %v3586, 4294901760
        %3588 = vmatpush1.msra.mxu0 %v3587
        %3589 = vmatprep.subr.mxu0 0.0
        %3590 = vmatpush1.msra.mxu0 0.0
        %3591 = vmatprep.subr.mxu0 0.0
        %3592 = vmatpush1.msra.mxu0 0.0
        %3593 = vmatprep.subr.mxu0 0.0
        %3594 = vmatpush1.msra.mxu0 0.0
        %3595 = vmatprep.subr.mxu0 0.0
        %3596 = vmatpush1.msra.mxu0 0.0
        %3597 = vmatprep.subr.mxu0 0.0
        %3598 = vmatpush1.msra.mxu0 0.0
        %3599 = vmatprep.subr.mxu0 0.0
        %3600 = vmatpush1.msra.mxu0 0.0
        %3601 = vmatprep.subr.mxu0 0.0
        %3602 = vmatpush1.msra.mxu0 0.0
        %3603 = vmatprep.subr.mxu0 0.0
        %3604 = vmatpush1.msra.mxu0 0.0
        %3605 = vmatprep.subr.mxu0 0.0
        %3606 = vmatpush1.msra.mxu0 0.0
        %3607 = vmatprep.subr.mxu0 0.0
        %3608 = vmatpush1.msra.mxu0 0.0
        %3609 = vmatprep.subr.mxu0 0.0
        %3610 = vmatpush1.msra.mxu0 0.0
        %3611 = vmatprep.subr.mxu0 0.0
        %3612 = vmatpush1.msra.mxu0 0.0
        %3613 = vmatprep.subr.mxu0 0.0
        %3614 = vmatpush1.msra.mxu0 0.0
        %3615 = vmatprep.subr.mxu0 0.0
        %3616 = vmatpush1.msra.mxu0 0.0
        %3617 = vmatprep.subr.mxu0 0.0
        %3618 = vmatpush1.msra.mxu0 0.0
        %3619 = vmatprep.subr.mxu0 0.0
        %3620 = vmatpush1.msra.mxu0 0.0
        %3621 = vmatprep.subr.mxu0 0.0
        %3622 = vmatpush1.msra.mxu0 0.0
        %3623 = vmatprep.subr.mxu0 0.0
        %3624 = vmatpush1.msra.mxu0 0.0
        %3625 = vmatprep.subr.mxu0 0.0
        %3626 = vmatpush1.msra.mxu0 0.0
        %3627 = vmatprep.subr.mxu0 0.0
        %3628 = vmatpush1.msra.mxu0 0.0
        %3629 = vmatprep.subr.mxu0 0.0
        %3630 = vmatpush1.msra.mxu0 0.0
        %3631 = vmatprep.subr.mxu0 0.0
        %3632 = vmatpush1.msra.mxu0 0.0
        %3633 = vmatprep.subr.mxu0 0.0
        %3634 = vmatpush1.msra.mxu0 0.0
        %3635 = vmatprep.subr.mxu0 0.0
        %3636 = vmatpush1.msra.mxu0 0.0
        %3637 = vmatprep.subr.mxu0 0.0
        %3638 = vmatpush1.msra.mxu0 0.0
        %3639 = vmatprep.subr.mxu0 0.0
        %3640 = vmatpush1.msra.mxu0 0.0
        %3641 = vmatprep.subr.mxu0 0.0
        %3642 = vmatpush1.msra.mxu0 0.0
        %3643 = vmatprep.subr.mxu0 0.0
        %3644 = vmatpush1.msra.mxu0 0.0
        %3645 = vmatprep.subr.mxu0 0.0
        %3646 = vmatpush1.msra.mxu0 0.0
        %3647 = vmatprep.subr.mxu0 0.0
        %3648 = vmatpush1.msra.mxu0 0.0
        %3649 = vmatprep.subr.mxu0 0.0
        %3650 = vmatpush1.msra.mxu0 0.0
        %3651 = vmatprep.mubr.f32.mxu0 0.0
        %v3652 = vand.u32 %v3504, 4294901760
        %3653 = vmatmul.mubr.f32.gmra.mrb[0].mxu0 %v3652
        %v3654 = vpop.f32.mrb[0].mxu0
        %v3655 = vadd.f32 %v3579, %v3654
        %v3656 = vpop.f32.mrb[0].mxu0
        %3657 = vdwg.mxu0
        %3658 = vmatprep.subr.mxu0 0.0
        %v3659 = vand.u32 %v3501, 4294901760
        %v3660 = vsub.f32 %v3501, %v3659
        %3661 = vmatpush1.msra.mxu0 %v3660
        %3662 = vmatprep.subr.mxu0 0.0
        %3663 = vmatpush1.msra.mxu0 0.0
        %3664 = vmatprep.subr.mxu0 0.0
        %3665 = vmatpush1.msra.mxu0 0.0
        %3666 = vmatprep.subr.mxu0 0.0
        %3667 = vmatpush1.msra.mxu0 0.0
        %3668 = vmatprep.subr.mxu0 0.0
        %3669 = vmatpush1.msra.mxu0 0.0
        %3670 = vmatprep.subr.mxu0 0.0
        %3671 = vmatpush1.msra.mxu0 0.0
        %3672 = vmatprep.subr.mxu0 0.0
        %3673 = vmatpush1.msra.mxu0 0.0
        %3674 = vmatprep.subr.mxu0 0.0
        %3675 = vmatpush1.msra.mxu0 0.0
        %3676 = vmatprep.subr.mxu0 0.0
        %3677 = vmatpush1.msra.mxu0 0.0
        %3678 = vmatprep.subr.mxu0 0.0
        %3679 = vmatpush1.msra.mxu0 0.0
        %3680 = vmatprep.subr.mxu0 0.0
        %3681 = vmatpush1.msra.mxu0 0.0
        %3682 = vmatprep.subr.mxu0 0.0
        %3683 = vmatpush1.msra.mxu0 0.0
        %3684 = vmatprep.subr.mxu0 0.0
        %3685 = vmatpush1.msra.mxu0 0.0
        %3686 = vmatprep.subr.mxu0 0.0
        %3687 = vmatpush1.msra.mxu0 0.0
        %3688 = vmatprep.subr.mxu0 0.0
        %3689 = vmatpush1.msra.mxu0 0.0
        %3690 = vmatprep.subr.mxu0 0.0
        %3691 = vmatpush1.msra.mxu0 0.0
        %3692 = vmatprep.subr.mxu0 0.0
        %3693 = vmatpush1.msra.mxu0 0.0
        %3694 = vmatprep.subr.mxu0 0.0
        %3695 = vmatpush1.msra.mxu0 0.0
        %3696 = vmatprep.subr.mxu0 0.0
        %3697 = vmatpush1.msra.mxu0 0.0
        %3698 = vmatprep.subr.mxu0 0.0
        %3699 = vmatpush1.msra.mxu0 0.0
        %3700 = vmatprep.subr.mxu0 0.0
        %3701 = vmatpush1.msra.mxu0 0.0
        %3702 = vmatprep.subr.mxu0 0.0
        %3703 = vmatpush1.msra.mxu0 0.0
        %3704 = vmatprep.subr.mxu0 0.0
        %3705 = vmatpush1.msra.mxu0 0.0
        %3706 = vmatprep.subr.mxu0 0.0
        %3707 = vmatpush1.msra.mxu0 0.0
        %3708 = vmatprep.subr.mxu0 0.0
        %3709 = vmatpush1.msra.mxu0 0.0
        %3710 = vmatprep.subr.mxu0 0.0
        %3711 = vmatpush1.msra.mxu0 0.0
        %3712 = vmatprep.subr.mxu0 0.0
        %3713 = vmatpush1.msra.mxu0 0.0
        %3714 = vmatprep.subr.mxu0 0.0
        %3715 = vmatpush1.msra.mxu0 0.0
        %3716 = vmatprep.subr.mxu0 0.0
        %3717 = vmatpush1.msra.mxu0 0.0
        %3718 = vmatprep.subr.mxu0 0.0
        %3719 = vmatpush1.msra.mxu0 0.0
        %3720 = vmatprep.subr.mxu0 0.0
        %3721 = vmatpush1.msra.mxu0 0.0
        %3722 = vmatprep.subr.mxu0 0.0
        %3723 = vmatpush1.msra.mxu0 0.0
        %3724 = vmatprep.mubr.f32.mxu0 0.0
        %v3725 = vand.u32 %v3504, 4294901760
        %v3726 = vsub.f32 %v3504, %v3725
        %3727 = vmatmul.mubr.f32.gmra.mrb[0].mxu0 %v3726
        %v3728 = vpop.f32.mrb[0].mxu0
        %v3729 = vadd.f32 %v3655, %v3728
        %v3730 = vpop.f32.mrb[0].mxu0
        %3731 = vdwg.mxu0
        %3732 = vmatprep.subr.mxu0 0.0
        %v3733 = vand.u32 %v3501, 4294901760
        %3734 = vmatpush1.msra.mxu0 %v3733
        %3735 = vmatprep.subr.mxu0 0.0
        %3736 = vmatpush1.msra.mxu0 0.0
        %3737 = vmatprep.subr.mxu0 0.0
        %3738 = vmatpush1.msra.mxu0 0.0
        %3739 = vmatprep.subr.mxu0 0.0
        %3740 = vmatpush1.msra.mxu0 0.0
        %3741 = vmatprep.subr.mxu0 0.0
        %3742 = vmatpush1.msra.mxu0 0.0
        %3743 = vmatprep.subr.mxu0 0.0
        %3744 = vmatpush1.msra.mxu0 0.0
        %3745 = vmatprep.subr.mxu0 0.0
        %3746 = vmatpush1.msra.mxu0 0.0
        %3747 = vmatprep.subr.mxu0 0.0
        %3748 = vmatpush1.msra.mxu0 0.0
        %3749 = vmatprep.subr.mxu0 0.0
        %3750 = vmatpush1.msra.mxu0 0.0
        %3751 = vmatprep.subr.mxu0 0.0
        %3752 = vmatpush1.msra.mxu0 0.0
        %3753 = vmatprep.subr.mxu0 0.0
        %3754 = vmatpush1.msra.mxu0 0.0
        %3755 = vmatprep.subr.mxu0 0.0
        %3756 = vmatpush1.msra.mxu0 0.0
        %3757 = vmatprep.subr.mxu0 0.0
        %3758 = vmatpush1.msra.mxu0 0.0
        %3759 = vmatprep.subr.mxu0 0.0
        %3760 = vmatpush1.msra.mxu0 0.0
        %3761 = vmatprep.subr.mxu0 0.0
        %3762 = vmatpush1.msra.mxu0 0.0
        %3763 = vmatprep.subr.mxu0 0.0
        %3764 = vmatpush1.msra.mxu0 0.0
        %3765 = vmatprep.subr.mxu0 0.0
        %3766 = vmatpush1.msra.mxu0 0.0
        %3767 = vmatprep.subr.mxu0 0.0
        %3768 = vmatpush1.msra.mxu0 0.0
        %3769 = vmatprep.subr.mxu0 0.0
        %3770 = vmatpush1.msra.mxu0 0.0
        %3771 = vmatprep.subr.mxu0 0.0
        %3772 = vmatpush1.msra.mxu0 0.0
        %3773 = vmatprep.subr.mxu0 0.0
        %3774 = vmatpush1.msra.mxu0 0.0
        %3775 = vmatprep.subr.mxu0 0.0
        %3776 = vmatpush1.msra.mxu0 0.0
        %3777 = vmatprep.subr.mxu0 0.0
        %3778 = vmatpush1.msra.mxu0 0.0
        %3779 = vmatprep.subr.mxu0 0.0
        %3780 = vmatpush1.msra.mxu0 0.0
        %3781 = vmatprep.subr.mxu0 0.0
        %3782 = vmatpush1.msra.mxu0 0.0
        %3783 = vmatprep.subr.mxu0 0.0
        %3784 = vmatpush1.msra.mxu0 0.0
        %3785 = vmatprep.subr.mxu0 0.0
        %3786 = vmatpush1.msra.mxu0 0.0
        %3787 = vmatprep.subr.mxu0 0.0
        %3788 = vmatpush1.msra.mxu0 0.0
        %3789 = vmatprep.subr.mxu0 0.0
        %3790 = vmatpush1.msra.mxu0 0.0
        %3791 = vmatprep.subr.mxu0 0.0
        %3792 = vmatpush1.msra.mxu0 0.0
        %3793 = vmatprep.subr.mxu0 0.0
        %3794 = vmatpush1.msra.mxu0 0.0
        %3795 = vmatprep.subr.mxu0 0.0
        %3796 = vmatpush1.msra.mxu0 0.0
        %3797 = vmatprep.mubr.f32.mxu0 0.0
        %v3798 = vand.u32 %v3504, 4294901760
        %v3799 = vsub.f32 %v3504, %v3798
        %v3800 = vand.u32 %v3799, 4294901760
        %3801 = vmatmul.mubr.f32.gmra.mrb[0].mxu0 %v3800
        %v3802 = vpop.f32.mrb[0].mxu0
        %v3803 = vadd.f32 %v3729, %v3802
        %v3804 = vpop.f32.mrb[0].mxu0
        %3805 = vdwg.mxu0
        %3806 = vmatprep.subr.mxu0 0.0
        %v3807 = vand.u32 %v3501, 4294901760
        %v3808 = vsub.f32 %v3501, %v3807
        %v3809 = vand.u32 %v3808, 4294901760
        %3810 = vmatpush1.msra.mxu0 %v3809
        %3811 = vmatprep.subr.mxu0 0.0
        %3812 = vmatpush1.msra.mxu0 0.0
        %3813 = vmatprep.subr.mxu0 0.0
        %3814 = vmatpush1.msra.mxu0 0.0
        %3815 = vmatprep.subr.mxu0 0.0
        %3816 = vmatpush1.msra.mxu0 0.0
        %3817 = vmatprep.subr.mxu0 0.0
        %3818 = vmatpush1.msra.mxu0 0.0
        %3819 = vmatprep.subr.mxu0 0.0
        %3820 = vmatpush1.msra.mxu0 0.0
        %3821 = vmatprep.subr.mxu0 0.0
        %3822 = vmatpush1.msra.mxu0 0.0
        %3823 = vmatprep.subr.mxu0 0.0
        %3824 = vmatpush1.msra.mxu0 0.0
        %3825 = vmatprep.subr.mxu0 0.0
        %3826 = vmatpush1.msra.mxu0 0.0
        %3827 = vmatprep.subr.mxu0 0.0
        %3828 = vmatpush1.msra.mxu0 0.0
        %3829 = vmatprep.subr.mxu0 0.0
        %3830 = vmatpush1.msra.mxu0 0.0
        %3831 = vmatprep.subr.mxu0 0.0
        %3832 = vmatpush1.msra.mxu0 0.0
        %3833 = vmatprep.subr.mxu0 0.0
        %3834 = vmatpush1.msra.mxu0 0.0
        %3835 = vmatprep.subr.mxu0 0.0
        %3836 = vmatpush1.msra.mxu0 0.0
        %3837 = vmatprep.subr.mxu0 0.0
        %3838 = vmatpush1.msra.mxu0 0.0
        %3839 = vmatprep.subr.mxu0 0.0
        %3840 = vmatpush1.msra.mxu0 0.0
        %3841 = vmatprep.subr.mxu0 0.0
        %3842 = vmatpush1.msra.mxu0 0.0
        %3843 = vmatprep.subr.mxu0 0.0
        %3844 = vmatpush1.msra.mxu0 0.0
        %3845 = vmatprep.subr.mxu0 0.0
        %3846 = vmatpush1.msra.mxu0 0.0
        %3847 = vmatprep.subr.mxu0 0.0
        %3848 = vmatpush1.msra.mxu0 0.0
        %3849 = vmatprep.subr.mxu0 0.0
        %3850 = vmatpush1.msra.mxu0 0.0
        %3851 = vmatprep.subr.mxu0 0.0
        %3852 = vmatpush1.msra.mxu0 0.0
        %3853 = vmatprep.subr.mxu0 0.0
        %3854 = vmatpush1.msra.mxu0 0.0
        %3855 = vmatprep.subr.mxu0 0.0
        %3856 = vmatpush1.msra.mxu0 0.0
        %3857 = vmatprep.subr.mxu0 0.0
        %3858 = vmatpush1.msra.mxu0 0.0
        %3859 = vmatprep.subr.mxu0 0.0
        %3860 = vmatpush1.msra.mxu0 0.0
        %3861 = vmatprep.subr.mxu0 0.0
        %3862 = vmatpush1.msra.mxu0 0.0
        %3863 = vmatprep.subr.mxu0 0.0
        %3864 = vmatpush1.msra.mxu0 0.0
        %3865 = vmatprep.subr.mxu0 0.0
        %3866 = vmatpush1.msra.mxu0 0.0
        %3867 = vmatprep.subr.mxu0 0.0
        %3868 = vmatpush1.msra.mxu0 0.0
        %3869 = vmatprep.subr.mxu0 0.0
        %3870 = vmatpush1.msra.mxu0 0.0
        %3871 = vmatprep.subr.mxu0 0.0
        %3872 = vmatpush1.msra.mxu0 0.0
        %3873 = vmatprep.mubr.f32.mxu0 0.0
        %v3874 = vand.u32 %v3504, 4294901760
        %3875 = vmatmul.mubr.f32.gmra.mrb[0].mxu0 %v3874
        %v3876 = vpop.f32.mrb[0].mxu0
        %v3877 = vadd.f32 %v3803, %v3876
        %v3878 = vpop.f32.mrb[0].mxu0
        %3879 = vdwg.mxu0
        %3880 = vmatprep.subr.mxu0 0.0
        %v3881 = vand.u32 %v3501, 4294901760
        %3882 = vmatpush1.msra.mxu0 %v3881
        %3883 = vmatprep.subr.mxu0 0.0
        %3884 = vmatpush1.msra.mxu0 0.0
        %3885 = vmatprep.subr.mxu0 0.0
        %3886 = vmatpush1.msra.mxu0 0.0
        %3887 = vmatprep.subr.mxu0 0.0
        %3888 = vmatpush1.msra.mxu0 0.0
        %3889 = vmatprep.subr.mxu0 0.0
        %3890 = vmatpush1.msra.mxu0 0.0
        %3891 = vmatprep.subr.mxu0 0.0
        %3892 = vmatpush1.msra.mxu0 0.0
        %3893 = vmatprep.subr.mxu0 0.0
        %3894 = vmatpush1.msra.mxu0 0.0
        %3895 = vmatprep.subr.mxu0 0.0
        %3896 = vmatpush1.msra.mxu0 0.0
        %3897 = vmatprep.subr.mxu0 0.0
        %3898 = vmatpush1.msra.mxu0 0.0
        %3899 = vmatprep.subr.mxu0 0.0
        %3900 = vmatpush1.msra.mxu0 0.0
        %3901 = vmatprep.subr.mxu0 0.0
        %3902 = vmatpush1.msra.mxu0 0.0
        %3903 = vmatprep.subr.mxu0 0.0
        %3904 = vmatpush1.msra.mxu0 0.0
        %3905 = vmatprep.subr.mxu0 0.0
        %3906 = vmatpush1.msra.mxu0 0.0
        %3907 = vmatprep.subr.mxu0 0.0
        %3908 = vmatpush1.msra.mxu0 0.0
        %3909 = vmatprep.subr.mxu0 0.0
        %3910 = vmatpush1.msra.mxu0 0.0
        %3911 = vmatprep.subr.mxu0 0.0
        %3912 = vmatpush1.msra.mxu0 0.0
        %3913 = vmatprep.subr.mxu0 0.0
        %3914 = vmatpush1.msra.mxu0 0.0
        %3915 = vmatprep.subr.mxu0 0.0
        %3916 = vmatpush1.msra.mxu0 0.0
        %3917 = vmatprep.subr.mxu0 0.0
        %3918 = vmatpush1.msra.mxu0 0.0
        %3919 = vmatprep.subr.mxu0 0.0
        %3920 = vmatpush1.msra.mxu0 0.0
        %3921 = vmatprep.subr.mxu0 0.0
        %3922 = vmatpush1.msra.mxu0 0.0
        %3923 = vmatprep.subr.mxu0 0.0
        %3924 = vmatpush1.msra.mxu0 0.0
        %3925 = vmatprep.subr.mxu0 0.0
        %3926 = vmatpush1.msra.mxu0 0.0
        %3927 = vmatprep.subr.mxu0 0.0
        %3928 = vmatpush1.msra.mxu0 0.0
        %3929 = vmatprep.subr.mxu0 0.0
        %3930 = vmatpush1.msra.mxu0 0.0
        %3931 = vmatprep.subr.mxu0 0.0
        %3932 = vmatpush1.msra.mxu0 0.0
        %3933 = vmatprep.subr.mxu0 0.0
        %3934 = vmatpush1.msra.mxu0 0.0
        %3935 = vmatprep.subr.mxu0 0.0
        %3936 = vmatpush1.msra.mxu0 0.0
        %3937 = vmatprep.subr.mxu0 0.0
        %3938 = vmatpush1.msra.mxu0 0.0
        %3939 = vmatprep.subr.mxu0 0.0
        %3940 = vmatpush1.msra.mxu0 0.0
        %3941 = vmatprep.subr.mxu0 0.0
        %3942 = vmatpush1.msra.mxu0 0.0
        %3943 = vmatprep.subr.mxu0 0.0
        %3944 = vmatpush1.msra.mxu0 0.0
        %3945 = vmatprep.mubr.f32.mxu0 0.0
        %v3946 = vand.u32 %v3504, 4294901760
        %3947 = vmatmul.mubr.f32.gmra.mrb[0].mxu0 %v3946
        %v3948 = vpop.f32.mrb[0].mxu0
        %v3949 = vadd.f32 %v3877, %v3948
        %v3950 = vpop.f32.mrb[0].mxu0
        %3951 = vdwg.mxu0
        %3953 = vrot.lane.b32.xlu0 %v3949, 16
        %v3954 = vpop.permute.xlu0 %3953
        %vm3956 = vcmask 195712
        %3957 = vst.msk [vmem:[#allocation2] sm:$0xff] %vm3956, %v3954
        %3958 = vrot.lane.b32.xlu0 %v1174, 104
        %v3959 = vpop.permute.xlu0 %3958
        %3960 = vrot.lane.b32.xlu0 %v1174, 72
        %v3961 = vpop.permute.xlu0 %3960
        %v3962 = vsel %vm1187, %v3959, 0
        %v3964 = vsel %vm1187, %v3961, 0
        %3966 = vmatprep.subr.mxu0 0.0
        %v3967 = vand.u32 %v3964, 4294901760
        %3968 = vmatpush1.xpose.msra.mxu0 %v3967
        %3969 = vmatprep.subr.mxu0 0.0
        %3970 = vmatpush1.xpose.msra.mxu0 0.0
        %3971 = vmatprep.subr.mxu0 0.0
        %3972 = vmatpush1.xpose.msra.mxu0 0.0
        %3973 = vmatprep.subr.mxu0 0.0
        %3974 = vmatpush1.xpose.msra.mxu0 0.0
        %3975 = vmatprep.subr.mxu0 0.0
        %3976 = vmatpush1.xpose.msra.mxu0 0.0
        %3977 = vmatprep.subr.mxu0 0.0
        %3978 = vmatpush1.xpose.msra.mxu0 0.0
        %3979 = vmatprep.subr.mxu0 0.0
        %3980 = vmatpush1.xpose.msra.mxu0 0.0
        %3981 = vmatprep.subr.mxu0 0.0
        %3982 = vmatpush1.xpose.msra.mxu0 0.0
        %3983 = vmatprep.subr.mxu0 0.0
        %3984 = vmatpush1.xpose.msra.mxu0 0.0
        %3985 = vmatprep.subr.mxu0 0.0
        %3986 = vmatpush1.xpose.msra.mxu0 0.0
        %3987 = vmatprep.subr.mxu0 0.0
        %3988 = vmatpush1.xpose.msra.mxu0 0.0
        %3989 = vmatprep.subr.mxu0 0.0
        %3990 = vmatpush1.xpose.msra.mxu0 0.0
        %3991 = vmatprep.subr.mxu0 0.0
        %3992 = vmatpush1.xpose.msra.mxu0 0.0
        %3993 = vmatprep.subr.mxu0 0.0
        %3994 = vmatpush1.xpose.msra.mxu0 0.0
        %3995 = vmatprep.subr.mxu0 0.0
        %3996 = vmatpush1.xpose.msra.mxu0 0.0
        %3997 = vmatprep.subr.mxu0 0.0
        %3998 = vmatpush1.xpose.msra.mxu0 0.0
        %3999 = vmatprep.subr.mxu0 0.0
        %4000 = vmatpush1.xpose.msra.mxu0 0.0
        %4001 = vmatprep.subr.mxu0 0.0
        %4002 = vmatpush1.xpose.msra.mxu0 0.0
        %4003 = vmatprep.subr.mxu0 0.0
        %4004 = vmatpush1.xpose.msra.mxu0 0.0
        %4005 = vmatprep.subr.mxu0 0.0
        %4006 = vmatpush1.xpose.msra.mxu0 0.0
        %4007 = vmatprep.subr.mxu0 0.0
        %4008 = vmatpush1.xpose.msra.mxu0 0.0
        %4009 = vmatprep.subr.mxu0 0.0
        %4010 = vmatpush1.xpose.msra.mxu0 0.0
        %4011 = vmatprep.subr.mxu0 0.0
        %4012 = vmatpush1.xpose.msra.mxu0 0.0
        %4013 = vmatprep.subr.mxu0 0.0
        %4014 = vmatpush1.xpose.msra.mxu0 0.0
        %4015 = vmatprep.subr.mxu0 0.0
        %4016 = vmatpush1.xpose.msra.mxu0 0.0
        %4017 = vmatprep.subr.mxu0 0.0
        %4018 = vmatpush1.xpose.msra.mxu0 0.0
        %4019 = vmatprep.subr.mxu0 0.0
        %4020 = vmatpush1.xpose.msra.mxu0 0.0
        %4021 = vmatprep.subr.mxu0 0.0
        %4022 = vmatpush1.xpose.msra.mxu0 0.0
        %4023 = vmatprep.subr.mxu0 0.0
        %4024 = vmatpush1.xpose.msra.mxu0 0.0
        %4025 = vmatprep.subr.mxu0 0.0
        %4026 = vmatpush1.xpose.msra.mxu0 0.0
        %4027 = vmatprep.subr.mxu0 0.0
        %4028 = vmatpush1.xpose.msra.mxu0 0.0
        %4029 = vmatprep.subr.mxu0 0.0
        %4030 = vmatpush1.xpose.msra.mxu0 0.0
        %4031 = vmatprep.mubr.f32.mxu0 0.0
        %v4032 = vand.u32 %v3962, 4294901760
        %v4033 = vsub.f32 %v3962, %v4032
        %v4034 = vand.u32 %v4033, 4294901760
        %v4035 = vsub.f32 %v4033, %v4034
        %v4036 = vand.u32 %v4035, 4294901760
        %4037 = vmatmul.mubr.f32.gmra.mrb[0].mxu0 %v4036
        %v4038 = vpop.f32.mrb[0].mxu0
        %v4039 = vadd.f32 0.0, %v4038
        %v4040 = vpop.f32.mrb[0].mxu0
        %4041 = vdwg.mxu0
        %4042 = vmatprep.subr.mxu0 0.0
        %v4043 = vand.u32 %v3964, 4294901760
        %v4044 = vsub.f32 %v3964, %v4043
        %v4045 = vand.u32 %v4044, 4294901760
        %v4046 = vsub.f32 %v4044, %v4045
        %v4047 = vand.u32 %v4046, 4294901760
        %4048 = vmatpush1.xpose.msra.mxu0 %v4047
        %4049 = vmatprep.subr.mxu0 0.0
        %4050 = vmatpush1.xpose.msra.mxu0 0.0
        %4051 = vmatprep.subr.mxu0 0.0
        %4052 = vmatpush1.xpose.msra.mxu0 0.0
        %4053 = vmatprep.subr.mxu0 0.0
        %4054 = vmatpush1.xpose.msra.mxu0 0.0
        %4055 = vmatprep.subr.mxu0 0.0
        %4056 = vmatpush1.xpose.msra.mxu0 0.0
        %4057 = vmatprep.subr.mxu0 0.0
        %4058 = vmatpush1.xpose.msra.mxu0 0.0
        %4059 = vmatprep.subr.mxu0 0.0
        %4060 = vmatpush1.xpose.msra.mxu0 0.0
        %4061 = vmatprep.subr.mxu0 0.0
        %4062 = vmatpush1.xpose.msra.mxu0 0.0
        %4063 = vmatprep.subr.mxu0 0.0
        %4064 = vmatpush1.xpose.msra.mxu0 0.0
        %4065 = vmatprep.subr.mxu0 0.0
        %4066 = vmatpush1.xpose.msra.mxu0 0.0
        %4067 = vmatprep.subr.mxu0 0.0
        %4068 = vmatpush1.xpose.msra.mxu0 0.0
        %4069 = vmatprep.subr.mxu0 0.0
        %4070 = vmatpush1.xpose.msra.mxu0 0.0
        %4071 = vmatprep.subr.mxu0 0.0
        %4072 = vmatpush1.xpose.msra.mxu0 0.0
        %4073 = vmatprep.subr.mxu0 0.0
        %4074 = vmatpush1.xpose.msra.mxu0 0.0
        %4075 = vmatprep.subr.mxu0 0.0
        %4076 = vmatpush1.xpose.msra.mxu0 0.0
        %4077 = vmatprep.subr.mxu0 0.0
        %4078 = vmatpush1.xpose.msra.mxu0 0.0
        %4079 = vmatprep.subr.mxu0 0.0
        %4080 = vmatpush1.xpose.msra.mxu0 0.0
        %4081 = vmatprep.subr.mxu0 0.0
        %4082 = vmatpush1.xpose.msra.mxu0 0.0
        %4083 = vmatprep.subr.mxu0 0.0
        %4084 = vmatpush1.xpose.msra.mxu0 0.0
        %4085 = vmatprep.subr.mxu0 0.0
        %4086 = vmatpush1.xpose.msra.mxu0 0.0
        %4087 = vmatprep.subr.mxu0 0.0
        %4088 = vmatpush1.xpose.msra.mxu0 0.0
        %4089 = vmatprep.subr.mxu0 0.0
        %4090 = vmatpush1.xpose.msra.mxu0 0.0
        %4091 = vmatprep.subr.mxu0 0.0
        %4092 = vmatpush1.xpose.msra.mxu0 0.0
        %4093 = vmatprep.subr.mxu0 0.0
        %4094 = vmatpush1.xpose.msra.mxu0 0.0
        %4095 = vmatprep.subr.mxu0 0.0
        %4096 = vmatpush1.xpose.msra.mxu0 0.0
        %4097 = vmatprep.subr.mxu0 0.0
        %4098 = vmatpush1.xpose.msra.mxu0 0.0
        %4099 = vmatprep.subr.mxu0 0.0
        %4100 = vmatpush1.xpose.msra.mxu0 0.0
        %4101 = vmatprep.subr.mxu0 0.0
        %4102 = vmatpush1.xpose.msra.mxu0 0.0
        %4103 = vmatprep.subr.mxu0 0.0
        %4104 = vmatpush1.xpose.msra.mxu0 0.0
        %4105 = vmatprep.subr.mxu0 0.0
        %4106 = vmatpush1.xpose.msra.mxu0 0.0
        %4107 = vmatprep.subr.mxu0 0.0
        %4108 = vmatpush1.xpose.msra.mxu0 0.0
        %4109 = vmatprep.subr.mxu0 0.0
        %4110 = vmatpush1.xpose.msra.mxu0 0.0
        %4111 = vmatprep.mubr.f32.mxu0 0.0
        %v4112 = vand.u32 %v3962, 4294901760
        %4113 = vmatmul.mubr.f32.gmra.mrb[0].mxu0 %v4112
        %v4114 = vpop.f32.mrb[0].mxu0
        %v4115 = vadd.f32 %v4039, %v4114
        %v4116 = vpop.f32.mrb[0].mxu0
        %4117 = vdwg.mxu0
        %4118 = vmatprep.subr.mxu0 0.0
        %v4119 = vand.u32 %v3964, 4294901760
        %v4120 = vsub.f32 %v3964, %v4119
        %4121 = vmatpush1.xpose.msra.mxu0 %v4120
        %4122 = vmatprep.subr.mxu0 0.0
        %4123 = vmatpush1.xpose.msra.mxu0 0.0
        %4124 = vmatprep.subr.mxu0 0.0
        %4125 = vmatpush1.xpose.msra.mxu0 0.0
        %4126 = vmatprep.subr.mxu0 0.0
        %4127 = vmatpush1.xpose.msra.mxu0 0.0
        %4128 = vmatprep.subr.mxu0 0.0
        %4129 = vmatpush1.xpose.msra.mxu0 0.0
        %4130 = vmatprep.subr.mxu0 0.0
        %4131 = vmatpush1.xpose.msra.mxu0 0.0
        %4132 = vmatprep.subr.mxu0 0.0
        %4133 = vmatpush1.xpose.msra.mxu0 0.0
        %4134 = vmatprep.subr.mxu0 0.0
        %4135 = vmatpush1.xpose.msra.mxu0 0.0
        %4136 = vmatprep.subr.mxu0 0.0
        %4137 = vmatpush1.xpose.msra.mxu0 0.0
        %4138 = vmatprep.subr.mxu0 0.0
        %4139 = vmatpush1.xpose.msra.mxu0 0.0
        %4140 = vmatprep.subr.mxu0 0.0
        %4141 = vmatpush1.xpose.msra.mxu0 0.0
        %4142 = vmatprep.subr.mxu0 0.0
        %4143 = vmatpush1.xpose.msra.mxu0 0.0
        %4144 = vmatprep.subr.mxu0 0.0
        %4145 = vmatpush1.xpose.msra.mxu0 0.0
        %4146 = vmatprep.subr.mxu0 0.0
        %4147 = vmatpush1.xpose.msra.mxu0 0.0
        %4148 = vmatprep.subr.mxu0 0.0
        %4149 = vmatpush1.xpose.msra.mxu0 0.0
        %4150 = vmatprep.subr.mxu0 0.0
        %4151 = vmatpush1.xpose.msra.mxu0 0.0
        %4152 = vmatprep.subr.mxu0 0.0
        %4153 = vmatpush1.xpose.msra.mxu0 0.0
        %4154 = vmatprep.subr.mxu0 0.0
        %4155 = vmatpush1.xpose.msra.mxu0 0.0
        %4156 = vmatprep.subr.mxu0 0.0
        %4157 = vmatpush1.xpose.msra.mxu0 0.0
        %4158 = vmatprep.subr.mxu0 0.0
        %4159 = vmatpush1.xpose.msra.mxu0 0.0
        %4160 = vmatprep.subr.mxu0 0.0
        %4161 = vmatpush1.xpose.msra.mxu0 0.0
        %4162 = vmatprep.subr.mxu0 0.0
        %4163 = vmatpush1.xpose.msra.mxu0 0.0
        %4164 = vmatprep.subr.mxu0 0.0
        %4165 = vmatpush1.xpose.msra.mxu0 0.0
        %4166 = vmatprep.subr.mxu0 0.0
        %4167 = vmatpush1.xpose.msra.mxu0 0.0
        %4168 = vmatprep.subr.mxu0 0.0
        %4169 = vmatpush1.xpose.msra.mxu0 0.0
        %4170 = vmatprep.subr.mxu0 0.0
        %4171 = vmatpush1.xpose.msra.mxu0 0.0
        %4172 = vmatprep.subr.mxu0 0.0
        %4173 = vmatpush1.xpose.msra.mxu0 0.0
        %4174 = vmatprep.subr.mxu0 0.0
        %4175 = vmatpush1.xpose.msra.mxu0 0.0
        %4176 = vmatprep.subr.mxu0 0.0
        %4177 = vmatpush1.xpose.msra.mxu0 0.0
        %4178 = vmatprep.subr.mxu0 0.0
        %4179 = vmatpush1.xpose.msra.mxu0 0.0
        %4180 = vmatprep.subr.mxu0 0.0
        %4181 = vmatpush1.xpose.msra.mxu0 0.0
        %4182 = vmatprep.subr.mxu0 0.0
        %4183 = vmatpush1.xpose.msra.mxu0 0.0
        %4184 = vmatprep.mubr.f32.mxu0 0.0
        %v4185 = vand.u32 %v3962, 4294901760
        %v4186 = vsub.f32 %v3962, %v4185
        %4187 = vmatmul.mubr.f32.gmra.mrb[0].mxu0 %v4186
        %v4188 = vpop.f32.mrb[0].mxu0
        %v4189 = vadd.f32 %v4115, %v4188
        %v4190 = vpop.f32.mrb[0].mxu0
        %4191 = vdwg.mxu0
        %4192 = vmatprep.subr.mxu0 0.0
        %v4193 = vand.u32 %v3964, 4294901760
        %4194 = vmatpush1.xpose.msra.mxu0 %v4193
        %4195 = vmatprep.subr.mxu0 0.0
        %4196 = vmatpush1.xpose.msra.mxu0 0.0
        %4197 = vmatprep.subr.mxu0 0.0
        %4198 = vmatpush1.xpose.msra.mxu0 0.0
        %4199 = vmatprep.subr.mxu0 0.0
        %4200 = vmatpush1.xpose.msra.mxu0 0.0
        %4201 = vmatprep.subr.mxu0 0.0
        %4202 = vmatpush1.xpose.msra.mxu0 0.0
        %4203 = vmatprep.subr.mxu0 0.0
        %4204 = vmatpush1.xpose.msra.mxu0 0.0
        %4205 = vmatprep.subr.mxu0 0.0
        %4206 = vmatpush1.xpose.msra.mxu0 0.0
        %4207 = vmatprep.subr.mxu0 0.0
        %4208 = vmatpush1.xpose.msra.mxu0 0.0
        %4209 = vmatprep.subr.mxu0 0.0
        %4210 = vmatpush1.xpose.msra.mxu0 0.0
        %4211 = vmatprep.subr.mxu0 0.0
        %4212 = vmatpush1.xpose.msra.mxu0 0.0
        %4213 = vmatprep.subr.mxu0 0.0
        %4214 = vmatpush1.xpose.msra.mxu0 0.0
        %4215 = vmatprep.subr.mxu0 0.0
        %4216 = vmatpush1.xpose.msra.mxu0 0.0
        %4217 = vmatprep.subr.mxu0 0.0
        %4218 = vmatpush1.xpose.msra.mxu0 0.0
        %4219 = vmatprep.subr.mxu0 0.0
        %4220 = vmatpush1.xpose.msra.mxu0 0.0
        %4221 = vmatprep.subr.mxu0 0.0
        %4222 = vmatpush1.xpose.msra.mxu0 0.0
        %4223 = vmatprep.subr.mxu0 0.0
        %4224 = vmatpush1.xpose.msra.mxu0 0.0
        %4225 = vmatprep.subr.mxu0 0.0
        %4226 = vmatpush1.xpose.msra.mxu0 0.0
        %4227 = vmatprep.subr.mxu0 0.0
        %4228 = vmatpush1.xpose.msra.mxu0 0.0
        %4229 = vmatprep.subr.mxu0 0.0
        %4230 = vmatpush1.xpose.msra.mxu0 0.0
        %4231 = vmatprep.subr.mxu0 0.0
        %4232 = vmatpush1.xpose.msra.mxu0 0.0
        %4233 = vmatprep.subr.mxu0 0.0
        %4234 = vmatpush1.xpose.msra.mxu0 0.0
        %4235 = vmatprep.subr.mxu0 0.0
        %4236 = vmatpush1.xpose.msra.mxu0 0.0
        %4237 = vmatprep.subr.mxu0 0.0
        %4238 = vmatpush1.xpose.msra.mxu0 0.0
        %4239 = vmatprep.subr.mxu0 0.0
        %4240 = vmatpush1.xpose.msra.mxu0 0.0
        %4241 = vmatprep.subr.mxu0 0.0
        %4242 = vmatpush1.xpose.msra.mxu0 0.0
        %4243 = vmatprep.subr.mxu0 0.0
        %4244 = vmatpush1.xpose.msra.mxu0 0.0
        %4245 = vmatprep.subr.mxu0 0.0
        %4246 = vmatpush1.xpose.msra.mxu0 0.0
        %4247 = vmatprep.subr.mxu0 0.0
        %4248 = vmatpush1.xpose.msra.mxu0 0.0
        %4249 = vmatprep.subr.mxu0 0.0
        %4250 = vmatpush1.xpose.msra.mxu0 0.0
        %4251 = vmatprep.subr.mxu0 0.0
        %4252 = vmatpush1.xpose.msra.mxu0 0.0
        %4253 = vmatprep.subr.mxu0 0.0
        %4254 = vmatpush1.xpose.msra.mxu0 0.0
        %4255 = vmatprep.subr.mxu0 0.0
        %4256 = vmatpush1.xpose.msra.mxu0 0.0
        %4257 = vmatprep.mubr.f32.mxu0 0.0
        %v4258 = vand.u32 %v3962, 4294901760
        %v4259 = vsub.f32 %v3962, %v4258
        %v4260 = vand.u32 %v4259, 4294901760
        %4261 = vmatmul.mubr.f32.gmra.mrb[0].mxu0 %v4260
        %v4262 = vpop.f32.mrb[0].mxu0
        %v4263 = vadd.f32 %v4189, %v4262
        %v4264 = vpop.f32.mrb[0].mxu0
        %4265 = vdwg.mxu0
        %4266 = vmatprep.subr.mxu0 0.0
        %v4267 = vand.u32 %v3964, 4294901760
        %v4268 = vsub.f32 %v3964, %v4267
        %v4269 = vand.u32 %v4268, 4294901760
        %4270 = vmatpush1.xpose.msra.mxu0 %v4269
        %4271 = vmatprep.subr.mxu0 0.0
        %4272 = vmatpush1.xpose.msra.mxu0 0.0
        %4273 = vmatprep.subr.mxu0 0.0
        %4274 = vmatpush1.xpose.msra.mxu0 0.0
        %4275 = vmatprep.subr.mxu0 0.0
        %4276 = vmatpush1.xpose.msra.mxu0 0.0
        %4277 = vmatprep.subr.mxu0 0.0
        %4278 = vmatpush1.xpose.msra.mxu0 0.0
        %4279 = vmatprep.subr.mxu0 0.0
        %4280 = vmatpush1.xpose.msra.mxu0 0.0
        %4281 = vmatprep.subr.mxu0 0.0
        %4282 = vmatpush1.xpose.msra.mxu0 0.0
        %4283 = vmatprep.subr.mxu0 0.0
        %4284 = vmatpush1.xpose.msra.mxu0 0.0
        %4285 = vmatprep.subr.mxu0 0.0
        %4286 = vmatpush1.xpose.msra.mxu0 0.0
        %4287 = vmatprep.subr.mxu0 0.0
        %4288 = vmatpush1.xpose.msra.mxu0 0.0
        %4289 = vmatprep.subr.mxu0 0.0
        %4290 = vmatpush1.xpose.msra.mxu0 0.0
        %4291 = vmatprep.subr.mxu0 0.0
        %4292 = vmatpush1.xpose.msra.mxu0 0.0
        %4293 = vmatprep.subr.mxu0 0.0
        %4294 = vmatpush1.xpose.msra.mxu0 0.0
        %4295 = vmatprep.subr.mxu0 0.0
        %4296 = vmatpush1.xpose.msra.mxu0 0.0
        %4297 = vmatprep.subr.mxu0 0.0
        %4298 = vmatpush1.xpose.msra.mxu0 0.0
        %4299 = vmatprep.subr.mxu0 0.0
        %4300 = vmatpush1.xpose.msra.mxu0 0.0
        %4301 = vmatprep.subr.mxu0 0.0
        %4302 = vmatpush1.xpose.msra.mxu0 0.0
        %4303 = vmatprep.subr.mxu0 0.0
        %4304 = vmatpush1.xpose.msra.mxu0 0.0
        %4305 = vmatprep.subr.mxu0 0.0
        %4306 = vmatpush1.xpose.msra.mxu0 0.0
        %4307 = vmatprep.subr.mxu0 0.0
        %4308 = vmatpush1.xpose.msra.mxu0 0.0
        %4309 = vmatprep.subr.mxu0 0.0
        %4310 = vmatpush1.xpose.msra.mxu0 0.0
        %4311 = vmatprep.subr.mxu0 0.0
        %4312 = vmatpush1.xpose.msra.mxu0 0.0
        %4313 = vmatprep.subr.mxu0 0.0
        %4314 = vmatpush1.xpose.msra.mxu0 0.0
        %4315 = vmatprep.subr.mxu0 0.0
        %4316 = vmatpush1.xpose.msra.mxu0 0.0
        %4317 = vmatprep.subr.mxu0 0.0
        %4318 = vmatpush1.xpose.msra.mxu0 0.0
        %4319 = vmatprep.subr.mxu0 0.0
        %4320 = vmatpush1.xpose.msra.mxu0 0.0
        %4321 = vmatprep.subr.mxu0 0.0
        %4322 = vmatpush1.xpose.msra.mxu0 0.0
        %4323 = vmatprep.subr.mxu0 0.0
        %4324 = vmatpush1.xpose.msra.mxu0 0.0
        %4325 = vmatprep.subr.mxu0 0.0
        %4326 = vmatpush1.xpose.msra.mxu0 0.0
        %4327 = vmatprep.subr.mxu0 0.0
        %4328 = vmatpush1.xpose.msra.mxu0 0.0
        %4329 = vmatprep.subr.mxu0 0.0
        %4330 = vmatpush1.xpose.msra.mxu0 0.0
        %4331 = vmatprep.subr.mxu0 0.0
        %4332 = vmatpush1.xpose.msra.mxu0 0.0
        %4333 = vmatprep.mubr.f32.mxu0 0.0
        %v4334 = vand.u32 %v3962, 4294901760
        %4335 = vmatmul.mubr.f32.gmra.mrb[0].mxu0 %v4334
        %v4336 = vpop.f32.mrb[0].mxu0
        %v4337 = vadd.f32 %v4263, %v4336
        %v4338 = vpop.f32.mrb[0].mxu0
        %4339 = vdwg.mxu0
        %4340 = vmatprep.subr.mxu0 0.0
        %v4341 = vand.u32 %v3964, 4294901760
        %4342 = vmatpush1.xpose.msra.mxu0 %v4341
        %4343 = vmatprep.subr.mxu0 0.0
        %4344 = vmatpush1.xpose.msra.mxu0 0.0
        %4345 = vmatprep.subr.mxu0 0.0
        %4346 = vmatpush1.xpose.msra.mxu0 0.0
        %4347 = vmatprep.subr.mxu0 0.0
        %4348 = vmatpush1.xpose.msra.mxu0 0.0
        %4349 = vmatprep.subr.mxu0 0.0
        %4350 = vmatpush1.xpose.msra.mxu0 0.0
        %4351 = vmatprep.subr.mxu0 0.0
        %4352 = vmatpush1.xpose.msra.mxu0 0.0
        %4353 = vmatprep.subr.mxu0 0.0
        %4354 = vmatpush1.xpose.msra.mxu0 0.0
        %4355 = vmatprep.subr.mxu0 0.0
        %4356 = vmatpush1.xpose.msra.mxu0 0.0
        %4357 = vmatprep.subr.mxu0 0.0
        %4358 = vmatpush1.xpose.msra.mxu0 0.0
        %4359 = vmatprep.subr.mxu0 0.0
        %4360 = vmatpush1.xpose.msra.mxu0 0.0
        %4361 = vmatprep.subr.mxu0 0.0
        %4362 = vmatpush1.xpose.msra.mxu0 0.0
        %4363 = vmatprep.subr.mxu0 0.0
        %4364 = vmatpush1.xpose.msra.mxu0 0.0
        %4365 = vmatprep.subr.mxu0 0.0
        %4366 = vmatpush1.xpose.msra.mxu0 0.0
        %4367 = vmatprep.subr.mxu0 0.0
        %4368 = vmatpush1.xpose.msra.mxu0 0.0
        %4369 = vmatprep.subr.mxu0 0.0
        %4370 = vmatpush1.xpose.msra.mxu0 0.0
        %4371 = vmatprep.subr.mxu0 0.0
        %4372 = vmatpush1.xpose.msra.mxu0 0.0
        %4373 = vmatprep.subr.mxu0 0.0
        %4374 = vmatpush1.xpose.msra.mxu0 0.0
        %4375 = vmatprep.subr.mxu0 0.0
        %4376 = vmatpush1.xpose.msra.mxu0 0.0
        %4377 = vmatprep.subr.mxu0 0.0
        %4378 = vmatpush1.xpose.msra.mxu0 0.0
        %4379 = vmatprep.subr.mxu0 0.0
        %4380 = vmatpush1.xpose.msra.mxu0 0.0
        %4381 = vmatprep.subr.mxu0 0.0
        %4382 = vmatpush1.xpose.msra.mxu0 0.0
        %4383 = vmatprep.subr.mxu0 0.0
        %4384 = vmatpush1.xpose.msra.mxu0 0.0
        %4385 = vmatprep.subr.mxu0 0.0
        %4386 = vmatpush1.xpose.msra.mxu0 0.0
        %4387 = vmatprep.subr.mxu0 0.0
        %4388 = vmatpush1.xpose.msra.mxu0 0.0
        %4389 = vmatprep.subr.mxu0 0.0
        %4390 = vmatpush1.xpose.msra.mxu0 0.0
        %4391 = vmatprep.subr.mxu0 0.0
        %4392 = vmatpush1.xpose.msra.mxu0 0.0
        %4393 = vmatprep.subr.mxu0 0.0
        %4394 = vmatpush1.xpose.msra.mxu0 0.0
        %4395 = vmatprep.subr.mxu0 0.0
        %4396 = vmatpush1.xpose.msra.mxu0 0.0
        %4397 = vmatprep.subr.mxu0 0.0
        %4398 = vmatpush1.xpose.msra.mxu0 0.0
        %4399 = vmatprep.subr.mxu0 0.0
        %4400 = vmatpush1.xpose.msra.mxu0 0.0
        %4401 = vmatprep.subr.mxu0 0.0
        %4402 = vmatpush1.xpose.msra.mxu0 0.0
        %4403 = vmatprep.subr.mxu0 0.0
        %4404 = vmatpush1.xpose.msra.mxu0 0.0
        %4405 = vmatprep.mubr.f32.mxu0 0.0
        %v4406 = vand.u32 %v3962, 4294901760
        %4407 = vmatmul.mubr.f32.gmra.mrb[0].mxu0 %v4406
        %v4408 = vpop.f32.mrb[0].mxu0
        %v4409 = vadd.f32 %v4337, %v4408
        %v4410 = vpop.f32.mrb[0].mxu0
        %4411 = vdwg.mxu0
        %v4412 = vmul.f32 %v4409, 0.35355338
        %v4413 = vadd.f32 %v4412, %v1642
        %v4414 = vsel %vm1187, %v4413, -inf
        %4415 = vmax.xlane.f32.xlu0 %v4414
        %v4416 = vpop.xlane.xlu0 %4415
        %v4417 = vsub.f32 %v4413, %v4416
        %v4418 = vmul.f32 %v4417, 1.442695
        %v4419 = vpow.pop %v4418
        %v4420 = vsel %vm1187, %v4419, 0.0
        %4421 = vadd.xlane.f32.xlu0 %v4420
        %v4422 = vpop.xlane.xlu0 %4421
        %v4423 = vrcp.pop %v4422
        %v4424 = vmul.f32 %v4419, %v4423
        %4425 = vrot.lane.b32.xlu0 %v1174, 40
        %v4426 = vpop.permute.xlu0 %4425
        %v4429 = vsel %vm1187, %v4424, 0
        %4431 = vmatprep.subr.mxu0 0.0
        %v4432 = vand.u32 %v4426, 4294901760
        %4433 = vmatpush1.msra.mxu0 %v4432
        %4434 = vmatprep.subr.mxu0 0.0
        %4435 = vmatpush1.msra.mxu0 0.0
        %4436 = vmatprep.subr.mxu0 0.0
        %4437 = vmatpush1.msra.mxu0 0.0
        %4438 = vmatprep.subr.mxu0 0.0
        %4439 = vmatpush1.msra.mxu0 0.0
        %4440 = vmatprep.subr.mxu0 0.0
        %4441 = vmatpush1.msra.mxu0 0.0
        %4442 = vmatprep.subr.mxu0 0.0
        %4443 = vmatpush1.msra.mxu0 0.0
        %4444 = vmatprep.subr.mxu0 0.0
        %4445 = vmatpush1.msra.mxu0 0.0
        %4446 = vmatprep.subr.mxu0 0.0
        %4447 = vmatpush1.msra.mxu0 0.0
        %4448 = vmatprep.subr.mxu0 0.0
        %4449 = vmatpush1.msra.mxu0 0.0
        %4450 = vmatprep.subr.mxu0 0.0
        %4451 = vmatpush1.msra.mxu0 0.0
        %4452 = vmatprep.subr.mxu0 0.0
        %4453 = vmatpush1.msra.mxu0 0.0
        %4454 = vmatprep.subr.mxu0 0.0
        %4455 = vmatpush1.msra.mxu0 0.0
        %4456 = vmatprep.subr.mxu0 0.0
        %4457 = vmatpush1.msra.mxu0 0.0
        %4458 = vmatprep.subr.mxu0 0.0
        %4459 = vmatpush1.msra.mxu0 0.0
        %4460 = vmatprep.subr.mxu0 0.0
        %4461 = vmatpush1.msra.mxu0 0.0
        %4462 = vmatprep.subr.mxu0 0.0
        %4463 = vmatpush1.msra.mxu0 0.0
        %4464 = vmatprep.subr.mxu0 0.0
        %4465 = vmatpush1.msra.mxu0 0.0
        %4466 = vmatprep.subr.mxu0 0.0
        %4467 = vmatpush1.msra.mxu0 0.0
        %4468 = vmatprep.subr.mxu0 0.0
        %4469 = vmatpush1.msra.mxu0 0.0
        %4470 = vmatprep.subr.mxu0 0.0
        %4471 = vmatpush1.msra.mxu0 0.0
        %4472 = vmatprep.subr.mxu0 0.0
        %4473 = vmatpush1.msra.mxu0 0.0
        %4474 = vmatprep.subr.mxu0 0.0
        %4475 = vmatpush1.msra.mxu0 0.0
        %4476 = vmatprep.subr.mxu0 0.0
        %4477 = vmatpush1.msra.mxu0 0.0
        %4478 = vmatprep.subr.mxu0 0.0
        %4479 = vmatpush1.msra.mxu0 0.0
        %4480 = vmatprep.subr.mxu0 0.0
        %4481 = vmatpush1.msra.mxu0 0.0
        %4482 = vmatprep.subr.mxu0 0.0
        %4483 = vmatpush1.msra.mxu0 0.0
        %4484 = vmatprep.subr.mxu0 0.0
        %4485 = vmatpush1.msra.mxu0 0.0
        %4486 = vmatprep.subr.mxu0 0.0
        %4487 = vmatpush1.msra.mxu0 0.0
        %4488 = vmatprep.subr.mxu0 0.0
        %4489 = vmatpush1.msra.mxu0 0.0
        %4490 = vmatprep.subr.mxu0 0.0
        %4491 = vmatpush1.msra.mxu0 0.0
        %4492 = vmatprep.subr.mxu0 0.0
        %4493 = vmatpush1.msra.mxu0 0.0
        %4494 = vmatprep.subr.mxu0 0.0
        %4495 = vmatpush1.msra.mxu0 0.0
        %4496 = vmatprep.mubr.f32.mxu0 0.0
        %v4497 = vand.u32 %v4429, 4294901760
        %v4498 = vsub.f32 %v4429, %v4497
        %v4499 = vand.u32 %v4498, 4294901760
        %v4500 = vsub.f32 %v4498, %v4499
        %v4501 = vand.u32 %v4500, 4294901760
        %4502 = vmatmul.mubr.f32.gmra.mrb[0].mxu0 %v4501
        %v4503 = vpop.f32.mrb[0].mxu0
        %v4504 = vadd.f32 0.0, %v4503
        %v4505 = vpop.f32.mrb[0].mxu0
        %4506 = vdwg.mxu0
        %4507 = vmatprep.subr.mxu0 0.0
        %v4508 = vand.u32 %v4426, 4294901760
        %v4509 = vsub.f32 %v4426, %v4508
        %v4510 = vand.u32 %v4509, 4294901760
        %v4511 = vsub.f32 %v4509, %v4510
        %v4512 = vand.u32 %v4511, 4294901760
        %4513 = vmatpush1.msra.mxu0 %v4512
        %4514 = vmatprep.subr.mxu0 0.0
        %4515 = vmatpush1.msra.mxu0 0.0
        %4516 = vmatprep.subr.mxu0 0.0
        %4517 = vmatpush1.msra.mxu0 0.0
        %4518 = vmatprep.subr.mxu0 0.0
        %4519 = vmatpush1.msra.mxu0 0.0
        %4520 = vmatprep.subr.mxu0 0.0
        %4521 = vmatpush1.msra.mxu0 0.0
        %4522 = vmatprep.subr.mxu0 0.0
        %4523 = vmatpush1.msra.mxu0 0.0
        %4524 = vmatprep.subr.mxu0 0.0
        %4525 = vmatpush1.msra.mxu0 0.0
        %4526 = vmatprep.subr.mxu0 0.0
        %4527 = vmatpush1.msra.mxu0 0.0
        %4528 = vmatprep.subr.mxu0 0.0
        %4529 = vmatpush1.msra.mxu0 0.0
        %4530 = vmatprep.subr.mxu0 0.0
        %4531 = vmatpush1.msra.mxu0 0.0
        %4532 = vmatprep.subr.mxu0 0.0
        %4533 = vmatpush1.msra.mxu0 0.0
        %4534 = vmatprep.subr.mxu0 0.0
        %4535 = vmatpush1.msra.mxu0 0.0
        %4536 = vmatprep.subr.mxu0 0.0
        %4537 = vmatpush1.msra.mxu0 0.0
        %4538 = vmatprep.subr.mxu0 0.0
        %4539 = vmatpush1.msra.mxu0 0.0
        %4540 = vmatprep.subr.mxu0 0.0
        %4541 = vmatpush1.msra.mxu0 0.0
        %4542 = vmatprep.subr.mxu0 0.0
        %4543 = vmatpush1.msra.mxu0 0.0
        %4544 = vmatprep.subr.mxu0 0.0
        %4545 = vmatpush1.msra.mxu0 0.0
        %4546 = vmatprep.subr.mxu0 0.0
        %4547 = vmatpush1.msra.mxu0 0.0
        %4548 = vmatprep.subr.mxu0 0.0
        %4549 = vmatpush1.msra.mxu0 0.0
        %4550 = vmatprep.subr.mxu0 0.0
        %4551 = vmatpush1.msra.mxu0 0.0
        %4552 = vmatprep.subr.mxu0 0.0
        %4553 = vmatpush1.msra.mxu0 0.0
        %4554 = vmatprep.subr.mxu0 0.0
        %4555 = vmatpush1.msra.mxu0 0.0
        %4556 = vmatprep.subr.mxu0 0.0
        %4557 = vmatpush1.msra.mxu0 0.0
        %4558 = vmatprep.subr.mxu0 0.0
        %4559 = vmatpush1.msra.mxu0 0.0
        %4560 = vmatprep.subr.mxu0 0.0
        %4561 = vmatpush1.msra.mxu0 0.0
        %4562 = vmatprep.subr.mxu0 0.0
        %4563 = vmatpush1.msra.mxu0 0.0
        %4564 = vmatprep.subr.mxu0 0.0
        %4565 = vmatpush1.msra.mxu0 0.0
        %4566 = vmatprep.subr.mxu0 0.0
        %4567 = vmatpush1.msra.mxu0 0.0
        %4568 = vmatprep.subr.mxu0 0.0
        %4569 = vmatpush1.msra.mxu0 0.0
        %4570 = vmatprep.subr.mxu0 0.0
        %4571 = vmatpush1.msra.mxu0 0.0
        %4572 = vmatprep.subr.mxu0 0.0
        %4573 = vmatpush1.msra.mxu0 0.0
        %4574 = vmatprep.subr.mxu0 0.0
        %4575 = vmatpush1.msra.mxu0 0.0
        %4576 = vmatprep.mubr.f32.mxu0 0.0
        %v4577 = vand.u32 %v4429, 4294901760
        %4578 = vmatmul.mubr.f32.gmra.mrb[0].mxu0 %v4577
        %v4579 = vpop.f32.mrb[0].mxu0
        %v4580 = vadd.f32 %v4504, %v4579
        %v4581 = vpop.f32.mrb[0].mxu0
        %4582 = vdwg.mxu0
        %4583 = vmatprep.subr.mxu0 0.0
        %v4584 = vand.u32 %v4426, 4294901760
        %v4585 = vsub.f32 %v4426, %v4584
        %4586 = vmatpush1.msra.mxu0 %v4585
        %4587 = vmatprep.subr.mxu0 0.0
        %4588 = vmatpush1.msra.mxu0 0.0
        %4589 = vmatprep.subr.mxu0 0.0
        %4590 = vmatpush1.msra.mxu0 0.0
        %4591 = vmatprep.subr.mxu0 0.0
        %4592 = vmatpush1.msra.mxu0 0.0
        %4593 = vmatprep.subr.mxu0 0.0
        %4594 = vmatpush1.msra.mxu0 0.0
        %4595 = vmatprep.subr.mxu0 0.0
        %4596 = vmatpush1.msra.mxu0 0.0
        %4597 = vmatprep.subr.mxu0 0.0
        %4598 = vmatpush1.msra.mxu0 0.0
        %4599 = vmatprep.subr.mxu0 0.0
        %4600 = vmatpush1.msra.mxu0 0.0
        %4601 = vmatprep.subr.mxu0 0.0
        %4602 = vmatpush1.msra.mxu0 0.0
        %4603 = vmatprep.subr.mxu0 0.0
        %4604 = vmatpush1.msra.mxu0 0.0
        %4605 = vmatprep.subr.mxu0 0.0
        %4606 = vmatpush1.msra.mxu0 0.0
        %4607 = vmatprep.subr.mxu0 0.0
        %4608 = vmatpush1.msra.mxu0 0.0
        %4609 = vmatprep.subr.mxu0 0.0
        %4610 = vmatpush1.msra.mxu0 0.0
        %4611 = vmatprep.subr.mxu0 0.0
        %4612 = vmatpush1.msra.mxu0 0.0
        %4613 = vmatprep.subr.mxu0 0.0
        %4614 = vmatpush1.msra.mxu0 0.0
        %4615 = vmatprep.subr.mxu0 0.0
        %4616 = vmatpush1.msra.mxu0 0.0
        %4617 = vmatprep.subr.mxu0 0.0
        %4618 = vmatpush1.msra.mxu0 0.0
        %4619 = vmatprep.subr.mxu0 0.0
        %4620 = vmatpush1.msra.mxu0 0.0
        %4621 = vmatprep.subr.mxu0 0.0
        %4622 = vmatpush1.msra.mxu0 0.0
        %4623 = vmatprep.subr.mxu0 0.0
        %4624 = vmatpush1.msra.mxu0 0.0
        %4625 = vmatprep.subr.mxu0 0.0
        %4626 = vmatpush1.msra.mxu0 0.0
        %4627 = vmatprep.subr.mxu0 0.0
        %4628 = vmatpush1.msra.mxu0 0.0
        %4629 = vmatprep.subr.mxu0 0.0
        %4630 = vmatpush1.msra.mxu0 0.0
        %4631 = vmatprep.subr.mxu0 0.0
        %4632 = vmatpush1.msra.mxu0 0.0
        %4633 = vmatprep.subr.mxu0 0.0
        %4634 = vmatpush1.msra.mxu0 0.0
        %4635 = vmatprep.subr.mxu0 0.0
        %4636 = vmatpush1.msra.mxu0 0.0
        %4637 = vmatprep.subr.mxu0 0.0
        %4638 = vmatpush1.msra.mxu0 0.0
        %4639 = vmatprep.subr.mxu0 0.0
        %4640 = vmatpush1.msra.mxu0 0.0
        %4641 = vmatprep.subr.mxu0 0.0
        %4642 = vmatpush1.msra.mxu0 0.0
        %4643 = vmatprep.subr.mxu0 0.0
        %4644 = vmatpush1.msra.mxu0 0.0
        %4645 = vmatprep.subr.mxu0 0.0
        %4646 = vmatpush1.msra.mxu0 0.0
        %4647 = vmatprep.subr.mxu0 0.0
        %4648 = vmatpush1.msra.mxu0 0.0
        %4649 = vmatprep.mubr.f32.mxu0 0.0
        %v4650 = vand.u32 %v4429, 4294901760
        %v4651 = vsub.f32 %v4429, %v4650
        %4652 = vmatmul.mubr.f32.gmra.mrb[0].mxu0 %v4651
        %v4653 = vpop.f32.mrb[0].mxu0
        %v4654 = vadd.f32 %v4580, %v4653
        %v4655 = vpop.f32.mrb[0].mxu0
        %4656 = vdwg.mxu0
        %4657 = vmatprep.subr.mxu0 0.0
        %v4658 = vand.u32 %v4426, 4294901760
        %4659 = vmatpush1.msra.mxu0 %v4658
        %4660 = vmatprep.subr.mxu0 0.0
        %4661 = vmatpush1.msra.mxu0 0.0
        %4662 = vmatprep.subr.mxu0 0.0
        %4663 = vmatpush1.msra.mxu0 0.0
        %4664 = vmatprep.subr.mxu0 0.0
        %4665 = vmatpush1.msra.mxu0 0.0
        %4666 = vmatprep.subr.mxu0 0.0
        %4667 = vmatpush1.msra.mxu0 0.0
        %4668 = vmatprep.subr.mxu0 0.0
        %4669 = vmatpush1.msra.mxu0 0.0
        %4670 = vmatprep.subr.mxu0 0.0
        %4671 = vmatpush1.msra.mxu0 0.0
        %4672 = vmatprep.subr.mxu0 0.0
        %4673 = vmatpush1.msra.mxu0 0.0
        %4674 = vmatprep.subr.mxu0 0.0
        %4675 = vmatpush1.msra.mxu0 0.0
        %4676 = vmatprep.subr.mxu0 0.0
        %4677 = vmatpush1.msra.mxu0 0.0
        %4678 = vmatprep.subr.mxu0 0.0
        %4679 = vmatpush1.msra.mxu0 0.0
        %4680 = vmatprep.subr.mxu0 0.0
        %4681 = vmatpush1.msra.mxu0 0.0
        %4682 = vmatprep.subr.mxu0 0.0
        %4683 = vmatpush1.msra.mxu0 0.0
        %4684 = vmatprep.subr.mxu0 0.0
        %4685 = vmatpush1.msra.mxu0 0.0
        %4686 = vmatprep.subr.mxu0 0.0
        %4687 = vmatpush1.msra.mxu0 0.0
        %4688 = vmatprep.subr.mxu0 0.0
        %4689 = vmatpush1.msra.mxu0 0.0
        %4690 = vmatprep.subr.mxu0 0.0
        %4691 = vmatpush1.msra.mxu0 0.0
        %4692 = vmatprep.subr.mxu0 0.0
        %4693 = vmatpush1.msra.mxu0 0.0
        %4694 = vmatprep.subr.mxu0 0.0
        %4695 = vmatpush1.msra.mxu0 0.0
        %4696 = vmatprep.subr.mxu0 0.0
        %4697 = vmatpush1.msra.mxu0 0.0
        %4698 = vmatprep.subr.mxu0 0.0
        %4699 = vmatpush1.msra.mxu0 0.0
        %4700 = vmatprep.subr.mxu0 0.0
        %4701 = vmatpush1.msra.mxu0 0.0
        %4702 = vmatprep.subr.mxu0 0.0
        %4703 = vmatpush1.msra.mxu0 0.0
        %4704 = vmatprep.subr.mxu0 0.0
        %4705 = vmatpush1.msra.mxu0 0.0
        %4706 = vmatprep.subr.mxu0 0.0
        %4707 = vmatpush1.msra.mxu0 0.0
        %4708 = vmatprep.subr.mxu0 0.0
        %4709 = vmatpush1.msra.mxu0 0.0
        %4710 = vmatprep.subr.mxu0 0.0
        %4711 = vmatpush1.msra.mxu0 0.0
        %4712 = vmatprep.subr.mxu0 0.0
        %4713 = vmatpush1.msra.mxu0 0.0
        %4714 = vmatprep.subr.mxu0 0.0
        %4715 = vmatpush1.msra.mxu0 0.0
        %4716 = vmatprep.subr.mxu0 0.0
        %4717 = vmatpush1.msra.mxu0 0.0
        %4718 = vmatprep.subr.mxu0 0.0
        %4719 = vmatpush1.msra.mxu0 0.0
        %4720 = vmatprep.subr.mxu0 0.0
        %4721 = vmatpush1.msra.mxu0 0.0
        %4722 = vmatprep.mubr.f32.mxu0 0.0
        %v4723 = vand.u32 %v4429, 4294901760
        %v4724 = vsub.f32 %v4429, %v4723
        %v4725 = vand.u32 %v4724, 4294901760
        %4726 = vmatmul.mubr.f32.gmra.mrb[0].mxu0 %v4725
        %v4727 = vpop.f32.mrb[0].mxu0
        %v4728 = vadd.f32 %v4654, %v4727
        %v4729 = vpop.f32.mrb[0].mxu0
        %4730 = vdwg.mxu0
        %4731 = vmatprep.subr.mxu0 0.0
        %v4732 = vand.u32 %v4426, 4294901760
        %v4733 = vsub.f32 %v4426, %v4732
        %v4734 = vand.u32 %v4733, 4294901760
        %4735 = vmatpush1.msra.mxu0 %v4734
        %4736 = vmatprep.subr.mxu0 0.0
        %4737 = vmatpush1.msra.mxu0 0.0
        %4738 = vmatprep.subr.mxu0 0.0
        %4739 = vmatpush1.msra.mxu0 0.0
        %4740 = vmatprep.subr.mxu0 0.0
        %4741 = vmatpush1.msra.mxu0 0.0
        %4742 = vmatprep.subr.mxu0 0.0
        %4743 = vmatpush1.msra.mxu0 0.0
        %4744 = vmatprep.subr.mxu0 0.0
        %4745 = vmatpush1.msra.mxu0 0.0
        %4746 = vmatprep.subr.mxu0 0.0
        %4747 = vmatpush1.msra.mxu0 0.0
        %4748 = vmatprep.subr.mxu0 0.0
        %4749 = vmatpush1.msra.mxu0 0.0
        %4750 = vmatprep.subr.mxu0 0.0
        %4751 = vmatpush1.msra.mxu0 0.0
        %4752 = vmatprep.subr.mxu0 0.0
        %4753 = vmatpush1.msra.mxu0 0.0
        %4754 = vmatprep.subr.mxu0 0.0
        %4755 = vmatpush1.msra.mxu0 0.0
        %4756 = vmatprep.subr.mxu0 0.0
        %4757 = vmatpush1.msra.mxu0 0.0
        %4758 = vmatprep.subr.mxu0 0.0
        %4759 = vmatpush1.msra.mxu0 0.0
        %4760 = vmatprep.subr.mxu0 0.0
        %4761 = vmatpush1.msra.mxu0 0.0
        %4762 = vmatprep.subr.mxu0 0.0
        %4763 = vmatpush1.msra.mxu0 0.0
        %4764 = vmatprep.subr.mxu0 0.0
        %4765 = vmatpush1.msra.mxu0 0.0
        %4766 = vmatprep.subr.mxu0 0.0
        %4767 = vmatpush1.msra.mxu0 0.0
        %4768 = vmatprep.subr.mxu0 0.0
        %4769 = vmatpush1.msra.mxu0 0.0
        %4770 = vmatprep.subr.mxu0 0.0
        %4771 = vmatpush1.msra.mxu0 0.0
        %4772 = vmatprep.subr.mxu0 0.0
        %4773 = vmatpush1.msra.mxu0 0.0
        %4774 = vmatprep.subr.mxu0 0.0
        %4775 = vmatpush1.msra.mxu0 0.0
        %4776 = vmatprep.subr.mxu0 0.0
        %4777 = vmatpush1.msra.mxu0 0.0
        %4778 = vmatprep.subr.mxu0 0.0
        %4779 = vmatpush1.msra.mxu0 0.0
        %4780 = vmatprep.subr.mxu0 0.0
        %4781 = vmatpush1.msra.mxu0 0.0
        %4782 = vmatprep.subr.mxu0 0.0
        %4783 = vmatpush1.msra.mxu0 0.0
        %4784 = vmatprep.subr.mxu0 0.0
        %4785 = vmatpush1.msra.mxu0 0.0
        %4786 = vmatprep.subr.mxu0 0.0
        %4787 = vmatpush1.msra.mxu0 0.0
        %4788 = vmatprep.subr.mxu0 0.0
        %4789 = vmatpush1.msra.mxu0 0.0
        %4790 = vmatprep.subr.mxu0 0.0
        %4791 = vmatpush1.msra.mxu0 0.0
        %4792 = vmatprep.subr.mxu0 0.0
        %4793 = vmatpush1.msra.mxu0 0.0
        %4794 = vmatprep.subr.mxu0 0.0
        %4795 = vmatpush1.msra.mxu0 0.0
        %4796 = vmatprep.subr.mxu0 0.0
        %4797 = vmatpush1.msra.mxu0 0.0
        %4798 = vmatprep.mubr.f32.mxu0 0.0
        %v4799 = vand.u32 %v4429, 4294901760
        %4800 = vmatmul.mubr.f32.gmra.mrb[0].mxu0 %v4799
        %v4801 = vpop.f32.mrb[0].mxu0
        %v4802 = vadd.f32 %v4728, %v4801
        %v4803 = vpop.f32.mrb[0].mxu0
        %4804 = vdwg.mxu0
        %4805 = vmatprep.subr.mxu0 0.0
        %v4806 = vand.u32 %v4426, 4294901760
        %4807 = vmatpush1.msra.mxu0 %v4806
        %4808 = vmatprep.subr.mxu0 0.0
        %4809 = vmatpush1.msra.mxu0 0.0
        %4810 = vmatprep.subr.mxu0 0.0
        %4811 = vmatpush1.msra.mxu0 0.0
        %4812 = vmatprep.subr.mxu0 0.0
        %4813 = vmatpush1.msra.mxu0 0.0
        %4814 = vmatprep.subr.mxu0 0.0
        %4815 = vmatpush1.msra.mxu0 0.0
        %4816 = vmatprep.subr.mxu0 0.0
        %4817 = vmatpush1.msra.mxu0 0.0
        %4818 = vmatprep.subr.mxu0 0.0
        %4819 = vmatpush1.msra.mxu0 0.0
        %4820 = vmatprep.subr.mxu0 0.0
        %4821 = vmatpush1.msra.mxu0 0.0
        %4822 = vmatprep.subr.mxu0 0.0
        %4823 = vmatpush1.msra.mxu0 0.0
        %4824 = vmatprep.subr.mxu0 0.0
        %4825 = vmatpush1.msra.mxu0 0.0
        %4826 = vmatprep.subr.mxu0 0.0
        %4827 = vmatpush1.msra.mxu0 0.0
        %4828 = vmatprep.subr.mxu0 0.0
        %4829 = vmatpush1.msra.mxu0 0.0
        %4830 = vmatprep.subr.mxu0 0.0
        %4831 = vmatpush1.msra.mxu0 0.0
        %4832 = vmatprep.subr.mxu0 0.0
        %4833 = vmatpush1.msra.mxu0 0.0
        %4834 = vmatprep.subr.mxu0 0.0
        %4835 = vmatpush1.msra.mxu0 0.0
        %4836 = vmatprep.subr.mxu0 0.0
        %4837 = vmatpush1.msra.mxu0 0.0
        %4838 = vmatprep.subr.mxu0 0.0
        %4839 = vmatpush1.msra.mxu0 0.0
        %4840 = vmatprep.subr.mxu0 0.0
        %4841 = vmatpush1.msra.mxu0 0.0
        %4842 = vmatprep.subr.mxu0 0.0
        %4843 = vmatpush1.msra.mxu0 0.0
        %4844 = vmatprep.subr.mxu0 0.0
        %4845 = vmatpush1.msra.mxu0 0.0
        %4846 = vmatprep.subr.mxu0 0.0
        %4847 = vmatpush1.msra.mxu0 0.0
        %4848 = vmatprep.subr.mxu0 0.0
        %4849 = vmatpush1.msra.mxu0 0.0
        %4850 = vmatprep.subr.mxu0 0.0
        %4851 = vmatpush1.msra.mxu0 0.0
        %4852 = vmatprep.subr.mxu0 0.0
        %4853 = vmatpush1.msra.mxu0 0.0
        %4854 = vmatprep.subr.mxu0 0.0
        %4855 = vmatpush1.msra.mxu0 0.0
        %4856 = vmatprep.subr.mxu0 0.0
        %4857 = vmatpush1.msra.mxu0 0.0
        %4858 = vmatprep.subr.mxu0 0.0
        %4859 = vmatpush1.msra.mxu0 0.0
        %4860 = vmatprep.subr.mxu0 0.0
        %4861 = vmatpush1.msra.mxu0 0.0
        %4862 = vmatprep.subr.mxu0 0.0
        %4863 = vmatpush1.msra.mxu0 0.0
        %4864 = vmatprep.subr.mxu0 0.0
        %4865 = vmatpush1.msra.mxu0 0.0
        %4866 = vmatprep.subr.mxu0 0.0
        %4867 = vmatpush1.msra.mxu0 0.0
        %4868 = vmatprep.subr.mxu0 0.0
        %4869 = vmatpush1.msra.mxu0 0.0
        %4870 = vmatprep.mubr.f32.mxu0 0.0
        %v4871 = vand.u32 %v4429, 4294901760
        %4872 = vmatmul.mubr.f32.gmra.mrb[0].mxu0 %v4871
        %v4873 = vpop.f32.mrb[0].mxu0
        %v4874 = vadd.f32 %v4802, %v4873
        %v4875 = vpop.f32.mrb[0].mxu0
        %4876 = vdwg.mxu0
        %4878 = vrot.lane.b32.xlu0 %v4874, 24
        %v4879 = vpop.permute.xlu0 %4878
        %vm4881 = vcmask 261312
        %4882 = vst.msk [vmem:[#allocation2] sm:$0xff] %vm4881, %v4879
        %v4883 = vld [vmem:[%s1 + $0x1] sm:$0x1]
        %4885 = vrot.lane.b32.xlu0 %v1180, 96
        %v4886 = vpop.permute.xlu0 %4885
        %v4887 = vsel %vm1187, %v1180, 0
        %v4889 = vsel %vm1187, %v4886, 0
        %4891 = vmatprep.subr.mxu0 0.0
        %v4892 = vand.u32 %v4889, 4294901760
        %4893 = vmatpush1.xpose.msra.mxu0 %v4892
        %4894 = vmatprep.subr.mxu0 0.0
        %4895 = vmatpush1.xpose.msra.mxu0 0.0
        %4896 = vmatprep.subr.mxu0 0.0
        %4897 = vmatpush1.xpose.msra.mxu0 0.0
        %4898 = vmatprep.subr.mxu0 0.0
        %4899 = vmatpush1.xpose.msra.mxu0 0.0
        %4900 = vmatprep.subr.mxu0 0.0
        %4901 = vmatpush1.xpose.msra.mxu0 0.0
        %4902 = vmatprep.subr.mxu0 0.0
        %4903 = vmatpush1.xpose.msra.mxu0 0.0
        %4904 = vmatprep.subr.mxu0 0.0
        %4905 = vmatpush1.xpose.msra.mxu0 0.0
        %4906 = vmatprep.subr.mxu0 0.0
        %4907 = vmatpush1.xpose.msra.mxu0 0.0
        %4908 = vmatprep.subr.mxu0 0.0
        %4909 = vmatpush1.xpose.msra.mxu0 0.0
        %4910 = vmatprep.subr.mxu0 0.0
        %4911 = vmatpush1.xpose.msra.mxu0 0.0
        %4912 = vmatprep.subr.mxu0 0.0
        %4913 = vmatpush1.xpose.msra.mxu0 0.0
        %4914 = vmatprep.subr.mxu0 0.0
        %4915 = vmatpush1.xpose.msra.mxu0 0.0
        %4916 = vmatprep.subr.mxu0 0.0
        %4917 = vmatpush1.xpose.msra.mxu0 0.0
        %4918 = vmatprep.subr.mxu0 0.0
        %4919 = vmatpush1.xpose.msra.mxu0 0.0
        %4920 = vmatprep.subr.mxu0 0.0
        %4921 = vmatpush1.xpose.msra.mxu0 0.0
        %4922 = vmatprep.subr.mxu0 0.0
        %4923 = vmatpush1.xpose.msra.mxu0 0.0
        %4924 = vmatprep.subr.mxu0 0.0
        %4925 = vmatpush1.xpose.msra.mxu0 0.0
        %4926 = vmatprep.subr.mxu0 0.0
        %4927 = vmatpush1.xpose.msra.mxu0 0.0
        %4928 = vmatprep.subr.mxu0 0.0
        %4929 = vmatpush1.xpose.msra.mxu0 0.0
        %4930 = vmatprep.subr.mxu0 0.0
        %4931 = vmatpush1.xpose.msra.mxu0 0.0
        %4932 = vmatprep.subr.mxu0 0.0
        %4933 = vmatpush1.xpose.msra.mxu0 0.0
        %4934 = vmatprep.subr.mxu0 0.0
        %4935 = vmatpush1.xpose.msra.mxu0 0.0
        %4936 = vmatprep.subr.mxu0 0.0
        %4937 = vmatpush1.xpose.msra.mxu0 0.0
        %4938 = vmatprep.subr.mxu0 0.0
        %4939 = vmatpush1.xpose.msra.mxu0 0.0
        %4940 = vmatprep.subr.mxu0 0.0
        %4941 = vmatpush1.xpose.msra.mxu0 0.0
        %4942 = vmatprep.subr.mxu0 0.0
        %4943 = vmatpush1.xpose.msra.mxu0 0.0
        %4944 = vmatprep.subr.mxu0 0.0
        %4945 = vmatpush1.xpose.msra.mxu0 0.0
        %4946 = vmatprep.subr.mxu0 0.0
        %4947 = vmatpush1.xpose.msra.mxu0 0.0
        %4948 = vmatprep.subr.mxu0 0.0
        %4949 = vmatpush1.xpose.msra.mxu0 0.0
        %4950 = vmatprep.subr.mxu0 0.0
        %4951 = vmatpush1.xpose.msra.mxu0 0.0
        %4952 = vmatprep.subr.mxu0 0.0
        %4953 = vmatpush1.xpose.msra.mxu0 0.0
        %4954 = vmatprep.subr.mxu0 0.0
        %4955 = vmatpush1.xpose.msra.mxu0 0.0
        %4956 = vmatprep.mubr.f32.mxu0 0.0
        %v4957 = vand.u32 %v4887, 4294901760
        %v4958 = vsub.f32 %v4887, %v4957
        %v4959 = vand.u32 %v4958, 4294901760
        %v4960 = vsub.f32 %v4958, %v4959
        %v4961 = vand.u32 %v4960, 4294901760
        %4962 = vmatmul.mubr.f32.gmra.mrb[0].mxu0 %v4961
        %v4963 = vpop.f32.mrb[0].mxu0
        %v4964 = vadd.f32 0.0, %v4963
        %v4965 = vpop.f32.mrb[0].mxu0
        %4966 = vdwg.mxu0
        %4967 = vmatprep.subr.mxu0 0.0
        %v4968 = vand.u32 %v4889, 4294901760
        %v4969 = vsub.f32 %v4889, %v4968
        %v4970 = vand.u32 %v4969, 4294901760
        %v4971 = vsub.f32 %v4969, %v4970
        %v4972 = vand.u32 %v4971, 4294901760
        %4973 = vmatpush1.xpose.msra.mxu0 %v4972
        %4974 = vmatprep.subr.mxu0 0.0
        %4975 = vmatpush1.xpose.msra.mxu0 0.0
        %4976 = vmatprep.subr.mxu0 0.0
        %4977 = vmatpush1.xpose.msra.mxu0 0.0
        %4978 = vmatprep.subr.mxu0 0.0
        %4979 = vmatpush1.xpose.msra.mxu0 0.0
        %4980 = vmatprep.subr.mxu0 0.0
        %4981 = vmatpush1.xpose.msra.mxu0 0.0
        %4982 = vmatprep.subr.mxu0 0.0
        %4983 = vmatpush1.xpose.msra.mxu0 0.0
        %4984 = vmatprep.subr.mxu0 0.0
        %4985 = vmatpush1.xpose.msra.mxu0 0.0
        %4986 = vmatprep.subr.mxu0 0.0
        %4987 = vmatpush1.xpose.msra.mxu0 0.0
        %4988 = vmatprep.subr.mxu0 0.0
        %4989 = vmatpush1.xpose.msra.mxu0 0.0
        %4990 = vmatprep.subr.mxu0 0.0
        %4991 = vmatpush1.xpose.msra.mxu0 0.0
        %4992 = vmatprep.subr.mxu0 0.0
        %4993 = vmatpush1.xpose.msra.mxu0 0.0
        %4994 = vmatprep.subr.mxu0 0.0
        %4995 = vmatpush1.xpose.msra.mxu0 0.0
        %4996 = vmatprep.subr.mxu0 0.0
        %4997 = vmatpush1.xpose.msra.mxu0 0.0
        %4998 = vmatprep.subr.mxu0 0.0
        %4999 = vmatpush1.xpose.msra.mxu0 0.0
        %5000 = vmatprep.subr.mxu0 0.0
        %5001 = vmatpush1.xpose.msra.mxu0 0.0
        %5002 = vmatprep.subr.mxu0 0.0
        %5003 = vmatpush1.xpose.msra.mxu0 0.0
        %5004 = vmatprep.subr.mxu0 0.0
        %5005 = vmatpush1.xpose.msra.mxu0 0.0
        %5006 = vmatprep.subr.mxu0 0.0
        %5007 = vmatpush1.xpose.msra.mxu0 0.0
        %5008 = vmatprep.subr.mxu0 0.0
        %5009 = vmatpush1.xpose.msra.mxu0 0.0
        %5010 = vmatprep.subr.mxu0 0.0
        %5011 = vmatpush1.xpose.msra.mxu0 0.0
        %5012 = vmatprep.subr.mxu0 0.0
        %5013 = vmatpush1.xpose.msra.mxu0 0.0
        %5014 = vmatprep.subr.mxu0 0.0
        %5015 = vmatpush1.xpose.msra.mxu0 0.0
        %5016 = vmatprep.subr.mxu0 0.0
        %5017 = vmatpush1.xpose.msra.mxu0 0.0
        %5018 = vmatprep.subr.mxu0 0.0
        %5019 = vmatpush1.xpose.msra.mxu0 0.0
        %5020 = vmatprep.subr.mxu0 0.0
        %5021 = vmatpush1.xpose.msra.mxu0 0.0
        %5022 = vmatprep.subr.mxu0 0.0
        %5023 = vmatpush1.xpose.msra.mxu0 0.0
        %5024 = vmatprep.subr.mxu0 0.0
        %5025 = vmatpush1.xpose.msra.mxu0 0.0
        %5026 = vmatprep.subr.mxu0 0.0
        %5027 = vmatpush1.xpose.msra.mxu0 0.0
        %5028 = vmatprep.subr.mxu0 0.0
        %5029 = vmatpush1.xpose.msra.mxu0 0.0
        %5030 = vmatprep.subr.mxu0 0.0
        %5031 = vmatpush1.xpose.msra.mxu0 0.0
        %5032 = vmatprep.subr.mxu0 0.0
        %5033 = vmatpush1.xpose.msra.mxu0 0.0
        %5034 = vmatprep.subr.mxu0 0.0
        %5035 = vmatpush1.xpose.msra.mxu0 0.0
        %5036 = vmatprep.mubr.f32.mxu0 0.0
        %v5037 = vand.u32 %v4887, 4294901760
        %5038 = vmatmul.mubr.f32.gmra.mrb[0].mxu0 %v5037
        %v5039 = vpop.f32.mrb[0].mxu0
        %v5040 = vadd.f32 %v4964, %v5039
        %v5041 = vpop.f32.mrb[0].mxu0
        %5042 = vdwg.mxu0
        %5043 = vmatprep.subr.mxu0 0.0
        %v5044 = vand.u32 %v4889, 4294901760
        %v5045 = vsub.f32 %v4889, %v5044
        %5046 = vmatpush1.xpose.msra.mxu0 %v5045
        %5047 = vmatprep.subr.mxu0 0.0
        %5048 = vmatpush1.xpose.msra.mxu0 0.0
        %5049 = vmatprep.subr.mxu0 0.0
        %5050 = vmatpush1.xpose.msra.mxu0 0.0
        %5051 = vmatprep.subr.mxu0 0.0
        %5052 = vmatpush1.xpose.msra.mxu0 0.0
        %5053 = vmatprep.subr.mxu0 0.0
        %5054 = vmatpush1.xpose.msra.mxu0 0.0
        %5055 = vmatprep.subr.mxu0 0.0
        %5056 = vmatpush1.xpose.msra.mxu0 0.0
        %5057 = vmatprep.subr.mxu0 0.0
        %5058 = vmatpush1.xpose.msra.mxu0 0.0
        %5059 = vmatprep.subr.mxu0 0.0
        %5060 = vmatpush1.xpose.msra.mxu0 0.0
        %5061 = vmatprep.subr.mxu0 0.0
        %5062 = vmatpush1.xpose.msra.mxu0 0.0
        %5063 = vmatprep.subr.mxu0 0.0
        %5064 = vmatpush1.xpose.msra.mxu0 0.0
        %5065 = vmatprep.subr.mxu0 0.0
        %5066 = vmatpush1.xpose.msra.mxu0 0.0
        %5067 = vmatprep.subr.mxu0 0.0
        %5068 = vmatpush1.xpose.msra.mxu0 0.0
        %5069 = vmatprep.subr.mxu0 0.0
        %5070 = vmatpush1.xpose.msra.mxu0 0.0
        %5071 = vmatprep.subr.mxu0 0.0
        %5072 = vmatpush1.xpose.msra.mxu0 0.0
        %5073 = vmatprep.subr.mxu0 0.0
        %5074 = vmatpush1.xpose.msra.mxu0 0.0
        %5075 = vmatprep.subr.mxu0 0.0
        %5076 = vmatpush1.xpose.msra.mxu0 0.0
        %5077 = vmatprep.subr.mxu0 0.0
        %5078 = vmatpush1.xpose.msra.mxu0 0.0
        %5079 = vmatprep.subr.mxu0 0.0
        %5080 = vmatpush1.xpose.msra.mxu0 0.0
        %5081 = vmatprep.subr.mxu0 0.0
        %5082 = vmatpush1.xpose.msra.mxu0 0.0
        %5083 = vmatprep.subr.mxu0 0.0
        %5084 = vmatpush1.xpose.msra.mxu0 0.0
        %5085 = vmatprep.subr.mxu0 0.0
        %5086 = vmatpush1.xpose.msra.mxu0 0.0
        %5087 = vmatprep.subr.mxu0 0.0
        %5088 = vmatpush1.xpose.msra.mxu0 0.0
        %5089 = vmatprep.subr.mxu0 0.0
        %5090 = vmatpush1.xpose.msra.mxu0 0.0
        %5091 = vmatprep.subr.mxu0 0.0
        %5092 = vmatpush1.xpose.msra.mxu0 0.0
        %5093 = vmatprep.subr.mxu0 0.0
        %5094 = vmatpush1.xpose.msra.mxu0 0.0
        %5095 = vmatprep.subr.mxu0 0.0
        %5096 = vmatpush1.xpose.msra.mxu0 0.0
        %5097 = vmatprep.subr.mxu0 0.0
        %5098 = vmatpush1.xpose.msra.mxu0 0.0
        %5099 = vmatprep.subr.mxu0 0.0
        %5100 = vmatpush1.xpose.msra.mxu0 0.0
        %5101 = vmatprep.subr.mxu0 0.0
        %5102 = vmatpush1.xpose.msra.mxu0 0.0
        %5103 = vmatprep.subr.mxu0 0.0
        %5104 = vmatpush1.xpose.msra.mxu0 0.0
        %5105 = vmatprep.subr.mxu0 0.0
        %5106 = vmatpush1.xpose.msra.mxu0 0.0
        %5107 = vmatprep.subr.mxu0 0.0
        %5108 = vmatpush1.xpose.msra.mxu0 0.0
        %5109 = vmatprep.mubr.f32.mxu0 0.0
        %v5110 = vand.u32 %v4887, 4294901760
        %v5111 = vsub.f32 %v4887, %v5110
        %5112 = vmatmul.mubr.f32.gmra.mrb[0].mxu0 %v5111
        %v5113 = vpop.f32.mrb[0].mxu0
        %v5114 = vadd.f32 %v5040, %v5113
        %v5115 = vpop.f32.mrb[0].mxu0
        %5116 = vdwg.mxu0
        %5117 = vmatprep.subr.mxu0 0.0
        %v5118 = vand.u32 %v4889, 4294901760
        %5119 = vmatpush1.xpose.msra.mxu0 %v5118
        %5120 = vmatprep.subr.mxu0 0.0
        %5121 = vmatpush1.xpose.msra.mxu0 0.0
        %5122 = vmatprep.subr.mxu0 0.0
        %5123 = vmatpush1.xpose.msra.mxu0 0.0
        %5124 = vmatprep.subr.mxu0 0.0
        %5125 = vmatpush1.xpose.msra.mxu0 0.0
        %5126 = vmatprep.subr.mxu0 0.0
        %5127 = vmatpush1.xpose.msra.mxu0 0.0
        %5128 = vmatprep.subr.mxu0 0.0
        %5129 = vmatpush1.xpose.msra.mxu0 0.0
        %5130 = vmatprep.subr.mxu0 0.0
        %5131 = vmatpush1.xpose.msra.mxu0 0.0
        %5132 = vmatprep.subr.mxu0 0.0
        %5133 = vmatpush1.xpose.msra.mxu0 0.0
        %5134 = vmatprep.subr.mxu0 0.0
        %5135 = vmatpush1.xpose.msra.mxu0 0.0
        %5136 = vmatprep.subr.mxu0 0.0
        %5137 = vmatpush1.xpose.msra.mxu0 0.0
        %5138 = vmatprep.subr.mxu0 0.0
        %5139 = vmatpush1.xpose.msra.mxu0 0.0
        %5140 = vmatprep.subr.mxu0 0.0
        %5141 = vmatpush1.xpose.msra.mxu0 0.0
        %5142 = vmatprep.subr.mxu0 0.0
        %5143 = vmatpush1.xpose.msra.mxu0 0.0
        %5144 = vmatprep.subr.mxu0 0.0
        %5145 = vmatpush1.xpose.msra.mxu0 0.0
        %5146 = vmatprep.subr.mxu0 0.0
        %5147 = vmatpush1.xpose.msra.mxu0 0.0
        %5148 = vmatprep.subr.mxu0 0.0
        %5149 = vmatpush1.xpose.msra.mxu0 0.0
        %5150 = vmatprep.subr.mxu0 0.0
        %5151 = vmatpush1.xpose.msra.mxu0 0.0
        %5152 = vmatprep.subr.mxu0 0.0
        %5153 = vmatpush1.xpose.msra.mxu0 0.0
        %5154 = vmatprep.subr.mxu0 0.0
        %5155 = vmatpush1.xpose.msra.mxu0 0.0
        %5156 = vmatprep.subr.mxu0 0.0
        %5157 = vmatpush1.xpose.msra.mxu0 0.0
        %5158 = vmatprep.subr.mxu0 0.0
        %5159 = vmatpush1.xpose.msra.mxu0 0.0
        %5160 = vmatprep.subr.mxu0 0.0
        %5161 = vmatpush1.xpose.msra.mxu0 0.0
        %5162 = vmatprep.subr.mxu0 0.0
        %5163 = vmatpush1.xpose.msra.mxu0 0.0
        %5164 = vmatprep.subr.mxu0 0.0
        %5165 = vmatpush1.xpose.msra.mxu0 0.0
        %5166 = vmatprep.subr.mxu0 0.0
        %5167 = vmatpush1.xpose.msra.mxu0 0.0
        %5168 = vmatprep.subr.mxu0 0.0
        %5169 = vmatpush1.xpose.msra.mxu0 0.0
        %5170 = vmatprep.subr.mxu0 0.0
        %5171 = vmatpush1.xpose.msra.mxu0 0.0
        %5172 = vmatprep.subr.mxu0 0.0
        %5173 = vmatpush1.xpose.msra.mxu0 0.0
        %5174 = vmatprep.subr.mxu0 0.0
        %5175 = vmatpush1.xpose.msra.mxu0 0.0
        %5176 = vmatprep.subr.mxu0 0.0
        %5177 = vmatpush1.xpose.msra.mxu0 0.0
        %5178 = vmatprep.subr.mxu0 0.0
        %5179 = vmatpush1.xpose.msra.mxu0 0.0
        %5180 = vmatprep.subr.mxu0 0.0
        %5181 = vmatpush1.xpose.msra.mxu0 0.0
        %5182 = vmatprep.mubr.f32.mxu0 0.0
        %v5183 = vand.u32 %v4887, 4294901760
        %v5184 = vsub.f32 %v4887, %v5183
        %v5185 = vand.u32 %v5184, 4294901760
        %5186 = vmatmul.mubr.f32.gmra.mrb[0].mxu0 %v5185
        %v5187 = vpop.f32.mrb[0].mxu0
        %v5188 = vadd.f32 %v5114, %v5187
        %v5189 = vpop.f32.mrb[0].mxu0
        %5190 = vdwg.mxu0
        %5191 = vmatprep.subr.mxu0 0.0
        %v5192 = vand.u32 %v4889, 4294901760
        %v5193 = vsub.f32 %v4889, %v5192
        %v5194 = vand.u32 %v5193, 4294901760
        %5195 = vmatpush1.xpose.msra.mxu0 %v5194
        %5196 = vmatprep.subr.mxu0 0.0
        %5197 = vmatpush1.xpose.msra.mxu0 0.0
        %5198 = vmatprep.subr.mxu0 0.0
        %5199 = vmatpush1.xpose.msra.mxu0 0.0
        %5200 = vmatprep.subr.mxu0 0.0
        %5201 = vmatpush1.xpose.msra.mxu0 0.0
        %5202 = vmatprep.subr.mxu0 0.0
        %5203 = vmatpush1.xpose.msra.mxu0 0.0
        %5204 = vmatprep.subr.mxu0 0.0
        %5205 = vmatpush1.xpose.msra.mxu0 0.0
        %5206 = vmatprep.subr.mxu0 0.0
        %5207 = vmatpush1.xpose.msra.mxu0 0.0
        %5208 = vmatprep.subr.mxu0 0.0
        %5209 = vmatpush1.xpose.msra.mxu0 0.0
        %5210 = vmatprep.subr.mxu0 0.0
        %5211 = vmatpush1.xpose.msra.mxu0 0.0
        %5212 = vmatprep.subr.mxu0 0.0
        %5213 = vmatpush1.xpose.msra.mxu0 0.0
        %5214 = vmatprep.subr.mxu0 0.0
        %5215 = vmatpush1.xpose.msra.mxu0 0.0
        %5216 = vmatprep.subr.mxu0 0.0
        %5217 = vmatpush1.xpose.msra.mxu0 0.0
        %5218 = vmatprep.subr.mxu0 0.0
        %5219 = vmatpush1.xpose.msra.mxu0 0.0
        %5220 = vmatprep.subr.mxu0 0.0
        %5221 = vmatpush1.xpose.msra.mxu0 0.0
        %5222 = vmatprep.subr.mxu0 0.0
        %5223 = vmatpush1.xpose.msra.mxu0 0.0
        %5224 = vmatprep.subr.mxu0 0.0
        %5225 = vmatpush1.xpose.msra.mxu0 0.0
        %5226 = vmatprep.subr.mxu0 0.0
        %5227 = vmatpush1.xpose.msra.mxu0 0.0
        %5228 = vmatprep.subr.mxu0 0.0
        %5229 = vmatpush1.xpose.msra.mxu0 0.0
        %5230 = vmatprep.subr.mxu0 0.0
        %5231 = vmatpush1.xpose.msra.mxu0 0.0
        %5232 = vmatprep.subr.mxu0 0.0
        %5233 = vmatpush1.xpose.msra.mxu0 0.0
        %5234 = vmatprep.subr.mxu0 0.0
        %5235 = vmatpush1.xpose.msra.mxu0 0.0
        %5236 = vmatprep.subr.mxu0 0.0
        %5237 = vmatpush1.xpose.msra.mxu0 0.0
        %5238 = vmatprep.subr.mxu0 0.0
        %5239 = vmatpush1.xpose.msra.mxu0 0.0
        %5240 = vmatprep.subr.mxu0 0.0
        %5241 = vmatpush1.xpose.msra.mxu0 0.0
        %5242 = vmatprep.subr.mxu0 0.0
        %5243 = vmatpush1.xpose.msra.mxu0 0.0
        %5244 = vmatprep.subr.mxu0 0.0
        %5245 = vmatpush1.xpose.msra.mxu0 0.0
        %5246 = vmatprep.subr.mxu0 0.0
        %5247 = vmatpush1.xpose.msra.mxu0 0.0
        %5248 = vmatprep.subr.mxu0 0.0
        %5249 = vmatpush1.xpose.msra.mxu0 0.0
        %5250 = vmatprep.subr.mxu0 0.0
        %5251 = vmatpush1.xpose.msra.mxu0 0.0
        %5252 = vmatprep.subr.mxu0 0.0
        %5253 = vmatpush1.xpose.msra.mxu0 0.0
        %5254 = vmatprep.subr.mxu0 0.0
        %5255 = vmatpush1.xpose.msra.mxu0 0.0
        %5256 = vmatprep.subr.mxu0 0.0
        %5257 = vmatpush1.xpose.msra.mxu0 0.0
        %5258 = vmatprep.mubr.f32.mxu0 0.0
        %v5259 = vand.u32 %v4887, 4294901760
        %5260 = vmatmul.mubr.f32.gmra.mrb[0].mxu0 %v5259
        %v5261 = vpop.f32.mrb[0].mxu0
        %v5262 = vadd.f32 %v5188, %v5261
        %v5263 = vpop.f32.mrb[0].mxu0
        %5264 = vdwg.mxu0
        %5265 = vmatprep.subr.mxu0 0.0
        %v5266 = vand.u32 %v4889, 4294901760
        %5267 = vmatpush1.xpose.msra.mxu0 %v5266
        %5268 = vmatprep.subr.mxu0 0.0
        %5269 = vmatpush1.xpose.msra.mxu0 0.0
        %5270 = vmatprep.subr.mxu0 0.0
        %5271 = vmatpush1.xpose.msra.mxu0 0.0
        %5272 = vmatprep.subr.mxu0 0.0
        %5273 = vmatpush1.xpose.msra.mxu0 0.0
        %5274 = vmatprep.subr.mxu0 0.0
        %5275 = vmatpush1.xpose.msra.mxu0 0.0
        %5276 = vmatprep.subr.mxu0 0.0
        %5277 = vmatpush1.xpose.msra.mxu0 0.0
        %5278 = vmatprep.subr.mxu0 0.0
        %5279 = vmatpush1.xpose.msra.mxu0 0.0
        %5280 = vmatprep.subr.mxu0 0.0
        %5281 = vmatpush1.xpose.msra.mxu0 0.0
        %5282 = vmatprep.subr.mxu0 0.0
        %5283 = vmatpush1.xpose.msra.mxu0 0.0
        %5284 = vmatprep.subr.mxu0 0.0
        %5285 = vmatpush1.xpose.msra.mxu0 0.0
        %5286 = vmatprep.subr.mxu0 0.0
        %5287 = vmatpush1.xpose.msra.mxu0 0.0
        %5288 = vmatprep.subr.mxu0 0.0
        %5289 = vmatpush1.xpose.msra.mxu0 0.0
        %5290 = vmatprep.subr.mxu0 0.0
        %5291 = vmatpush1.xpose.msra.mxu0 0.0
        %5292 = vmatprep.subr.mxu0 0.0
        %5293 = vmatpush1.xpose.msra.mxu0 0.0
        %5294 = vmatprep.subr.mxu0 0.0
        %5295 = vmatpush1.xpose.msra.mxu0 0.0
        %5296 = vmatprep.subr.mxu0 0.0
        %5297 = vmatpush1.xpose.msra.mxu0 0.0
        %5298 = vmatprep.subr.mxu0 0.0
        %5299 = vmatpush1.xpose.msra.mxu0 0.0
        %5300 = vmatprep.subr.mxu0 0.0
        %5301 = vmatpush1.xpose.msra.mxu0 0.0
        %5302 = vmatprep.subr.mxu0 0.0
        %5303 = vmatpush1.xpose.msra.mxu0 0.0
        %5304 = vmatprep.subr.mxu0 0.0
        %5305 = vmatpush1.xpose.msra.mxu0 0.0
        %5306 = vmatprep.subr.mxu0 0.0
        %5307 = vmatpush1.xpose.msra.mxu0 0.0
        %5308 = vmatprep.subr.mxu0 0.0
        %5309 = vmatpush1.xpose.msra.mxu0 0.0
        %5310 = vmatprep.subr.mxu0 0.0
        %5311 = vmatpush1.xpose.msra.mxu0 0.0
        %5312 = vmatprep.subr.mxu0 0.0
        %5313 = vmatpush1.xpose.msra.mxu0 0.0
        %5314 = vmatprep.subr.mxu0 0.0
        %5315 = vmatpush1.xpose.msra.mxu0 0.0
        %5316 = vmatprep.subr.mxu0 0.0
        %5317 = vmatpush1.xpose.msra.mxu0 0.0
        %5318 = vmatprep.subr.mxu0 0.0
        %5319 = vmatpush1.xpose.msra.mxu0 0.0
        %5320 = vmatprep.subr.mxu0 0.0
        %5321 = vmatpush1.xpose.msra.mxu0 0.0
        %5322 = vmatprep.subr.mxu0 0.0
        %5323 = vmatpush1.xpose.msra.mxu0 0.0
        %5324 = vmatprep.subr.mxu0 0.0
        %5325 = vmatpush1.xpose.msra.mxu0 0.0
        %5326 = vmatprep.subr.mxu0 0.0
        %5327 = vmatpush1.xpose.msra.mxu0 0.0
        %5328 = vmatprep.subr.mxu0 0.0
        %5329 = vmatpush1.xpose.msra.mxu0 0.0
        %5330 = vmatprep.mubr.f32.mxu0 0.0
        %v5331 = vand.u32 %v4887, 4294901760
        %5332 = vmatmul.mubr.f32.gmra.mrb[0].mxu0 %v5331
        %v5333 = vpop.f32.mrb[0].mxu0
        %v5334 = vadd.f32 %v5262, %v5333
        %v5335 = vpop.f32.mrb[0].mxu0
        %5336 = vdwg.mxu0
        %v5337 = vmul.f32 %v5334, 0.35355338
        %v5338 = vlaneseq
        %v5339 = vshrl.u32 %v5338, 7
        %v5340 = vsub.s32 0, %v5339
        %v5341 = vrot.slane %v4883, %v5340
        %v5342 = vadd.f32 %v5337, %v5341
        %v5343 = vsel %vm1187, %v5342, -inf
        %5344 = vmax.xlane.f32.xlu0 %v5343
        %v5345 = vpop.xlane.xlu0 %5344
        %v5346 = vsub.f32 %v5342, %v5345
        %v5347 = vmul.f32 %v5346, 1.442695
        %v5348 = vpow.pop %v5347
        %v5349 = vsel %vm1187, %v5348, 0.0
        %5350 = vadd.xlane.f32.xlu0 %v5349
        %v5351 = vpop.xlane.xlu0 %5350
        %v5352 = vrcp.pop %v5351
        %v5353 = vmul.f32 %v5348, %v5352
        %5354 = vrot.lane.b32.xlu0 %v1180, 64
        %v5355 = vpop.permute.xlu0 %5354
        %v5358 = vsel %vm1187, %v5353, 0
        %5360 = vmatprep.subr.mxu0 0.0
        %v5361 = vand.u32 %v5355, 4294901760
        %5362 = vmatpush1.msra.mxu0 %v5361
        %5363 = vmatprep.subr.mxu0 0.0
        %5364 = vmatpush1.msra.mxu0 0.0
        %5365 = vmatprep.subr.mxu0 0.0
        %5366 = vmatpush1.msra.mxu0 0.0
        %5367 = vmatprep.subr.mxu0 0.0
        %5368 = vmatpush1.msra.mxu0 0.0
        %5369 = vmatprep.subr.mxu0 0.0
        %5370 = vmatpush1.msra.mxu0 0.0
        %5371 = vmatprep.subr.mxu0 0.0
        %5372 = vmatpush1.msra.mxu0 0.0
        %5373 = vmatprep.subr.mxu0 0.0
        %5374 = vmatpush1.msra.mxu0 0.0
        %5375 = vmatprep.subr.mxu0 0.0
        %5376 = vmatpush1.msra.mxu0 0.0
        %5377 = vmatprep.subr.mxu0 0.0
        %5378 = vmatpush1.msra.mxu0 0.0
        %5379 = vmatprep.subr.mxu0 0.0
        %5380 = vmatpush1.msra.mxu0 0.0
        %5381 = vmatprep.subr.mxu0 0.0
        %5382 = vmatpush1.msra.mxu0 0.0
        %5383 = vmatprep.subr.mxu0 0.0
        %5384 = vmatpush1.msra.mxu0 0.0
        %5385 = vmatprep.subr.mxu0 0.0
        %5386 = vmatpush1.msra.mxu0 0.0
        %5387 = vmatprep.subr.mxu0 0.0
        %5388 = vmatpush1.msra.mxu0 0.0
        %5389 = vmatprep.subr.mxu0 0.0
        %5390 = vmatpush1.msra.mxu0 0.0
        %5391 = vmatprep.subr.mxu0 0.0
        %5392 = vmatpush1.msra.mxu0 0.0
        %5393 = vmatprep.subr.mxu0 0.0
        %5394 = vmatpush1.msra.mxu0 0.0
        %5395 = vmatprep.subr.mxu0 0.0
        %5396 = vmatpush1.msra.mxu0 0.0
        %5397 = vmatprep.subr.mxu0 0.0
        %5398 = vmatpush1.msra.mxu0 0.0
        %5399 = vmatprep.subr.mxu0 0.0
        %5400 = vmatpush1.msra.mxu0 0.0
        %5401 = vmatprep.subr.mxu0 0.0
        %5402 = vmatpush1.msra.mxu0 0.0
        %5403 = vmatprep.subr.mxu0 0.0
        %5404 = vmatpush1.msra.mxu0 0.0
        %5405 = vmatprep.subr.mxu0 0.0
        %5406 = vmatpush1.msra.mxu0 0.0
        %5407 = vmatprep.subr.mxu0 0.0
        %5408 = vmatpush1.msra.mxu0 0.0
        %5409 = vmatprep.subr.mxu0 0.0
        %5410 = vmatpush1.msra.mxu0 0.0
        %5411 = vmatprep.subr.mxu0 0.0
        %5412 = vmatpush1.msra.mxu0 0.0
        %5413 = vmatprep.subr.mxu0 0.0
        %5414 = vmatpush1.msra.mxu0 0.0
        %5415 = vmatprep.subr.mxu0 0.0
        %5416 = vmatpush1.msra.mxu0 0.0
        %5417 = vmatprep.subr.mxu0 0.0
        %5418 = vmatpush1.msra.mxu0 0.0
        %5419 = vmatprep.subr.mxu0 0.0
        %5420 = vmatpush1.msra.mxu0 0.0
        %5421 = vmatprep.subr.mxu0 0.0
        %5422 = vmatpush1.msra.mxu0 0.0
        %5423 = vmatprep.subr.mxu0 0.0
        %5424 = vmatpush1.msra.mxu0 0.0
        %5425 = vmatprep.mubr.f32.mxu0 0.0
        %v5426 = vand.u32 %v5358, 4294901760
        %v5427 = vsub.f32 %v5358, %v5426
        %v5428 = vand.u32 %v5427, 4294901760
        %v5429 = vsub.f32 %v5427, %v5428
        %v5430 = vand.u32 %v5429, 4294901760
        %5431 = vmatmul.mubr.f32.gmra.mrb[0].mxu0 %v5430
        %v5432 = vpop.f32.mrb[0].mxu0
        %v5433 = vadd.f32 0.0, %v5432
        %v5434 = vpop.f32.mrb[0].mxu0
        %5435 = vdwg.mxu0
        %5436 = vmatprep.subr.mxu0 0.0
        %v5437 = vand.u32 %v5355, 4294901760
        %v5438 = vsub.f32 %v5355, %v5437
        %v5439 = vand.u32 %v5438, 4294901760
        %v5440 = vsub.f32 %v5438, %v5439
        %v5441 = vand.u32 %v5440, 4294901760
        %5442 = vmatpush1.msra.mxu0 %v5441
        %5443 = vmatprep.subr.mxu0 0.0
        %5444 = vmatpush1.msra.mxu0 0.0
        %5445 = vmatprep.subr.mxu0 0.0
        %5446 = vmatpush1.msra.mxu0 0.0
        %5447 = vmatprep.subr.mxu0 0.0
        %5448 = vmatpush1.msra.mxu0 0.0
        %5449 = vmatprep.subr.mxu0 0.0
        %5450 = vmatpush1.msra.mxu0 0.0
        %5451 = vmatprep.subr.mxu0 0.0
        %5452 = vmatpush1.msra.mxu0 0.0
        %5453 = vmatprep.subr.mxu0 0.0
        %5454 = vmatpush1.msra.mxu0 0.0
        %5455 = vmatprep.subr.mxu0 0.0
        %5456 = vmatpush1.msra.mxu0 0.0
        %5457 = vmatprep.subr.mxu0 0.0
        %5458 = vmatpush1.msra.mxu0 0.0
        %5459 = vmatprep.subr.mxu0 0.0
        %5460 = vmatpush1.msra.mxu0 0.0
        %5461 = vmatprep.subr.mxu0 0.0
        %5462 = vmatpush1.msra.mxu0 0.0
        %5463 = vmatprep.subr.mxu0 0.0
        %5464 = vmatpush1.msra.mxu0 0.0
        %5465 = vmatprep.subr.mxu0 0.0
        %5466 = vmatpush1.msra.mxu0 0.0
        %5467 = vmatprep.subr.mxu0 0.0
        %5468 = vmatpush1.msra.mxu0 0.0
        %5469 = vmatprep.subr.mxu0 0.0
        %5470 = vmatpush1.msra.mxu0 0.0
        %5471 = vmatprep.subr.mxu0 0.0
        %5472 = vmatpush1.msra.mxu0 0.0
        %5473 = vmatprep.subr.mxu0 0.0
        %5474 = vmatpush1.msra.mxu0 0.0
        %5475 = vmatprep.subr.mxu0 0.0
        %5476 = vmatpush1.msra.mxu0 0.0
        %5477 = vmatprep.subr.mxu0 0.0
        %5478 = vmatpush1.msra.mxu0 0.0
        %5479 = vmatprep.subr.mxu0 0.0
        %5480 = vmatpush1.msra.mxu0 0.0
        %5481 = vmatprep.subr.mxu0 0.0
        %5482 = vmatpush1.msra.mxu0 0.0
        %5483 = vmatprep.subr.mxu0 0.0
        %5484 = vmatpush1.msra.mxu0 0.0
        %5485 = vmatprep.subr.mxu0 0.0
        %5486 = vmatpush1.msra.mxu0 0.0
        %5487 = vmatprep.subr.mxu0 0.0
        %5488 = vmatpush1.msra.mxu0 0.0
        %5489 = vmatprep.subr.mxu0 0.0
        %5490 = vmatpush1.msra.mxu0 0.0
        %5491 = vmatprep.subr.mxu0 0.0
        %5492 = vmatpush1.msra.mxu0 0.0
        %5493 = vmatprep.subr.mxu0 0.0
        %5494 = vmatpush1.msra.mxu0 0.0
        %5495 = vmatprep.subr.mxu0 0.0
        %5496 = vmatpush1.msra.mxu0 0.0
        %5497 = vmatprep.subr.mxu0 0.0
        %5498 = vmatpush1.msra.mxu0 0.0
        %5499 = vmatprep.subr.mxu0 0.0
        %5500 = vmatpush1.msra.mxu0 0.0
        %5501 = vmatprep.subr.mxu0 0.0
        %5502 = vmatpush1.msra.mxu0 0.0
        %5503 = vmatprep.subr.mxu0 0.0
        %5504 = vmatpush1.msra.mxu0 0.0
        %5505 = vmatprep.mubr.f32.mxu0 0.0
        %v5506 = vand.u32 %v5358, 4294901760
        %5507 = vmatmul.mubr.f32.gmra.mrb[0].mxu0 %v5506
        %v5508 = vpop.f32.mrb[0].mxu0
        %v5509 = vadd.f32 %v5433, %v5508
        %v5510 = vpop.f32.mrb[0].mxu0
        %5511 = vdwg.mxu0
        %5512 = vmatprep.subr.mxu0 0.0
        %v5513 = vand.u32 %v5355, 4294901760
        %v5514 = vsub.f32 %v5355, %v5513
        %5515 = vmatpush1.msra.mxu0 %v5514
        %5516 = vmatprep.subr.mxu0 0.0
        %5517 = vmatpush1.msra.mxu0 0.0
        %5518 = vmatprep.subr.mxu0 0.0
        %5519 = vmatpush1.msra.mxu0 0.0
        %5520 = vmatprep.subr.mxu0 0.0
        %5521 = vmatpush1.msra.mxu0 0.0
        %5522 = vmatprep.subr.mxu0 0.0
        %5523 = vmatpush1.msra.mxu0 0.0
        %5524 = vmatprep.subr.mxu0 0.0
        %5525 = vmatpush1.msra.mxu0 0.0
        %5526 = vmatprep.subr.mxu0 0.0
        %5527 = vmatpush1.msra.mxu0 0.0
        %5528 = vmatprep.subr.mxu0 0.0
        %5529 = vmatpush1.msra.mxu0 0.0
        %5530 = vmatprep.subr.mxu0 0.0
        %5531 = vmatpush1.msra.mxu0 0.0
        %5532 = vmatprep.subr.mxu0 0.0
        %5533 = vmatpush1.msra.mxu0 0.0
        %5534 = vmatprep.subr.mxu0 0.0
        %5535 = vmatpush1.msra.mxu0 0.0
        %5536 = vmatprep.subr.mxu0 0.0
        %5537 = vmatpush1.msra.mxu0 0.0
        %5538 = vmatprep.subr.mxu0 0.0
        %5539 = vmatpush1.msra.mxu0 0.0
        %5540 = vmatprep.subr.mxu0 0.0
        %5541 = vmatpush1.msra.mxu0 0.0
        %5542 = vmatprep.subr.mxu0 0.0
        %5543 = vmatpush1.msra.mxu0 0.0
        %5544 = vmatprep.subr.mxu0 0.0
        %5545 = vmatpush1.msra.mxu0 0.0
        %5546 = vmatprep.subr.mxu0 0.0
        %5547 = vmatpush1.msra.mxu0 0.0
        %5548 = vmatprep.subr.mxu0 0.0
        %5549 = vmatpush1.msra.mxu0 0.0
        %5550 = vmatprep.subr.mxu0 0.0
        %5551 = vmatpush1.msra.mxu0 0.0
        %5552 = vmatprep.subr.mxu0 0.0
        %5553 = vmatpush1.msra.mxu0 0.0
        %5554 = vmatprep.subr.mxu0 0.0
        %5555 = vmatpush1.msra.mxu0 0.0
        %5556 = vmatprep.subr.mxu0 0.0
        %5557 = vmatpush1.msra.mxu0 0.0
        %5558 = vmatprep.subr.mxu0 0.0
        %5559 = vmatpush1.msra.mxu0 0.0
        %5560 = vmatprep.subr.mxu0 0.0
        %5561 = vmatpush1.msra.mxu0 0.0
        %5562 = vmatprep.subr.mxu0 0.0
        %5563 = vmatpush1.msra.mxu0 0.0
        %5564 = vmatprep.subr.mxu0 0.0
        %5565 = vmatpush1.msra.mxu0 0.0
        %5566 = vmatprep.subr.mxu0 0.0
        %5567 = vmatpush1.msra.mxu0 0.0
        %5568 = vmatprep.subr.mxu0 0.0
        %5569 = vmatpush1.msra.mxu0 0.0
        %5570 = vmatprep.subr.mxu0 0.0
        %5571 = vmatpush1.msra.mxu0 0.0
        %5572 = vmatprep.subr.mxu0 0.0
        %5573 = vmatpush1.msra.mxu0 0.0
        %5574 = vmatprep.subr.mxu0 0.0
        %5575 = vmatpush1.msra.mxu0 0.0
        %5576 = vmatprep.subr.mxu0 0.0
        %5577 = vmatpush1.msra.mxu0 0.0
        %5578 = vmatprep.mubr.f32.mxu0 0.0
        %v5579 = vand.u32 %v5358, 4294901760
        %v5580 = vsub.f32 %v5358, %v5579
        %5581 = vmatmul.mubr.f32.gmra.mrb[0].mxu0 %v5580
        %v5582 = vpop.f32.mrb[0].mxu0
        %v5583 = vadd.f32 %v5509, %v5582
        %v5584 = vpop.f32.mrb[0].mxu0
        %5585 = vdwg.mxu0
        %5586 = vmatprep.subr.mxu0 0.0
        %v5587 = vand.u32 %v5355, 4294901760
        %5588 = vmatpush1.msra.mxu0 %v5587
        %5589 = vmatprep.subr.mxu0 0.0
        %5590 = vmatpush1.msra.mxu0 0.0
        %5591 = vmatprep.subr.mxu0 0.0
        %5592 = vmatpush1.msra.mxu0 0.0
        %5593 = vmatprep.subr.mxu0 0.0
        %5594 = vmatpush1.msra.mxu0 0.0
        %5595 = vmatprep.subr.mxu0 0.0
        %5596 = vmatpush1.msra.mxu0 0.0
        %5597 = vmatprep.subr.mxu0 0.0
        %5598 = vmatpush1.msra.mxu0 0.0
        %5599 = vmatprep.subr.mxu0 0.0
        %5600 = vmatpush1.msra.mxu0 0.0
        %5601 = vmatprep.subr.mxu0 0.0
        %5602 = vmatpush1.msra.mxu0 0.0
        %5603 = vmatprep.subr.mxu0 0.0
        %5604 = vmatpush1.msra.mxu0 0.0
        %5605 = vmatprep.subr.mxu0 0.0
        %5606 = vmatpush1.msra.mxu0 0.0
        %5607 = vmatprep.subr.mxu0 0.0
        %5608 = vmatpush1.msra.mxu0 0.0
        %5609 = vmatprep.subr.mxu0 0.0
        %5610 = vmatpush1.msra.mxu0 0.0
        %5611 = vmatprep.subr.mxu0 0.0
        %5612 = vmatpush1.msra.mxu0 0.0
        %5613 = vmatprep.subr.mxu0 0.0
        %5614 = vmatpush1.msra.mxu0 0.0
        %5615 = vmatprep.subr.mxu0 0.0
        %5616 = vmatpush1.msra.mxu0 0.0
        %5617 = vmatprep.subr.mxu0 0.0
        %5618 = vmatpush1.msra.mxu0 0.0
        %5619 = vmatprep.subr.mxu0 0.0
        %5620 = vmatpush1.msra.mxu0 0.0
        %5621 = vmatprep.subr.mxu0 0.0
        %5622 = vmatpush1.msra.mxu0 0.0
        %5623 = vmatprep.subr.mxu0 0.0
        %5624 = vmatpush1.msra.mxu0 0.0
        %5625 = vmatprep.subr.mxu0 0.0
        %5626 = vmatpush1.msra.mxu0 0.0
        %5627 = vmatprep.subr.mxu0 0.0
        %5628 = vmatpush1.msra.mxu0 0.0
        %5629 = vmatprep.subr.mxu0 0.0
        %5630 = vmatpush1.msra.mxu0 0.0
        %5631 = vmatprep.subr.mxu0 0.0
        %5632 = vmatpush1.msra.mxu0 0.0
        %5633 = vmatprep.subr.mxu0 0.0
        %5634 = vmatpush1.msra.mxu0 0.0
        %5635 = vmatprep.subr.mxu0 0.0
        %5636 = vmatpush1.msra.mxu0 0.0
        %5637 = vmatprep.subr.mxu0 0.0
        %5638 = vmatpush1.msra.mxu0 0.0
        %5639 = vmatprep.subr.mxu0 0.0
        %5640 = vmatpush1.msra.mxu0 0.0
        %5641 = vmatprep.subr.mxu0 0.0
        %5642 = vmatpush1.msra.mxu0 0.0
        %5643 = vmatprep.subr.mxu0 0.0
        %5644 = vmatpush1.msra.mxu0 0.0
        %5645 = vmatprep.subr.mxu0 0.0
        %5646 = vmatpush1.msra.mxu0 0.0
        %5647 = vmatprep.subr.mxu0 0.0
        %5648 = vmatpush1.msra.mxu0 0.0
        %5649 = vmatprep.subr.mxu0 0.0
        %5650 = vmatpush1.msra.mxu0 0.0
        %5651 = vmatprep.mubr.f32.mxu0 0.0
        %v5652 = vand.u32 %v5358, 4294901760
        %v5653 = vsub.f32 %v5358, %v5652
        %v5654 = vand.u32 %v5653, 4294901760
        %5655 = vmatmul.mubr.f32.gmra.mrb[0].mxu0 %v5654
        %v5656 = vpop.f32.mrb[0].mxu0
        %v5657 = vadd.f32 %v5583, %v5656
        %v5658 = vpop.f32.mrb[0].mxu0
        %5659 = vdwg.mxu0
        %5660 = vmatprep.subr.mxu0 0.0
        %v5661 = vand.u32 %v5355, 4294901760
        %v5662 = vsub.f32 %v5355, %v5661
        %v5663 = vand.u32 %v5662, 4294901760
        %5664 = vmatpush1.msra.mxu0 %v5663
        %5665 = vmatprep.subr.mxu0 0.0
        %5666 = vmatpush1.msra.mxu0 0.0
        %5667 = vmatprep.subr.mxu0 0.0
        %5668 = vmatpush1.msra.mxu0 0.0
        %5669 = vmatprep.subr.mxu0 0.0
        %5670 = vmatpush1.msra.mxu0 0.0
        %5671 = vmatprep.subr.mxu0 0.0
        %5672 = vmatpush1.msra.mxu0 0.0
        %5673 = vmatprep.subr.mxu0 0.0
        %5674 = vmatpush1.msra.mxu0 0.0
        %5675 = vmatprep.subr.mxu0 0.0
        %5676 = vmatpush1.msra.mxu0 0.0
        %5677 = vmatprep.subr.mxu0 0.0
        %5678 = vmatpush1.msra.mxu0 0.0
        %5679 = vmatprep.subr.mxu0 0.0
        %5680 = vmatpush1.msra.mxu0 0.0
        %5681 = vmatprep.subr.mxu0 0.0
        %5682 = vmatpush1.msra.mxu0 0.0
        %5683 = vmatprep.subr.mxu0 0.0
        %5684 = vmatpush1.msra.mxu0 0.0
        %5685 = vmatprep.subr.mxu0 0.0
        %5686 = vmatpush1.msra.mxu0 0.0
        %5687 = vmatprep.subr.mxu0 0.0
        %5688 = vmatpush1.msra.mxu0 0.0
        %5689 = vmatprep.subr.mxu0 0.0
        %5690 = vmatpush1.msra.mxu0 0.0
        %5691 = vmatprep.subr.mxu0 0.0
        %5692 = vmatpush1.msra.mxu0 0.0
        %5693 = vmatprep.subr.mxu0 0.0
        %5694 = vmatpush1.msra.mxu0 0.0
        %5695 = vmatprep.subr.mxu0 0.0
        %5696 = vmatpush1.msra.mxu0 0.0
        %5697 = vmatprep.subr.mxu0 0.0
        %5698 = vmatpush1.msra.mxu0 0.0
        %5699 = vmatprep.subr.mxu0 0.0
        %5700 = vmatpush1.msra.mxu0 0.0
        %5701 = vmatprep.subr.mxu0 0.0
        %5702 = vmatpush1.msra.mxu0 0.0
        %5703 = vmatprep.subr.mxu0 0.0
        %5704 = vmatpush1.msra.mxu0 0.0
        %5705 = vmatprep.subr.mxu0 0.0
        %5706 = vmatpush1.msra.mxu0 0.0
        %5707 = vmatprep.subr.mxu0 0.0
        %5708 = vmatpush1.msra.mxu0 0.0
        %5709 = vmatprep.subr.mxu0 0.0
        %5710 = vmatpush1.msra.mxu0 0.0
        %5711 = vmatprep.subr.mxu0 0.0
        %5712 = vmatpush1.msra.mxu0 0.0
        %5713 = vmatprep.subr.mxu0 0.0
        %5714 = vmatpush1.msra.mxu0 0.0
        %5715 = vmatprep.subr.mxu0 0.0
        %5716 = vmatpush1.msra.mxu0 0.0
        %5717 = vmatprep.subr.mxu0 0.0
        %5718 = vmatpush1.msra.mxu0 0.0
        %5719 = vmatprep.subr.mxu0 0.0
        %5720 = vmatpush1.msra.mxu0 0.0
        %5721 = vmatprep.subr.mxu0 0.0
        %5722 = vmatpush1.msra.mxu0 0.0
        %5723 = vmatprep.subr.mxu0 0.0
        %5724 = vmatpush1.msra.mxu0 0.0
        %5725 = vmatprep.subr.mxu0 0.0
        %5726 = vmatpush1.msra.mxu0 0.0
        %5727 = vmatprep.mubr.f32.mxu0 0.0
        %v5728 = vand.u32 %v5358, 4294901760
        %5729 = vmatmul.mubr.f32.gmra.mrb[0].mxu0 %v5728
        %v5730 = vpop.f32.mrb[0].mxu0
        %v5731 = vadd.f32 %v5657, %v5730
        %v5732 = vpop.f32.mrb[0].mxu0
        %5733 = vdwg.mxu0
        %5734 = vmatprep.subr.mxu0 0.0
        %v5735 = vand.u32 %v5355, 4294901760
        %5736 = vmatpush1.msra.mxu0 %v5735
        %5737 = vmatprep.subr.mxu0 0.0
        %5738 = vmatpush1.msra.mxu0 0.0
        %5739 = vmatprep.subr.mxu0 0.0
        %5740 = vmatpush1.msra.mxu0 0.0
        %5741 = vmatprep.subr.mxu0 0.0
        %5742 = vmatpush1.msra.mxu0 0.0
        %5743 = vmatprep.subr.mxu0 0.0
        %5744 = vmatpush1.msra.mxu0 0.0
        %5745 = vmatprep.subr.mxu0 0.0
        %5746 = vmatpush1.msra.mxu0 0.0
        %5747 = vmatprep.subr.mxu0 0.0
        %5748 = vmatpush1.msra.mxu0 0.0
        %5749 = vmatprep.subr.mxu0 0.0
        %5750 = vmatpush1.msra.mxu0 0.0
        %5751 = vmatprep.subr.mxu0 0.0
        %5752 = vmatpush1.msra.mxu0 0.0
        %5753 = vmatprep.subr.mxu0 0.0
        %5754 = vmatpush1.msra.mxu0 0.0
        %5755 = vmatprep.subr.mxu0 0.0
        %5756 = vmatpush1.msra.mxu0 0.0
        %5757 = vmatprep.subr.mxu0 0.0
        %5758 = vmatpush1.msra.mxu0 0.0
        %5759 = vmatprep.subr.mxu0 0.0
        %5760 = vmatpush1.msra.mxu0 0.0
        %5761 = vmatprep.subr.mxu0 0.0
        %5762 = vmatpush1.msra.mxu0 0.0
        %5763 = vmatprep.subr.mxu0 0.0
        %5764 = vmatpush1.msra.mxu0 0.0
        %5765 = vmatprep.subr.mxu0 0.0
        %5766 = vmatpush1.msra.mxu0 0.0
        %5767 = vmatprep.subr.mxu0 0.0
        %5768 = vmatpush1.msra.mxu0 0.0
        %5769 = vmatprep.subr.mxu0 0.0
        %5770 = vmatpush1.msra.mxu0 0.0
        %5771 = vmatprep.subr.mxu0 0.0
        %5772 = vmatpush1.msra.mxu0 0.0
        %5773 = vmatprep.subr.mxu0 0.0
        %5774 = vmatpush1.msra.mxu0 0.0
        %5775 = vmatprep.subr.mxu0 0.0
        %5776 = vmatpush1.msra.mxu0 0.0
        %5777 = vmatprep.subr.mxu0 0.0
        %5778 = vmatpush1.msra.mxu0 0.0
        %5779 = vmatprep.subr.mxu0 0.0
        %5780 = vmatpush1.msra.mxu0 0.0
        %5781 = vmatprep.subr.mxu0 0.0
        %5782 = vmatpush1.msra.mxu0 0.0
        %5783 = vmatprep.subr.mxu0 0.0
        %5784 = vmatpush1.msra.mxu0 0.0
        %5785 = vmatprep.subr.mxu0 0.0
        %5786 = vmatpush1.msra.mxu0 0.0
        %5787 = vmatprep.subr.mxu0 0.0
        %5788 = vmatpush1.msra.mxu0 0.0
        %5789 = vmatprep.subr.mxu0 0.0
        %5790 = vmatpush1.msra.mxu0 0.0
        %5791 = vmatprep.subr.mxu0 0.0
        %5792 = vmatpush1.msra.mxu0 0.0
        %5793 = vmatprep.subr.mxu0 0.0
        %5794 = vmatpush1.msra.mxu0 0.0
        %5795 = vmatprep.subr.mxu0 0.0
        %5796 = vmatpush1.msra.mxu0 0.0
        %5797 = vmatprep.subr.mxu0 0.0
        %5798 = vmatpush1.msra.mxu0 0.0
        %5799 = vmatprep.mubr.f32.mxu0 0.0
        %v5800 = vand.u32 %v5358, 4294901760
        %5801 = vmatmul.mubr.f32.gmra.mrb[0].mxu0 %v5800
        %v5802 = vpop.f32.mrb[0].mxu0
        %v5803 = vadd.f32 %v5731, %v5802
        %v5804 = vpop.f32.mrb[0].mxu0
        %5805 = vdwg.mxu0
        %5806 = vst.msk [vmem:[#allocation2 + $0x8] sm:$0xff] %vm1187, %v5803
        %5807 = vrot.lane.b32.xlu0 %v1180, 120
        %v5808 = vpop.permute.xlu0 %5807
        %5809 = vrot.lane.b32.xlu0 %v1180, 88
        %v5810 = vpop.permute.xlu0 %5809
        %v5811 = vsel %vm1187, %v5808, 0
        %v5813 = vsel %vm1187, %v5810, 0
        %5815 = vmatprep.subr.mxu0 0.0
        %v5816 = vand.u32 %v5813, 4294901760
        %5817 = vmatpush1.xpose.msra.mxu0 %v5816
        %5818 = vmatprep.subr.mxu0 0.0
        %5819 = vmatpush1.xpose.msra.mxu0 0.0
        %5820 = vmatprep.subr.mxu0 0.0
        %5821 = vmatpush1.xpose.msra.mxu0 0.0
        %5822 = vmatprep.subr.mxu0 0.0
        %5823 = vmatpush1.xpose.msra.mxu0 0.0
        %5824 = vmatprep.subr.mxu0 0.0
        %5825 = vmatpush1.xpose.msra.mxu0 0.0
        %5826 = vmatprep.subr.mxu0 0.0
        %5827 = vmatpush1.xpose.msra.mxu0 0.0
        %5828 = vmatprep.subr.mxu0 0.0
        %5829 = vmatpush1.xpose.msra.mxu0 0.0
        %5830 = vmatprep.subr.mxu0 0.0
        %5831 = vmatpush1.xpose.msra.mxu0 0.0
        %5832 = vmatprep.subr.mxu0 0.0
        %5833 = vmatpush1.xpose.msra.mxu0 0.0
        %5834 = vmatprep.subr.mxu0 0.0
        %5835 = vmatpush1.xpose.msra.mxu0 0.0
        %5836 = vmatprep.subr.mxu0 0.0
        %5837 = vmatpush1.xpose.msra.mxu0 0.0
        %5838 = vmatprep.subr.mxu0 0.0
        %5839 = vmatpush1.xpose.msra.mxu0 0.0
        %5840 = vmatprep.subr.mxu0 0.0
        %5841 = vmatpush1.xpose.msra.mxu0 0.0
        %5842 = vmatprep.subr.mxu0 0.0
        %5843 = vmatpush1.xpose.msra.mxu0 0.0
        %5844 = vmatprep.subr.mxu0 0.0
        %5845 = vmatpush1.xpose.msra.mxu0 0.0
        %5846 = vmatprep.subr.mxu0 0.0
        %5847 = vmatpush1.xpose.msra.mxu0 0.0
        %5848 = vmatprep.subr.mxu0 0.0
        %5849 = vmatpush1.xpose.msra.mxu0 0.0
        %5850 = vmatprep.subr.mxu0 0.0
        %5851 = vmatpush1.xpose.msra.mxu0 0.0
        %5852 = vmatprep.subr.mxu0 0.0
        %5853 = vmatpush1.xpose.msra.mxu0 0.0
        %5854 = vmatprep.subr.mxu0 0.0
        %5855 = vmatpush1.xpose.msra.mxu0 0.0
        %5856 = vmatprep.subr.mxu0 0.0
        %5857 = vmatpush1.xpose.msra.mxu0 0.0
        %5858 = vmatprep.subr.mxu0 0.0
        %5859 = vmatpush1.xpose.msra.mxu0 0.0
        %5860 = vmatprep.subr.mxu0 0.0
        %5861 = vmatpush1.xpose.msra.mxu0 0.0
        %5862 = vmatprep.subr.mxu0 0.0
        %5863 = vmatpush1.xpose.msra.mxu0 0.0
        %5864 = vmatprep.subr.mxu0 0.0
        %5865 = vmatpush1.xpose.msra.mxu0 0.0
        %5866 = vmatprep.subr.mxu0 0.0
        %5867 = vmatpush1.xpose.msra.mxu0 0.0
        %5868 = vmatprep.subr.mxu0 0.0
        %5869 = vmatpush1.xpose.msra.mxu0 0.0
        %5870 = vmatprep.subr.mxu0 0.0
        %5871 = vmatpush1.xpose.msra.mxu0 0.0
        %5872 = vmatprep.subr.mxu0 0.0
        %5873 = vmatpush1.xpose.msra.mxu0 0.0
        %5874 = vmatprep.subr.mxu0 0.0
        %5875 = vmatpush1.xpose.msra.mxu0 0.0
        %5876 = vmatprep.subr.mxu0 0.0
        %5877 = vmatpush1.xpose.msra.mxu0 0.0
        %5878 = vmatprep.subr.mxu0 0.0
        %5879 = vmatpush1.xpose.msra.mxu0 0.0
        %5880 = vmatprep.mubr.f32.mxu0 0.0
        %v5881 = vand.u32 %v5811, 4294901760
        %v5882 = vsub.f32 %v5811, %v5881
        %v5883 = vand.u32 %v5882, 4294901760
        %v5884 = vsub.f32 %v5882, %v5883
        %v5885 = vand.u32 %v5884, 4294901760
        %5886 = vmatmul.mubr.f32.gmra.mrb[0].mxu0 %v5885
        %v5887 = vpop.f32.mrb[0].mxu0
        %v5888 = vadd.f32 0.0, %v5887
        %v5889 = vpop.f32.mrb[0].mxu0
        %5890 = vdwg.mxu0
        %5891 = vmatprep.subr.mxu0 0.0
        %v5892 = vand.u32 %v5813, 4294901760
        %v5893 = vsub.f32 %v5813, %v5892
        %v5894 = vand.u32 %v5893, 4294901760
        %v5895 = vsub.f32 %v5893, %v5894
        %v5896 = vand.u32 %v5895, 4294901760
        %5897 = vmatpush1.xpose.msra.mxu0 %v5896
        %5898 = vmatprep.subr.mxu0 0.0
        %5899 = vmatpush1.xpose.msra.mxu0 0.0
        %5900 = vmatprep.subr.mxu0 0.0
        %5901 = vmatpush1.xpose.msra.mxu0 0.0
        %5902 = vmatprep.subr.mxu0 0.0
        %5903 = vmatpush1.xpose.msra.mxu0 0.0
        %5904 = vmatprep.subr.mxu0 0.0
        %5905 = vmatpush1.xpose.msra.mxu0 0.0
        %5906 = vmatprep.subr.mxu0 0.0
        %5907 = vmatpush1.xpose.msra.mxu0 0.0
        %5908 = vmatprep.subr.mxu0 0.0
        %5909 = vmatpush1.xpose.msra.mxu0 0.0
        %5910 = vmatprep.subr.mxu0 0.0
        %5911 = vmatpush1.xpose.msra.mxu0 0.0
        %5912 = vmatprep.subr.mxu0 0.0
        %5913 = vmatpush1.xpose.msra.mxu0 0.0
        %5914 = vmatprep.subr.mxu0 0.0
        %5915 = vmatpush1.xpose.msra.mxu0 0.0
        %5916 = vmatprep.subr.mxu0 0.0
        %5917 = vmatpush1.xpose.msra.mxu0 0.0
        %5918 = vmatprep.subr.mxu0 0.0
        %5919 = vmatpush1.xpose.msra.mxu0 0.0
        %5920 = vmatprep.subr.mxu0 0.0
        %5921 = vmatpush1.xpose.msra.mxu0 0.0
        %5922 = vmatprep.subr.mxu0 0.0
        %5923 = vmatpush1.xpose.msra.mxu0 0.0
        %5924 = vmatprep.subr.mxu0 0.0
        %5925 = vmatpush1.xpose.msra.mxu0 0.0
        %5926 = vmatprep.subr.mxu0 0.0
        %5927 = vmatpush1.xpose.msra.mxu0 0.0
        %5928 = vmatprep.subr.mxu0 0.0
        %5929 = vmatpush1.xpose.msra.mxu0 0.0
        %5930 = vmatprep.subr.mxu0 0.0
        %5931 = vmatpush1.xpose.msra.mxu0 0.0
        %5932 = vmatprep.subr.mxu0 0.0
        %5933 = vmatpush1.xpose.msra.mxu0 0.0
        %5934 = vmatprep.subr.mxu0 0.0
        %5935 = vmatpush1.xpose.msra.mxu0 0.0
        %5936 = vmatprep.subr.mxu0 0.0
        %5937 = vmatpush1.xpose.msra.mxu0 0.0
        %5938 = vmatprep.subr.mxu0 0.0
        %5939 = vmatpush1.xpose.msra.mxu0 0.0
        %5940 = vmatprep.subr.mxu0 0.0
        %5941 = vmatpush1.xpose.msra.mxu0 0.0
        %5942 = vmatprep.subr.mxu0 0.0
        %5943 = vmatpush1.xpose.msra.mxu0 0.0
        %5944 = vmatprep.subr.mxu0 0.0
        %5945 = vmatpush1.xpose.msra.mxu0 0.0
        %5946 = vmatprep.subr.mxu0 0.0
        %5947 = vmatpush1.xpose.msra.mxu0 0.0
        %5948 = vmatprep.subr.mxu0 0.0
        %5949 = vmatpush1.xpose.msra.mxu0 0.0
        %5950 = vmatprep.subr.mxu0 0.0
        %5951 = vmatpush1.xpose.msra.mxu0 0.0
        %5952 = vmatprep.subr.mxu0 0.0
        %5953 = vmatpush1.xpose.msra.mxu0 0.0
        %5954 = vmatprep.subr.mxu0 0.0
        %5955 = vmatpush1.xpose.msra.mxu0 0.0
        %5956 = vmatprep.subr.mxu0 0.0
        %5957 = vmatpush1.xpose.msra.mxu0 0.0
        %5958 = vmatprep.subr.mxu0 0.0
        %5959 = vmatpush1.xpose.msra.mxu0 0.0
        %5960 = vmatprep.mubr.f32.mxu0 0.0
        %v5961 = vand.u32 %v5811, 4294901760
        %5962 = vmatmul.mubr.f32.gmra.mrb[0].mxu0 %v5961
        %v5963 = vpop.f32.mrb[0].mxu0
        %v5964 = vadd.f32 %v5888, %v5963
        %v5965 = vpop.f32.mrb[0].mxu0
        %5966 = vdwg.mxu0
        %5967 = vmatprep.subr.mxu0 0.0
        %v5968 = vand.u32 %v5813, 4294901760
        %v5969 = vsub.f32 %v5813, %v5968
        %5970 = vmatpush1.xpose.msra.mxu0 %v5969
        %5971 = vmatprep.subr.mxu0 0.0
        %5972 = vmatpush1.xpose.msra.mxu0 0.0
        %5973 = vmatprep.subr.mxu0 0.0
        %5974 = vmatpush1.xpose.msra.mxu0 0.0
        %5975 = vmatprep.subr.mxu0 0.0
        %5976 = vmatpush1.xpose.msra.mxu0 0.0
        %5977 = vmatprep.subr.mxu0 0.0
        %5978 = vmatpush1.xpose.msra.mxu0 0.0
        %5979 = vmatprep.subr.mxu0 0.0
        %5980 = vmatpush1.xpose.msra.mxu0 0.0
        %5981 = vmatprep.subr.mxu0 0.0
        %5982 = vmatpush1.xpose.msra.mxu0 0.0
        %5983 = vmatprep.subr.mxu0 0.0
        %5984 = vmatpush1.xpose.msra.mxu0 0.0
        %5985 = vmatprep.subr.mxu0 0.0
        %5986 = vmatpush1.xpose.msra.mxu0 0.0
        %5987 = vmatprep.subr.mxu0 0.0
        %5988 = vmatpush1.xpose.msra.mxu0 0.0
        %5989 = vmatprep.subr.mxu0 0.0
        %5990 = vmatpush1.xpose.msra.mxu0 0.0
        %5991 = vmatprep.subr.mxu0 0.0
        %5992 = vmatpush1.xpose.msra.mxu0 0.0
        %5993 = vmatprep.subr.mxu0 0.0
        %5994 = vmatpush1.xpose.msra.mxu0 0.0
        %5995 = vmatprep.subr.mxu0 0.0
        %5996 = vmatpush1.xpose.msra.mxu0 0.0
        %5997 = vmatprep.subr.mxu0 0.0
        %5998 = vmatpush1.xpose.msra.mxu0 0.0
        %5999 = vmatprep.subr.mxu0 0.0
        %6000 = vmatpush1.xpose.msra.mxu0 0.0
        %6001 = vmatprep.subr.mxu0 0.0
        %6002 = vmatpush1.xpose.msra.mxu0 0.0
        %6003 = vmatprep.subr.mxu0 0.0
        %6004 = vmatpush1.xpose.msra.mxu0 0.0
        %6005 = vmatprep.subr.mxu0 0.0
        %6006 = vmatpush1.xpose.msra.mxu0 0.0
        %6007 = vmatprep.subr.mxu0 0.0
        %6008 = vmatpush1.xpose.msra.mxu0 0.0
        %6009 = vmatprep.subr.mxu0 0.0
        %6010 = vmatpush1.xpose.msra.mxu0 0.0
        %6011 = vmatprep.subr.mxu0 0.0
        %6012 = vmatpush1.xpose.msra.mxu0 0.0
        %6013 = vmatprep.subr.mxu0 0.0
        %6014 = vmatpush1.xpose.msra.mxu0 0.0
        %6015 = vmatprep.subr.mxu0 0.0
        %6016 = vmatpush1.xpose.msra.mxu0 0.0
        %6017 = vmatprep.subr.mxu0 0.0
        %6018 = vmatpush1.xpose.msra.mxu0 0.0
        %6019 = vmatprep.subr.mxu0 0.0
        %6020 = vmatpush1.xpose.msra.mxu0 0.0
        %6021 = vmatprep.subr.mxu0 0.0
        %6022 = vmatpush1.xpose.msra.mxu0 0.0
        %6023 = vmatprep.subr.mxu0 0.0
        %6024 = vmatpush1.xpose.msra.mxu0 0.0
        %6025 = vmatprep.subr.mxu0 0.0
        %6026 = vmatpush1.xpose.msra.mxu0 0.0
        %6027 = vmatprep.subr.mxu0 0.0
        %6028 = vmatpush1.xpose.msra.mxu0 0.0
        %6029 = vmatprep.subr.mxu0 0.0
        %6030 = vmatpush1.xpose.msra.mxu0 0.0
        %6031 = vmatprep.subr.mxu0 0.0
        %6032 = vmatpush1.xpose.msra.mxu0 0.0
        %6033 = vmatprep.mubr.f32.mxu0 0.0
        %v6034 = vand.u32 %v5811, 4294901760
        %v6035 = vsub.f32 %v5811, %v6034
        %6036 = vmatmul.mubr.f32.gmra.mrb[0].mxu0 %v6035
        %v6037 = vpop.f32.mrb[0].mxu0
        %v6038 = vadd.f32 %v5964, %v6037
        %v6039 = vpop.f32.mrb[0].mxu0
        %6040 = vdwg.mxu0
        %6041 = vmatprep.subr.mxu0 0.0
        %v6042 = vand.u32 %v5813, 4294901760
        %6043 = vmatpush1.xpose.msra.mxu0 %v6042
        %6044 = vmatprep.subr.mxu0 0.0
        %6045 = vmatpush1.xpose.msra.mxu0 0.0
        %6046 = vmatprep.subr.mxu0 0.0
        %6047 = vmatpush1.xpose.msra.mxu0 0.0
        %6048 = vmatprep.subr.mxu0 0.0
        %6049 = vmatpush1.xpose.msra.mxu0 0.0
        %6050 = vmatprep.subr.mxu0 0.0
        %6051 = vmatpush1.xpose.msra.mxu0 0.0
        %6052 = vmatprep.subr.mxu0 0.0
        %6053 = vmatpush1.xpose.msra.mxu0 0.0
        %6054 = vmatprep.subr.mxu0 0.0
        %6055 = vmatpush1.xpose.msra.mxu0 0.0
        %6056 = vmatprep.subr.mxu0 0.0
        %6057 = vmatpush1.xpose.msra.mxu0 0.0
        %6058 = vmatprep.subr.mxu0 0.0
        %6059 = vmatpush1.xpose.msra.mxu0 0.0
        %6060 = vmatprep.subr.mxu0 0.0
        %6061 = vmatpush1.xpose.msra.mxu0 0.0
        %6062 = vmatprep.subr.mxu0 0.0
        %6063 = vmatpush1.xpose.msra.mxu0 0.0
        %6064 = vmatprep.subr.mxu0 0.0
        %6065 = vmatpush1.xpose.msra.mxu0 0.0
        %6066 = vmatprep.subr.mxu0 0.0
        %6067 = vmatpush1.xpose.msra.mxu0 0.0
        %6068 = vmatprep.subr.mxu0 0.0
        %6069 = vmatpush1.xpose.msra.mxu0 0.0
        %6070 = vmatprep.subr.mxu0 0.0
        %6071 = vmatpush1.xpose.msra.mxu0 0.0
        %6072 = vmatprep.subr.mxu0 0.0
        %6073 = vmatpush1.xpose.msra.mxu0 0.0
        %6074 = vmatprep.subr.mxu0 0.0
        %6075 = vmatpush1.xpose.msra.mxu0 0.0
        %6076 = vmatprep.subr.mxu0 0.0
        %6077 = vmatpush1.xpose.msra.mxu0 0.0
        %6078 = vmatprep.subr.mxu0 0.0
        %6079 = vmatpush1.xpose.msra.mxu0 0.0
        %6080 = vmatprep.subr.mxu0 0.0
        %6081 = vmatpush1.xpose.msra.mxu0 0.0
        %6082 = vmatprep.subr.mxu0 0.0
        %6083 = vmatpush1.xpose.msra.mxu0 0.0
        %6084 = vmatprep.subr.mxu0 0.0
        %6085 = vmatpush1.xpose.msra.mxu0 0.0
        %6086 = vmatprep.subr.mxu0 0.0
        %6087 = vmatpush1.xpose.msra.mxu0 0.0
        %6088 = vmatprep.subr.mxu0 0.0
        %6089 = vmatpush1.xpose.msra.mxu0 0.0
        %6090 = vmatprep.subr.mxu0 0.0
        %6091 = vmatpush1.xpose.msra.mxu0 0.0
        %6092 = vmatprep.subr.mxu0 0.0
        %6093 = vmatpush1.xpose.msra.mxu0 0.0
        %6094 = vmatprep.subr.mxu0 0.0
        %6095 = vmatpush1.xpose.msra.mxu0 0.0
        %6096 = vmatprep.subr.mxu0 0.0
        %6097 = vmatpush1.xpose.msra.mxu0 0.0
        %6098 = vmatprep.subr.mxu0 0.0
        %6099 = vmatpush1.xpose.msra.mxu0 0.0
        %6100 = vmatprep.subr.mxu0 0.0
        %6101 = vmatpush1.xpose.msra.mxu0 0.0
        %6102 = vmatprep.subr.mxu0 0.0
        %6103 = vmatpush1.xpose.msra.mxu0 0.0
        %6104 = vmatprep.subr.mxu0 0.0
        %6105 = vmatpush1.xpose.msra.mxu0 0.0
        %6106 = vmatprep.mubr.f32.mxu0 0.0
        %v6107 = vand.u32 %v5811, 4294901760
        %v6108 = vsub.f32 %v5811, %v6107
        %v6109 = vand.u32 %v6108, 4294901760
        %6110 = vmatmul.mubr.f32.gmra.mrb[0].mxu0 %v6109
        %v6111 = vpop.f32.mrb[0].mxu0
        %v6112 = vadd.f32 %v6038, %v6111
        %v6113 = vpop.f32.mrb[0].mxu0
        %6114 = vdwg.mxu0
        %6115 = vmatprep.subr.mxu0 0.0
        %v6116 = vand.u32 %v5813, 4294901760
        %v6117 = vsub.f32 %v5813, %v6116
        %v6118 = vand.u32 %v6117, 4294901760
        %6119 = vmatpush1.xpose.msra.mxu0 %v6118
        %6120 = vmatprep.subr.mxu0 0.0
        %6121 = vmatpush1.xpose.msra.mxu0 0.0
        %6122 = vmatprep.subr.mxu0 0.0
        %6123 = vmatpush1.xpose.msra.mxu0 0.0
        %6124 = vmatprep.subr.mxu0 0.0
        %6125 = vmatpush1.xpose.msra.mxu0 0.0
        %6126 = vmatprep.subr.mxu0 0.0
        %6127 = vmatpush1.xpose.msra.mxu0 0.0
        %6128 = vmatprep.subr.mxu0 0.0
        %6129 = vmatpush1.xpose.msra.mxu0 0.0
        %6130 = vmatprep.subr.mxu0 0.0
        %6131 = vmatpush1.xpose.msra.mxu0 0.0
        %6132 = vmatprep.subr.mxu0 0.0
        %6133 = vmatpush1.xpose.msra.mxu0 0.0
        %6134 = vmatprep.subr.mxu0 0.0
        %6135 = vmatpush1.xpose.msra.mxu0 0.0
        %6136 = vmatprep.subr.mxu0 0.0
        %6137 = vmatpush1.xpose.msra.mxu0 0.0
        %6138 = vmatprep.subr.mxu0 0.0
        %6139 = vmatpush1.xpose.msra.mxu0 0.0
        %6140 = vmatprep.subr.mxu0 0.0
        %6141 = vmatpush1.xpose.msra.mxu0 0.0
        %6142 = vmatprep.subr.mxu0 0.0
        %6143 = vmatpush1.xpose.msra.mxu0 0.0
        %6144 = vmatprep.subr.mxu0 0.0
        %6145 = vmatpush1.xpose.msra.mxu0 0.0
        %6146 = vmatprep.subr.mxu0 0.0
        %6147 = vmatpush1.xpose.msra.mxu0 0.0
        %6148 = vmatprep.subr.mxu0 0.0
        %6149 = vmatpush1.xpose.msra.mxu0 0.0
        %6150 = vmatprep.subr.mxu0 0.0
        %6151 = vmatpush1.xpose.msra.mxu0 0.0
        %6152 = vmatprep.subr.mxu0 0.0
        %6153 = vmatpush1.xpose.msra.mxu0 0.0
        %6154 = vmatprep.subr.mxu0 0.0
        %6155 = vmatpush1.xpose.msra.mxu0 0.0
        %6156 = vmatprep.subr.mxu0 0.0
        %6157 = vmatpush1.xpose.msra.mxu0 0.0
        %6158 = vmatprep.subr.mxu0 0.0
        %6159 = vmatpush1.xpose.msra.mxu0 0.0
        %6160 = vmatprep.subr.mxu0 0.0
        %6161 = vmatpush1.xpose.msra.mxu0 0.0
        %6162 = vmatprep.subr.mxu0 0.0
        %6163 = vmatpush1.xpose.msra.mxu0 0.0
        %6164 = vmatprep.subr.mxu0 0.0
        %6165 = vmatpush1.xpose.msra.mxu0 0.0
        %6166 = vmatprep.subr.mxu0 0.0
        %6167 = vmatpush1.xpose.msra.mxu0 0.0
        %6168 = vmatprep.subr.mxu0 0.0
        %6169 = vmatpush1.xpose.msra.mxu0 0.0
        %6170 = vmatprep.subr.mxu0 0.0
        %6171 = vmatpush1.xpose.msra.mxu0 0.0
        %6172 = vmatprep.subr.mxu0 0.0
        %6173 = vmatpush1.xpose.msra.mxu0 0.0
        %6174 = vmatprep.subr.mxu0 0.0
        %6175 = vmatpush1.xpose.msra.mxu0 0.0
        %6176 = vmatprep.subr.mxu0 0.0
        %6177 = vmatpush1.xpose.msra.mxu0 0.0
        %6178 = vmatprep.subr.mxu0 0.0
        %6179 = vmatpush1.xpose.msra.mxu0 0.0
        %6180 = vmatprep.subr.mxu0 0.0
        %6181 = vmatpush1.xpose.msra.mxu0 0.0
        %6182 = vmatprep.mubr.f32.mxu0 0.0
        %v6183 = vand.u32 %v5811, 4294901760
        %6184 = vmatmul.mubr.f32.gmra.mrb[0].mxu0 %v6183
        %v6185 = vpop.f32.mrb[0].mxu0
        %v6186 = vadd.f32 %v6112, %v6185
        %v6187 = vpop.f32.mrb[0].mxu0
        %6188 = vdwg.mxu0
        %6189 = vmatprep.subr.mxu0 0.0
        %v6190 = vand.u32 %v5813, 4294901760
        %6191 = vmatpush1.xpose.msra.mxu0 %v6190
        %6192 = vmatprep.subr.mxu0 0.0
        %6193 = vmatpush1.xpose.msra.mxu0 0.0
        %6194 = vmatprep.subr.mxu0 0.0
        %6195 = vmatpush1.xpose.msra.mxu0 0.0
        %6196 = vmatprep.subr.mxu0 0.0
        %6197 = vmatpush1.xpose.msra.mxu0 0.0
        %6198 = vmatprep.subr.mxu0 0.0
        %6199 = vmatpush1.xpose.msra.mxu0 0.0
        %6200 = vmatprep.subr.mxu0 0.0
        %6201 = vmatpush1.xpose.msra.mxu0 0.0
        %6202 = vmatprep.subr.mxu0 0.0
        %6203 = vmatpush1.xpose.msra.mxu0 0.0
        %6204 = vmatprep.subr.mxu0 0.0
        %6205 = vmatpush1.xpose.msra.mxu0 0.0
        %6206 = vmatprep.subr.mxu0 0.0
        %6207 = vmatpush1.xpose.msra.mxu0 0.0
        %6208 = vmatprep.subr.mxu0 0.0
        %6209 = vmatpush1.xpose.msra.mxu0 0.0
        %6210 = vmatprep.subr.mxu0 0.0
        %6211 = vmatpush1.xpose.msra.mxu0 0.0
        %6212 = vmatprep.subr.mxu0 0.0
        %6213 = vmatpush1.xpose.msra.mxu0 0.0
        %6214 = vmatprep.subr.mxu0 0.0
        %6215 = vmatpush1.xpose.msra.mxu0 0.0
        %6216 = vmatprep.subr.mxu0 0.0
        %6217 = vmatpush1.xpose.msra.mxu0 0.0
        %6218 = vmatprep.subr.mxu0 0.0
        %6219 = vmatpush1.xpose.msra.mxu0 0.0
        %6220 = vmatprep.subr.mxu0 0.0
        %6221 = vmatpush1.xpose.msra.mxu0 0.0
        %6222 = vmatprep.subr.mxu0 0.0
        %6223 = vmatpush1.xpose.msra.mxu0 0.0
        %6224 = vmatprep.subr.mxu0 0.0
        %6225 = vmatpush1.xpose.msra.mxu0 0.0
        %6226 = vmatprep.subr.mxu0 0.0
        %6227 = vmatpush1.xpose.msra.mxu0 0.0
        %6228 = vmatprep.subr.mxu0 0.0
        %6229 = vmatpush1.xpose.msra.mxu0 0.0
        %6230 = vmatprep.subr.mxu0 0.0
        %6231 = vmatpush1.xpose.msra.mxu0 0.0
        %6232 = vmatprep.subr.mxu0 0.0
        %6233 = vmatpush1.xpose.msra.mxu0 0.0
        %6234 = vmatprep.subr.mxu0 0.0
        %6235 = vmatpush1.xpose.msra.mxu0 0.0
        %6236 = vmatprep.subr.mxu0 0.0
        %6237 = vmatpush1.xpose.msra.mxu0 0.0
        %6238 = vmatprep.subr.mxu0 0.0
        %6239 = vmatpush1.xpose.msra.mxu0 0.0
        %6240 = vmatprep.subr.mxu0 0.0
        %6241 = vmatpush1.xpose.msra.mxu0 0.0
        %6242 = vmatprep.subr.mxu0 0.0
        %6243 = vmatpush1.xpose.msra.mxu0 0.0
        %6244 = vmatprep.subr.mxu0 0.0
        %6245 = vmatpush1.xpose.msra.mxu0 0.0
        %6246 = vmatprep.subr.mxu0 0.0
        %6247 = vmatpush1.xpose.msra.mxu0 0.0
        %6248 = vmatprep.subr.mxu0 0.0
        %6249 = vmatpush1.xpose.msra.mxu0 0.0
        %6250 = vmatprep.subr.mxu0 0.0
        %6251 = vmatpush1.xpose.msra.mxu0 0.0
        %6252 = vmatprep.subr.mxu0 0.0
        %6253 = vmatpush1.xpose.msra.mxu0 0.0
        %6254 = vmatprep.mubr.f32.mxu0 0.0
        %v6255 = vand.u32 %v5811, 4294901760
        %6256 = vmatmul.mubr.f32.gmra.mrb[0].mxu0 %v6255
        %v6257 = vpop.f32.mrb[0].mxu0
        %v6258 = vadd.f32 %v6186, %v6257
        %v6259 = vpop.f32.mrb[0].mxu0
        %6260 = vdwg.mxu0
        %v6261 = vmul.f32 %v6258, 0.35355338
        %v6262 = vadd.f32 %v6261, %v5341
        %v6263 = vsel %vm1187, %v6262, -inf
        %6264 = vmax.xlane.f32.xlu0 %v6263
        %v6265 = vpop.xlane.xlu0 %6264
        %v6266 = vsub.f32 %v6262, %v6265
        %v6267 = vmul.f32 %v6266, 1.442695
        %v6268 = vpow.pop %v6267
        %v6269 = vsel %vm1187, %v6268, 0.0
        %6270 = vadd.xlane.f32.xlu0 %v6269
        %v6271 = vpop.xlane.xlu0 %6270
        %v6272 = vrcp.pop %v6271
        %v6273 = vmul.f32 %v6268, %v6272
        %6274 = vrot.lane.b32.xlu0 %v1180, 56
        %v6275 = vpop.permute.xlu0 %6274
        %v6278 = vsel %vm1187, %v6273, 0
        %6280 = vmatprep.subr.mxu0 0.0
        %v6281 = vand.u32 %v6275, 4294901760
        %6282 = vmatpush1.msra.mxu0 %v6281
        %6283 = vmatprep.subr.mxu0 0.0
        %6284 = vmatpush1.msra.mxu0 0.0
        %6285 = vmatprep.subr.mxu0 0.0
        %6286 = vmatpush1.msra.mxu0 0.0
        %6287 = vmatprep.subr.mxu0 0.0
        %6288 = vmatpush1.msra.mxu0 0.0
        %6289 = vmatprep.subr.mxu0 0.0
        %6290 = vmatpush1.msra.mxu0 0.0
        %6291 = vmatprep.subr.mxu0 0.0
        %6292 = vmatpush1.msra.mxu0 0.0
        %6293 = vmatprep.subr.mxu0 0.0
        %6294 = vmatpush1.msra.mxu0 0.0
        %6295 = vmatprep.subr.mxu0 0.0
        %6296 = vmatpush1.msra.mxu0 0.0
        %6297 = vmatprep.subr.mxu0 0.0
        %6298 = vmatpush1.msra.mxu0 0.0
        %6299 = vmatprep.subr.mxu0 0.0
        %6300 = vmatpush1.msra.mxu0 0.0
        %6301 = vmatprep.subr.mxu0 0.0
        %6302 = vmatpush1.msra.mxu0 0.0
        %6303 = vmatprep.subr.mxu0 0.0
        %6304 = vmatpush1.msra.mxu0 0.0
        %6305 = vmatprep.subr.mxu0 0.0
        %6306 = vmatpush1.msra.mxu0 0.0
        %6307 = vmatprep.subr.mxu0 0.0
        %6308 = vmatpush1.msra.mxu0 0.0
        %6309 = vmatprep.subr.mxu0 0.0
        %6310 = vmatpush1.msra.mxu0 0.0
        %6311 = vmatprep.subr.mxu0 0.0
        %6312 = vmatpush1.msra.mxu0 0.0
        %6313 = vmatprep.subr.mxu0 0.0
        %6314 = vmatpush1.msra.mxu0 0.0
        %6315 = vmatprep.subr.mxu0 0.0
        %6316 = vmatpush1.msra.mxu0 0.0
        %6317 = vmatprep.subr.mxu0 0.0
        %6318 = vmatpush1.msra.mxu0 0.0
        %6319 = vmatprep.subr.mxu0 0.0
        %6320 = vmatpush1.msra.mxu0 0.0
        %6321 = vmatprep.subr.mxu0 0.0
        %6322 = vmatpush1.msra.mxu0 0.0
        %6323 = vmatprep.subr.mxu0 0.0
        %6324 = vmatpush1.msra.mxu0 0.0
        %6325 = vmatprep.subr.mxu0 0.0
        %6326 = vmatpush1.msra.mxu0 0.0
        %6327 = vmatprep.subr.mxu0 0.0
        %6328 = vmatpush1.msra.mxu0 0.0
        %6329 = vmatprep.subr.mxu0 0.0
        %6330 = vmatpush1.msra.mxu0 0.0
        %6331 = vmatprep.subr.mxu0 0.0
        %6332 = vmatpush1.msra.mxu0 0.0
        %6333 = vmatprep.subr.mxu0 0.0
        %6334 = vmatpush1.msra.mxu0 0.0
        %6335 = vmatprep.subr.mxu0 0.0
        %6336 = vmatpush1.msra.mxu0 0.0
        %6337 = vmatprep.subr.mxu0 0.0
        %6338 = vmatpush1.msra.mxu0 0.0
        %6339 = vmatprep.subr.mxu0 0.0
        %6340 = vmatpush1.msra.mxu0 0.0
        %6341 = vmatprep.subr.mxu0 0.0
        %6342 = vmatpush1.msra.mxu0 0.0
        %6343 = vmatprep.subr.mxu0 0.0
        %6344 = vmatpush1.msra.mxu0 0.0
        %6345 = vmatprep.mubr.f32.mxu0 0.0
        %v6346 = vand.u32 %v6278, 4294901760
        %v6347 = vsub.f32 %v6278, %v6346
        %v6348 = vand.u32 %v6347, 4294901760
        %v6349 = vsub.f32 %v6347, %v6348
        %v6350 = vand.u32 %v6349, 4294901760
        %6351 = vmatmul.mubr.f32.gmra.mrb[0].mxu0 %v6350
        %v6352 = vpop.f32.mrb[0].mxu0
        %v6353 = vadd.f32 0.0, %v6352
        %v6354 = vpop.f32.mrb[0].mxu0
        %6355 = vdwg.mxu0
        %6356 = vmatprep.subr.mxu0 0.0
        %v6357 = vand.u32 %v6275, 4294901760
        %v6358 = vsub.f32 %v6275, %v6357
        %v6359 = vand.u32 %v6358, 4294901760
        %v6360 = vsub.f32 %v6358, %v6359
        %v6361 = vand.u32 %v6360, 4294901760
        %6362 = vmatpush1.msra.mxu0 %v6361
        %6363 = vmatprep.subr.mxu0 0.0
        %6364 = vmatpush1.msra.mxu0 0.0
        %6365 = vmatprep.subr.mxu0 0.0
        %6366 = vmatpush1.msra.mxu0 0.0
        %6367 = vmatprep.subr.mxu0 0.0
        %6368 = vmatpush1.msra.mxu0 0.0
        %6369 = vmatprep.subr.mxu0 0.0
        %6370 = vmatpush1.msra.mxu0 0.0
        %6371 = vmatprep.subr.mxu0 0.0
        %6372 = vmatpush1.msra.mxu0 0.0
        %6373 = vmatprep.subr.mxu0 0.0
        %6374 = vmatpush1.msra.mxu0 0.0
        %6375 = vmatprep.subr.mxu0 0.0
        %6376 = vmatpush1.msra.mxu0 0.0
        %6377 = vmatprep.subr.mxu0 0.0
        %6378 = vmatpush1.msra.mxu0 0.0
        %6379 = vmatprep.subr.mxu0 0.0
        %6380 = vmatpush1.msra.mxu0 0.0
        %6381 = vmatprep.subr.mxu0 0.0
        %6382 = vmatpush1.msra.mxu0 0.0
        %6383 = vmatprep.subr.mxu0 0.0
        %6384 = vmatpush1.msra.mxu0 0.0
        %6385 = vmatprep.subr.mxu0 0.0
        %6386 = vmatpush1.msra.mxu0 0.0
        %6387 = vmatprep.subr.mxu0 0.0
        %6388 = vmatpush1.msra.mxu0 0.0
        %6389 = vmatprep.subr.mxu0 0.0
        %6390 = vmatpush1.msra.mxu0 0.0
        %6391 = vmatprep.subr.mxu0 0.0
        %6392 = vmatpush1.msra.mxu0 0.0
        %6393 = vmatprep.subr.mxu0 0.0
        %6394 = vmatpush1.msra.mxu0 0.0
        %6395 = vmatprep.subr.mxu0 0.0
        %6396 = vmatpush1.msra.mxu0 0.0
        %6397 = vmatprep.subr.mxu0 0.0
        %6398 = vmatpush1.msra.mxu0 0.0
        %6399 = vmatprep.subr.mxu0 0.0
        %6400 = vmatpush1.msra.mxu0 0.0
        %6401 = vmatprep.subr.mxu0 0.0
        %6402 = vmatpush1.msra.mxu0 0.0
        %6403 = vmatprep.subr.mxu0 0.0
        %6404 = vmatpush1.msra.mxu0 0.0
        %6405 = vmatprep.subr.mxu0 0.0
        %6406 = vmatpush1.msra.mxu0 0.0
        %6407 = vmatprep.subr.mxu0 0.0
        %6408 = vmatpush1.msra.mxu0 0.0
        %6409 = vmatprep.subr.mxu0 0.0
        %6410 = vmatpush1.msra.mxu0 0.0
        %6411 = vmatprep.subr.mxu0 0.0
        %6412 = vmatpush1.msra.mxu0 0.0
        %6413 = vmatprep.subr.mxu0 0.0
        %6414 = vmatpush1.msra.mxu0 0.0
        %6415 = vmatprep.subr.mxu0 0.0
        %6416 = vmatpush1.msra.mxu0 0.0
        %6417 = vmatprep.subr.mxu0 0.0
        %6418 = vmatpush1.msra.mxu0 0.0
        %6419 = vmatprep.subr.mxu0 0.0
        %6420 = vmatpush1.msra.mxu0 0.0
        %6421 = vmatprep.subr.mxu0 0.0
        %6422 = vmatpush1.msra.mxu0 0.0
        %6423 = vmatprep.subr.mxu0 0.0
        %6424 = vmatpush1.msra.mxu0 0.0
        %6425 = vmatprep.mubr.f32.mxu0 0.0
        %v6426 = vand.u32 %v6278, 4294901760
        %6427 = vmatmul.mubr.f32.gmra.mrb[0].mxu0 %v6426
        %v6428 = vpop.f32.mrb[0].mxu0
        %v6429 = vadd.f32 %v6353, %v6428
        %v6430 = vpop.f32.mrb[0].mxu0
        %6431 = vdwg.mxu0
        %6432 = vmatprep.subr.mxu0 0.0
        %v6433 = vand.u32 %v6275, 4294901760
        %v6434 = vsub.f32 %v6275, %v6433
        %6435 = vmatpush1.msra.mxu0 %v6434
        %6436 = vmatprep.subr.mxu0 0.0
        %6437 = vmatpush1.msra.mxu0 0.0
        %6438 = vmatprep.subr.mxu0 0.0
        %6439 = vmatpush1.msra.mxu0 0.0
        %6440 = vmatprep.subr.mxu0 0.0
        %6441 = vmatpush1.msra.mxu0 0.0
        %6442 = vmatprep.subr.mxu0 0.0
        %6443 = vmatpush1.msra.mxu0 0.0
        %6444 = vmatprep.subr.mxu0 0.0
        %6445 = vmatpush1.msra.mxu0 0.0
        %6446 = vmatprep.subr.mxu0 0.0
        %6447 = vmatpush1.msra.mxu0 0.0
        %6448 = vmatprep.subr.mxu0 0.0
        %6449 = vmatpush1.msra.mxu0 0.0
        %6450 = vmatprep.subr.mxu0 0.0
        %6451 = vmatpush1.msra.mxu0 0.0
        %6452 = vmatprep.subr.mxu0 0.0
        %6453 = vmatpush1.msra.mxu0 0.0
        %6454 = vmatprep.subr.mxu0 0.0
        %6455 = vmatpush1.msra.mxu0 0.0
        %6456 = vmatprep.subr.mxu0 0.0
        %6457 = vmatpush1.msra.mxu0 0.0
        %6458 = vmatprep.subr.mxu0 0.0
        %6459 = vmatpush1.msra.mxu0 0.0
        %6460 = vmatprep.subr.mxu0 0.0
        %6461 = vmatpush1.msra.mxu0 0.0
        %6462 = vmatprep.subr.mxu0 0.0
        %6463 = vmatpush1.msra.mxu0 0.0
        %6464 = vmatprep.subr.mxu0 0.0
        %6465 = vmatpush1.msra.mxu0 0.0
        %6466 = vmatprep.subr.mxu0 0.0
        %6467 = vmatpush1.msra.mxu0 0.0
        %6468 = vmatprep.subr.mxu0 0.0
        %6469 = vmatpush1.msra.mxu0 0.0
        %6470 = vmatprep.subr.mxu0 0.0
        %6471 = vmatpush1.msra.mxu0 0.0
        %6472 = vmatprep.subr.mxu0 0.0
        %6473 = vmatpush1.msra.mxu0 0.0
        %6474 = vmatprep.subr.mxu0 0.0
        %6475 = vmatpush1.msra.mxu0 0.0
        %6476 = vmatprep.subr.mxu0 0.0
        %6477 = vmatpush1.msra.mxu0 0.0
        %6478 = vmatprep.subr.mxu0 0.0
        %6479 = vmatpush1.msra.mxu0 0.0
        %6480 = vmatprep.subr.mxu0 0.0
        %6481 = vmatpush1.msra.mxu0 0.0
        %6482 = vmatprep.subr.mxu0 0.0
        %6483 = vmatpush1.msra.mxu0 0.0
        %6484 = vmatprep.subr.mxu0 0.0
        %6485 = vmatpush1.msra.mxu0 0.0
        %6486 = vmatprep.subr.mxu0 0.0
        %6487 = vmatpush1.msra.mxu0 0.0
        %6488 = vmatprep.subr.mxu0 0.0
        %6489 = vmatpush1.msra.mxu0 0.0
        %6490 = vmatprep.subr.mxu0 0.0
        %6491 = vmatpush1.msra.mxu0 0.0
        %6492 = vmatprep.subr.mxu0 0.0
        %6493 = vmatpush1.msra.mxu0 0.0
        %6494 = vmatprep.subr.mxu0 0.0
        %6495 = vmatpush1.msra.mxu0 0.0
        %6496 = vmatprep.subr.mxu0 0.0
        %6497 = vmatpush1.msra.mxu0 0.0
        %6498 = vmatprep.mubr.f32.mxu0 0.0
        %v6499 = vand.u32 %v6278, 4294901760
        %v6500 = vsub.f32 %v6278, %v6499
        %6501 = vmatmul.mubr.f32.gmra.mrb[0].mxu0 %v6500
        %v6502 = vpop.f32.mrb[0].mxu0
        %v6503 = vadd.f32 %v6429, %v6502
        %v6504 = vpop.f32.mrb[0].mxu0
        %6505 = vdwg.mxu0
        %6506 = vmatprep.subr.mxu0 0.0
        %v6507 = vand.u32 %v6275, 4294901760
        %6508 = vmatpush1.msra.mxu0 %v6507
        %6509 = vmatprep.subr.mxu0 0.0
        %6510 = vmatpush1.msra.mxu0 0.0
        %6511 = vmatprep.subr.mxu0 0.0
        %6512 = vmatpush1.msra.mxu0 0.0
        %6513 = vmatprep.subr.mxu0 0.0
        %6514 = vmatpush1.msra.mxu0 0.0
        %6515 = vmatprep.subr.mxu0 0.0
        %6516 = vmatpush1.msra.mxu0 0.0
        %6517 = vmatprep.subr.mxu0 0.0
        %6518 = vmatpush1.msra.mxu0 0.0
        %6519 = vmatprep.subr.mxu0 0.0
        %6520 = vmatpush1.msra.mxu0 0.0
        %6521 = vmatprep.subr.mxu0 0.0
        %6522 = vmatpush1.msra.mxu0 0.0
        %6523 = vmatprep.subr.mxu0 0.0
        %6524 = vmatpush1.msra.mxu0 0.0
        %6525 = vmatprep.subr.mxu0 0.0
        %6526 = vmatpush1.msra.mxu0 0.0
        %6527 = vmatprep.subr.mxu0 0.0
        %6528 = vmatpush1.msra.mxu0 0.0
        %6529 = vmatprep.subr.mxu0 0.0
        %6530 = vmatpush1.msra.mxu0 0.0
        %6531 = vmatprep.subr.mxu0 0.0
        %6532 = vmatpush1.msra.mxu0 0.0
        %6533 = vmatprep.subr.mxu0 0.0
        %6534 = vmatpush1.msra.mxu0 0.0
        %6535 = vmatprep.subr.mxu0 0.0
        %6536 = vmatpush1.msra.mxu0 0.0
        %6537 = vmatprep.subr.mxu0 0.0
        %6538 = vmatpush1.msra.mxu0 0.0
        %6539 = vmatprep.subr.mxu0 0.0
        %6540 = vmatpush1.msra.mxu0 0.0
        %6541 = vmatprep.subr.mxu0 0.0
        %6542 = vmatpush1.msra.mxu0 0.0
        %6543 = vmatprep.subr.mxu0 0.0
        %6544 = vmatpush1.msra.mxu0 0.0
        %6545 = vmatprep.subr.mxu0 0.0
        %6546 = vmatpush1.msra.mxu0 0.0
        %6547 = vmatprep.subr.mxu0 0.0
        %6548 = vmatpush1.msra.mxu0 0.0
        %6549 = vmatprep.subr.mxu0 0.0
        %6550 = vmatpush1.msra.mxu0 0.0
        %6551 = vmatprep.subr.mxu0 0.0
        %6552 = vmatpush1.msra.mxu0 0.0
        %6553 = vmatprep.subr.mxu0 0.0
        %6554 = vmatpush1.msra.mxu0 0.0
        %6555 = vmatprep.subr.mxu0 0.0
        %6556 = vmatpush1.msra.mxu0 0.0
        %6557 = vmatprep.subr.mxu0 0.0
        %6558 = vmatpush1.msra.mxu0 0.0
        %6559 = vmatprep.subr.mxu0 0.0
        %6560 = vmatpush1.msra.mxu0 0.0
        %6561 = vmatprep.subr.mxu0 0.0
        %6562 = vmatpush1.msra.mxu0 0.0
        %6563 = vmatprep.subr.mxu0 0.0
        %6564 = vmatpush1.msra.mxu0 0.0
        %6565 = vmatprep.subr.mxu0 0.0
        %6566 = vmatpush1.msra.mxu0 0.0
        %6567 = vmatprep.subr.mxu0 0.0
        %6568 = vmatpush1.msra.mxu0 0.0
        %6569 = vmatprep.subr.mxu0 0.0
        %6570 = vmatpush1.msra.mxu0 0.0
        %6571 = vmatprep.mubr.f32.mxu0 0.0
        %v6572 = vand.u32 %v6278, 4294901760
        %v6573 = vsub.f32 %v6278, %v6572
        %v6574 = vand.u32 %v6573, 4294901760
        %6575 = vmatmul.mubr.f32.gmra.mrb[0].mxu0 %v6574
        %v6576 = vpop.f32.mrb[0].mxu0
        %v6577 = vadd.f32 %v6503, %v6576
        %v6578 = vpop.f32.mrb[0].mxu0
        %6579 = vdwg.mxu0
        %6580 = vmatprep.subr.mxu0 0.0
        %v6581 = vand.u32 %v6275, 4294901760
        %v6582 = vsub.f32 %v6275, %v6581
        %v6583 = vand.u32 %v6582, 4294901760
        %6584 = vmatpush1.msra.mxu0 %v6583
        %6585 = vmatprep.subr.mxu0 0.0
        %6586 = vmatpush1.msra.mxu0 0.0
        %6587 = vmatprep.subr.mxu0 0.0
        %6588 = vmatpush1.msra.mxu0 0.0
        %6589 = vmatprep.subr.mxu0 0.0
        %6590 = vmatpush1.msra.mxu0 0.0
        %6591 = vmatprep.subr.mxu0 0.0
        %6592 = vmatpush1.msra.mxu0 0.0
        %6593 = vmatprep.subr.mxu0 0.0
        %6594 = vmatpush1.msra.mxu0 0.0
        %6595 = vmatprep.subr.mxu0 0.0
        %6596 = vmatpush1.msra.mxu0 0.0
        %6597 = vmatprep.subr.mxu0 0.0
        %6598 = vmatpush1.msra.mxu0 0.0
        %6599 = vmatprep.subr.mxu0 0.0
        %6600 = vmatpush1.msra.mxu0 0.0
        %6601 = vmatprep.subr.mxu0 0.0
        %6602 = vmatpush1.msra.mxu0 0.0
        %6603 = vmatprep.subr.mxu0 0.0
        %6604 = vmatpush1.msra.mxu0 0.0
        %6605 = vmatprep.subr.mxu0 0.0
        %6606 = vmatpush1.msra.mxu0 0.0
        %6607 = vmatprep.subr.mxu0 0.0
        %6608 = vmatpush1.msra.mxu0 0.0
        %6609 = vmatprep.subr.mxu0 0.0
        %6610 = vmatpush1.msra.mxu0 0.0
        %6611 = vmatprep.subr.mxu0 0.0
        %6612 = vmatpush1.msra.mxu0 0.0
        %6613 = vmatprep.subr.mxu0 0.0
        %6614 = vmatpush1.msra.mxu0 0.0
        %6615 = vmatprep.subr.mxu0 0.0
        %6616 = vmatpush1.msra.mxu0 0.0
        %6617 = vmatprep.subr.mxu0 0.0
        %6618 = vmatpush1.msra.mxu0 0.0
        %6619 = vmatprep.subr.mxu0 0.0
        %6620 = vmatpush1.msra.mxu0 0.0
        %6621 = vmatprep.subr.mxu0 0.0
        %6622 = vmatpush1.msra.mxu0 0.0
        %6623 = vmatprep.subr.mxu0 0.0
        %6624 = vmatpush1.msra.mxu0 0.0
        %6625 = vmatprep.subr.mxu0 0.0
        %6626 = vmatpush1.msra.mxu0 0.0
        %6627 = vmatprep.subr.mxu0 0.0
        %6628 = vmatpush1.msra.mxu0 0.0
        %6629 = vmatprep.subr.mxu0 0.0
        %6630 = vmatpush1.msra.mxu0 0.0
        %6631 = vmatprep.subr.mxu0 0.0
        %6632 = vmatpush1.msra.mxu0 0.0
        %6633 = vmatprep.subr.mxu0 0.0
        %6634 = vmatpush1.msra.mxu0 0.0
        %6635 = vmatprep.subr.mxu0 0.0
        %6636 = vmatpush1.msra.mxu0 0.0
        %6637 = vmatprep.subr.mxu0 0.0
        %6638 = vmatpush1.msra.mxu0 0.0
        %6639 = vmatprep.subr.mxu0 0.0
        %6640 = vmatpush1.msra.mxu0 0.0
        %6641 = vmatprep.subr.mxu0 0.0
        %6642 = vmatpush1.msra.mxu0 0.0
        %6643 = vmatprep.subr.mxu0 0.0
        %6644 = vmatpush1.msra.mxu0 0.0
        %6645 = vmatprep.subr.mxu0 0.0
        %6646 = vmatpush1.msra.mxu0 0.0
        %6647 = vmatprep.mubr.f32.mxu0 0.0
        %v6648 = vand.u32 %v6278, 4294901760
        %6649 = vmatmul.mubr.f32.gmra.mrb[0].mxu0 %v6648
        %v6650 = vpop.f32.mrb[0].mxu0
        %v6651 = vadd.f32 %v6577, %v6650
        %v6652 = vpop.f32.mrb[0].mxu0
        %6653 = vdwg.mxu0
        %6654 = vmatprep.subr.mxu0 0.0
        %v6655 = vand.u32 %v6275, 4294901760
        %6656 = vmatpush1.msra.mxu0 %v6655
        %6657 = vmatprep.subr.mxu0 0.0
        %6658 = vmatpush1.msra.mxu0 0.0
        %6659 = vmatprep.subr.mxu0 0.0
        %6660 = vmatpush1.msra.mxu0 0.0
        %6661 = vmatprep.subr.mxu0 0.0
        %6662 = vmatpush1.msra.mxu0 0.0
        %6663 = vmatprep.subr.mxu0 0.0
        %6664 = vmatpush1.msra.mxu0 0.0
        %6665 = vmatprep.subr.mxu0 0.0
        %6666 = vmatpush1.msra.mxu0 0.0
        %6667 = vmatprep.subr.mxu0 0.0
        %6668 = vmatpush1.msra.mxu0 0.0
        %6669 = vmatprep.subr.mxu0 0.0
        %6670 = vmatpush1.msra.mxu0 0.0
        %6671 = vmatprep.subr.mxu0 0.0
        %6672 = vmatpush1.msra.mxu0 0.0
        %6673 = vmatprep.subr.mxu0 0.0
        %6674 = vmatpush1.msra.mxu0 0.0
        %6675 = vmatprep.subr.mxu0 0.0
        %6676 = vmatpush1.msra.mxu0 0.0
        %6677 = vmatprep.subr.mxu0 0.0
        %6678 = vmatpush1.msra.mxu0 0.0
        %6679 = vmatprep.subr.mxu0 0.0
        %6680 = vmatpush1.msra.mxu0 0.0
        %6681 = vmatprep.subr.mxu0 0.0
        %6682 = vmatpush1.msra.mxu0 0.0
        %6683 = vmatprep.subr.mxu0 0.0
        %6684 = vmatpush1.msra.mxu0 0.0
        %6685 = vmatprep.subr.mxu0 0.0
        %6686 = vmatpush1.msra.mxu0 0.0
        %6687 = vmatprep.subr.mxu0 0.0
        %6688 = vmatpush1.msra.mxu0 0.0
        %6689 = vmatprep.subr.mxu0 0.0
        %6690 = vmatpush1.msra.mxu0 0.0
        %6691 = vmatprep.subr.mxu0 0.0
        %6692 = vmatpush1.msra.mxu0 0.0
        %6693 = vmatprep.subr.mxu0 0.0
        %6694 = vmatpush1.msra.mxu0 0.0
        %6695 = vmatprep.subr.mxu0 0.0
        %6696 = vmatpush1.msra.mxu0 0.0
        %6697 = vmatprep.subr.mxu0 0.0
        %6698 = vmatpush1.msra.mxu0 0.0
        %6699 = vmatprep.subr.mxu0 0.0
        %6700 = vmatpush1.msra.mxu0 0.0
        %6701 = vmatprep.subr.mxu0 0.0
        %6702 = vmatpush1.msra.mxu0 0.0
        %6703 = vmatprep.subr.mxu0 0.0
        %6704 = vmatpush1.msra.mxu0 0.0
        %6705 = vmatprep.subr.mxu0 0.0
        %6706 = vmatpush1.msra.mxu0 0.0
        %6707 = vmatprep.subr.mxu0 0.0
        %6708 = vmatpush1.msra.mxu0 0.0
        %6709 = vmatprep.subr.mxu0 0.0
        %6710 = vmatpush1.msra.mxu0 0.0
        %6711 = vmatprep.subr.mxu0 0.0
        %6712 = vmatpush1.msra.mxu0 0.0
        %6713 = vmatprep.subr.mxu0 0.0
        %6714 = vmatpush1.msra.mxu0 0.0
        %6715 = vmatprep.subr.mxu0 0.0
        %6716 = vmatpush1.msra.mxu0 0.0
        %6717 = vmatprep.subr.mxu0 0.0
        %6718 = vmatpush1.msra.mxu0 0.0
        %6719 = vmatprep.mubr.f32.mxu0 0.0
        %v6720 = vand.u32 %v6278, 4294901760
        %6721 = vmatmul.mubr.f32.gmra.mrb[0].mxu0 %v6720
        %v6722 = vpop.f32.mrb[0].mxu0
        %v6723 = vadd.f32 %v6651, %v6722
        %v6724 = vpop.f32.mrb[0].mxu0
        %6725 = vdwg.mxu0
        %6727 = vrot.lane.b32.xlu0 %v6723, 8
        %v6728 = vpop.permute.xlu0 %6727
        %6730 = vst.msk [vmem:[#allocation2 + $0x8] sm:$0xff] %vm3031, %v6728
        %6731 = vrot.lane.b32.xlu0 %v1180, 112
        %v6732 = vpop.permute.xlu0 %6731
        %6733 = vrot.lane.b32.xlu0 %v1180, 80
        %v6734 = vpop.permute.xlu0 %6733
        %v6735 = vsel %vm1187, %v6732, 0
        %v6737 = vsel %vm1187, %v6734, 0
        %6739 = vmatprep.subr.mxu0 0.0
        %v6740 = vand.u32 %v6737, 4294901760
        %6741 = vmatpush1.xpose.msra.mxu0 %v6740
        %6742 = vmatprep.subr.mxu0 0.0
        %6743 = vmatpush1.xpose.msra.mxu0 0.0
        %6744 = vmatprep.subr.mxu0 0.0
        %6745 = vmatpush1.xpose.msra.mxu0 0.0
        %6746 = vmatprep.subr.mxu0 0.0
        %6747 = vmatpush1.xpose.msra.mxu0 0.0
        %6748 = vmatprep.subr.mxu0 0.0
        %6749 = vmatpush1.xpose.msra.mxu0 0.0
        %6750 = vmatprep.subr.mxu0 0.0
        %6751 = vmatpush1.xpose.msra.mxu0 0.0
        %6752 = vmatprep.subr.mxu0 0.0
        %6753 = vmatpush1.xpose.msra.mxu0 0.0
        %6754 = vmatprep.subr.mxu0 0.0
        %6755 = vmatpush1.xpose.msra.mxu0 0.0
        %6756 = vmatprep.subr.mxu0 0.0
        %6757 = vmatpush1.xpose.msra.mxu0 0.0
        %6758 = vmatprep.subr.mxu0 0.0
        %6759 = vmatpush1.xpose.msra.mxu0 0.0
        %6760 = vmatprep.subr.mxu0 0.0
        %6761 = vmatpush1.xpose.msra.mxu0 0.0
        %6762 = vmatprep.subr.mxu0 0.0
        %6763 = vmatpush1.xpose.msra.mxu0 0.0
        %6764 = vmatprep.subr.mxu0 0.0
        %6765 = vmatpush1.xpose.msra.mxu0 0.0
        %6766 = vmatprep.subr.mxu0 0.0
        %6767 = vmatpush1.xpose.msra.mxu0 0.0
        %6768 = vmatprep.subr.mxu0 0.0
        %6769 = vmatpush1.xpose.msra.mxu0 0.0
        %6770 = vmatprep.subr.mxu0 0.0
        %6771 = vmatpush1.xpose.msra.mxu0 0.0
        %6772 = vmatprep.subr.mxu0 0.0
        %6773 = vmatpush1.xpose.msra.mxu0 0.0
        %6774 = vmatprep.subr.mxu0 0.0
        %6775 = vmatpush1.xpose.msra.mxu0 0.0
        %6776 = vmatprep.subr.mxu0 0.0
        %6777 = vmatpush1.xpose.msra.mxu0 0.0
        %6778 = vmatprep.subr.mxu0 0.0
        %6779 = vmatpush1.xpose.msra.mxu0 0.0
        %6780 = vmatprep.subr.mxu0 0.0
        %6781 = vmatpush1.xpose.msra.mxu0 0.0
        %6782 = vmatprep.subr.mxu0 0.0
        %6783 = vmatpush1.xpose.msra.mxu0 0.0
        %6784 = vmatprep.subr.mxu0 0.0
        %6785 = vmatpush1.xpose.msra.mxu0 0.0
        %6786 = vmatprep.subr.mxu0 0.0
        %6787 = vmatpush1.xpose.msra.mxu0 0.0
        %6788 = vmatprep.subr.mxu0 0.0
        %6789 = vmatpush1.xpose.msra.mxu0 0.0
        %6790 = vmatprep.subr.mxu0 0.0
        %6791 = vmatpush1.xpose.msra.mxu0 0.0
        %6792 = vmatprep.subr.mxu0 0.0
        %6793 = vmatpush1.xpose.msra.mxu0 0.0
        %6794 = vmatprep.subr.mxu0 0.0
        %6795 = vmatpush1.xpose.msra.mxu0 0.0
        %6796 = vmatprep.subr.mxu0 0.0
        %6797 = vmatpush1.xpose.msra.mxu0 0.0
        %6798 = vmatprep.subr.mxu0 0.0
        %6799 = vmatpush1.xpose.msra.mxu0 0.0
        %6800 = vmatprep.subr.mxu0 0.0
        %6801 = vmatpush1.xpose.msra.mxu0 0.0
        %6802 = vmatprep.subr.mxu0 0.0
        %6803 = vmatpush1.xpose.msra.mxu0 0.0
        %6804 = vmatprep.mubr.f32.mxu0 0.0
        %v6805 = vand.u32 %v6735, 4294901760
        %v6806 = vsub.f32 %v6735, %v6805
        %v6807 = vand.u32 %v6806, 4294901760
        %v6808 = vsub.f32 %v6806, %v6807
        %v6809 = vand.u32 %v6808, 4294901760
        %6810 = vmatmul.mubr.f32.gmra.mrb[0].mxu0 %v6809
        %v6811 = vpop.f32.mrb[0].mxu0
        %v6812 = vadd.f32 0.0, %v6811
        %v6813 = vpop.f32.mrb[0].mxu0
        %6814 = vdwg.mxu0
        %6815 = vmatprep.subr.mxu0 0.0
        %v6816 = vand.u32 %v6737, 4294901760
        %v6817 = vsub.f32 %v6737, %v6816
        %v6818 = vand.u32 %v6817, 4294901760
        %v6819 = vsub.f32 %v6817, %v6818
        %v6820 = vand.u32 %v6819, 4294901760
        %6821 = vmatpush1.xpose.msra.mxu0 %v6820
        %6822 = vmatprep.subr.mxu0 0.0
        %6823 = vmatpush1.xpose.msra.mxu0 0.0
        %6824 = vmatprep.subr.mxu0 0.0
        %6825 = vmatpush1.xpose.msra.mxu0 0.0
        %6826 = vmatprep.subr.mxu0 0.0
        %6827 = vmatpush1.xpose.msra.mxu0 0.0
        %6828 = vmatprep.subr.mxu0 0.0
        %6829 = vmatpush1.xpose.msra.mxu0 0.0
        %6830 = vmatprep.subr.mxu0 0.0
        %6831 = vmatpush1.xpose.msra.mxu0 0.0
        %6832 = vmatprep.subr.mxu0 0.0
        %6833 = vmatpush1.xpose.msra.mxu0 0.0
        %6834 = vmatprep.subr.mxu0 0.0
        %6835 = vmatpush1.xpose.msra.mxu0 0.0
        %6836 = vmatprep.subr.mxu0 0.0
        %6837 = vmatpush1.xpose.msra.mxu0 0.0
        %6838 = vmatprep.subr.mxu0 0.0
        %6839 = vmatpush1.xpose.msra.mxu0 0.0
        %6840 = vmatprep.subr.mxu0 0.0
        %6841 = vmatpush1.xpose.msra.mxu0 0.0
        %6842 = vmatprep.subr.mxu0 0.0
        %6843 = vmatpush1.xpose.msra.mxu0 0.0
        %6844 = vmatprep.subr.mxu0 0.0
        %6845 = vmatpush1.xpose.msra.mxu0 0.0
        %6846 = vmatprep.subr.mxu0 0.0
        %6847 = vmatpush1.xpose.msra.mxu0 0.0
        %6848 = vmatprep.subr.mxu0 0.0
        %6849 = vmatpush1.xpose.msra.mxu0 0.0
        %6850 = vmatprep.subr.mxu0 0.0
        %6851 = vmatpush1.xpose.msra.mxu0 0.0
        %6852 = vmatprep.subr.mxu0 0.0
        %6853 = vmatpush1.xpose.msra.mxu0 0.0
        %6854 = vmatprep.subr.mxu0 0.0
        %6855 = vmatpush1.xpose.msra.mxu0 0.0
        %6856 = vmatprep.subr.mxu0 0.0
        %6857 = vmatpush1.xpose.msra.mxu0 0.0
        %6858 = vmatprep.subr.mxu0 0.0
        %6859 = vmatpush1.xpose.msra.mxu0 0.0
        %6860 = vmatprep.subr.mxu0 0.0
        %6861 = vmatpush1.xpose.msra.mxu0 0.0
        %6862 = vmatprep.subr.mxu0 0.0
        %6863 = vmatpush1.xpose.msra.mxu0 0.0
        %6864 = vmatprep.subr.mxu0 0.0
        %6865 = vmatpush1.xpose.msra.mxu0 0.0
        %6866 = vmatprep.subr.mxu0 0.0
        %6867 = vmatpush1.xpose.msra.mxu0 0.0
        %6868 = vmatprep.subr.mxu0 0.0
        %6869 = vmatpush1.xpose.msra.mxu0 0.0
        %6870 = vmatprep.subr.mxu0 0.0
        %6871 = vmatpush1.xpose.msra.mxu0 0.0
        %6872 = vmatprep.subr.mxu0 0.0
        %6873 = vmatpush1.xpose.msra.mxu0 0.0
        %6874 = vmatprep.subr.mxu0 0.0
        %6875 = vmatpush1.xpose.msra.mxu0 0.0
        %6876 = vmatprep.subr.mxu0 0.0
        %6877 = vmatpush1.xpose.msra.mxu0 0.0
        %6878 = vmatprep.subr.mxu0 0.0
        %6879 = vmatpush1.xpose.msra.mxu0 0.0
        %6880 = vmatprep.subr.mxu0 0.0
        %6881 = vmatpush1.xpose.msra.mxu0 0.0
        %6882 = vmatprep.subr.mxu0 0.0
        %6883 = vmatpush1.xpose.msra.mxu0 0.0
        %6884 = vmatprep.mubr.f32.mxu0 0.0
        %v6885 = vand.u32 %v6735, 4294901760
        %6886 = vmatmul.mubr.f32.gmra.mrb[0].mxu0 %v6885
        %v6887 = vpop.f32.mrb[0].mxu0
        %v6888 = vadd.f32 %v6812, %v6887
        %v6889 = vpop.f32.mrb[0].mxu0
        %6890 = vdwg.mxu0
        %6891 = vmatprep.subr.mxu0 0.0
        %v6892 = vand.u32 %v6737, 4294901760
        %v6893 = vsub.f32 %v6737, %v6892
        %6894 = vmatpush1.xpose.msra.mxu0 %v6893
        %6895 = vmatprep.subr.mxu0 0.0
        %6896 = vmatpush1.xpose.msra.mxu0 0.0
        %6897 = vmatprep.subr.mxu0 0.0
        %6898 = vmatpush1.xpose.msra.mxu0 0.0
        %6899 = vmatprep.subr.mxu0 0.0
        %6900 = vmatpush1.xpose.msra.mxu0 0.0
        %6901 = vmatprep.subr.mxu0 0.0
        %6902 = vmatpush1.xpose.msra.mxu0 0.0
        %6903 = vmatprep.subr.mxu0 0.0
        %6904 = vmatpush1.xpose.msra.mxu0 0.0
        %6905 = vmatprep.subr.mxu0 0.0
        %6906 = vmatpush1.xpose.msra.mxu0 0.0
        %6907 = vmatprep.subr.mxu0 0.0
        %6908 = vmatpush1.xpose.msra.mxu0 0.0
        %6909 = vmatprep.subr.mxu0 0.0
        %6910 = vmatpush1.xpose.msra.mxu0 0.0
        %6911 = vmatprep.subr.mxu0 0.0
        %6912 = vmatpush1.xpose.msra.mxu0 0.0
        %6913 = vmatprep.subr.mxu0 0.0
        %6914 = vmatpush1.xpose.msra.mxu0 0.0
        %6915 = vmatprep.subr.mxu0 0.0
        %6916 = vmatpush1.xpose.msra.mxu0 0.0
        %6917 = vmatprep.subr.mxu0 0.0
        %6918 = vmatpush1.xpose.msra.mxu0 0.0
        %6919 = vmatprep.subr.mxu0 0.0
        %6920 = vmatpush1.xpose.msra.mxu0 0.0
        %6921 = vmatprep.subr.mxu0 0.0
        %6922 = vmatpush1.xpose.msra.mxu0 0.0
        %6923 = vmatprep.subr.mxu0 0.0
        %6924 = vmatpush1.xpose.msra.mxu0 0.0
        %6925 = vmatprep.subr.mxu0 0.0
        %6926 = vmatpush1.xpose.msra.mxu0 0.0
        %6927 = vmatprep.subr.mxu0 0.0
        %6928 = vmatpush1.xpose.msra.mxu0 0.0
        %6929 = vmatprep.subr.mxu0 0.0
        %6930 = vmatpush1.xpose.msra.mxu0 0.0
        %6931 = vmatprep.subr.mxu0 0.0
        %6932 = vmatpush1.xpose.msra.mxu0 0.0
        %6933 = vmatprep.subr.mxu0 0.0
        %6934 = vmatpush1.xpose.msra.mxu0 0.0
        %6935 = vmatprep.subr.mxu0 0.0
        %6936 = vmatpush1.xpose.msra.mxu0 0.0
        %6937 = vmatprep.subr.mxu0 0.0
        %6938 = vmatpush1.xpose.msra.mxu0 0.0
        %6939 = vmatprep.subr.mxu0 0.0
        %6940 = vmatpush1.xpose.msra.mxu0 0.0
        %6941 = vmatprep.subr.mxu0 0.0
        %6942 = vmatpush1.xpose.msra.mxu0 0.0
        %6943 = vmatprep.subr.mxu0 0.0
        %6944 = vmatpush1.xpose.msra.mxu0 0.0
        %6945 = vmatprep.subr.mxu0 0.0
        %6946 = vmatpush1.xpose.msra.mxu0 0.0
        %6947 = vmatprep.subr.mxu0 0.0
        %6948 = vmatpush1.xpose.msra.mxu0 0.0
        %6949 = vmatprep.subr.mxu0 0.0
        %6950 = vmatpush1.xpose.msra.mxu0 0.0
        %6951 = vmatprep.subr.mxu0 0.0
        %6952 = vmatpush1.xpose.msra.mxu0 0.0
        %6953 = vmatprep.subr.mxu0 0.0
        %6954 = vmatpush1.xpose.msra.mxu0 0.0
        %6955 = vmatprep.subr.mxu0 0.0
        %6956 = vmatpush1.xpose.msra.mxu0 0.0
        %6957 = vmatprep.mubr.f32.mxu0 0.0
        %v6958 = vand.u32 %v6735, 4294901760
        %v6959 = vsub.f32 %v6735, %v6958
        %6960 = vmatmul.mubr.f32.gmra.mrb[0].mxu0 %v6959
        %v6961 = vpop.f32.mrb[0].mxu0
        %v6962 = vadd.f32 %v6888, %v6961
        %v6963 = vpop.f32.mrb[0].mxu0
        %6964 = vdwg.mxu0
        %6965 = vmatprep.subr.mxu0 0.0
        %v6966 = vand.u32 %v6737, 4294901760
        %6967 = vmatpush1.xpose.msra.mxu0 %v6966
        %6968 = vmatprep.subr.mxu0 0.0
        %6969 = vmatpush1.xpose.msra.mxu0 0.0
        %6970 = vmatprep.subr.mxu0 0.0
        %6971 = vmatpush1.xpose.msra.mxu0 0.0
        %6972 = vmatprep.subr.mxu0 0.0
        %6973 = vmatpush1.xpose.msra.mxu0 0.0
        %6974 = vmatprep.subr.mxu0 0.0
        %6975 = vmatpush1.xpose.msra.mxu0 0.0
        %6976 = vmatprep.subr.mxu0 0.0
        %6977 = vmatpush1.xpose.msra.mxu0 0.0
        %6978 = vmatprep.subr.mxu0 0.0
        %6979 = vmatpush1.xpose.msra.mxu0 0.0
        %6980 = vmatprep.subr.mxu0 0.0
        %6981 = vmatpush1.xpose.msra.mxu0 0.0
        %6982 = vmatprep.subr.mxu0 0.0
        %6983 = vmatpush1.xpose.msra.mxu0 0.0
        %6984 = vmatprep.subr.mxu0 0.0
        %6985 = vmatpush1.xpose.msra.mxu0 0.0
        %6986 = vmatprep.subr.mxu0 0.0
        %6987 = vmatpush1.xpose.msra.mxu0 0.0
        %6988 = vmatprep.subr.mxu0 0.0
        %6989 = vmatpush1.xpose.msra.mxu0 0.0
        %6990 = vmatprep.subr.mxu0 0.0
        %6991 = vmatpush1.xpose.msra.mxu0 0.0
        %6992 = vmatprep.subr.mxu0 0.0
        %6993 = vmatpush1.xpose.msra.mxu0 0.0
        %6994 = vmatprep.subr.mxu0 0.0
        %6995 = vmatpush1.xpose.msra.mxu0 0.0
        %6996 = vmatprep.subr.mxu0 0.0
        %6997 = vmatpush1.xpose.msra.mxu0 0.0
        %6998 = vmatprep.subr.mxu0 0.0
        %6999 = vmatpush1.xpose.msra.mxu0 0.0
        %7000 = vmatprep.subr.mxu0 0.0
        %7001 = vmatpush1.xpose.msra.mxu0 0.0
        %7002 = vmatprep.subr.mxu0 0.0
        %7003 = vmatpush1.xpose.msra.mxu0 0.0
        %7004 = vmatprep.subr.mxu0 0.0
        %7005 = vmatpush1.xpose.msra.mxu0 0.0
        %7006 = vmatprep.subr.mxu0 0.0
        %7007 = vmatpush1.xpose.msra.mxu0 0.0
        %7008 = vmatprep.subr.mxu0 0.0
        %7009 = vmatpush1.xpose.msra.mxu0 0.0
        %7010 = vmatprep.subr.mxu0 0.0
        %7011 = vmatpush1.xpose.msra.mxu0 0.0
        %7012 = vmatprep.subr.mxu0 0.0
        %7013 = vmatpush1.xpose.msra.mxu0 0.0
        %7014 = vmatprep.subr.mxu0 0.0
        %7015 = vmatpush1.xpose.msra.mxu0 0.0
        %7016 = vmatprep.subr.mxu0 0.0
        %7017 = vmatpush1.xpose.msra.mxu0 0.0
        %7018 = vmatprep.subr.mxu0 0.0
        %7019 = vmatpush1.xpose.msra.mxu0 0.0
        %7020 = vmatprep.subr.mxu0 0.0
        %7021 = vmatpush1.xpose.msra.mxu0 0.0
        %7022 = vmatprep.subr.mxu0 0.0
        %7023 = vmatpush1.xpose.msra.mxu0 0.0
        %7024 = vmatprep.subr.mxu0 0.0
        %7025 = vmatpush1.xpose.msra.mxu0 0.0
        %7026 = vmatprep.subr.mxu0 0.0
        %7027 = vmatpush1.xpose.msra.mxu0 0.0
        %7028 = vmatprep.subr.mxu0 0.0
        %7029 = vmatpush1.xpose.msra.mxu0 0.0
        %7030 = vmatprep.mubr.f32.mxu0 0.0
        %v7031 = vand.u32 %v6735, 4294901760
        %v7032 = vsub.f32 %v6735, %v7031
        %v7033 = vand.u32 %v7032, 4294901760
        %7034 = vmatmul.mubr.f32.gmra.mrb[0].mxu0 %v7033
        %v7035 = vpop.f32.mrb[0].mxu0
        %v7036 = vadd.f32 %v6962, %v7035
        %v7037 = vpop.f32.mrb[0].mxu0
        %7038 = vdwg.mxu0
        %7039 = vmatprep.subr.mxu0 0.0
        %v7040 = vand.u32 %v6737, 4294901760
        %v7041 = vsub.f32 %v6737, %v7040
        %v7042 = vand.u32 %v7041, 4294901760
        %7043 = vmatpush1.xpose.msra.mxu0 %v7042
        %7044 = vmatprep.subr.mxu0 0.0
        %7045 = vmatpush1.xpose.msra.mxu0 0.0
        %7046 = vmatprep.subr.mxu0 0.0
        %7047 = vmatpush1.xpose.msra.mxu0 0.0
        %7048 = vmatprep.subr.mxu0 0.0
        %7049 = vmatpush1.xpose.msra.mxu0 0.0
        %7050 = vmatprep.subr.mxu0 0.0
        %7051 = vmatpush1.xpose.msra.mxu0 0.0
        %7052 = vmatprep.subr.mxu0 0.0
        %7053 = vmatpush1.xpose.msra.mxu0 0.0
        %7054 = vmatprep.subr.mxu0 0.0
        %7055 = vmatpush1.xpose.msra.mxu0 0.0
        %7056 = vmatprep.subr.mxu0 0.0
        %7057 = vmatpush1.xpose.msra.mxu0 0.0
        %7058 = vmatprep.subr.mxu0 0.0
        %7059 = vmatpush1.xpose.msra.mxu0 0.0
        %7060 = vmatprep.subr.mxu0 0.0
        %7061 = vmatpush1.xpose.msra.mxu0 0.0
        %7062 = vmatprep.subr.mxu0 0.0
        %7063 = vmatpush1.xpose.msra.mxu0 0.0
        %7064 = vmatprep.subr.mxu0 0.0
        %7065 = vmatpush1.xpose.msra.mxu0 0.0
        %7066 = vmatprep.subr.mxu0 0.0
        %7067 = vmatpush1.xpose.msra.mxu0 0.0
        %7068 = vmatprep.subr.mxu0 0.0
        %7069 = vmatpush1.xpose.msra.mxu0 0.0
        %7070 = vmatprep.subr.mxu0 0.0
        %7071 = vmatpush1.xpose.msra.mxu0 0.0
        %7072 = vmatprep.subr.mxu0 0.0
        %7073 = vmatpush1.xpose.msra.mxu0 0.0
        %7074 = vmatprep.subr.mxu0 0.0
        %7075 = vmatpush1.xpose.msra.mxu0 0.0
        %7076 = vmatprep.subr.mxu0 0.0
        %7077 = vmatpush1.xpose.msra.mxu0 0.0
        %7078 = vmatprep.subr.mxu0 0.0
        %7079 = vmatpush1.xpose.msra.mxu0 0.0
        %7080 = vmatprep.subr.mxu0 0.0
        %7081 = vmatpush1.xpose.msra.mxu0 0.0
        %7082 = vmatprep.subr.mxu0 0.0
        %7083 = vmatpush1.xpose.msra.mxu0 0.0
        %7084 = vmatprep.subr.mxu0 0.0
        %7085 = vmatpush1.xpose.msra.mxu0 0.0
        %7086 = vmatprep.subr.mxu0 0.0
        %7087 = vmatpush1.xpose.msra.mxu0 0.0
        %7088 = vmatprep.subr.mxu0 0.0
        %7089 = vmatpush1.xpose.msra.mxu0 0.0
        %7090 = vmatprep.subr.mxu0 0.0
        %7091 = vmatpush1.xpose.msra.mxu0 0.0
        %7092 = vmatprep.subr.mxu0 0.0
        %7093 = vmatpush1.xpose.msra.mxu0 0.0
        %7094 = vmatprep.subr.mxu0 0.0
        %7095 = vmatpush1.xpose.msra.mxu0 0.0
        %7096 = vmatprep.subr.mxu0 0.0
        %7097 = vmatpush1.xpose.msra.mxu0 0.0
        %7098 = vmatprep.subr.mxu0 0.0
        %7099 = vmatpush1.xpose.msra.mxu0 0.0
        %7100 = vmatprep.subr.mxu0 0.0
        %7101 = vmatpush1.xpose.msra.mxu0 0.0
        %7102 = vmatprep.subr.mxu0 0.0
        %7103 = vmatpush1.xpose.msra.mxu0 0.0
        %7104 = vmatprep.subr.mxu0 0.0
        %7105 = vmatpush1.xpose.msra.mxu0 0.0
        %7106 = vmatprep.mubr.f32.mxu0 0.0
        %v7107 = vand.u32 %v6735, 4294901760
        %7108 = vmatmul.mubr.f32.gmra.mrb[0].mxu0 %v7107
        %v7109 = vpop.f32.mrb[0].mxu0
        %v7110 = vadd.f32 %v7036, %v7109
        %v7111 = vpop.f32.mrb[0].mxu0
        %7112 = vdwg.mxu0
        %7113 = vmatprep.subr.mxu0 0.0
        %v7114 = vand.u32 %v6737, 4294901760
        %7115 = vmatpush1.xpose.msra.mxu0 %v7114
        %7116 = vmatprep.subr.mxu0 0.0
        %7117 = vmatpush1.xpose.msra.mxu0 0.0
        %7118 = vmatprep.subr.mxu0 0.0
        %7119 = vmatpush1.xpose.msra.mxu0 0.0
        %7120 = vmatprep.subr.mxu0 0.0
        %7121 = vmatpush1.xpose.msra.mxu0 0.0
        %7122 = vmatprep.subr.mxu0 0.0
        %7123 = vmatpush1.xpose.msra.mxu0 0.0
        %7124 = vmatprep.subr.mxu0 0.0
        %7125 = vmatpush1.xpose.msra.mxu0 0.0
        %7126 = vmatprep.subr.mxu0 0.0
        %7127 = vmatpush1.xpose.msra.mxu0 0.0
        %7128 = vmatprep.subr.mxu0 0.0
        %7129 = vmatpush1.xpose.msra.mxu0 0.0
        %7130 = vmatprep.subr.mxu0 0.0
        %7131 = vmatpush1.xpose.msra.mxu0 0.0
        %7132 = vmatprep.subr.mxu0 0.0
        %7133 = vmatpush1.xpose.msra.mxu0 0.0
        %7134 = vmatprep.subr.mxu0 0.0
        %7135 = vmatpush1.xpose.msra.mxu0 0.0
        %7136 = vmatprep.subr.mxu0 0.0
        %7137 = vmatpush1.xpose.msra.mxu0 0.0
        %7138 = vmatprep.subr.mxu0 0.0
        %7139 = vmatpush1.xpose.msra.mxu0 0.0
        %7140 = vmatprep.subr.mxu0 0.0
        %7141 = vmatpush1.xpose.msra.mxu0 0.0
        %7142 = vmatprep.subr.mxu0 0.0
        %7143 = vmatpush1.xpose.msra.mxu0 0.0
        %7144 = vmatprep.subr.mxu0 0.0
        %7145 = vmatpush1.xpose.msra.mxu0 0.0
        %7146 = vmatprep.subr.mxu0 0.0
        %7147 = vmatpush1.xpose.msra.mxu0 0.0
        %7148 = vmatprep.subr.mxu0 0.0
        %7149 = vmatpush1.xpose.msra.mxu0 0.0
        %7150 = vmatprep.subr.mxu0 0.0
        %7151 = vmatpush1.xpose.msra.mxu0 0.0
        %7152 = vmatprep.subr.mxu0 0.0
        %7153 = vmatpush1.xpose.msra.mxu0 0.0
        %7154 = vmatprep.subr.mxu0 0.0
        %7155 = vmatpush1.xpose.msra.mxu0 0.0
        %7156 = vmatprep.subr.mxu0 0.0
        %7157 = vmatpush1.xpose.msra.mxu0 0.0
        %7158 = vmatprep.subr.mxu0 0.0
        %7159 = vmatpush1.xpose.msra.mxu0 0.0
        %7160 = vmatprep.subr.mxu0 0.0
        %7161 = vmatpush1.xpose.msra.mxu0 0.0
        %7162 = vmatprep.subr.mxu0 0.0
        %7163 = vmatpush1.xpose.msra.mxu0 0.0
        %7164 = vmatprep.subr.mxu0 0.0
        %7165 = vmatpush1.xpose.msra.mxu0 0.0
        %7166 = vmatprep.subr.mxu0 0.0
        %7167 = vmatpush1.xpose.msra.mxu0 0.0
        %7168 = vmatprep.subr.mxu0 0.0
        %7169 = vmatpush1.xpose.msra.mxu0 0.0
        %7170 = vmatprep.subr.mxu0 0.0
        %7171 = vmatpush1.xpose.msra.mxu0 0.0
        %7172 = vmatprep.subr.mxu0 0.0
        %7173 = vmatpush1.xpose.msra.mxu0 0.0
        %7174 = vmatprep.subr.mxu0 0.0
        %7175 = vmatpush1.xpose.msra.mxu0 0.0
        %7176 = vmatprep.subr.mxu0 0.0
        %7177 = vmatpush1.xpose.msra.mxu0 0.0
        %7178 = vmatprep.mubr.f32.mxu0 0.0
        %v7179 = vand.u32 %v6735, 4294901760
        %7180 = vmatmul.mubr.f32.gmra.mrb[0].mxu0 %v7179
        %v7181 = vpop.f32.mrb[0].mxu0
        %v7182 = vadd.f32 %v7110, %v7181
        %v7183 = vpop.f32.mrb[0].mxu0
        %7184 = vdwg.mxu0
        %v7185 = vmul.f32 %v7182, 0.35355338
        %v7186 = vadd.f32 %v7185, %v5341
        %v7187 = vsel %vm1187, %v7186, -inf
        %7188 = vmax.xlane.f32.xlu0 %v7187
        %v7189 = vpop.xlane.xlu0 %7188
        %v7190 = vsub.f32 %v7186, %v7189
        %v7191 = vmul.f32 %v7190, 1.442695
        %v7192 = vpow.pop %v7191
        %v7193 = vsel %vm1187, %v7192, 0.0
        %7194 = vadd.xlane.f32.xlu0 %v7193
        %v7195 = vpop.xlane.xlu0 %7194
        %v7196 = vrcp.pop %v7195
        %v7197 = vmul.f32 %v7192, %v7196
        %7198 = vrot.lane.b32.xlu0 %v1180, 48
        %v7199 = vpop.permute.xlu0 %7198
        %v7202 = vsel %vm1187, %v7197, 0
        %7204 = vmatprep.subr.mxu0 0.0
        %v7205 = vand.u32 %v7199, 4294901760
        %7206 = vmatpush1.msra.mxu0 %v7205
        %7207 = vmatprep.subr.mxu0 0.0
        %7208 = vmatpush1.msra.mxu0 0.0
        %7209 = vmatprep.subr.mxu0 0.0
        %7210 = vmatpush1.msra.mxu0 0.0
        %7211 = vmatprep.subr.mxu0 0.0
        %7212 = vmatpush1.msra.mxu0 0.0
        %7213 = vmatprep.subr.mxu0 0.0
        %7214 = vmatpush1.msra.mxu0 0.0
        %7215 = vmatprep.subr.mxu0 0.0
        %7216 = vmatpush1.msra.mxu0 0.0
        %7217 = vmatprep.subr.mxu0 0.0
        %7218 = vmatpush1.msra.mxu0 0.0
        %7219 = vmatprep.subr.mxu0 0.0
        %7220 = vmatpush1.msra.mxu0 0.0
        %7221 = vmatprep.subr.mxu0 0.0
        %7222 = vmatpush1.msra.mxu0 0.0
        %7223 = vmatprep.subr.mxu0 0.0
        %7224 = vmatpush1.msra.mxu0 0.0
        %7225 = vmatprep.subr.mxu0 0.0
        %7226 = vmatpush1.msra.mxu0 0.0
        %7227 = vmatprep.subr.mxu0 0.0
        %7228 = vmatpush1.msra.mxu0 0.0
        %7229 = vmatprep.subr.mxu0 0.0
        %7230 = vmatpush1.msra.mxu0 0.0
        %7231 = vmatprep.subr.mxu0 0.0
        %7232 = vmatpush1.msra.mxu0 0.0
        %7233 = vmatprep.subr.mxu0 0.0
        %7234 = vmatpush1.msra.mxu0 0.0
        %7235 = vmatprep.subr.mxu0 0.0
        %7236 = vmatpush1.msra.mxu0 0.0
        %7237 = vmatprep.subr.mxu0 0.0
        %7238 = vmatpush1.msra.mxu0 0.0
        %7239 = vmatprep.subr.mxu0 0.0
        %7240 = vmatpush1.msra.mxu0 0.0
        %7241 = vmatprep.subr.mxu0 0.0
        %7242 = vmatpush1.msra.mxu0 0.0
        %7243 = vmatprep.subr.mxu0 0.0
        %7244 = vmatpush1.msra.mxu0 0.0
        %7245 = vmatprep.subr.mxu0 0.0
        %7246 = vmatpush1.msra.mxu0 0.0
        %7247 = vmatprep.subr.mxu0 0.0
        %7248 = vmatpush1.msra.mxu0 0.0
        %7249 = vmatprep.subr.mxu0 0.0
        %7250 = vmatpush1.msra.mxu0 0.0
        %7251 = vmatprep.subr.mxu0 0.0
        %7252 = vmatpush1.msra.mxu0 0.0
        %7253 = vmatprep.subr.mxu0 0.0
        %7254 = vmatpush1.msra.mxu0 0.0
        %7255 = vmatprep.subr.mxu0 0.0
        %7256 = vmatpush1.msra.mxu0 0.0
        %7257 = vmatprep.subr.mxu0 0.0
        %7258 = vmatpush1.msra.mxu0 0.0
        %7259 = vmatprep.subr.mxu0 0.0
        %7260 = vmatpush1.msra.mxu0 0.0
        %7261 = vmatprep.subr.mxu0 0.0
        %7262 = vmatpush1.msra.mxu0 0.0
        %7263 = vmatprep.subr.mxu0 0.0
        %7264 = vmatpush1.msra.mxu0 0.0
        %7265 = vmatprep.subr.mxu0 0.0
        %7266 = vmatpush1.msra.mxu0 0.0
        %7267 = vmatprep.subr.mxu0 0.0
        %7268 = vmatpush1.msra.mxu0 0.0
        %7269 = vmatprep.mubr.f32.mxu0 0.0
        %v7270 = vand.u32 %v7202, 4294901760
        %v7271 = vsub.f32 %v7202, %v7270
        %v7272 = vand.u32 %v7271, 4294901760
        %v7273 = vsub.f32 %v7271, %v7272
        %v7274 = vand.u32 %v7273, 4294901760
        %7275 = vmatmul.mubr.f32.gmra.mrb[0].mxu0 %v7274
        %v7276 = vpop.f32.mrb[0].mxu0
        %v7277 = vadd.f32 0.0, %v7276
        %v7278 = vpop.f32.mrb[0].mxu0
        %7279 = vdwg.mxu0
        %7280 = vmatprep.subr.mxu0 0.0
        %v7281 = vand.u32 %v7199, 4294901760
        %v7282 = vsub.f32 %v7199, %v7281
        %v7283 = vand.u32 %v7282, 4294901760
        %v7284 = vsub.f32 %v7282, %v7283
        %v7285 = vand.u32 %v7284, 4294901760
        %7286 = vmatpush1.msra.mxu0 %v7285
        %7287 = vmatprep.subr.mxu0 0.0
        %7288 = vmatpush1.msra.mxu0 0.0
        %7289 = vmatprep.subr.mxu0 0.0
        %7290 = vmatpush1.msra.mxu0 0.0
        %7291 = vmatprep.subr.mxu0 0.0
        %7292 = vmatpush1.msra.mxu0 0.0
        %7293 = vmatprep.subr.mxu0 0.0
        %7294 = vmatpush1.msra.mxu0 0.0
        %7295 = vmatprep.subr.mxu0 0.0
        %7296 = vmatpush1.msra.mxu0 0.0
        %7297 = vmatprep.subr.mxu0 0.0
        %7298 = vmatpush1.msra.mxu0 0.0
        %7299 = vmatprep.subr.mxu0 0.0
        %7300 = vmatpush1.msra.mxu0 0.0
        %7301 = vmatprep.subr.mxu0 0.0
        %7302 = vmatpush1.msra.mxu0 0.0
        %7303 = vmatprep.subr.mxu0 0.0
        %7304 = vmatpush1.msra.mxu0 0.0
        %7305 = vmatprep.subr.mxu0 0.0
        %7306 = vmatpush1.msra.mxu0 0.0
        %7307 = vmatprep.subr.mxu0 0.0
        %7308 = vmatpush1.msra.mxu0 0.0
        %7309 = vmatprep.subr.mxu0 0.0
        %7310 = vmatpush1.msra.mxu0 0.0
        %7311 = vmatprep.subr.mxu0 0.0
        %7312 = vmatpush1.msra.mxu0 0.0
        %7313 = vmatprep.subr.mxu0 0.0
        %7314 = vmatpush1.msra.mxu0 0.0
        %7315 = vmatprep.subr.mxu0 0.0
        %7316 = vmatpush1.msra.mxu0 0.0
        %7317 = vmatprep.subr.mxu0 0.0
        %7318 = vmatpush1.msra.mxu0 0.0
        %7319 = vmatprep.subr.mxu0 0.0
        %7320 = vmatpush1.msra.mxu0 0.0
        %7321 = vmatprep.subr.mxu0 0.0
        %7322 = vmatpush1.msra.mxu0 0.0
        %7323 = vmatprep.subr.mxu0 0.0
        %7324 = vmatpush1.msra.mxu0 0.0
        %7325 = vmatprep.subr.mxu0 0.0
        %7326 = vmatpush1.msra.mxu0 0.0
        %7327 = vmatprep.subr.mxu0 0.0
        %7328 = vmatpush1.msra.mxu0 0.0
        %7329 = vmatprep.subr.mxu0 0.0
        %7330 = vmatpush1.msra.mxu0 0.0
        %7331 = vmatprep.subr.mxu0 0.0
        %7332 = vmatpush1.msra.mxu0 0.0
        %7333 = vmatprep.subr.mxu0 0.0
        %7334 = vmatpush1.msra.mxu0 0.0
        %7335 = vmatprep.subr.mxu0 0.0
        %7336 = vmatpush1.msra.mxu0 0.0
        %7337 = vmatprep.subr.mxu0 0.0
        %7338 = vmatpush1.msra.mxu0 0.0
        %7339 = vmatprep.subr.mxu0 0.0
        %7340 = vmatpush1.msra.mxu0 0.0
        %7341 = vmatprep.subr.mxu0 0.0
        %7342 = vmatpush1.msra.mxu0 0.0
        %7343 = vmatprep.subr.mxu0 0.0
        %7344 = vmatpush1.msra.mxu0 0.0
        %7345 = vmatprep.subr.mxu0 0.0
        %7346 = vmatpush1.msra.mxu0 0.0
        %7347 = vmatprep.subr.mxu0 0.0
        %7348 = vmatpush1.msra.mxu0 0.0
        %7349 = vmatprep.mubr.f32.mxu0 0.0
        %v7350 = vand.u32 %v7202, 4294901760
        %7351 = vmatmul.mubr.f32.gmra.mrb[0].mxu0 %v7350
        %v7352 = vpop.f32.mrb[0].mxu0
        %v7353 = vadd.f32 %v7277, %v7352
        %v7354 = vpop.f32.mrb[0].mxu0
        %7355 = vdwg.mxu0
        %7356 = vmatprep.subr.mxu0 0.0
        %v7357 = vand.u32 %v7199, 4294901760
        %v7358 = vsub.f32 %v7199, %v7357
        %7359 = vmatpush1.msra.mxu0 %v7358
        %7360 = vmatprep.subr.mxu0 0.0
        %7361 = vmatpush1.msra.mxu0 0.0
        %7362 = vmatprep.subr.mxu0 0.0
        %7363 = vmatpush1.msra.mxu0 0.0
        %7364 = vmatprep.subr.mxu0 0.0
        %7365 = vmatpush1.msra.mxu0 0.0
        %7366 = vmatprep.subr.mxu0 0.0
        %7367 = vmatpush1.msra.mxu0 0.0
        %7368 = vmatprep.subr.mxu0 0.0
        %7369 = vmatpush1.msra.mxu0 0.0
        %7370 = vmatprep.subr.mxu0 0.0
        %7371 = vmatpush1.msra.mxu0 0.0
        %7372 = vmatprep.subr.mxu0 0.0
        %7373 = vmatpush1.msra.mxu0 0.0
        %7374 = vmatprep.subr.mxu0 0.0
        %7375 = vmatpush1.msra.mxu0 0.0
        %7376 = vmatprep.subr.mxu0 0.0
        %7377 = vmatpush1.msra.mxu0 0.0
        %7378 = vmatprep.subr.mxu0 0.0
        %7379 = vmatpush1.msra.mxu0 0.0
        %7380 = vmatprep.subr.mxu0 0.0
        %7381 = vmatpush1.msra.mxu0 0.0
        %7382 = vmatprep.subr.mxu0 0.0
        %7383 = vmatpush1.msra.mxu0 0.0
        %7384 = vmatprep.subr.mxu0 0.0
        %7385 = vmatpush1.msra.mxu0 0.0
        %7386 = vmatprep.subr.mxu0 0.0
        %7387 = vmatpush1.msra.mxu0 0.0
        %7388 = vmatprep.subr.mxu0 0.0
        %7389 = vmatpush1.msra.mxu0 0.0
        %7390 = vmatprep.subr.mxu0 0.0
        %7391 = vmatpush1.msra.mxu0 0.0
        %7392 = vmatprep.subr.mxu0 0.0
        %7393 = vmatpush1.msra.mxu0 0.0
        %7394 = vmatprep.subr.mxu0 0.0
        %7395 = vmatpush1.msra.mxu0 0.0
        %7396 = vmatprep.subr.mxu0 0.0
        %7397 = vmatpush1.msra.mxu0 0.0
        %7398 = vmatprep.subr.mxu0 0.0
        %7399 = vmatpush1.msra.mxu0 0.0
        %7400 = vmatprep.subr.mxu0 0.0
        %7401 = vmatpush1.msra.mxu0 0.0
        %7402 = vmatprep.subr.mxu0 0.0
        %7403 = vmatpush1.msra.mxu0 0.0
        %7404 = vmatprep.subr.mxu0 0.0
        %7405 = vmatpush1.msra.mxu0 0.0
        %7406 = vmatprep.subr.mxu0 0.0
        %7407 = vmatpush1.msra.mxu0 0.0
        %7408 = vmatprep.subr.mxu0 0.0
        %7409 = vmatpush1.msra.mxu0 0.0
        %7410 = vmatprep.subr.mxu0 0.0
        %7411 = vmatpush1.msra.mxu0 0.0
        %7412 = vmatprep.subr.mxu0 0.0
        %7413 = vmatpush1.msra.mxu0 0.0
        %7414 = vmatprep.subr.mxu0 0.0
        %7415 = vmatpush1.msra.mxu0 0.0
        %7416 = vmatprep.subr.mxu0 0.0
        %7417 = vmatpush1.msra.mxu0 0.0
        %7418 = vmatprep.subr.mxu0 0.0
        %7419 = vmatpush1.msra.mxu0 0.0
        %7420 = vmatprep.subr.mxu0 0.0
        %7421 = vmatpush1.msra.mxu0 0.0
        %7422 = vmatprep.mubr.f32.mxu0 0.0
        %v7423 = vand.u32 %v7202, 4294901760
        %v7424 = vsub.f32 %v7202, %v7423
        %7425 = vmatmul.mubr.f32.gmra.mrb[0].mxu0 %v7424
        %v7426 = vpop.f32.mrb[0].mxu0
        %v7427 = vadd.f32 %v7353, %v7426
        %v7428 = vpop.f32.mrb[0].mxu0
        %7429 = vdwg.mxu0
        %7430 = vmatprep.subr.mxu0 0.0
        %v7431 = vand.u32 %v7199, 4294901760
        %7432 = vmatpush1.msra.mxu0 %v7431
        %7433 = vmatprep.subr.mxu0 0.0
        %7434 = vmatpush1.msra.mxu0 0.0
        %7435 = vmatprep.subr.mxu0 0.0
        %7436 = vmatpush1.msra.mxu0 0.0
        %7437 = vmatprep.subr.mxu0 0.0
        %7438 = vmatpush1.msra.mxu0 0.0
        %7439 = vmatprep.subr.mxu0 0.0
        %7440 = vmatpush1.msra.mxu0 0.0
        %7441 = vmatprep.subr.mxu0 0.0
        %7442 = vmatpush1.msra.mxu0 0.0
        %7443 = vmatprep.subr.mxu0 0.0
        %7444 = vmatpush1.msra.mxu0 0.0
        %7445 = vmatprep.subr.mxu0 0.0
        %7446 = vmatpush1.msra.mxu0 0.0
        %7447 = vmatprep.subr.mxu0 0.0
        %7448 = vmatpush1.msra.mxu0 0.0
        %7449 = vmatprep.subr.mxu0 0.0
        %7450 = vmatpush1.msra.mxu0 0.0
        %7451 = vmatprep.subr.mxu0 0.0
        %7452 = vmatpush1.msra.mxu0 0.0
        %7453 = vmatprep.subr.mxu0 0.0
        %7454 = vmatpush1.msra.mxu0 0.0
        %7455 = vmatprep.subr.mxu0 0.0
        %7456 = vmatpush1.msra.mxu0 0.0
        %7457 = vmatprep.subr.mxu0 0.0
        %7458 = vmatpush1.msra.mxu0 0.0
        %7459 = vmatprep.subr.mxu0 0.0
        %7460 = vmatpush1.msra.mxu0 0.0
        %7461 = vmatprep.subr.mxu0 0.0
        %7462 = vmatpush1.msra.mxu0 0.0
        %7463 = vmatprep.subr.mxu0 0.0
        %7464 = vmatpush1.msra.mxu0 0.0
        %7465 = vmatprep.subr.mxu0 0.0
        %7466 = vmatpush1.msra.mxu0 0.0
        %7467 = vmatprep.subr.mxu0 0.0
        %7468 = vmatpush1.msra.mxu0 0.0
        %7469 = vmatprep.subr.mxu0 0.0
        %7470 = vmatpush1.msra.mxu0 0.0
        %7471 = vmatprep.subr.mxu0 0.0
        %7472 = vmatpush1.msra.mxu0 0.0
        %7473 = vmatprep.subr.mxu0 0.0
        %7474 = vmatpush1.msra.mxu0 0.0
        %7475 = vmatprep.subr.mxu0 0.0
        %7476 = vmatpush1.msra.mxu0 0.0
        %7477 = vmatprep.subr.mxu0 0.0
        %7478 = vmatpush1.msra.mxu0 0.0
        %7479 = vmatprep.subr.mxu0 0.0
        %7480 = vmatpush1.msra.mxu0 0.0
        %7481 = vmatprep.subr.mxu0 0.0
        %7482 = vmatpush1.msra.mxu0 0.0
        %7483 = vmatprep.subr.mxu0 0.0
        %7484 = vmatpush1.msra.mxu0 0.0
        %7485 = vmatprep.subr.mxu0 0.0
        %7486 = vmatpush1.msra.mxu0 0.0
        %7487 = vmatprep.subr.mxu0 0.0
        %7488 = vmatpush1.msra.mxu0 0.0
        %7489 = vmatprep.subr.mxu0 0.0
        %7490 = vmatpush1.msra.mxu0 0.0
        %7491 = vmatprep.subr.mxu0 0.0
        %7492 = vmatpush1.msra.mxu0 0.0
        %7493 = vmatprep.subr.mxu0 0.0
        %7494 = vmatpush1.msra.mxu0 0.0
        %7495 = vmatprep.mubr.f32.mxu0 0.0
        %v7496 = vand.u32 %v7202, 4294901760
        %v7497 = vsub.f32 %v7202, %v7496
        %v7498 = vand.u32 %v7497, 4294901760
        %7499 = vmatmul.mubr.f32.gmra.mrb[0].mxu0 %v7498
        %v7500 = vpop.f32.mrb[0].mxu0
        %v7501 = vadd.f32 %v7427, %v7500
        %v7502 = vpop.f32.mrb[0].mxu0
        %7503 = vdwg.mxu0
        %7504 = vmatprep.subr.mxu0 0.0
        %v7505 = vand.u32 %v7199, 4294901760
        %v7506 = vsub.f32 %v7199, %v7505
        %v7507 = vand.u32 %v7506, 4294901760
        %7508 = vmatpush1.msra.mxu0 %v7507
        %7509 = vmatprep.subr.mxu0 0.0
        %7510 = vmatpush1.msra.mxu0 0.0
        %7511 = vmatprep.subr.mxu0 0.0
        %7512 = vmatpush1.msra.mxu0 0.0
        %7513 = vmatprep.subr.mxu0 0.0
        %7514 = vmatpush1.msra.mxu0 0.0
        %7515 = vmatprep.subr.mxu0 0.0
        %7516 = vmatpush1.msra.mxu0 0.0
        %7517 = vmatprep.subr.mxu0 0.0
        %7518 = vmatpush1.msra.mxu0 0.0
        %7519 = vmatprep.subr.mxu0 0.0
        %7520 = vmatpush1.msra.mxu0 0.0
        %7521 = vmatprep.subr.mxu0 0.0
        %7522 = vmatpush1.msra.mxu0 0.0
        %7523 = vmatprep.subr.mxu0 0.0
        %7524 = vmatpush1.msra.mxu0 0.0
        %7525 = vmatprep.subr.mxu0 0.0
        %7526 = vmatpush1.msra.mxu0 0.0
        %7527 = vmatprep.subr.mxu0 0.0
        %7528 = vmatpush1.msra.mxu0 0.0
        %7529 = vmatprep.subr.mxu0 0.0
        %7530 = vmatpush1.msra.mxu0 0.0
        %7531 = vmatprep.subr.mxu0 0.0
        %7532 = vmatpush1.msra.mxu0 0.0
        %7533 = vmatprep.subr.mxu0 0.0
        %7534 = vmatpush1.msra.mxu0 0.0
        %7535 = vmatprep.subr.mxu0 0.0
        %7536 = vmatpush1.msra.mxu0 0.0
        %7537 = vmatprep.subr.mxu0 0.0
        %7538 = vmatpush1.msra.mxu0 0.0
        %7539 = vmatprep.subr.mxu0 0.0
        %7540 = vmatpush1.msra.mxu0 0.0
        %7541 = vmatprep.subr.mxu0 0.0
        %7542 = vmatpush1.msra.mxu0 0.0
        %7543 = vmatprep.subr.mxu0 0.0
        %7544 = vmatpush1.msra.mxu0 0.0
        %7545 = vmatprep.subr.mxu0 0.0
        %7546 = vmatpush1.msra.mxu0 0.0
        %7547 = vmatprep.subr.mxu0 0.0
        %7548 = vmatpush1.msra.mxu0 0.0
        %7549 = vmatprep.subr.mxu0 0.0
        %7550 = vmatpush1.msra.mxu0 0.0
        %7551 = vmatprep.subr.mxu0 0.0
        %7552 = vmatpush1.msra.mxu0 0.0
        %7553 = vmatprep.subr.mxu0 0.0
        %7554 = vmatpush1.msra.mxu0 0.0
        %7555 = vmatprep.subr.mxu0 0.0
        %7556 = vmatpush1.msra.mxu0 0.0
        %7557 = vmatprep.subr.mxu0 0.0
        %7558 = vmatpush1.msra.mxu0 0.0
        %7559 = vmatprep.subr.mxu0 0.0
        %7560 = vmatpush1.msra.mxu0 0.0
        %7561 = vmatprep.subr.mxu0 0.0
        %7562 = vmatpush1.msra.mxu0 0.0
        %7563 = vmatprep.subr.mxu0 0.0
        %7564 = vmatpush1.msra.mxu0 0.0
        %7565 = vmatprep.subr.mxu0 0.0
        %7566 = vmatpush1.msra.mxu0 0.0
        %7567 = vmatprep.subr.mxu0 0.0
        %7568 = vmatpush1.msra.mxu0 0.0
        %7569 = vmatprep.subr.mxu0 0.0
        %7570 = vmatpush1.msra.mxu0 0.0
        %7571 = vmatprep.mubr.f32.mxu0 0.0
        %v7572 = vand.u32 %v7202, 4294901760
        %7573 = vmatmul.mubr.f32.gmra.mrb[0].mxu0 %v7572
        %v7574 = vpop.f32.mrb[0].mxu0
        %v7575 = vadd.f32 %v7501, %v7574
        %v7576 = vpop.f32.mrb[0].mxu0
        %7577 = vdwg.mxu0
        %7578 = vmatprep.subr.mxu0 0.0
        %v7579 = vand.u32 %v7199, 4294901760
        %7580 = vmatpush1.msra.mxu0 %v7579
        %7581 = vmatprep.subr.mxu0 0.0
        %7582 = vmatpush1.msra.mxu0 0.0
        %7583 = vmatprep.subr.mxu0 0.0
        %7584 = vmatpush1.msra.mxu0 0.0
        %7585 = vmatprep.subr.mxu0 0.0
        %7586 = vmatpush1.msra.mxu0 0.0
        %7587 = vmatprep.subr.mxu0 0.0
        %7588 = vmatpush1.msra.mxu0 0.0
        %7589 = vmatprep.subr.mxu0 0.0
        %7590 = vmatpush1.msra.mxu0 0.0
        %7591 = vmatprep.subr.mxu0 0.0
        %7592 = vmatpush1.msra.mxu0 0.0
        %7593 = vmatprep.subr.mxu0 0.0
        %7594 = vmatpush1.msra.mxu0 0.0
        %7595 = vmatprep.subr.mxu0 0.0
        %7596 = vmatpush1.msra.mxu0 0.0
        %7597 = vmatprep.subr.mxu0 0.0
        %7598 = vmatpush1.msra.mxu0 0.0
        %7599 = vmatprep.subr.mxu0 0.0
        %7600 = vmatpush1.msra.mxu0 0.0
        %7601 = vmatprep.subr.mxu0 0.0
        %7602 = vmatpush1.msra.mxu0 0.0
        %7603 = vmatprep.subr.mxu0 0.0
        %7604 = vmatpush1.msra.mxu0 0.0
        %7605 = vmatprep.subr.mxu0 0.0
        %7606 = vmatpush1.msra.mxu0 0.0
        %7607 = vmatprep.subr.mxu0 0.0
        %7608 = vmatpush1.msra.mxu0 0.0
        %7609 = vmatprep.subr.mxu0 0.0
        %7610 = vmatpush1.msra.mxu0 0.0
        %7611 = vmatprep.subr.mxu0 0.0
        %7612 = vmatpush1.msra.mxu0 0.0
        %7613 = vmatprep.subr.mxu0 0.0
        %7614 = vmatpush1.msra.mxu0 0.0
        %7615 = vmatprep.subr.mxu0 0.0
        %7616 = vmatpush1.msra.mxu0 0.0
        %7617 = vmatprep.subr.mxu0 0.0
        %7618 = vmatpush1.msra.mxu0 0.0
        %7619 = vmatprep.subr.mxu0 0.0
        %7620 = vmatpush1.msra.mxu0 0.0
        %7621 = vmatprep.subr.mxu0 0.0
        %7622 = vmatpush1.msra.mxu0 0.0
        %7623 = vmatprep.subr.mxu0 0.0
        %7624 = vmatpush1.msra.mxu0 0.0
        %7625 = vmatprep.subr.mxu0 0.0
        %7626 = vmatpush1.msra.mxu0 0.0
        %7627 = vmatprep.subr.mxu0 0.0
        %7628 = vmatpush1.msra.mxu0 0.0
        %7629 = vmatprep.subr.mxu0 0.0
        %7630 = vmatpush1.msra.mxu0 0.0
        %7631 = vmatprep.subr.mxu0 0.0
        %7632 = vmatpush1.msra.mxu0 0.0
        %7633 = vmatprep.subr.mxu0 0.0
        %7634 = vmatpush1.msra.mxu0 0.0
        %7635 = vmatprep.subr.mxu0 0.0
        %7636 = vmatpush1.msra.mxu0 0.0
        %7637 = vmatprep.subr.mxu0 0.0
        %7638 = vmatpush1.msra.mxu0 0.0
        %7639 = vmatprep.subr.mxu0 0.0
        %7640 = vmatpush1.msra.mxu0 0.0
        %7641 = vmatprep.subr.mxu0 0.0
        %7642 = vmatpush1.msra.mxu0 0.0
        %7643 = vmatprep.mubr.f32.mxu0 0.0
        %v7644 = vand.u32 %v7202, 4294901760
        %7645 = vmatmul.mubr.f32.gmra.mrb[0].mxu0 %v7644
        %v7646 = vpop.f32.mrb[0].mxu0
        %v7647 = vadd.f32 %v7575, %v7646
        %v7648 = vpop.f32.mrb[0].mxu0
        %7649 = vdwg.mxu0
        %7651 = vrot.lane.b32.xlu0 %v7647, 16
        %v7652 = vpop.permute.xlu0 %7651
        %7654 = vst.msk [vmem:[#allocation2 + $0x8] sm:$0xff] %vm3956, %v7652
        %7655 = vrot.lane.b32.xlu0 %v1180, 104
        %v7656 = vpop.permute.xlu0 %7655
        %7657 = vrot.lane.b32.xlu0 %v1180, 72
        %v7658 = vpop.permute.xlu0 %7657
        %v7659 = vsel %vm1187, %v7656, 0
        %v7661 = vsel %vm1187, %v7658, 0
        %7663 = vmatprep.subr.mxu0 0.0
        %v7664 = vand.u32 %v7661, 4294901760
        %7665 = vmatpush1.xpose.msra.mxu0 %v7664
        %7666 = vmatprep.subr.mxu0 0.0
        %7667 = vmatpush1.xpose.msra.mxu0 0.0
        %7668 = vmatprep.subr.mxu0 0.0
        %7669 = vmatpush1.xpose.msra.mxu0 0.0
        %7670 = vmatprep.subr.mxu0 0.0
        %7671 = vmatpush1.xpose.msra.mxu0 0.0
        %7672 = vmatprep.subr.mxu0 0.0
        %7673 = vmatpush1.xpose.msra.mxu0 0.0
        %7674 = vmatprep.subr.mxu0 0.0
        %7675 = vmatpush1.xpose.msra.mxu0 0.0
        %7676 = vmatprep.subr.mxu0 0.0
        %7677 = vmatpush1.xpose.msra.mxu0 0.0
        %7678 = vmatprep.subr.mxu0 0.0
        %7679 = vmatpush1.xpose.msra.mxu0 0.0
        %7680 = vmatprep.subr.mxu0 0.0
        %7681 = vmatpush1.xpose.msra.mxu0 0.0
        %7682 = vmatprep.subr.mxu0 0.0
        %7683 = vmatpush1.xpose.msra.mxu0 0.0
        %7684 = vmatprep.subr.mxu0 0.0
        %7685 = vmatpush1.xpose.msra.mxu0 0.0
        %7686 = vmatprep.subr.mxu0 0.0
        %7687 = vmatpush1.xpose.msra.mxu0 0.0
        %7688 = vmatprep.subr.mxu0 0.0
        %7689 = vmatpush1.xpose.msra.mxu0 0.0
        %7690 = vmatprep.subr.mxu0 0.0
        %7691 = vmatpush1.xpose.msra.mxu0 0.0
        %7692 = vmatprep.subr.mxu0 0.0
        %7693 = vmatpush1.xpose.msra.mxu0 0.0
        %7694 = vmatprep.subr.mxu0 0.0
        %7695 = vmatpush1.xpose.msra.mxu0 0.0
        %7696 = vmatprep.subr.mxu0 0.0
        %7697 = vmatpush1.xpose.msra.mxu0 0.0
        %7698 = vmatprep.subr.mxu0 0.0
        %7699 = vmatpush1.xpose.msra.mxu0 0.0
        %7700 = vmatprep.subr.mxu0 0.0
        %7701 = vmatpush1.xpose.msra.mxu0 0.0
        %7702 = vmatprep.subr.mxu0 0.0
        %7703 = vmatpush1.xpose.msra.mxu0 0.0
        %7704 = vmatprep.subr.mxu0 0.0
        %7705 = vmatpush1.xpose.msra.mxu0 0.0
        %7706 = vmatprep.subr.mxu0 0.0
        %7707 = vmatpush1.xpose.msra.mxu0 0.0
        %7708 = vmatprep.subr.mxu0 0.0
        %7709 = vmatpush1.xpose.msra.mxu0 0.0
        %7710 = vmatprep.subr.mxu0 0.0
        %7711 = vmatpush1.xpose.msra.mxu0 0.0
        %7712 = vmatprep.subr.mxu0 0.0
        %7713 = vmatpush1.xpose.msra.mxu0 0.0
        %7714 = vmatprep.subr.mxu0 0.0
        %7715 = vmatpush1.xpose.msra.mxu0 0.0
        %7716 = vmatprep.subr.mxu0 0.0
        %7717 = vmatpush1.xpose.msra.mxu0 0.0
        %7718 = vmatprep.subr.mxu0 0.0
        %7719 = vmatpush1.xpose.msra.mxu0 0.0
        %7720 = vmatprep.subr.mxu0 0.0
        %7721 = vmatpush1.xpose.msra.mxu0 0.0
        %7722 = vmatprep.subr.mxu0 0.0
        %7723 = vmatpush1.xpose.msra.mxu0 0.0
        %7724 = vmatprep.subr.mxu0 0.0
        %7725 = vmatpush1.xpose.msra.mxu0 0.0
        %7726 = vmatprep.subr.mxu0 0.0
        %7727 = vmatpush1.xpose.msra.mxu0 0.0
        %7728 = vmatprep.mubr.f32.mxu0 0.0
        %v7729 = vand.u32 %v7659, 4294901760
        %v7730 = vsub.f32 %v7659, %v7729
        %v7731 = vand.u32 %v7730, 4294901760
        %v7732 = vsub.f32 %v7730, %v7731
        %v7733 = vand.u32 %v7732, 4294901760
        %7734 = vmatmul.mubr.f32.gmra.mrb[0].mxu0 %v7733
        %v7735 = vpop.f32.mrb[0].mxu0
        %v7736 = vadd.f32 0.0, %v7735
        %v7737 = vpop.f32.mrb[0].mxu0
        %7738 = vdwg.mxu0
        %7739 = vmatprep.subr.mxu0 0.0
        %v7740 = vand.u32 %v7661, 4294901760
        %v7741 = vsub.f32 %v7661, %v7740
        %v7742 = vand.u32 %v7741, 4294901760
        %v7743 = vsub.f32 %v7741, %v7742
        %v7744 = vand.u32 %v7743, 4294901760
        %7745 = vmatpush1.xpose.msra.mxu0 %v7744
        %7746 = vmatprep.subr.mxu0 0.0
        %7747 = vmatpush1.xpose.msra.mxu0 0.0
        %7748 = vmatprep.subr.mxu0 0.0
        %7749 = vmatpush1.xpose.msra.mxu0 0.0
        %7750 = vmatprep.subr.mxu0 0.0
        %7751 = vmatpush1.xpose.msra.mxu0 0.0
        %7752 = vmatprep.subr.mxu0 0.0
        %7753 = vmatpush1.xpose.msra.mxu0 0.0
        %7754 = vmatprep.subr.mxu0 0.0
        %7755 = vmatpush1.xpose.msra.mxu0 0.0
        %7756 = vmatprep.subr.mxu0 0.0
        %7757 = vmatpush1.xpose.msra.mxu0 0.0
        %7758 = vmatprep.subr.mxu0 0.0
        %7759 = vmatpush1.xpose.msra.mxu0 0.0
        %7760 = vmatprep.subr.mxu0 0.0
        %7761 = vmatpush1.xpose.msra.mxu0 0.0
        %7762 = vmatprep.subr.mxu0 0.0
        %7763 = vmatpush1.xpose.msra.mxu0 0.0
        %7764 = vmatprep.subr.mxu0 0.0
        %7765 = vmatpush1.xpose.msra.mxu0 0.0
        %7766 = vmatprep.subr.mxu0 0.0
        %7767 = vmatpush1.xpose.msra.mxu0 0.0
        %7768 = vmatprep.subr.mxu0 0.0
        %7769 = vmatpush1.xpose.msra.mxu0 0.0
        %7770 = vmatprep.subr.mxu0 0.0
        %7771 = vmatpush1.xpose.msra.mxu0 0.0
        %7772 = vmatprep.subr.mxu0 0.0
        %7773 = vmatpush1.xpose.msra.mxu0 0.0
        %7774 = vmatprep.subr.mxu0 0.0
        %7775 = vmatpush1.xpose.msra.mxu0 0.0
        %7776 = vmatprep.subr.mxu0 0.0
        %7777 = vmatpush1.xpose.msra.mxu0 0.0
        %7778 = vmatprep.subr.mxu0 0.0
        %7779 = vmatpush1.xpose.msra.mxu0 0.0
        %7780 = vmatprep.subr.mxu0 0.0
        %7781 = vmatpush1.xpose.msra.mxu0 0.0
        %7782 = vmatprep.subr.mxu0 0.0
        %7783 = vmatpush1.xpose.msra.mxu0 0.0
        %7784 = vmatprep.subr.mxu0 0.0
        %7785 = vmatpush1.xpose.msra.mxu0 0.0
        %7786 = vmatprep.subr.mxu0 0.0
        %7787 = vmatpush1.xpose.msra.mxu0 0.0
        %7788 = vmatprep.subr.mxu0 0.0
        %7789 = vmatpush1.xpose.msra.mxu0 0.0
        %7790 = vmatprep.subr.mxu0 0.0
        %7791 = vmatpush1.xpose.msra.mxu0 0.0
        %7792 = vmatprep.subr.mxu0 0.0
        %7793 = vmatpush1.xpose.msra.mxu0 0.0
        %7794 = vmatprep.subr.mxu0 0.0
        %7795 = vmatpush1.xpose.msra.mxu0 0.0
        %7796 = vmatprep.subr.mxu0 0.0
        %7797 = vmatpush1.xpose.msra.mxu0 0.0
        %7798 = vmatprep.subr.mxu0 0.0
        %7799 = vmatpush1.xpose.msra.mxu0 0.0
        %7800 = vmatprep.subr.mxu0 0.0
        %7801 = vmatpush1.xpose.msra.mxu0 0.0
        %7802 = vmatprep.subr.mxu0 0.0
        %7803 = vmatpush1.xpose.msra.mxu0 0.0
        %7804 = vmatprep.subr.mxu0 0.0
        %7805 = vmatpush1.xpose.msra.mxu0 0.0
        %7806 = vmatprep.subr.mxu0 0.0
        %7807 = vmatpush1.xpose.msra.mxu0 0.0
        %7808 = vmatprep.mubr.f32.mxu0 0.0
        %v7809 = vand.u32 %v7659, 4294901760
        %7810 = vmatmul.mubr.f32.gmra.mrb[0].mxu0 %v7809
        %v7811 = vpop.f32.mrb[0].mxu0
        %v7812 = vadd.f32 %v7736, %v7811
        %v7813 = vpop.f32.mrb[0].mxu0
        %7814 = vdwg.mxu0
        %7815 = vmatprep.subr.mxu0 0.0
        %v7816 = vand.u32 %v7661, 4294901760
        %v7817 = vsub.f32 %v7661, %v7816
        %7818 = vmatpush1.xpose.msra.mxu0 %v7817
        %7819 = vmatprep.subr.mxu0 0.0
        %7820 = vmatpush1.xpose.msra.mxu0 0.0
        %7821 = vmatprep.subr.mxu0 0.0
        %7822 = vmatpush1.xpose.msra.mxu0 0.0
        %7823 = vmatprep.subr.mxu0 0.0
        %7824 = vmatpush1.xpose.msra.mxu0 0.0
        %7825 = vmatprep.subr.mxu0 0.0
        %7826 = vmatpush1.xpose.msra.mxu0 0.0
        %7827 = vmatprep.subr.mxu0 0.0
        %7828 = vmatpush1.xpose.msra.mxu0 0.0
        %7829 = vmatprep.subr.mxu0 0.0
        %7830 = vmatpush1.xpose.msra.mxu0 0.0
        %7831 = vmatprep.subr.mxu0 0.0
        %7832 = vmatpush1.xpose.msra.mxu0 0.0
        %7833 = vmatprep.subr.mxu0 0.0
        %7834 = vmatpush1.xpose.msra.mxu0 0.0
        %7835 = vmatprep.subr.mxu0 0.0
        %7836 = vmatpush1.xpose.msra.mxu0 0.0
        %7837 = vmatprep.subr.mxu0 0.0
        %7838 = vmatpush1.xpose.msra.mxu0 0.0
        %7839 = vmatprep.subr.mxu0 0.0
        %7840 = vmatpush1.xpose.msra.mxu0 0.0
        %7841 = vmatprep.subr.mxu0 0.0
        %7842 = vmatpush1.xpose.msra.mxu0 0.0
        %7843 = vmatprep.subr.mxu0 0.0
        %7844 = vmatpush1.xpose.msra.mxu0 0.0
        %7845 = vmatprep.subr.mxu0 0.0
        %7846 = vmatpush1.xpose.msra.mxu0 0.0
        %7847 = vmatprep.subr.mxu0 0.0
        %7848 = vmatpush1.xpose.msra.mxu0 0.0
        %7849 = vmatprep.subr.mxu0 0.0
        %7850 = vmatpush1.xpose.msra.mxu0 0.0
        %7851 = vmatprep.subr.mxu0 0.0
        %7852 = vmatpush1.xpose.msra.mxu0 0.0
        %7853 = vmatprep.subr.mxu0 0.0
        %7854 = vmatpush1.xpose.msra.mxu0 0.0
        %7855 = vmatprep.subr.mxu0 0.0
        %7856 = vmatpush1.xpose.msra.mxu0 0.0
        %7857 = vmatprep.subr.mxu0 0.0
        %7858 = vmatpush1.xpose.msra.mxu0 0.0
        %7859 = vmatprep.subr.mxu0 0.0
        %7860 = vmatpush1.xpose.msra.mxu0 0.0
        %7861 = vmatprep.subr.mxu0 0.0
        %7862 = vmatpush1.xpose.msra.mxu0 0.0
        %7863 = vmatprep.subr.mxu0 0.0
        %7864 = vmatpush1.xpose.msra.mxu0 0.0
        %7865 = vmatprep.subr.mxu0 0.0
        %7866 = vmatpush1.xpose.msra.mxu0 0.0
        %7867 = vmatprep.subr.mxu0 0.0
        %7868 = vmatpush1.xpose.msra.mxu0 0.0
        %7869 = vmatprep.subr.mxu0 0.0
        %7870 = vmatpush1.xpose.msra.mxu0 0.0
        %7871 = vmatprep.subr.mxu0 0.0
        %7872 = vmatpush1.xpose.msra.mxu0 0.0
        %7873 = vmatprep.subr.mxu0 0.0
        %7874 = vmatpush1.xpose.msra.mxu0 0.0
        %7875 = vmatprep.subr.mxu0 0.0
        %7876 = vmatpush1.xpose.msra.mxu0 0.0
        %7877 = vmatprep.subr.mxu0 0.0
        %7878 = vmatpush1.xpose.msra.mxu0 0.0
        %7879 = vmatprep.subr.mxu0 0.0
        %7880 = vmatpush1.xpose.msra.mxu0 0.0
        %7881 = vmatprep.mubr.f32.mxu0 0.0
        %v7882 = vand.u32 %v7659, 4294901760
        %v7883 = vsub.f32 %v7659, %v7882
        %7884 = vmatmul.mubr.f32.gmra.mrb[0].mxu0 %v7883
        %v7885 = vpop.f32.mrb[0].mxu0
        %v7886 = vadd.f32 %v7812, %v7885
        %v7887 = vpop.f32.mrb[0].mxu0
        %7888 = vdwg.mxu0
        %7889 = vmatprep.subr.mxu0 0.0
        %v7890 = vand.u32 %v7661, 4294901760
        %7891 = vmatpush1.xpose.msra.mxu0 %v7890
        %7892 = vmatprep.subr.mxu0 0.0
        %7893 = vmatpush1.xpose.msra.mxu0 0.0
        %7894 = vmatprep.subr.mxu0 0.0
        %7895 = vmatpush1.xpose.msra.mxu0 0.0
        %7896 = vmatprep.subr.mxu0 0.0
        %7897 = vmatpush1.xpose.msra.mxu0 0.0
        %7898 = vmatprep.subr.mxu0 0.0
        %7899 = vmatpush1.xpose.msra.mxu0 0.0
        %7900 = vmatprep.subr.mxu0 0.0
        %7901 = vmatpush1.xpose.msra.mxu0 0.0
        %7902 = vmatprep.subr.mxu0 0.0
        %7903 = vmatpush1.xpose.msra.mxu0 0.0
        %7904 = vmatprep.subr.mxu0 0.0
        %7905 = vmatpush1.xpose.msra.mxu0 0.0
        %7906 = vmatprep.subr.mxu0 0.0
        %7907 = vmatpush1.xpose.msra.mxu0 0.0
        %7908 = vmatprep.subr.mxu0 0.0
        %7909 = vmatpush1.xpose.msra.mxu0 0.0
        %7910 = vmatprep.subr.mxu0 0.0
        %7911 = vmatpush1.xpose.msra.mxu0 0.0
        %7912 = vmatprep.subr.mxu0 0.0
        %7913 = vmatpush1.xpose.msra.mxu0 0.0
        %7914 = vmatprep.subr.mxu0 0.0
        %7915 = vmatpush1.xpose.msra.mxu0 0.0
        %7916 = vmatprep.subr.mxu0 0.0
        %7917 = vmatpush1.xpose.msra.mxu0 0.0
        %7918 = vmatprep.subr.mxu0 0.0
        %7919 = vmatpush1.xpose.msra.mxu0 0.0
        %7920 = vmatprep.subr.mxu0 0.0
        %7921 = vmatpush1.xpose.msra.mxu0 0.0
        %7922 = vmatprep.subr.mxu0 0.0
        %7923 = vmatpush1.xpose.msra.mxu0 0.0
        %7924 = vmatprep.subr.mxu0 0.0
        %7925 = vmatpush1.xpose.msra.mxu0 0.0
        %7926 = vmatprep.subr.mxu0 0.0
        %7927 = vmatpush1.xpose.msra.mxu0 0.0
        %7928 = vmatprep.subr.mxu0 0.0
        %7929 = vmatpush1.xpose.msra.mxu0 0.0
        %7930 = vmatprep.subr.mxu0 0.0
        %7931 = vmatpush1.xpose.msra.mxu0 0.0
        %7932 = vmatprep.subr.mxu0 0.0
        %7933 = vmatpush1.xpose.msra.mxu0 0.0
        %7934 = vmatprep.subr.mxu0 0.0
        %7935 = vmatpush1.xpose.msra.mxu0 0.0
        %7936 = vmatprep.subr.mxu0 0.0
        %7937 = vmatpush1.xpose.msra.mxu0 0.0
        %7938 = vmatprep.subr.mxu0 0.0
        %7939 = vmatpush1.xpose.msra.mxu0 0.0
        %7940 = vmatprep.subr.mxu0 0.0
        %7941 = vmatpush1.xpose.msra.mxu0 0.0
        %7942 = vmatprep.subr.mxu0 0.0
        %7943 = vmatpush1.xpose.msra.mxu0 0.0
        %7944 = vmatprep.subr.mxu0 0.0
        %7945 = vmatpush1.xpose.msra.mxu0 0.0
        %7946 = vmatprep.subr.mxu0 0.0
        %7947 = vmatpush1.xpose.msra.mxu0 0.0
        %7948 = vmatprep.subr.mxu0 0.0
        %7949 = vmatpush1.xpose.msra.mxu0 0.0
        %7950 = vmatprep.subr.mxu0 0.0
        %7951 = vmatpush1.xpose.msra.mxu0 0.0
        %7952 = vmatprep.subr.mxu0 0.0
        %7953 = vmatpush1.xpose.msra.mxu0 0.0
        %7954 = vmatprep.mubr.f32.mxu0 0.0
        %v7955 = vand.u32 %v7659, 4294901760
        %v7956 = vsub.f32 %v7659, %v7955
        %v7957 = vand.u32 %v7956, 4294901760
        %7958 = vmatmul.mubr.f32.gmra.mrb[0].mxu0 %v7957
        %v7959 = vpop.f32.mrb[0].mxu0
        %v7960 = vadd.f32 %v7886, %v7959
        %v7961 = vpop.f32.mrb[0].mxu0
        %7962 = vdwg.mxu0
        %7963 = vmatprep.subr.mxu0 0.0
        %v7964 = vand.u32 %v7661, 4294901760
        %v7965 = vsub.f32 %v7661, %v7964
        %v7966 = vand.u32 %v7965, 4294901760
        %7967 = vmatpush1.xpose.msra.mxu0 %v7966
        %7968 = vmatprep.subr.mxu0 0.0
        %7969 = vmatpush1.xpose.msra.mxu0 0.0
        %7970 = vmatprep.subr.mxu0 0.0
        %7971 = vmatpush1.xpose.msra.mxu0 0.0
        %7972 = vmatprep.subr.mxu0 0.0
        %7973 = vmatpush1.xpose.msra.mxu0 0.0
        %7974 = vmatprep.subr.mxu0 0.0
        %7975 = vmatpush1.xpose.msra.mxu0 0.0
        %7976 = vmatprep.subr.mxu0 0.0
        %7977 = vmatpush1.xpose.msra.mxu0 0.0
        %7978 = vmatprep.subr.mxu0 0.0
        %7979 = vmatpush1.xpose.msra.mxu0 0.0
        %7980 = vmatprep.subr.mxu0 0.0
        %7981 = vmatpush1.xpose.msra.mxu0 0.0
        %7982 = vmatprep.subr.mxu0 0.0
        %7983 = vmatpush1.xpose.msra.mxu0 0.0
        %7984 = vmatprep.subr.mxu0 0.0
        %7985 = vmatpush1.xpose.msra.mxu0 0.0
        %7986 = vmatprep.subr.mxu0 0.0
        %7987 = vmatpush1.xpose.msra.mxu0 0.0
        %7988 = vmatprep.subr.mxu0 0.0
        %7989 = vmatpush1.xpose.msra.mxu0 0.0
        %7990 = vmatprep.subr.mxu0 0.0
        %7991 = vmatpush1.xpose.msra.mxu0 0.0
        %7992 = vmatprep.subr.mxu0 0.0
        %7993 = vmatpush1.xpose.msra.mxu0 0.0
        %7994 = vmatprep.subr.mxu0 0.0
        %7995 = vmatpush1.xpose.msra.mxu0 0.0
        %7996 = vmatprep.subr.mxu0 0.0
        %7997 = vmatpush1.xpose.msra.mxu0 0.0
        %7998 = vmatprep.subr.mxu0 0.0
        %7999 = vmatpush1.xpose.msra.mxu0 0.0
        %8000 = vmatprep.subr.mxu0 0.0
        %8001 = vmatpush1.xpose.msra.mxu0 0.0
        %8002 = vmatprep.subr.mxu0 0.0
        %8003 = vmatpush1.xpose.msra.mxu0 0.0
        %8004 = vmatprep.subr.mxu0 0.0
        %8005 = vmatpush1.xpose.msra.mxu0 0.0
        %8006 = vmatprep.subr.mxu0 0.0
        %8007 = vmatpush1.xpose.msra.mxu0 0.0
        %8008 = vmatprep.subr.mxu0 0.0
        %8009 = vmatpush1.xpose.msra.mxu0 0.0
        %8010 = vmatprep.subr.mxu0 0.0
        %8011 = vmatpush1.xpose.msra.mxu0 0.0
        %8012 = vmatprep.subr.mxu0 0.0
        %8013 = vmatpush1.xpose.msra.mxu0 0.0
        %8014 = vmatprep.subr.mxu0 0.0
        %8015 = vmatpush1.xpose.msra.mxu0 0.0
        %8016 = vmatprep.subr.mxu0 0.0
        %8017 = vmatpush1.xpose.msra.mxu0 0.0
        %8018 = vmatprep.subr.mxu0 0.0
        %8019 = vmatpush1.xpose.msra.mxu0 0.0
        %8020 = vmatprep.subr.mxu0 0.0
        %8021 = vmatpush1.xpose.msra.mxu0 0.0
        %8022 = vmatprep.subr.mxu0 0.0
        %8023 = vmatpush1.xpose.msra.mxu0 0.0
        %8024 = vmatprep.subr.mxu0 0.0
        %8025 = vmatpush1.xpose.msra.mxu0 0.0
        %8026 = vmatprep.subr.mxu0 0.0
        %8027 = vmatpush1.xpose.msra.mxu0 0.0
        %8028 = vmatprep.subr.mxu0 0.0
        %8029 = vmatpush1.xpose.msra.mxu0 0.0
        %8030 = vmatprep.mubr.f32.mxu0 0.0
        %v8031 = vand.u32 %v7659, 4294901760
        %8032 = vmatmul.mubr.f32.gmra.mrb[0].mxu0 %v8031
        %v8033 = vpop.f32.mrb[0].mxu0
        %v8034 = vadd.f32 %v7960, %v8033
        %v8035 = vpop.f32.mrb[0].mxu0
        %8036 = vdwg.mxu0
        %8037 = vmatprep.subr.mxu0 0.0
        %v8038 = vand.u32 %v7661, 4294901760
        %8039 = vmatpush1.xpose.msra.mxu0 %v8038
        %8040 = vmatprep.subr.mxu0 0.0
        %8041 = vmatpush1.xpose.msra.mxu0 0.0
        %8042 = vmatprep.subr.mxu0 0.0
        %8043 = vmatpush1.xpose.msra.mxu0 0.0
        %8044 = vmatprep.subr.mxu0 0.0
        %8045 = vmatpush1.xpose.msra.mxu0 0.0
        %8046 = vmatprep.subr.mxu0 0.0
        %8047 = vmatpush1.xpose.msra.mxu0 0.0
        %8048 = vmatprep.subr.mxu0 0.0
        %8049 = vmatpush1.xpose.msra.mxu0 0.0
        %8050 = vmatprep.subr.mxu0 0.0
        %8051 = vmatpush1.xpose.msra.mxu0 0.0
        %8052 = vmatprep.subr.mxu0 0.0
        %8053 = vmatpush1.xpose.msra.mxu0 0.0
        %8054 = vmatprep.subr.mxu0 0.0
        %8055 = vmatpush1.xpose.msra.mxu0 0.0
        %8056 = vmatprep.subr.mxu0 0.0
        %8057 = vmatpush1.xpose.msra.mxu0 0.0
        %8058 = vmatprep.subr.mxu0 0.0
        %8059 = vmatpush1.xpose.msra.mxu0 0.0
        %8060 = vmatprep.subr.mxu0 0.0
        %8061 = vmatpush1.xpose.msra.mxu0 0.0
        %8062 = vmatprep.subr.mxu0 0.0
        %8063 = vmatpush1.xpose.msra.mxu0 0.0
        %8064 = vmatprep.subr.mxu0 0.0
        %8065 = vmatpush1.xpose.msra.mxu0 0.0
        %8066 = vmatprep.subr.mxu0 0.0
        %8067 = vmatpush1.xpose.msra.mxu0 0.0
        %8068 = vmatprep.subr.mxu0 0.0
        %8069 = vmatpush1.xpose.msra.mxu0 0.0
        %8070 = vmatprep.subr.mxu0 0.0
        %8071 = vmatpush1.xpose.msra.mxu0 0.0
        %8072 = vmatprep.subr.mxu0 0.0
        %8073 = vmatpush1.xpose.msra.mxu0 0.0
        %8074 = vmatprep.subr.mxu0 0.0
        %8075 = vmatpush1.xpose.msra.mxu0 0.0
        %8076 = vmatprep.subr.mxu0 0.0
        %8077 = vmatpush1.xpose.msra.mxu0 0.0
        %8078 = vmatprep.subr.mxu0 0.0
        %8079 = vmatpush1.xpose.msra.mxu0 0.0
        %8080 = vmatprep.subr.mxu0 0.0
        %8081 = vmatpush1.xpose.msra.mxu0 0.0
        %8082 = vmatprep.subr.mxu0 0.0
        %8083 = vmatpush1.xpose.msra.mxu0 0.0
        %8084 = vmatprep.subr.mxu0 0.0
        %8085 = vmatpush1.xpose.msra.mxu0 0.0
        %8086 = vmatprep.subr.mxu0 0.0
        %8087 = vmatpush1.xpose.msra.mxu0 0.0
        %8088 = vmatprep.subr.mxu0 0.0
        %8089 = vmatpush1.xpose.msra.mxu0 0.0
        %8090 = vmatprep.subr.mxu0 0.0
        %8091 = vmatpush1.xpose.msra.mxu0 0.0
        %8092 = vmatprep.subr.mxu0 0.0
        %8093 = vmatpush1.xpose.msra.mxu0 0.0
        %8094 = vmatprep.subr.mxu0 0.0
        %8095 = vmatpush1.xpose.msra.mxu0 0.0
        %8096 = vmatprep.subr.mxu0 0.0
        %8097 = vmatpush1.xpose.msra.mxu0 0.0
        %8098 = vmatprep.subr.mxu0 0.0
        %8099 = vmatpush1.xpose.msra.mxu0 0.0
        %8100 = vmatprep.subr.mxu0 0.0
        %8101 = vmatpush1.xpose.msra.mxu0 0.0
        %8102 = vmatprep.mubr.f32.mxu0 0.0
        %v8103 = vand.u32 %v7659, 4294901760
        %8104 = vmatmul.mubr.f32.gmra.mrb[0].mxu0 %v8103
        %v8105 = vpop.f32.mrb[0].mxu0
        %v8106 = vadd.f32 %v8034, %v8105
        %v8107 = vpop.f32.mrb[0].mxu0
        %8108 = vdwg.mxu0
        %v8109 = vmul.f32 %v8106, 0.35355338
        %v8110 = vadd.f32 %v8109, %v5341
        %v8111 = vsel %vm1187, %v8110, -inf
        %8112 = vmax.xlane.f32.xlu0 %v8111
        %v8113 = vpop.xlane.xlu0 %8112
        %v8114 = vsub.f32 %v8110, %v8113
        %v8115 = vmul.f32 %v8114, 1.442695
        %v8116 = vpow.pop %v8115
        %v8117 = vsel %vm1187, %v8116, 0.0
        %8118 = vadd.xlane.f32.xlu0 %v8117
        %v8119 = vpop.xlane.xlu0 %8118
        %v8120 = vrcp.pop %v8119
        %v8121 = vmul.f32 %v8116, %v8120
        %8122 = vrot.lane.b32.xlu0 %v1180, 40
        %v8123 = vpop.permute.xlu0 %8122
        %v8126 = vsel %vm1187, %v8121, 0
        %8128 = vmatprep.subr.mxu0 0.0
        %v8129 = vand.u32 %v8123, 4294901760
        %8130 = vmatpush1.msra.mxu0 %v8129
        %8131 = vmatprep.subr.mxu0 0.0
        %8132 = vmatpush1.msra.mxu0 0.0
        %8133 = vmatprep.subr.mxu0 0.0
        %8134 = vmatpush1.msra.mxu0 0.0
        %8135 = vmatprep.subr.mxu0 0.0
        %8136 = vmatpush1.msra.mxu0 0.0
        %8137 = vmatprep.subr.mxu0 0.0
        %8138 = vmatpush1.msra.mxu0 0.0
        %8139 = vmatprep.subr.mxu0 0.0
        %8140 = vmatpush1.msra.mxu0 0.0
        %8141 = vmatprep.subr.mxu0 0.0
        %8142 = vmatpush1.msra.mxu0 0.0
        %8143 = vmatprep.subr.mxu0 0.0
        %8144 = vmatpush1.msra.mxu0 0.0
        %8145 = vmatprep.subr.mxu0 0.0
        %8146 = vmatpush1.msra.mxu0 0.0
        %8147 = vmatprep.subr.mxu0 0.0
        %8148 = vmatpush1.msra.mxu0 0.0
        %8149 = vmatprep.subr.mxu0 0.0
        %8150 = vmatpush1.msra.mxu0 0.0
        %8151 = vmatprep.subr.mxu0 0.0
        %8152 = vmatpush1.msra.mxu0 0.0
        %8153 = vmatprep.subr.mxu0 0.0
        %8154 = vmatpush1.msra.mxu0 0.0
        %8155 = vmatprep.subr.mxu0 0.0
        %8156 = vmatpush1.msra.mxu0 0.0
        %8157 = vmatprep.subr.mxu0 0.0
        %8158 = vmatpush1.msra.mxu0 0.0
        %8159 = vmatprep.subr.mxu0 0.0
        %8160 = vmatpush1.msra.mxu0 0.0
        %8161 = vmatprep.subr.mxu0 0.0
        %8162 = vmatpush1.msra.mxu0 0.0
        %8163 = vmatprep.subr.mxu0 0.0
        %8164 = vmatpush1.msra.mxu0 0.0
        %8165 = vmatprep.subr.mxu0 0.0
        %8166 = vmatpush1.msra.mxu0 0.0
        %8167 = vmatprep.subr.mxu0 0.0
        %8168 = vmatpush1.msra.mxu0 0.0
        %8169 = vmatprep.subr.mxu0 0.0
        %8170 = vmatpush1.msra.mxu0 0.0
        %8171 = vmatprep.subr.mxu0 0.0
        %8172 = vmatpush1.msra.mxu0 0.0
        %8173 = vmatprep.subr.mxu0 0.0
        %8174 = vmatpush1.msra.mxu0 0.0
        %8175 = vmatprep.subr.mxu0 0.0
        %8176 = vmatpush1.msra.mxu0 0.0
        %8177 = vmatprep.subr.mxu0 0.0
        %8178 = vmatpush1.msra.mxu0 0.0
        %8179 = vmatprep.subr.mxu0 0.0
        %8180 = vmatpush1.msra.mxu0 0.0
        %8181 = vmatprep.subr.mxu0 0.0
        %8182 = vmatpush1.msra.mxu0 0.0
        %8183 = vmatprep.subr.mxu0 0.0
        %8184 = vmatpush1.msra.mxu0 0.0
        %8185 = vmatprep.subr.mxu0 0.0
        %8186 = vmatpush1.msra.mxu0 0.0
        %8187 = vmatprep.subr.mxu0 0.0
        %8188 = vmatpush1.msra.mxu0 0.0
        %8189 = vmatprep.subr.mxu0 0.0
        %8190 = vmatpush1.msra.mxu0 0.0
        %8191 = vmatprep.subr.mxu0 0.0
        %8192 = vmatpush1.msra.mxu0 0.0
        %8193 = vmatprep.mubr.f32.mxu0 0.0
        %v8194 = vand.u32 %v8126, 4294901760
        %v8195 = vsub.f32 %v8126, %v8194
        %v8196 = vand.u32 %v8195, 4294901760
        %v8197 = vsub.f32 %v8195, %v8196
        %v8198 = vand.u32 %v8197, 4294901760
        %8199 = vmatmul.mubr.f32.gmra.mrb[0].mxu0 %v8198
        %v8200 = vpop.f32.mrb[0].mxu0
        %v8201 = vadd.f32 0.0, %v8200
        %v8202 = vpop.f32.mrb[0].mxu0
        %8203 = vdwg.mxu0
        %8204 = vmatprep.subr.mxu0 0.0
        %v8205 = vand.u32 %v8123, 4294901760
        %v8206 = vsub.f32 %v8123, %v8205
        %v8207 = vand.u32 %v8206, 4294901760
        %v8208 = vsub.f32 %v8206, %v8207
        %v8209 = vand.u32 %v8208, 4294901760
        %8210 = vmatpush1.msra.mxu0 %v8209
        %8211 = vmatprep.subr.mxu0 0.0
        %8212 = vmatpush1.msra.mxu0 0.0
        %8213 = vmatprep.subr.mxu0 0.0
        %8214 = vmatpush1.msra.mxu0 0.0
        %8215 = vmatprep.subr.mxu0 0.0
        %8216 = vmatpush1.msra.mxu0 0.0
        %8217 = vmatprep.subr.mxu0 0.0
        %8218 = vmatpush1.msra.mxu0 0.0
        %8219 = vmatprep.subr.mxu0 0.0
        %8220 = vmatpush1.msra.mxu0 0.0
        %8221 = vmatprep.subr.mxu0 0.0
        %8222 = vmatpush1.msra.mxu0 0.0
        %8223 = vmatprep.subr.mxu0 0.0
        %8224 = vmatpush1.msra.mxu0 0.0
        %8225 = vmatprep.subr.mxu0 0.0
        %8226 = vmatpush1.msra.mxu0 0.0
        %8227 = vmatprep.subr.mxu0 0.0
        %8228 = vmatpush1.msra.mxu0 0.0
        %8229 = vmatprep.subr.mxu0 0.0
        %8230 = vmatpush1.msra.mxu0 0.0
        %8231 = vmatprep.subr.mxu0 0.0
        %8232 = vmatpush1.msra.mxu0 0.0
        %8233 = vmatprep.subr.mxu0 0.0
        %8234 = vmatpush1.msra.mxu0 0.0
        %8235 = vmatprep.subr.mxu0 0.0
        %8236 = vmatpush1.msra.mxu0 0.0
        %8237 = vmatprep.subr.mxu0 0.0
        %8238 = vmatpush1.msra.mxu0 0.0
        %8239 = vmatprep.subr.mxu0 0.0
        %8240 = vmatpush1.msra.mxu0 0.0
        %8241 = vmatprep.subr.mxu0 0.0
        %8242 = vmatpush1.msra.mxu0 0.0
        %8243 = vmatprep.subr.mxu0 0.0
        %8244 = vmatpush1.msra.mxu0 0.0
        %8245 = vmatprep.subr.mxu0 0.0
        %8246 = vmatpush1.msra.mxu0 0.0
        %8247 = vmatprep.subr.mxu0 0.0
        %8248 = vmatpush1.msra.mxu0 0.0
        %8249 = vmatprep.subr.mxu0 0.0
        %8250 = vmatpush1.msra.mxu0 0.0
        %8251 = vmatprep.subr.mxu0 0.0
        %8252 = vmatpush1.msra.mxu0 0.0
        %8253 = vmatprep.subr.mxu0 0.0
        %8254 = vmatpush1.msra.mxu0 0.0
        %8255 = vmatprep.subr.mxu0 0.0
        %8256 = vmatpush1.msra.mxu0 0.0
        %8257 = vmatprep.subr.mxu0 0.0
        %8258 = vmatpush1.msra.mxu0 0.0
        %8259 = vmatprep.subr.mxu0 0.0
        %8260 = vmatpush1.msra.mxu0 0.0
        %8261 = vmatprep.subr.mxu0 0.0
        %8262 = vmatpush1.msra.mxu0 0.0
        %8263 = vmatprep.subr.mxu0 0.0
        %8264 = vmatpush1.msra.mxu0 0.0
        %8265 = vmatprep.subr.mxu0 0.0
        %8266 = vmatpush1.msra.mxu0 0.0
        %8267 = vmatprep.subr.mxu0 0.0
        %8268 = vmatpush1.msra.mxu0 0.0
        %8269 = vmatprep.subr.mxu0 0.0
        %8270 = vmatpush1.msra.mxu0 0.0
        %8271 = vmatprep.subr.mxu0 0.0
        %8272 = vmatpush1.msra.mxu0 0.0
        %8273 = vmatprep.mubr.f32.mxu0 0.0
        %v8274 = vand.u32 %v8126, 4294901760
        %8275 = vmatmul.mubr.f32.gmra.mrb[0].mxu0 %v8274
        %v8276 = vpop.f32.mrb[0].mxu0
        %v8277 = vadd.f32 %v8201, %v8276
        %v8278 = vpop.f32.mrb[0].mxu0
        %8279 = vdwg.mxu0
        %8280 = vmatprep.subr.mxu0 0.0
        %v8281 = vand.u32 %v8123, 4294901760
        %v8282 = vsub.f32 %v8123, %v8281
        %8283 = vmatpush1.msra.mxu0 %v8282
        %8284 = vmatprep.subr.mxu0 0.0
        %8285 = vmatpush1.msra.mxu0 0.0
        %8286 = vmatprep.subr.mxu0 0.0
        %8287 = vmatpush1.msra.mxu0 0.0
        %8288 = vmatprep.subr.mxu0 0.0
        %8289 = vmatpush1.msra.mxu0 0.0
        %8290 = vmatprep.subr.mxu0 0.0
        %8291 = vmatpush1.msra.mxu0 0.0
        %8292 = vmatprep.subr.mxu0 0.0
        %8293 = vmatpush1.msra.mxu0 0.0
        %8294 = vmatprep.subr.mxu0 0.0
        %8295 = vmatpush1.msra.mxu0 0.0
        %8296 = vmatprep.subr.mxu0 0.0
        %8297 = vmatpush1.msra.mxu0 0.0
        %8298 = vmatprep.subr.mxu0 0.0
        %8299 = vmatpush1.msra.mxu0 0.0
        %8300 = vmatprep.subr.mxu0 0.0
        %8301 = vmatpush1.msra.mxu0 0.0
        %8302 = vmatprep.subr.mxu0 0.0
        %8303 = vmatpush1.msra.mxu0 0.0
        %8304 = vmatprep.subr.mxu0 0.0
        %8305 = vmatpush1.msra.mxu0 0.0
        %8306 = vmatprep.subr.mxu0 0.0
        %8307 = vmatpush1.msra.mxu0 0.0
        %8308 = vmatprep.subr.mxu0 0.0
        %8309 = vmatpush1.msra.mxu0 0.0
        %8310 = vmatprep.subr.mxu0 0.0
        %8311 = vmatpush1.msra.mxu0 0.0
        %8312 = vmatprep.subr.mxu0 0.0
        %8313 = vmatpush1.msra.mxu0 0.0
        %8314 = vmatprep.subr.mxu0 0.0
        %8315 = vmatpush1.msra.mxu0 0.0
        %8316 = vmatprep.subr.mxu0 0.0
        %8317 = vmatpush1.msra.mxu0 0.0
        %8318 = vmatprep.subr.mxu0 0.0
        %8319 = vmatpush1.msra.mxu0 0.0
        %8320 = vmatprep.subr.mxu0 0.0
        %8321 = vmatpush1.msra.mxu0 0.0
        %8322 = vmatprep.subr.mxu0 0.0
        %8323 = vmatpush1.msra.mxu0 0.0
        %8324 = vmatprep.subr.mxu0 0.0
        %8325 = vmatpush1.msra.mxu0 0.0
        %8326 = vmatprep.subr.mxu0 0.0
        %8327 = vmatpush1.msra.mxu0 0.0
        %8328 = vmatprep.subr.mxu0 0.0
        %8329 = vmatpush1.msra.mxu0 0.0
        %8330 = vmatprep.subr.mxu0 0.0
        %8331 = vmatpush1.msra.mxu0 0.0
        %8332 = vmatprep.subr.mxu0 0.0
        %8333 = vmatpush1.msra.mxu0 0.0
        %8334 = vmatprep.subr.mxu0 0.0
        %8335 = vmatpush1.msra.mxu0 0.0
        %8336 = vmatprep.subr.mxu0 0.0
        %8337 = vmatpush1.msra.mxu0 0.0
        %8338 = vmatprep.subr.mxu0 0.0
        %8339 = vmatpush1.msra.mxu0 0.0
        %8340 = vmatprep.subr.mxu0 0.0
        %8341 = vmatpush1.msra.mxu0 0.0
        %8342 = vmatprep.subr.mxu0 0.0
        %8343 = vmatpush1.msra.mxu0 0.0
        %8344 = vmatprep.subr.mxu0 0.0
        %8345 = vmatpush1.msra.mxu0 0.0
        %8346 = vmatprep.mubr.f32.mxu0 0.0
        %v8347 = vand.u32 %v8126, 4294901760
        %v8348 = vsub.f32 %v8126, %v8347
        %8349 = vmatmul.mubr.f32.gmra.mrb[0].mxu0 %v8348
        %v8350 = vpop.f32.mrb[0].mxu0
        %v8351 = vadd.f32 %v8277, %v8350
        %v8352 = vpop.f32.mrb[0].mxu0
        %8353 = vdwg.mxu0
        %8354 = vmatprep.subr.mxu0 0.0
        %v8355 = vand.u32 %v8123, 4294901760
        %8356 = vmatpush1.msra.mxu0 %v8355
        %8357 = vmatprep.subr.mxu0 0.0
        %8358 = vmatpush1.msra.mxu0 0.0
        %8359 = vmatprep.subr.mxu0 0.0
        %8360 = vmatpush1.msra.mxu0 0.0
        %8361 = vmatprep.subr.mxu0 0.0
        %8362 = vmatpush1.msra.mxu0 0.0
        %8363 = vmatprep.subr.mxu0 0.0
        %8364 = vmatpush1.msra.mxu0 0.0
        %8365 = vmatprep.subr.mxu0 0.0
        %8366 = vmatpush1.msra.mxu0 0.0
        %8367 = vmatprep.subr.mxu0 0.0
        %8368 = vmatpush1.msra.mxu0 0.0
        %8369 = vmatprep.subr.mxu0 0.0
        %8370 = vmatpush1.msra.mxu0 0.0
        %8371 = vmatprep.subr.mxu0 0.0
        %8372 = vmatpush1.msra.mxu0 0.0
        %8373 = vmatprep.subr.mxu0 0.0
        %8374 = vmatpush1.msra.mxu0 0.0
        %8375 = vmatprep.subr.mxu0 0.0
        %8376 = vmatpush1.msra.mxu0 0.0
        %8377 = vmatprep.subr.mxu0 0.0
        %8378 = vmatpush1.msra.mxu0 0.0
        %8379 = vmatprep.subr.mxu0 0.0
        %8380 = vmatpush1.msra.mxu0 0.0
        %8381 = vmatprep.subr.mxu0 0.0
        %8382 = vmatpush1.msra.mxu0 0.0
        %8383 = vmatprep.subr.mxu0 0.0
        %8384 = vmatpush1.msra.mxu0 0.0
        %8385 = vmatprep.subr.mxu0 0.0
        %8386 = vmatpush1.msra.mxu0 0.0
        %8387 = vmatprep.subr.mxu0 0.0
        %8388 = vmatpush1.msra.mxu0 0.0
        %8389 = vmatprep.subr.mxu0 0.0
        %8390 = vmatpush1.msra.mxu0 0.0
        %8391 = vmatprep.subr.mxu0 0.0
        %8392 = vmatpush1.msra.mxu0 0.0
        %8393 = vmatprep.subr.mxu0 0.0
        %8394 = vmatpush1.msra.mxu0 0.0
        %8395 = vmatprep.subr.mxu0 0.0
        %8396 = vmatpush1.msra.mxu0 0.0
        %8397 = vmatprep.subr.mxu0 0.0
        %8398 = vmatpush1.msra.mxu0 0.0
        %8399 = vmatprep.subr.mxu0 0.0
        %8400 = vmatpush1.msra.mxu0 0.0
        %8401 = vmatprep.subr.mxu0 0.0
        %8402 = vmatpush1.msra.mxu0 0.0
        %8403 = vmatprep.subr.mxu0 0.0
        %8404 = vmatpush1.msra.mxu0 0.0
        %8405 = vmatprep.subr.mxu0 0.0
        %8406 = vmatpush1.msra.mxu0 0.0
        %8407 = vmatprep.subr.mxu0 0.0
        %8408 = vmatpush1.msra.mxu0 0.0
        %8409 = vmatprep.subr.mxu0 0.0
        %8410 = vmatpush1.msra.mxu0 0.0
        %8411 = vmatprep.subr.mxu0 0.0
        %8412 = vmatpush1.msra.mxu0 0.0
        %8413 = vmatprep.subr.mxu0 0.0
        %8414 = vmatpush1.msra.mxu0 0.0
        %8415 = vmatprep.subr.mxu0 0.0
        %8416 = vmatpush1.msra.mxu0 0.0
        %8417 = vmatprep.subr.mxu0 0.0
        %8418 = vmatpush1.msra.mxu0 0.0
        %8419 = vmatprep.mubr.f32.mxu0 0.0
        %v8420 = vand.u32 %v8126, 4294901760
        %v8421 = vsub.f32 %v8126, %v8420
        %v8422 = vand.u32 %v8421, 4294901760
        %8423 = vmatmul.mubr.f32.gmra.mrb[0].mxu0 %v8422
        %v8424 = vpop.f32.mrb[0].mxu0
        %v8425 = vadd.f32 %v8351, %v8424
        %v8426 = vpop.f32.mrb[0].mxu0
        %8427 = vdwg.mxu0
        %8428 = vmatprep.subr.mxu0 0.0
        %v8429 = vand.u32 %v8123, 4294901760
        %v8430 = vsub.f32 %v8123, %v8429
        %v8431 = vand.u32 %v8430, 4294901760
        %8432 = vmatpush1.msra.mxu0 %v8431
        %8433 = vmatprep.subr.mxu0 0.0
        %8434 = vmatpush1.msra.mxu0 0.0
        %8435 = vmatprep.subr.mxu0 0.0
        %8436 = vmatpush1.msra.mxu0 0.0
        %8437 = vmatprep.subr.mxu0 0.0
        %8438 = vmatpush1.msra.mxu0 0.0
        %8439 = vmatprep.subr.mxu0 0.0
        %8440 = vmatpush1.msra.mxu0 0.0
        %8441 = vmatprep.subr.mxu0 0.0
        %8442 = vmatpush1.msra.mxu0 0.0
        %8443 = vmatprep.subr.mxu0 0.0
        %8444 = vmatpush1.msra.mxu0 0.0
        %8445 = vmatprep.subr.mxu0 0.0
        %8446 = vmatpush1.msra.mxu0 0.0
        %8447 = vmatprep.subr.mxu0 0.0
        %8448 = vmatpush1.msra.mxu0 0.0
        %8449 = vmatprep.subr.mxu0 0.0
        %8450 = vmatpush1.msra.mxu0 0.0
        %8451 = vmatprep.subr.mxu0 0.0
        %8452 = vmatpush1.msra.mxu0 0.0
        %8453 = vmatprep.subr.mxu0 0.0
        %8454 = vmatpush1.msra.mxu0 0.0
        %8455 = vmatprep.subr.mxu0 0.0
        %8456 = vmatpush1.msra.mxu0 0.0
        %8457 = vmatprep.subr.mxu0 0.0
        %8458 = vmatpush1.msra.mxu0 0.0
        %8459 = vmatprep.subr.mxu0 0.0
        %8460 = vmatpush1.msra.mxu0 0.0
        %8461 = vmatprep.subr.mxu0 0.0
        %8462 = vmatpush1.msra.mxu0 0.0
        %8463 = vmatprep.subr.mxu0 0.0
        %8464 = vmatpush1.msra.mxu0 0.0
        %8465 = vmatprep.subr.mxu0 0.0
        %8466 = vmatpush1.msra.mxu0 0.0
        %8467 = vmatprep.subr.mxu0 0.0
        %8468 = vmatpush1.msra.mxu0 0.0
        %8469 = vmatprep.subr.mxu0 0.0
        %8470 = vmatpush1.msra.mxu0 0.0
        %8471 = vmatprep.subr.mxu0 0.0
        %8472 = vmatpush1.msra.mxu0 0.0
        %8473 = vmatprep.subr.mxu0 0.0
        %8474 = vmatpush1.msra.mxu0 0.0
        %8475 = vmatprep.subr.mxu0 0.0
        %8476 = vmatpush1.msra.mxu0 0.0
        %8477 = vmatprep.subr.mxu0 0.0
        %8478 = vmatpush1.msra.mxu0 0.0
        %8479 = vmatprep.subr.mxu0 0.0
        %8480 = vmatpush1.msra.mxu0 0.0
        %8481 = vmatprep.subr.mxu0 0.0
        %8482 = vmatpush1.msra.mxu0 0.0
        %8483 = vmatprep.subr.mxu0 0.0
        %8484 = vmatpush1.msra.mxu0 0.0
        %8485 = vmatprep.subr.mxu0 0.0
        %8486 = vmatpush1.msra.mxu0 0.0
        %8487 = vmatprep.subr.mxu0 0.0
        %8488 = vmatpush1.msra.mxu0 0.0
        %8489 = vmatprep.subr.mxu0 0.0
        %8490 = vmatpush1.msra.mxu0 0.0
        %8491 = vmatprep.subr.mxu0 0.0
        %8492 = vmatpush1.msra.mxu0 0.0
        %8493 = vmatprep.subr.mxu0 0.0
        %8494 = vmatpush1.msra.mxu0 0.0
        %8495 = vmatprep.mubr.f32.mxu0 0.0
        %v8496 = vand.u32 %v8126, 4294901760
        %8497 = vmatmul.mubr.f32.gmra.mrb[0].mxu0 %v8496
        %v8498 = vpop.f32.mrb[0].mxu0
        %v8499 = vadd.f32 %v8425, %v8498
        %v8500 = vpop.f32.mrb[0].mxu0
        %8501 = vdwg.mxu0
        %8502 = vmatprep.subr.mxu0 0.0
        %v8503 = vand.u32 %v8123, 4294901760
        %8504 = vmatpush1.msra.mxu0 %v8503
        %8505 = vmatprep.subr.mxu0 0.0
        %8506 = vmatpush1.msra.mxu0 0.0
        %8507 = vmatprep.subr.mxu0 0.0
        %8508 = vmatpush1.msra.mxu0 0.0
        %8509 = vmatprep.subr.mxu0 0.0
        %8510 = vmatpush1.msra.mxu0 0.0
        %8511 = vmatprep.subr.mxu0 0.0
        %8512 = vmatpush1.msra.mxu0 0.0
        %8513 = vmatprep.subr.mxu0 0.0
        %8514 = vmatpush1.msra.mxu0 0.0
        %8515 = vmatprep.subr.mxu0 0.0
        %8516 = vmatpush1.msra.mxu0 0.0
        %8517 = vmatprep.subr.mxu0 0.0
        %8518 = vmatpush1.msra.mxu0 0.0
        %8519 = vmatprep.subr.mxu0 0.0
        %8520 = vmatpush1.msra.mxu0 0.0
        %8521 = vmatprep.subr.mxu0 0.0
        %8522 = vmatpush1.msra.mxu0 0.0
        %8523 = vmatprep.subr.mxu0 0.0
        %8524 = vmatpush1.msra.mxu0 0.0
        %8525 = vmatprep.subr.mxu0 0.0
        %8526 = vmatpush1.msra.mxu0 0.0
        %8527 = vmatprep.subr.mxu0 0.0
        %8528 = vmatpush1.msra.mxu0 0.0
        %8529 = vmatprep.subr.mxu0 0.0
        %8530 = vmatpush1.msra.mxu0 0.0
        %8531 = vmatprep.subr.mxu0 0.0
        %8532 = vmatpush1.msra.mxu0 0.0
        %8533 = vmatprep.subr.mxu0 0.0
        %8534 = vmatpush1.msra.mxu0 0.0
        %8535 = vmatprep.subr.mxu0 0.0
        %8536 = vmatpush1.msra.mxu0 0.0
        %8537 = vmatprep.subr.mxu0 0.0
        %8538 = vmatpush1.msra.mxu0 0.0
        %8539 = vmatprep.subr.mxu0 0.0
        %8540 = vmatpush1.msra.mxu0 0.0
        %8541 = vmatprep.subr.mxu0 0.0
        %8542 = vmatpush1.msra.mxu0 0.0
        %8543 = vmatprep.subr.mxu0 0.0
        %8544 = vmatpush1.msra.mxu0 0.0
        %8545 = vmatprep.subr.mxu0 0.0
        %8546 = vmatpush1.msra.mxu0 0.0
        %8547 = vmatprep.subr.mxu0 0.0
        %8548 = vmatpush1.msra.mxu0 0.0
        %8549 = vmatprep.subr.mxu0 0.0
        %8550 = vmatpush1.msra.mxu0 0.0
        %8551 = vmatprep.subr.mxu0 0.0
        %8552 = vmatpush1.msra.mxu0 0.0
        %8553 = vmatprep.subr.mxu0 0.0
        %8554 = vmatpush1.msra.mxu0 0.0
        %8555 = vmatprep.subr.mxu0 0.0
        %8556 = vmatpush1.msra.mxu0 0.0
        %8557 = vmatprep.subr.mxu0 0.0
        %8558 = vmatpush1.msra.mxu0 0.0
        %8559 = vmatprep.subr.mxu0 0.0
        %8560 = vmatpush1.msra.mxu0 0.0
        %8561 = vmatprep.subr.mxu0 0.0
        %8562 = vmatpush1.msra.mxu0 0.0
        %8563 = vmatprep.subr.mxu0 0.0
        %8564 = vmatpush1.msra.mxu0 0.0
        %8565 = vmatprep.subr.mxu0 0.0
        %8566 = vmatpush1.msra.mxu0 0.0
        %8567 = vmatprep.mubr.f32.mxu0 0.0
        %v8568 = vand.u32 %v8126, 4294901760
        %8569 = vmatmul.mubr.f32.gmra.mrb[0].mxu0 %v8568
        %v8570 = vpop.f32.mrb[0].mxu0
        %v8571 = vadd.f32 %v8499, %v8570
        %v8572 = vpop.f32.mrb[0].mxu0
        %8573 = vdwg.mxu0
        %8575 = vrot.lane.b32.xlu0 %v8571, 24
        %v8576 = vpop.permute.xlu0 %8575
        %8578 = vst.msk [vmem:[#allocation2 + $0x8] sm:$0xff] %vm4881, %v8576
        %v8579 = vld [vmem:[#allocation2] sm:$0xff]
        %v8580 = vld [vmem:[#allocation2 + $0x8] sm:$0xff]
        %v8581 = vld [vmem:[%s594] sm:$0xff]
        %v8582 = vld [vmem:[%s594 + $0x8] sm:$0xff]
        %v8583 = vld [vmem:[%s594 + $0x10] sm:$0xff]
        %v8584 = vld [vmem:[%s594 + $0x18] sm:$0xff]
        %v8585 = vld [vmem:[%s597] sm:$0x1]
        %v8587 = vlaneseq
        %v8588 = vshrl.u32 %v8587, 7
        %v8589 = vsub.s32 0, %v8588
        %v8590 = vrot.slane %v8585, %v8589
        %v8593 = vsel %vm648, %v8579, 0
        %v8596 = vsel %vm648, %v8580, 0
        %8598 = vmatprep.subr.mxu0 0.0
        %v8599 = vand.u32 %v8581, 4294901760
        %8600 = vmatpush1.msra.mxu0 %v8599
        %8601 = vmatprep.subr.mxu0 0.0
        %v8602 = vand.u32 %v8582, 4294901760
        %8603 = vmatpush1.msra.mxu0 %v8602
        %8604 = vmatprep.subr.mxu0 0.0
        %v8605 = vand.u32 %v8583, 4294901760
        %8606 = vmatpush1.msra.mxu0 %v8605
        %8607 = vmatprep.subr.mxu0 0.0
        %v8608 = vand.u32 %v8584, 4294901760
        %8609 = vmatpush1.msra.mxu0 %v8608
        %8610 = vmatprep.subr.mxu0 0.0
        %8611 = vmatpush1.msra.mxu0 0.0
        %8612 = vmatprep.subr.mxu0 0.0
        %8613 = vmatpush1.msra.mxu0 0.0
        %8614 = vmatprep.subr.mxu0 0.0
        %8615 = vmatpush1.msra.mxu0 0.0
        %8616 = vmatprep.subr.mxu0 0.0
        %8617 = vmatpush1.msra.mxu0 0.0
        %8618 = vmatprep.subr.mxu0 0.0
        %8619 = vmatpush1.msra.mxu0 0.0
        %8620 = vmatprep.subr.mxu0 0.0
        %8621 = vmatpush1.msra.mxu0 0.0
        %8622 = vmatprep.subr.mxu0 0.0
        %8623 = vmatpush1.msra.mxu0 0.0
        %8624 = vmatprep.subr.mxu0 0.0
        %8625 = vmatpush1.msra.mxu0 0.0
        %8626 = vmatprep.subr.mxu0 0.0
        %8627 = vmatpush1.msra.mxu0 0.0
        %8628 = vmatprep.subr.mxu0 0.0
        %8629 = vmatpush1.msra.mxu0 0.0
        %8630 = vmatprep.subr.mxu0 0.0
        %8631 = vmatpush1.msra.mxu0 0.0
        %8632 = vmatprep.subr.mxu0 0.0
        %8633 = vmatpush1.msra.mxu0 0.0
        %8634 = vmatprep.subr.mxu0 0.0
        %8635 = vmatpush1.msra.mxu0 0.0
        %8636 = vmatprep.subr.mxu0 0.0
        %8637 = vmatpush1.msra.mxu0 0.0
        %8638 = vmatprep.subr.mxu0 0.0
        %8639 = vmatpush1.msra.mxu0 0.0
        %8640 = vmatprep.subr.mxu0 0.0
        %8641 = vmatpush1.msra.mxu0 0.0
        %8642 = vmatprep.subr.mxu0 0.0
        %8643 = vmatpush1.msra.mxu0 0.0
        %8644 = vmatprep.subr.mxu0 0.0
        %8645 = vmatpush1.msra.mxu0 0.0
        %8646 = vmatprep.subr.mxu0 0.0
        %8647 = vmatpush1.msra.mxu0 0.0
        %8648 = vmatprep.subr.mxu0 0.0
        %8649 = vmatpush1.msra.mxu0 0.0
        %8650 = vmatprep.subr.mxu0 0.0
        %8651 = vmatpush1.msra.mxu0 0.0
        %8652 = vmatprep.subr.mxu0 0.0
        %8653 = vmatpush1.msra.mxu0 0.0
        %8654 = vmatprep.subr.mxu0 0.0
        %8655 = vmatpush1.msra.mxu0 0.0
        %8656 = vmatprep.subr.mxu0 0.0
        %8657 = vmatpush1.msra.mxu0 0.0
        %8658 = vmatprep.subr.mxu0 0.0
        %8659 = vmatpush1.msra.mxu0 0.0
        %8660 = vmatprep.subr.mxu0 0.0
        %8661 = vmatpush1.msra.mxu0 0.0
        %8662 = vmatprep.subr.mxu0 0.0
        %8663 = vmatpush1.msra.mxu0 0.0
        %8664 = vmatprep.subr.mxu0 0.0
        %8665 = vmatpush1.msra.mxu0 0.0
        %8666 = vmatprep.mubr.f32.mxu0 0.0
        %v8667 = vand.u32 %v8593, 4294901760
        %v8668 = vsub.f32 %v8593, %v8667
        %v8669 = vand.u32 %v8668, 4294901760
        %v8670 = vsub.f32 %v8668, %v8669
        %v8671 = vand.u32 %v8670, 4294901760
        %8672 = vmatmul.mubr.f32.gmra.mrb[0].mxu0 %v8671
        %v8673 = vpop.f32.mrb[0].mxu0
        %v8674 = vadd.f32 %v8590, %v8673
        %v8675 = vpop.f32.mrb[0].mxu0
        %8676 = vmatprep.mubr.f32.mxu0 0.0
        %v8677 = vand.u32 %v8596, 4294901760
        %v8678 = vsub.f32 %v8596, %v8677
        %v8679 = vand.u32 %v8678, 4294901760
        %v8680 = vsub.f32 %v8678, %v8679
        %v8681 = vand.u32 %v8680, 4294901760
        %8682 = vmatmul.mubr.f32.gmra.mrb[0].mxu0 %v8681
        %v8683 = vpop.f32.mrb[0].mxu0
        %v8684 = vadd.f32 %v8590, %v8683
        %v8685 = vpop.f32.mrb[0].mxu0
        %8686 = vdwg.mxu0
        %8687 = vmatprep.subr.mxu0 0.0
        %v8688 = vand.u32 %v8581, 4294901760
        %v8689 = vsub.f32 %v8581, %v8688
        %v8690 = vand.u32 %v8689, 4294901760
        %v8691 = vsub.f32 %v8689, %v8690
        %v8692 = vand.u32 %v8691, 4294901760
        %8693 = vmatpush1.msra.mxu0 %v8692
        %8694 = vmatprep.subr.mxu0 0.0
        %v8695 = vand.u32 %v8582, 4294901760
        %v8696 = vsub.f32 %v8582, %v8695
        %v8697 = vand.u32 %v8696, 4294901760
        %v8698 = vsub.f32 %v8696, %v8697
        %v8699 = vand.u32 %v8698, 4294901760
        %8700 = vmatpush1.msra.mxu0 %v8699
        %8701 = vmatprep.subr.mxu0 0.0
        %v8702 = vand.u32 %v8583, 4294901760
        %v8703 = vsub.f32 %v8583, %v8702
        %v8704 = vand.u32 %v8703, 4294901760
        %v8705 = vsub.f32 %v8703, %v8704
        %v8706 = vand.u32 %v8705, 4294901760
        %8707 = vmatpush1.msra.mxu0 %v8706
        %8708 = vmatprep.subr.mxu0 0.0
        %v8709 = vand.u32 %v8584, 4294901760
        %v8710 = vsub.f32 %v8584, %v8709
        %v8711 = vand.u32 %v8710, 4294901760
        %v8712 = vsub.f32 %v8710, %v8711
        %v8713 = vand.u32 %v8712, 4294901760
        %8714 = vmatpush1.msra.mxu0 %v8713
        %8715 = vmatprep.subr.mxu0 0.0
        %8716 = vmatpush1.msra.mxu0 0.0
        %8717 = vmatprep.subr.mxu0 0.0
        %8718 = vmatpush1.msra.mxu0 0.0
        %8719 = vmatprep.subr.mxu0 0.0
        %8720 = vmatpush1.msra.mxu0 0.0
        %8721 = vmatprep.subr.mxu0 0.0
        %8722 = vmatpush1.msra.mxu0 0.0
        %8723 = vmatprep.subr.mxu0 0.0
        %8724 = vmatpush1.msra.mxu0 0.0
        %8725 = vmatprep.subr.mxu0 0.0
        %8726 = vmatpush1.msra.mxu0 0.0
        %8727 = vmatprep.subr.mxu0 0.0
        %8728 = vmatpush1.msra.mxu0 0.0
        %8729 = vmatprep.subr.mxu0 0.0
        %8730 = vmatpush1.msra.mxu0 0.0
        %8731 = vmatprep.subr.mxu0 0.0
        %8732 = vmatpush1.msra.mxu0 0.0
        %8733 = vmatprep.subr.mxu0 0.0
        %8734 = vmatpush1.msra.mxu0 0.0
        %8735 = vmatprep.subr.mxu0 0.0
        %8736 = vmatpush1.msra.mxu0 0.0
        %8737 = vmatprep.subr.mxu0 0.0
        %8738 = vmatpush1.msra.mxu0 0.0
        %8739 = vmatprep.subr.mxu0 0.0
        %8740 = vmatpush1.msra.mxu0 0.0
        %8741 = vmatprep.subr.mxu0 0.0
        %8742 = vmatpush1.msra.mxu0 0.0
        %8743 = vmatprep.subr.mxu0 0.0
        %8744 = vmatpush1.msra.mxu0 0.0
        %8745 = vmatprep.subr.mxu0 0.0
        %8746 = vmatpush1.msra.mxu0 0.0
        %8747 = vmatprep.subr.mxu0 0.0
        %8748 = vmatpush1.msra.mxu0 0.0
        %8749 = vmatprep.subr.mxu0 0.0
        %8750 = vmatpush1.msra.mxu0 0.0
        %8751 = vmatprep.subr.mxu0 0.0
        %8752 = vmatpush1.msra.mxu0 0.0
        %8753 = vmatprep.subr.mxu0 0.0
        %8754 = vmatpush1.msra.mxu0 0.0
        %8755 = vmatprep.subr.mxu0 0.0
        %8756 = vmatpush1.msra.mxu0 0.0
        %8757 = vmatprep.subr.mxu0 0.0
        %8758 = vmatpush1.msra.mxu0 0.0
        %8759 = vmatprep.subr.mxu0 0.0
        %8760 = vmatpush1.msra.mxu0 0.0
        %8761 = vmatprep.subr.mxu0 0.0
        %8762 = vmatpush1.msra.mxu0 0.0
        %8763 = vmatprep.subr.mxu0 0.0
        %8764 = vmatpush1.msra.mxu0 0.0
        %8765 = vmatprep.subr.mxu0 0.0
        %8766 = vmatpush1.msra.mxu0 0.0
        %8767 = vmatprep.subr.mxu0 0.0
        %8768 = vmatpush1.msra.mxu0 0.0
        %8769 = vmatprep.subr.mxu0 0.0
        %8770 = vmatpush1.msra.mxu0 0.0
        %8771 = vmatprep.mubr.f32.mxu0 0.0
        %v8772 = vand.u32 %v8593, 4294901760
        %8773 = vmatmul.mubr.f32.gmra.mrb[0].mxu0 %v8772
        %v8774 = vpop.f32.mrb[0].mxu0
        %v8775 = vadd.f32 %v8674, %v8774
        %v8776 = vpop.f32.mrb[0].mxu0
        %8777 = vmatprep.mubr.f32.mxu0 0.0
        %v8778 = vand.u32 %v8596, 4294901760
        %8779 = vmatmul.mubr.f32.gmra.mrb[0].mxu0 %v8778
        %v8780 = vpop.f32.mrb[0].mxu0
        %v8781 = vadd.f32 %v8684, %v8780
        %v8782 = vpop.f32.mrb[0].mxu0
        %8783 = vdwg.mxu0
        %8784 = vmatprep.subr.mxu0 0.0
        %v8785 = vand.u32 %v8581, 4294901760
        %v8786 = vsub.f32 %v8581, %v8785
        %8787 = vmatpush1.msra.mxu0 %v8786
        %8788 = vmatprep.subr.mxu0 0.0
        %v8789 = vand.u32 %v8582, 4294901760
        %v8790 = vsub.f32 %v8582, %v8789
        %8791 = vmatpush1.msra.mxu0 %v8790
        %8792 = vmatprep.subr.mxu0 0.0
        %v8793 = vand.u32 %v8583, 4294901760
        %v8794 = vsub.f32 %v8583, %v8793
        %8795 = vmatpush1.msra.mxu0 %v8794
        %8796 = vmatprep.subr.mxu0 0.0
        %v8797 = vand.u32 %v8584, 4294901760
        %v8798 = vsub.f32 %v8584, %v8797
        %8799 = vmatpush1.msra.mxu0 %v8798
        %8800 = vmatprep.subr.mxu0 0.0
        %8801 = vmatpush1.msra.mxu0 0.0
        %8802 = vmatprep.subr.mxu0 0.0
        %8803 = vmatpush1.msra.mxu0 0.0
        %8804 = vmatprep.subr.mxu0 0.0
        %8805 = vmatpush1.msra.mxu0 0.0
        %8806 = vmatprep.subr.mxu0 0.0
        %8807 = vmatpush1.msra.mxu0 0.0
        %8808 = vmatprep.subr.mxu0 0.0
        %8809 = vmatpush1.msra.mxu0 0.0
        %8810 = vmatprep.subr.mxu0 0.0
        %8811 = vmatpush1.msra.mxu0 0.0
        %8812 = vmatprep.subr.mxu0 0.0
        %8813 = vmatpush1.msra.mxu0 0.0
        %8814 = vmatprep.subr.mxu0 0.0
        %8815 = vmatpush1.msra.mxu0 0.0
        %8816 = vmatprep.subr.mxu0 0.0
        %8817 = vmatpush1.msra.mxu0 0.0
        %8818 = vmatprep.subr.mxu0 0.0
        %8819 = vmatpush1.msra.mxu0 0.0
        %8820 = vmatprep.subr.mxu0 0.0
        %8821 = vmatpush1.msra.mxu0 0.0
        %8822 = vmatprep.subr.mxu0 0.0
        %8823 = vmatpush1.msra.mxu0 0.0
        %8824 = vmatprep.subr.mxu0 0.0
        %8825 = vmatpush1.msra.mxu0 0.0
        %8826 = vmatprep.subr.mxu0 0.0
        %8827 = vmatpush1.msra.mxu0 0.0
        %8828 = vmatprep.subr.mxu0 0.0
        %8829 = vmatpush1.msra.mxu0 0.0
        %8830 = vmatprep.subr.mxu0 0.0
        %8831 = vmatpush1.msra.mxu0 0.0
        %8832 = vmatprep.subr.mxu0 0.0
        %8833 = vmatpush1.msra.mxu0 0.0
        %8834 = vmatprep.subr.mxu0 0.0
        %8835 = vmatpush1.msra.mxu0 0.0
        %8836 = vmatprep.subr.mxu0 0.0
        %8837 = vmatpush1.msra.mxu0 0.0
        %8838 = vmatprep.subr.mxu0 0.0
        %8839 = vmatpush1.msra.mxu0 0.0
        %8840 = vmatprep.subr.mxu0 0.0
        %8841 = vmatpush1.msra.mxu0 0.0
        %8842 = vmatprep.subr.mxu0 0.0
        %8843 = vmatpush1.msra.mxu0 0.0
        %8844 = vmatprep.subr.mxu0 0.0
        %8845 = vmatpush1.msra.mxu0 0.0
        %8846 = vmatprep.subr.mxu0 0.0
        %8847 = vmatpush1.msra.mxu0 0.0
        %8848 = vmatprep.subr.mxu0 0.0
        %8849 = vmatpush1.msra.mxu0 0.0
        %8850 = vmatprep.subr.mxu0 0.0
        %8851 = vmatpush1.msra.mxu0 0.0
        %8852 = vmatprep.subr.mxu0 0.0
        %8853 = vmatpush1.msra.mxu0 0.0
        %8854 = vmatprep.subr.mxu0 0.0
        %8855 = vmatpush1.msra.mxu0 0.0
        %8856 = vmatprep.mubr.f32.mxu0 0.0
        %v8857 = vand.u32 %v8593, 4294901760
        %v8858 = vsub.f32 %v8593, %v8857
        %8859 = vmatmul.mubr.f32.gmra.mrb[0].mxu0 %v8858
        %v8860 = vpop.f32.mrb[0].mxu0
        %v8861 = vadd.f32 %v8775, %v8860
        %v8862 = vpop.f32.mrb[0].mxu0
        %8863 = vmatprep.mubr.f32.mxu0 0.0
        %v8864 = vand.u32 %v8596, 4294901760
        %v8865 = vsub.f32 %v8596, %v8864
        %8866 = vmatmul.mubr.f32.gmra.mrb[0].mxu0 %v8865
        %v8867 = vpop.f32.mrb[0].mxu0
        %v8868 = vadd.f32 %v8781, %v8867
        %v8869 = vpop.f32.mrb[0].mxu0
        %8870 = vdwg.mxu0
        %8871 = vmatprep.subr.mxu0 0.0
        %v8872 = vand.u32 %v8581, 4294901760
        %8873 = vmatpush1.msra.mxu0 %v8872
        %8874 = vmatprep.subr.mxu0 0.0
        %v8875 = vand.u32 %v8582, 4294901760
        %8876 = vmatpush1.msra.mxu0 %v8875
        %8877 = vmatprep.subr.mxu0 0.0
        %v8878 = vand.u32 %v8583, 4294901760
        %8879 = vmatpush1.msra.mxu0 %v8878
        %8880 = vmatprep.subr.mxu0 0.0
        %v8881 = vand.u32 %v8584, 4294901760
        %8882 = vmatpush1.msra.mxu0 %v8881
        %8883 = vmatprep.subr.mxu0 0.0
        %8884 = vmatpush1.msra.mxu0 0.0
        %8885 = vmatprep.subr.mxu0 0.0
        %8886 = vmatpush1.msra.mxu0 0.0
        %8887 = vmatprep.subr.mxu0 0.0
        %8888 = vmatpush1.msra.mxu0 0.0
        %8889 = vmatprep.subr.mxu0 0.0
        %8890 = vmatpush1.msra.mxu0 0.0
        %8891 = vmatprep.subr.mxu0 0.0
        %8892 = vmatpush1.msra.mxu0 0.0
        %8893 = vmatprep.subr.mxu0 0.0
        %8894 = vmatpush1.msra.mxu0 0.0
        %8895 = vmatprep.subr.mxu0 0.0
        %8896 = vmatpush1.msra.mxu0 0.0
        %8897 = vmatprep.subr.mxu0 0.0
        %8898 = vmatpush1.msra.mxu0 0.0
        %8899 = vmatprep.subr.mxu0 0.0
        %8900 = vmatpush1.msra.mxu0 0.0
        %8901 = vmatprep.subr.mxu0 0.0
        %8902 = vmatpush1.msra.mxu0 0.0
        %8903 = vmatprep.subr.mxu0 0.0
        %8904 = vmatpush1.msra.mxu0 0.0
        %8905 = vmatprep.subr.mxu0 0.0
        %8906 = vmatpush1.msra.mxu0 0.0
        %8907 = vmatprep.subr.mxu0 0.0
        %8908 = vmatpush1.msra.mxu0 0.0
        %8909 = vmatprep.subr.mxu0 0.0
        %8910 = vmatpush1.msra.mxu0 0.0
        %8911 = vmatprep.subr.mxu0 0.0
        %8912 = vmatpush1.msra.mxu0 0.0
        %8913 = vmatprep.subr.mxu0 0.0
        %8914 = vmatpush1.msra.mxu0 0.0
        %8915 = vmatprep.subr.mxu0 0.0
        %8916 = vmatpush1.msra.mxu0 0.0
        %8917 = vmatprep.subr.mxu0 0.0
        %8918 = vmatpush1.msra.mxu0 0.0
        %8919 = vmatprep.subr.mxu0 0.0
        %8920 = vmatpush1.msra.mxu0 0.0
        %8921 = vmatprep.subr.mxu0 0.0
        %8922 = vmatpush1.msra.mxu0 0.0
        %8923 = vmatprep.subr.mxu0 0.0
        %8924 = vmatpush1.msra.mxu0 0.0
        %8925 = vmatprep.subr.mxu0 0.0
        %8926 = vmatpush1.msra.mxu0 0.0
        %8927 = vmatprep.subr.mxu0 0.0
        %8928 = vmatpush1.msra.mxu0 0.0
        %8929 = vmatprep.subr.mxu0 0.0
        %8930 = vmatpush1.msra.mxu0 0.0
        %8931 = vmatprep.subr.mxu0 0.0
        %8932 = vmatpush1.msra.mxu0 0.0
        %8933 = vmatprep.subr.mxu0 0.0
        %8934 = vmatpush1.msra.mxu0 0.0
        %8935 = vmatprep.subr.mxu0 0.0
        %8936 = vmatpush1.msra.mxu0 0.0
        %8937 = vmatprep.subr.mxu0 0.0
        %8938 = vmatpush1.msra.mxu0 0.0
        %8939 = vmatprep.mubr.f32.mxu0 0.0
        %v8940 = vand.u32 %v8593, 4294901760
        %v8941 = vsub.f32 %v8593, %v8940
        %v8942 = vand.u32 %v8941, 4294901760
        %8943 = vmatmul.mubr.f32.gmra.mrb[0].mxu0 %v8942
        %v8944 = vpop.f32.mrb[0].mxu0
        %v8945 = vadd.f32 %v8861, %v8944
        %v8946 = vpop.f32.mrb[0].mxu0
        %8947 = vmatprep.mubr.f32.mxu0 0.0
        %v8948 = vand.u32 %v8596, 4294901760
        %v8949 = vsub.f32 %v8596, %v8948
        %v8950 = vand.u32 %v8949, 4294901760
        %8951 = vmatmul.mubr.f32.gmra.mrb[0].mxu0 %v8950
        %v8952 = vpop.f32.mrb[0].mxu0
        %v8953 = vadd.f32 %v8868, %v8952
        %v8954 = vpop.f32.mrb[0].mxu0
        %8955 = vdwg.mxu0
        %8956 = vmatprep.subr.mxu0 0.0
        %v8957 = vand.u32 %v8581, 4294901760
        %v8958 = vsub.f32 %v8581, %v8957
        %v8959 = vand.u32 %v8958, 4294901760
        %8960 = vmatpush1.msra.mxu0 %v8959
        %8961 = vmatprep.subr.mxu0 0.0
        %v8962 = vand.u32 %v8582, 4294901760
        %v8963 = vsub.f32 %v8582, %v8962
        %v8964 = vand.u32 %v8963, 4294901760
        %8965 = vmatpush1.msra.mxu0 %v8964
        %8966 = vmatprep.subr.mxu0 0.0
        %v8967 = vand.u32 %v8583, 4294901760
        %v8968 = vsub.f32 %v8583, %v8967
        %v8969 = vand.u32 %v8968, 4294901760
        %8970 = vmatpush1.msra.mxu0 %v8969
        %8971 = vmatprep.subr.mxu0 0.0
        %v8972 = vand.u32 %v8584, 4294901760
        %v8973 = vsub.f32 %v8584, %v8972
        %v8974 = vand.u32 %v8973, 4294901760
        %8975 = vmatpush1.msra.mxu0 %v8974
        %8976 = vmatprep.subr.mxu0 0.0
        %8977 = vmatpush1.msra.mxu0 0.0
        %8978 = vmatprep.subr.mxu0 0.0
        %8979 = vmatpush1.msra.mxu0 0.0
        %8980 = vmatprep.subr.mxu0 0.0
        %8981 = vmatpush1.msra.mxu0 0.0
        %8982 = vmatprep.subr.mxu0 0.0
        %8983 = vmatpush1.msra.mxu0 0.0
        %8984 = vmatprep.subr.mxu0 0.0
        %8985 = vmatpush1.msra.mxu0 0.0
        %8986 = vmatprep.subr.mxu0 0.0
        %8987 = vmatpush1.msra.mxu0 0.0
        %8988 = vmatprep.subr.mxu0 0.0
        %8989 = vmatpush1.msra.mxu0 0.0
        %8990 = vmatprep.subr.mxu0 0.0
        %8991 = vmatpush1.msra.mxu0 0.0
        %8992 = vmatprep.subr.mxu0 0.0
        %8993 = vmatpush1.msra.mxu0 0.0
        %8994 = vmatprep.subr.mxu0 0.0
        %8995 = vmatpush1.msra.mxu0 0.0
        %8996 = vmatprep.subr.mxu0 0.0
        %8997 = vmatpush1.msra.mxu0 0.0
        %8998 = vmatprep.subr.mxu0 0.0
        %8999 = vmatpush1.msra.mxu0 0.0
        %9000 = vmatprep.subr.mxu0 0.0
        %9001 = vmatpush1.msra.mxu0 0.0
        %9002 = vmatprep.subr.mxu0 0.0
        %9003 = vmatpush1.msra.mxu0 0.0
        %9004 = vmatprep.subr.mxu0 0.0
        %9005 = vmatpush1.msra.mxu0 0.0
        %9006 = vmatprep.subr.mxu0 0.0
        %9007 = vmatpush1.msra.mxu0 0.0
        %9008 = vmatprep.subr.mxu0 0.0
        %9009 = vmatpush1.msra.mxu0 0.0
        %9010 = vmatprep.subr.mxu0 0.0
        %9011 = vmatpush1.msra.mxu0 0.0
        %9012 = vmatprep.subr.mxu0 0.0
        %9013 = vmatpush1.msra.mxu0 0.0
        %9014 = vmatprep.subr.mxu0 0.0
        %9015 = vmatpush1.msra.mxu0 0.0
        %9016 = vmatprep.subr.mxu0 0.0
        %9017 = vmatpush1.msra.mxu0 0.0
        %9018 = vmatprep.subr.mxu0 0.0
        %9019 = vmatpush1.msra.mxu0 0.0
        %9020 = vmatprep.subr.mxu0 0.0
        %9021 = vmatpush1.msra.mxu0 0.0
        %9022 = vmatprep.subr.mxu0 0.0
        %9023 = vmatpush1.msra.mxu0 0.0
        %9024 = vmatprep.subr.mxu0 0.0
        %9025 = vmatpush1.msra.mxu0 0.0
        %9026 = vmatprep.subr.mxu0 0.0
        %9027 = vmatpush1.msra.mxu0 0.0
        %9028 = vmatprep.subr.mxu0 0.0
        %9029 = vmatpush1.msra.mxu0 0.0
        %9030 = vmatprep.subr.mxu0 0.0
        %9031 = vmatpush1.msra.mxu0 0.0
        %9032 = vmatprep.mubr.f32.mxu0 0.0
        %v9033 = vand.u32 %v8593, 4294901760
        %9034 = vmatmul.mubr.f32.gmra.mrb[0].mxu0 %v9033
        %v9035 = vpop.f32.mrb[0].mxu0
        %v9036 = vadd.f32 %v8945, %v9035
        %v9037 = vpop.f32.mrb[0].mxu0
        %9038 = vmatprep.mubr.f32.mxu0 0.0
        %v9039 = vand.u32 %v8596, 4294901760
        %9040 = vmatmul.mubr.f32.gmra.mrb[0].mxu0 %v9039
        %v9041 = vpop.f32.mrb[0].mxu0
        %v9042 = vadd.f32 %v8953, %v9041
        %v9043 = vpop.f32.mrb[0].mxu0
        %9044 = vdwg.mxu0
        %9045 = vmatprep.subr.mxu0 0.0
        %v9046 = vand.u32 %v8581, 4294901760
        %9047 = vmatpush1.msra.mxu0 %v9046
        %9048 = vmatprep.subr.mxu0 0.0
        %v9049 = vand.u32 %v8582, 4294901760
        %9050 = vmatpush1.msra.mxu0 %v9049
        %9051 = vmatprep.subr.mxu0 0.0
        %v9052 = vand.u32 %v8583, 4294901760
        %9053 = vmatpush1.msra.mxu0 %v9052
        %9054 = vmatprep.subr.mxu0 0.0
        %v9055 = vand.u32 %v8584, 4294901760
        %9056 = vmatpush1.msra.mxu0 %v9055
        %9057 = vmatprep.subr.mxu0 0.0
        %9058 = vmatpush1.msra.mxu0 0.0
        %9059 = vmatprep.subr.mxu0 0.0
        %9060 = vmatpush1.msra.mxu0 0.0
        %9061 = vmatprep.subr.mxu0 0.0
        %9062 = vmatpush1.msra.mxu0 0.0
        %9063 = vmatprep.subr.mxu0 0.0
        %9064 = vmatpush1.msra.mxu0 0.0
        %9065 = vmatprep.subr.mxu0 0.0
        %9066 = vmatpush1.msra.mxu0 0.0
        %9067 = vmatprep.subr.mxu0 0.0
        %9068 = vmatpush1.msra.mxu0 0.0
        %9069 = vmatprep.subr.mxu0 0.0
        %9070 = vmatpush1.msra.mxu0 0.0
        %9071 = vmatprep.subr.mxu0 0.0
        %9072 = vmatpush1.msra.mxu0 0.0
        %9073 = vmatprep.subr.mxu0 0.0
        %9074 = vmatpush1.msra.mxu0 0.0
        %9075 = vmatprep.subr.mxu0 0.0
        %9076 = vmatpush1.msra.mxu0 0.0
        %9077 = vmatprep.subr.mxu0 0.0
        %9078 = vmatpush1.msra.mxu0 0.0
        %9079 = vmatprep.subr.mxu0 0.0
        %9080 = vmatpush1.msra.mxu0 0.0
        %9081 = vmatprep.subr.mxu0 0.0
        %9082 = vmatpush1.msra.mxu0 0.0
        %9083 = vmatprep.subr.mxu0 0.0
        %9084 = vmatpush1.msra.mxu0 0.0
        %9085 = vmatprep.subr.mxu0 0.0
        %9086 = vmatpush1.msra.mxu0 0.0
        %9087 = vmatprep.subr.mxu0 0.0
        %9088 = vmatpush1.msra.mxu0 0.0
        %9089 = vmatprep.subr.mxu0 0.0
        %9090 = vmatpush1.msra.mxu0 0.0
        %9091 = vmatprep.subr.mxu0 0.0
        %9092 = vmatpush1.msra.mxu0 0.0
        %9093 = vmatprep.subr.mxu0 0.0
        %9094 = vmatpush1.msra.mxu0 0.0
        %9095 = vmatprep.subr.mxu0 0.0
        %9096 = vmatpush1.msra.mxu0 0.0
        %9097 = vmatprep.subr.mxu0 0.0
        %9098 = vmatpush1.msra.mxu0 0.0
        %9099 = vmatprep.subr.mxu0 0.0
        %9100 = vmatpush1.msra.mxu0 0.0
        %9101 = vmatprep.subr.mxu0 0.0
        %9102 = vmatpush1.msra.mxu0 0.0
        %9103 = vmatprep.subr.mxu0 0.0
        %9104 = vmatpush1.msra.mxu0 0.0
        %9105 = vmatprep.subr.mxu0 0.0
        %9106 = vmatpush1.msra.mxu0 0.0
        %9107 = vmatprep.subr.mxu0 0.0
        %9108 = vmatpush1.msra.mxu0 0.0
        %9109 = vmatprep.subr.mxu0 0.0
        %9110 = vmatpush1.msra.mxu0 0.0
        %9111 = vmatprep.subr.mxu0 0.0
        %9112 = vmatpush1.msra.mxu0 0.0
        %9113 = vmatprep.mubr.f32.mxu0 0.0
        %v9114 = vand.u32 %v8593, 4294901760
        %9115 = vmatmul.mubr.f32.gmra.mrb[0].mxu0 %v9114
        %v9116 = vpop.f32.mrb[0].mxu0
        %v9117 = vadd.f32 %v9036, %v9116
        %v9118 = vpop.f32.mrb[0].mxu0
        %9119 = vmatprep.mubr.f32.mxu0 0.0
        %v9120 = vand.u32 %v8596, 4294901760
        %9121 = vmatmul.mubr.f32.gmra.mrb[0].mxu0 %v9120
        %v9122 = vpop.f32.mrb[0].mxu0
        %v9123 = vadd.f32 %v9042, %v9122
        %v9124 = vpop.f32.mrb[0].mxu0
        %9125 = vdwg.mxu0
        %v9126 = vadd.f32 %v9117, %v635
        %v9127 = vadd.f32 %v9123, %v636
        %v9128 = vld [vmem:[%s600] sm:$0x1]
        %v9129 = vld [vmem:[%s603] sm:$0x1]
        %v9130 = vsel %vm648, %v9126, 0.0
        %9131 = vadd.xlane.f32.xlu0 %v9130
        %v9132 = vpop.xlane.xlu0 %9131
        %v9133 = vsel %vm648, %v9127, 0.0
        %9134 = vadd.xlane.f32.xlu0 %v9133
        %v9135 = vpop.xlane.xlu0 %9134
        %v9136 = vrcp.pop 32.0
        %v9137 = vmul.f32 %v9132, %v9136
        %v9138 = vmul.f32 %v9135, %v9136
        %v9139 = vsub.f32 %v9126, %v9137
        %v9140 = vsub.f32 %v9127, %v9138
        %v9141 = vmul.f32 %v9139, %v9139
        %v9142 = vmul.f32 %v9140, %v9140
        %v9143 = vsel %vm648, %v9141, 0.0
        %9144 = vadd.xlane.f32.xlu0 %v9143
        %v9145 = vpop.xlane.xlu0 %9144
        %v9146 = vsel %vm648, %v9142, 0.0
        %9147 = vadd.xlane.f32.xlu0 %v9146
        %v9148 = vpop.xlane.xlu0 %9147
        %v9149 = vmul.f32 %v9145, %v9136
        %v9150 = vmul.f32 %v9148, %v9136
        %v9151 = vadd.f32 %v9149, 1e-12
        %v9152 = vadd.f32 %v9150, 1e-12
        %v9153 = vrsqrt.pop %v9151
        %v9154 = vrsqrt.pop %v9152
        %v9155 = vmul.f32 %v9139, %v9153
        %v9156 = vmul.f32 %v9140, %v9154
        %v9158 = vlaneseq
        %v9159 = vshrl.u32 %v9158, 7
        %v9160 = vsub.s32 0, %v9159
        %v9161 = vrot.slane %v9128, %v9160
        %v9163 = vmul.f32 %v9155, %v9161
        %v9164 = vmul.f32 %v9156, %v9161
        %v9166 = vlaneseq
        %v9167 = vshrl.u32 %v9166, 7
        %v9168 = vsub.s32 0, %v9167
        %v9169 = vrot.slane %v9129, %v9168
        %v9171 = vadd.f32 %v9163, %v9169
        %v9172 = vadd.f32 %v9164, %v9169
        %v9173 = vld [vmem:[%s608] sm:$0xff]
        %v9174 = vld [vmem:[%s608 + $0x8] sm:$0xff]
        %v9175 = vld [vmem:[%s608 + $0x10] sm:$0xff]
        %v9176 = vld [vmem:[%s608 + $0x18] sm:$0xff]
        %v9177 = vld [vmem:[%s611] sm:$0x1]
        %v9179 = vlaneseq
        %v9180 = vshrl.u32 %v9179, 7
        %v9181 = vsub.s32 0, %v9180
        %v9182 = vrot.slane %v9177, %v9181
        %v9185 = vsel %vm648, %v9171, 0
        %v9188 = vsel %vm648, %v9172, 0
        %9190 = vmatprep.subr.mxu0 0.0
        %v9191 = vand.u32 %v9173, 4294901760
        %9192 = vmatpush1.msra.mxu0 %v9191
        %9193 = vmatprep.subr.mxu0 0.0
        %v9194 = vand.u32 %v9174, 4294901760
        %9195 = vmatpush1.msra.mxu0 %v9194
        %9196 = vmatprep.subr.mxu0 0.0
        %v9197 = vand.u32 %v9175, 4294901760
        %9198 = vmatpush1.msra.mxu0 %v9197
        %9199 = vmatprep.subr.mxu0 0.0
        %v9200 = vand.u32 %v9176, 4294901760
        %9201 = vmatpush1.msra.mxu0 %v9200
        %9202 = vmatprep.subr.mxu0 0.0
        %9203 = vmatpush1.msra.mxu0 0.0
        %9204 = vmatprep.subr.mxu0 0.0
        %9205 = vmatpush1.msra.mxu0 0.0
        %9206 = vmatprep.subr.mxu0 0.0
        %9207 = vmatpush1.msra.mxu0 0.0
        %9208 = vmatprep.subr.mxu0 0.0
        %9209 = vmatpush1.msra.mxu0 0.0
        %9210 = vmatprep.subr.mxu0 0.0
        %9211 = vmatpush1.msra.mxu0 0.0
        %9212 = vmatprep.subr.mxu0 0.0
        %9213 = vmatpush1.msra.mxu0 0.0
        %9214 = vmatprep.subr.mxu0 0.0
        %9215 = vmatpush1.msra.mxu0 0.0
        %9216 = vmatprep.subr.mxu0 0.0
        %9217 = vmatpush1.msra.mxu0 0.0
        %9218 = vmatprep.subr.mxu0 0.0
        %9219 = vmatpush1.msra.mxu0 0.0
        %9220 = vmatprep.subr.mxu0 0.0
        %9221 = vmatpush1.msra.mxu0 0.0
        %9222 = vmatprep.subr.mxu0 0.0
        %9223 = vmatpush1.msra.mxu0 0.0
        %9224 = vmatprep.subr.mxu0 0.0
        %9225 = vmatpush1.msra.mxu0 0.0
        %9226 = vmatprep.subr.mxu0 0.0
        %9227 = vmatpush1.msra.mxu0 0.0
        %9228 = vmatprep.subr.mxu0 0.0
        %9229 = vmatpush1.msra.mxu0 0.0
        %9230 = vmatprep.subr.mxu0 0.0
        %9231 = vmatpush1.msra.mxu0 0.0
        %9232 = vmatprep.subr.mxu0 0.0
        %9233 = vmatpush1.msra.mxu0 0.0
        %9234 = vmatprep.subr.mxu0 0.0
        %9235 = vmatpush1.msra.mxu0 0.0
        %9236 = vmatprep.subr.mxu0 0.0
        %9237 = vmatpush1.msra.mxu0 0.0
        %9238 = vmatprep.subr.mxu0 0.0
        %9239 = vmatpush1.msra.mxu0 0.0
        %9240 = vmatprep.subr.mxu0 0.0
        %9241 = vmatpush1.msra.mxu0 0.0
        %9242 = vmatprep.subr.mxu0 0.0
        %9243 = vmatpush1.msra.mxu0 0.0
        %9244 = vmatprep.subr.mxu0 0.0
        %9245 = vmatpush1.msra.mxu0 0.0
        %9246 = vmatprep.subr.mxu0 0.0
        %9247 = vmatpush1.msra.mxu0 0.0
        %9248 = vmatprep.subr.mxu0 0.0
        %9249 = vmatpush1.msra.mxu0 0.0
        %9250 = vmatprep.subr.mxu0 0.0
        %9251 = vmatpush1.msra.mxu0 0.0
        %9252 = vmatprep.subr.mxu0 0.0
        %9253 = vmatpush1.msra.mxu0 0.0
        %9254 = vmatprep.subr.mxu0 0.0
        %9255 = vmatpush1.msra.mxu0 0.0
        %9256 = vmatprep.subr.mxu0 0.0
        %9257 = vmatpush1.msra.mxu0 0.0
        %9258 = vmatprep.mubr.f32.mxu0 0.0
        %v9259 = vand.u32 %v9185, 4294901760
        %v9260 = vsub.f32 %v9185, %v9259
        %v9261 = vand.u32 %v9260, 4294901760
        %v9262 = vsub.f32 %v9260, %v9261
        %v9263 = vand.u32 %v9262, 4294901760
        %9264 = vmatmul.mubr.f32.gmra.mrb[0].mxu0 %v9263
        %v9265 = vpop.f32.mrb[0].mxu0
        %v9266 = vadd.f32 %v9182, %v9265
        %v9267 = vpop.f32.mrb[0].mxu0
        %9268 = vmatprep.mubr.f32.mxu0 0.0
        %v9269 = vand.u32 %v9188, 4294901760
        %v9270 = vsub.f32 %v9188, %v9269
        %v9271 = vand.u32 %v9270, 4294901760
        %v9272 = vsub.f32 %v9270, %v9271
        %v9273 = vand.u32 %v9272, 4294901760
        %9274 = vmatmul.mubr.f32.gmra.mrb[0].mxu0 %v9273
        %v9275 = vpop.f32.mrb[0].mxu0
        %v9276 = vadd.f32 %v9182, %v9275
        %v9277 = vpop.f32.mrb[0].mxu0
        %9278 = vdwg.mxu0
        %9279 = vmatprep.subr.mxu0 0.0
        %v9280 = vand.u32 %v9173, 4294901760
        %v9281 = vsub.f32 %v9173, %v9280
        %v9282 = vand.u32 %v9281, 4294901760
        %v9283 = vsub.f32 %v9281, %v9282
        %v9284 = vand.u32 %v9283, 4294901760
        %9285 = vmatpush1.msra.mxu0 %v9284
        %9286 = vmatprep.subr.mxu0 0.0
        %v9287 = vand.u32 %v9174, 4294901760
        %v9288 = vsub.f32 %v9174, %v9287
        %v9289 = vand.u32 %v9288, 4294901760
        %v9290 = vsub.f32 %v9288, %v9289
        %v9291 = vand.u32 %v9290, 4294901760
        %9292 = vmatpush1.msra.mxu0 %v9291
        %9293 = vmatprep.subr.mxu0 0.0
        %v9294 = vand.u32 %v9175, 4294901760
        %v9295 = vsub.f32 %v9175, %v9294
        %v9296 = vand.u32 %v9295, 4294901760
        %v9297 = vsub.f32 %v9295, %v9296
        %v9298 = vand.u32 %v9297, 4294901760
        %9299 = vmatpush1.msra.mxu0 %v9298
        %9300 = vmatprep.subr.mxu0 0.0
        %v9301 = vand.u32 %v9176, 4294901760
        %v9302 = vsub.f32 %v9176, %v9301
        %v9303 = vand.u32 %v9302, 4294901760
        %v9304 = vsub.f32 %v9302, %v9303
        %v9305 = vand.u32 %v9304, 4294901760
        %9306 = vmatpush1.msra.mxu0 %v9305
        %9307 = vmatprep.subr.mxu0 0.0
        %9308 = vmatpush1.msra.mxu0 0.0
        %9309 = vmatprep.subr.mxu0 0.0
        %9310 = vmatpush1.msra.mxu0 0.0
        %9311 = vmatprep.subr.mxu0 0.0
        %9312 = vmatpush1.msra.mxu0 0.0
        %9313 = vmatprep.subr.mxu0 0.0
        %9314 = vmatpush1.msra.mxu0 0.0
        %9315 = vmatprep.subr.mxu0 0.0
        %9316 = vmatpush1.msra.mxu0 0.0
        %9317 = vmatprep.subr.mxu0 0.0
        %9318 = vmatpush1.msra.mxu0 0.0
        %9319 = vmatprep.subr.mxu0 0.0
        %9320 = vmatpush1.msra.mxu0 0.0
        %9321 = vmatprep.subr.mxu0 0.0
        %9322 = vmatpush1.msra.mxu0 0.0
        %9323 = vmatprep.subr.mxu0 0.0
        %9324 = vmatpush1.msra.mxu0 0.0
        %9325 = vmatprep.subr.mxu0 0.0
        %9326 = vmatpush1.msra.mxu0 0.0
        %9327 = vmatprep.subr.mxu0 0.0
        %9328 = vmatpush1.msra.mxu0 0.0
        %9329 = vmatprep.subr.mxu0 0.0
        %9330 = vmatpush1.msra.mxu0 0.0
        %9331 = vmatprep.subr.mxu0 0.0
        %9332 = vmatpush1.msra.mxu0 0.0
        %9333 = vmatprep.subr.mxu0 0.0
        %9334 = vmatpush1.msra.mxu0 0.0
        %9335 = vmatprep.subr.mxu0 0.0
        %9336 = vmatpush1.msra.mxu0 0.0
        %9337 = vmatprep.subr.mxu0 0.0
        %9338 = vmatpush1.msra.mxu0 0.0
        %9339 = vmatprep.subr.mxu0 0.0
        %9340 = vmatpush1.msra.mxu0 0.0
        %9341 = vmatprep.subr.mxu0 0.0
        %9342 = vmatpush1.msra.mxu0 0.0
        %9343 = vmatprep.subr.mxu0 0.0
        %9344 = vmatpush1.msra.mxu0 0.0
        %9345 = vmatprep.subr.mxu0 0.0
        %9346 = vmatpush1.msra.mxu0 0.0
        %9347 = vmatprep.subr.mxu0 0.0
        %9348 = vmatpush1.msra.mxu0 0.0
        %9349 = vmatprep.subr.mxu0 0.0
        %9350 = vmatpush1.msra.mxu0 0.0
        %9351 = vmatprep.subr.mxu0 0.0
        %9352 = vmatpush1.msra.mxu0 0.0
        %9353 = vmatprep.subr.mxu0 0.0
        %9354 = vmatpush1.msra.mxu0 0.0
        %9355 = vmatprep.subr.mxu0 0.0
        %9356 = vmatpush1.msra.mxu0 0.0
        %9357 = vmatprep.subr.mxu0 0.0
        %9358 = vmatpush1.msra.mxu0 0.0
        %9359 = vmatprep.subr.mxu0 0.0
        %9360 = vmatpush1.msra.mxu0 0.0
        %9361 = vmatprep.subr.mxu0 0.0
        %9362 = vmatpush1.msra.mxu0 0.0
        %9363 = vmatprep.mubr.f32.mxu0 0.0
        %v9364 = vand.u32 %v9185, 4294901760
        %9365 = vmatmul.mubr.f32.gmra.mrb[0].mxu0 %v9364
        %v9366 = vpop.f32.mrb[0].mxu0
        %v9367 = vadd.f32 %v9266, %v9366
        %v9368 = vpop.f32.mrb[0].mxu0
        %9369 = vmatprep.mubr.f32.mxu0 0.0
        %v9370 = vand.u32 %v9188, 4294901760
        %9371 = vmatmul.mubr.f32.gmra.mrb[0].mxu0 %v9370
        %v9372 = vpop.f32.mrb[0].mxu0
        %v9373 = vadd.f32 %v9276, %v9372
        %v9374 = vpop.f32.mrb[0].mxu0
        %9375 = vdwg.mxu0
        %9376 = vmatprep.subr.mxu0 0.0
        %v9377 = vand.u32 %v9173, 4294901760
        %v9378 = vsub.f32 %v9173, %v9377
        %9379 = vmatpush1.msra.mxu0 %v9378
        %9380 = vmatprep.subr.mxu0 0.0
        %v9381 = vand.u32 %v9174, 4294901760
        %v9382 = vsub.f32 %v9174, %v9381
        %9383 = vmatpush1.msra.mxu0 %v9382
        %9384 = vmatprep.subr.mxu0 0.0
        %v9385 = vand.u32 %v9175, 4294901760
        %v9386 = vsub.f32 %v9175, %v9385
        %9387 = vmatpush1.msra.mxu0 %v9386
        %9388 = vmatprep.subr.mxu0 0.0
        %v9389 = vand.u32 %v9176, 4294901760
        %v9390 = vsub.f32 %v9176, %v9389
        %9391 = vmatpush1.msra.mxu0 %v9390
        %9392 = vmatprep.subr.mxu0 0.0
        %9393 = vmatpush1.msra.mxu0 0.0
        %9394 = vmatprep.subr.mxu0 0.0
        %9395 = vmatpush1.msra.mxu0 0.0
        %9396 = vmatprep.subr.mxu0 0.0
        %9397 = vmatpush1.msra.mxu0 0.0
        %9398 = vmatprep.subr.mxu0 0.0
        %9399 = vmatpush1.msra.mxu0 0.0
        %9400 = vmatprep.subr.mxu0 0.0
        %9401 = vmatpush1.msra.mxu0 0.0
        %9402 = vmatprep.subr.mxu0 0.0
        %9403 = vmatpush1.msra.mxu0 0.0
        %9404 = vmatprep.subr.mxu0 0.0
        %9405 = vmatpush1.msra.mxu0 0.0
        %9406 = vmatprep.subr.mxu0 0.0
        %9407 = vmatpush1.msra.mxu0 0.0
        %9408 = vmatprep.subr.mxu0 0.0
        %9409 = vmatpush1.msra.mxu0 0.0
        %9410 = vmatprep.subr.mxu0 0.0
        %9411 = vmatpush1.msra.mxu0 0.0
        %9412 = vmatprep.subr.mxu0 0.0
        %9413 = vmatpush1.msra.mxu0 0.0
        %9414 = vmatprep.subr.mxu0 0.0
        %9415 = vmatpush1.msra.mxu0 0.0
        %9416 = vmatprep.subr.mxu0 0.0
        %9417 = vmatpush1.msra.mxu0 0.0
        %9418 = vmatprep.subr.mxu0 0.0
        %9419 = vmatpush1.msra.mxu0 0.0
        %9420 = vmatprep.subr.mxu0 0.0
        %9421 = vmatpush1.msra.mxu0 0.0
        %9422 = vmatprep.subr.mxu0 0.0
        %9423 = vmatpush1.msra.mxu0 0.0
        %9424 = vmatprep.subr.mxu0 0.0
        %9425 = vmatpush1.msra.mxu0 0.0
        %9426 = vmatprep.subr.mxu0 0.0
        %9427 = vmatpush1.msra.mxu0 0.0
        %9428 = vmatprep.subr.mxu0 0.0
        %9429 = vmatpush1.msra.mxu0 0.0
        %9430 = vmatprep.subr.mxu0 0.0
        %9431 = vmatpush1.msra.mxu0 0.0
        %9432 = vmatprep.subr.mxu0 0.0
        %9433 = vmatpush1.msra.mxu0 0.0
        %9434 = vmatprep.subr.mxu0 0.0
        %9435 = vmatpush1.msra.mxu0 0.0
        %9436 = vmatprep.subr.mxu0 0.0
        %9437 = vmatpush1.msra.mxu0 0.0
        %9438 = vmatprep.subr.mxu0 0.0
        %9439 = vmatpush1.msra.mxu0 0.0
        %9440 = vmatprep.subr.mxu0 0.0
        %9441 = vmatpush1.msra.mxu0 0.0
        %9442 = vmatprep.subr.mxu0 0.0
        %9443 = vmatpush1.msra.mxu0 0.0
        %9444 = vmatprep.subr.mxu0 0.0
        %9445 = vmatpush1.msra.mxu0 0.0
        %9446 = vmatprep.subr.mxu0 0.0
        %9447 = vmatpush1.msra.mxu0 0.0
        %9448 = vmatprep.mubr.f32.mxu0 0.0
        %v9449 = vand.u32 %v9185, 4294901760
        %v9450 = vsub.f32 %v9185, %v9449
        %9451 = vmatmul.mubr.f32.gmra.mrb[0].mxu0 %v9450
        %v9452 = vpop.f32.mrb[0].mxu0
        %v9453 = vadd.f32 %v9367, %v9452
        %v9454 = vpop.f32.mrb[0].mxu0
        %9455 = vmatprep.mubr.f32.mxu0 0.0
        %v9456 = vand.u32 %v9188, 4294901760
        %v9457 = vsub.f32 %v9188, %v9456
        %9458 = vmatmul.mubr.f32.gmra.mrb[0].mxu0 %v9457
        %v9459 = vpop.f32.mrb[0].mxu0
        %v9460 = vadd.f32 %v9373, %v9459
        %v9461 = vpop.f32.mrb[0].mxu0
        %9462 = vdwg.mxu0
        %9463 = vmatprep.subr.mxu0 0.0
        %v9464 = vand.u32 %v9173, 4294901760
        %9465 = vmatpush1.msra.mxu0 %v9464
        %9466 = vmatprep.subr.mxu0 0.0
        %v9467 = vand.u32 %v9174, 4294901760
        %9468 = vmatpush1.msra.mxu0 %v9467
        %9469 = vmatprep.subr.mxu0 0.0
        %v9470 = vand.u32 %v9175, 4294901760
        %9471 = vmatpush1.msra.mxu0 %v9470
        %9472 = vmatprep.subr.mxu0 0.0
        %v9473 = vand.u32 %v9176, 4294901760
        %9474 = vmatpush1.msra.mxu0 %v9473
        %9475 = vmatprep.subr.mxu0 0.0
        %9476 = vmatpush1.msra.mxu0 0.0
        %9477 = vmatprep.subr.mxu0 0.0
        %9478 = vmatpush1.msra.mxu0 0.0
        %9479 = vmatprep.subr.mxu0 0.0
        %9480 = vmatpush1.msra.mxu0 0.0
        %9481 = vmatprep.subr.mxu0 0.0
        %9482 = vmatpush1.msra.mxu0 0.0
        %9483 = vmatprep.subr.mxu0 0.0
        %9484 = vmatpush1.msra.mxu0 0.0
        %9485 = vmatprep.subr.mxu0 0.0
        %9486 = vmatpush1.msra.mxu0 0.0
        %9487 = vmatprep.subr.mxu0 0.0
        %9488 = vmatpush1.msra.mxu0 0.0
        %9489 = vmatprep.subr.mxu0 0.0
        %9490 = vmatpush1.msra.mxu0 0.0
        %9491 = vmatprep.subr.mxu0 0.0
        %9492 = vmatpush1.msra.mxu0 0.0
        %9493 = vmatprep.subr.mxu0 0.0
        %9494 = vmatpush1.msra.mxu0 0.0
        %9495 = vmatprep.subr.mxu0 0.0
        %9496 = vmatpush1.msra.mxu0 0.0
        %9497 = vmatprep.subr.mxu0 0.0
        %9498 = vmatpush1.msra.mxu0 0.0
        %9499 = vmatprep.subr.mxu0 0.0
        %9500 = vmatpush1.msra.mxu0 0.0
        %9501 = vmatprep.subr.mxu0 0.0
        %9502 = vmatpush1.msra.mxu0 0.0
        %9503 = vmatprep.subr.mxu0 0.0
        %9504 = vmatpush1.msra.mxu0 0.0
        %9505 = vmatprep.subr.mxu0 0.0
        %9506 = vmatpush1.msra.mxu0 0.0
        %9507 = vmatprep.subr.mxu0 0.0
        %9508 = vmatpush1.msra.mxu0 0.0
        %9509 = vmatprep.subr.mxu0 0.0
        %9510 = vmatpush1.msra.mxu0 0.0
        %9511 = vmatprep.subr.mxu0 0.0
        %9512 = vmatpush1.msra.mxu0 0.0
        %9513 = vmatprep.subr.mxu0 0.0
        %9514 = vmatpush1.msra.mxu0 0.0
        %9515 = vmatprep.subr.mxu0 0.0
        %9516 = vmatpush1.msra.mxu0 0.0
        %9517 = vmatprep.subr.mxu0 0.0
        %9518 = vmatpush1.msra.mxu0 0.0
        %9519 = vmatprep.subr.mxu0 0.0
        %9520 = vmatpush1.msra.mxu0 0.0
        %9521 = vmatprep.subr.mxu0 0.0
        %9522 = vmatpush1.msra.mxu0 0.0
        %9523 = vmatprep.subr.mxu0 0.0
        %9524 = vmatpush1.msra.mxu0 0.0
        %9525 = vmatprep.subr.mxu0 0.0
        %9526 = vmatpush1.msra.mxu0 0.0
        %9527 = vmatprep.subr.mxu0 0.0
        %9528 = vmatpush1.msra.mxu0 0.0
        %9529 = vmatprep.subr.mxu0 0.0
        %9530 = vmatpush1.msra.mxu0 0.0
        %9531 = vmatprep.mubr.f32.mxu0 0.0
        %v9532 = vand.u32 %v9185, 4294901760
        %v9533 = vsub.f32 %v9185, %v9532
        %v9534 = vand.u32 %v9533, 4294901760
        %9535 = vmatmul.mubr.f32.gmra.mrb[0].mxu0 %v9534
        %v9536 = vpop.f32.mrb[0].mxu0
        %v9537 = vadd.f32 %v9453, %v9536
        %v9538 = vpop.f32.mrb[0].mxu0
        %9539 = vmatprep.mubr.f32.mxu0 0.0
        %v9540 = vand.u32 %v9188, 4294901760
        %v9541 = vsub.f32 %v9188, %v9540
        %v9542 = vand.u32 %v9541, 4294901760
        %9543 = vmatmul.mubr.f32.gmra.mrb[0].mxu0 %v9542
        %v9544 = vpop.f32.mrb[0].mxu0
        %v9545 = vadd.f32 %v9460, %v9544
        %v9546 = vpop.f32.mrb[0].mxu0
        %9547 = vdwg.mxu0
        %9548 = vmatprep.subr.mxu0 0.0
        %v9549 = vand.u32 %v9173, 4294901760
        %v9550 = vsub.f32 %v9173, %v9549
        %v9551 = vand.u32 %v9550, 4294901760
        %9552 = vmatpush1.msra.mxu0 %v9551
        %9553 = vmatprep.subr.mxu0 0.0
        %v9554 = vand.u32 %v9174, 4294901760
        %v9555 = vsub.f32 %v9174, %v9554
        %v9556 = vand.u32 %v9555, 4294901760
        %9557 = vmatpush1.msra.mxu0 %v9556
        %9558 = vmatprep.subr.mxu0 0.0
        %v9559 = vand.u32 %v9175, 4294901760
        %v9560 = vsub.f32 %v9175, %v9559
        %v9561 = vand.u32 %v9560, 4294901760
        %9562 = vmatpush1.msra.mxu0 %v9561
        %9563 = vmatprep.subr.mxu0 0.0
        %v9564 = vand.u32 %v9176, 4294901760
        %v9565 = vsub.f32 %v9176, %v9564
        %v9566 = vand.u32 %v9565, 4294901760
        %9567 = vmatpush1.msra.mxu0 %v9566
        %9568 = vmatprep.subr.mxu0 0.0
        %9569 = vmatpush1.msra.mxu0 0.0
        %9570 = vmatprep.subr.mxu0 0.0
        %9571 = vmatpush1.msra.mxu0 0.0
        %9572 = vmatprep.subr.mxu0 0.0
        %9573 = vmatpush1.msra.mxu0 0.0
        %9574 = vmatprep.subr.mxu0 0.0
        %9575 = vmatpush1.msra.mxu0 0.0
        %9576 = vmatprep.subr.mxu0 0.0
        %9577 = vmatpush1.msra.mxu0 0.0
        %9578 = vmatprep.subr.mxu0 0.0
        %9579 = vmatpush1.msra.mxu0 0.0
        %9580 = vmatprep.subr.mxu0 0.0
        %9581 = vmatpush1.msra.mxu0 0.0
        %9582 = vmatprep.subr.mxu0 0.0
        %9583 = vmatpush1.msra.mxu0 0.0
        %9584 = vmatprep.subr.mxu0 0.0
        %9585 = vmatpush1.msra.mxu0 0.0
        %9586 = vmatprep.subr.mxu0 0.0
        %9587 = vmatpush1.msra.mxu0 0.0
        %9588 = vmatprep.subr.mxu0 0.0
        %9589 = vmatpush1.msra.mxu0 0.0
        %9590 = vmatprep.subr.mxu0 0.0
        %9591 = vmatpush1.msra.mxu0 0.0
        %9592 = vmatprep.subr.mxu0 0.0
        %9593 = vmatpush1.msra.mxu0 0.0
        %9594 = vmatprep.subr.mxu0 0.0
        %9595 = vmatpush1.msra.mxu0 0.0
        %9596 = vmatprep.subr.mxu0 0.0
        %9597 = vmatpush1.msra.mxu0 0.0
        %9598 = vmatprep.subr.mxu0 0.0
        %9599 = vmatpush1.msra.mxu0 0.0
        %9600 = vmatprep.subr.mxu0 0.0
        %9601 = vmatpush1.msra.mxu0 0.0
        %9602 = vmatprep.subr.mxu0 0.0
        %9603 = vmatpush1.msra.mxu0 0.0
        %9604 = vmatprep.subr.mxu0 0.0
        %9605 = vmatpush1.msra.mxu0 0.0
        %9606 = vmatprep.subr.mxu0 0.0
        %9607 = vmatpush1.msra.mxu0 0.0
        %9608 = vmatprep.subr.mxu0 0.0
        %9609 = vmatpush1.msra.mxu0 0.0
        %9610 = vmatprep.subr.mxu0 0.0
        %9611 = vmatpush1.msra.mxu0 0.0
        %9612 = vmatprep.subr.mxu0 0.0
        %9613 = vmatpush1.msra.mxu0 0.0
        %9614 = vmatprep.subr.mxu0 0.0
        %9615 = vmatpush1.msra.mxu0 0.0
        %9616 = vmatprep.subr.mxu0 0.0
        %9617 = vmatpush1.msra.mxu0 0.0
        %9618 = vmatprep.subr.mxu0 0.0
        %9619 = vmatpush1.msra.mxu0 0.0
        %9620 = vmatprep.subr.mxu0 0.0
        %9621 = vmatpush1.msra.mxu0 0.0
        %9622 = vmatprep.subr.mxu0 0.0
        %9623 = vmatpush1.msra.mxu0 0.0
        %9624 = vmatprep.mubr.f32.mxu0 0.0
        %v9625 = vand.u32 %v9185, 4294901760
        %9626 = vmatmul.mubr.f32.gmra.mrb[0].mxu0 %v9625
        %v9627 = vpop.f32.mrb[0].mxu0
        %v9628 = vadd.f32 %v9537, %v9627
        %v9629 = vpop.f32.mrb[0].mxu0
        %9630 = vmatprep.mubr.f32.mxu0 0.0
        %v9631 = vand.u32 %v9188, 4294901760
        %9632 = vmatmul.mubr.f32.gmra.mrb[0].mxu0 %v9631
        %v9633 = vpop.f32.mrb[0].mxu0
        %v9634 = vadd.f32 %v9545, %v9633
        %v9635 = vpop.f32.mrb[0].mxu0
        %9636 = vdwg.mxu0
        %9637 = vmatprep.subr.mxu0 0.0
        %v9638 = vand.u32 %v9173, 4294901760
        %9639 = vmatpush1.msra.mxu0 %v9638
        %9640 = vmatprep.subr.mxu0 0.0
        %v9641 = vand.u32 %v9174, 4294901760
        %9642 = vmatpush1.msra.mxu0 %v9641
        %9643 = vmatprep.subr.mxu0 0.0
        %v9644 = vand.u32 %v9175, 4294901760
        %9645 = vmatpush1.msra.mxu0 %v9644
        %9646 = vmatprep.subr.mxu0 0.0
        %v9647 = vand.u32 %v9176, 4294901760
        %9648 = vmatpush1.msra.mxu0 %v9647
        %9649 = vmatprep.subr.mxu0 0.0
        %9650 = vmatpush1.msra.mxu0 0.0
        %9651 = vmatprep.subr.mxu0 0.0
        %9652 = vmatpush1.msra.mxu0 0.0
        %9653 = vmatprep.subr.mxu0 0.0
        %9654 = vmatpush1.msra.mxu0 0.0
        %9655 = vmatprep.subr.mxu0 0.0
        %9656 = vmatpush1.msra.mxu0 0.0
        %9657 = vmatprep.subr.mxu0 0.0
        %9658 = vmatpush1.msra.mxu0 0.0
        %9659 = vmatprep.subr.mxu0 0.0
        %9660 = vmatpush1.msra.mxu0 0.0
        %9661 = vmatprep.subr.mxu0 0.0
        %9662 = vmatpush1.msra.mxu0 0.0
        %9663 = vmatprep.subr.mxu0 0.0
        %9664 = vmatpush1.msra.mxu0 0.0
        %9665 = vmatprep.subr.mxu0 0.0
        %9666 = vmatpush1.msra.mxu0 0.0
        %9667 = vmatprep.subr.mxu0 0.0
        %9668 = vmatpush1.msra.mxu0 0.0
        %9669 = vmatprep.subr.mxu0 0.0
        %9670 = vmatpush1.msra.mxu0 0.0
        %9671 = vmatprep.subr.mxu0 0.0
        %9672 = vmatpush1.msra.mxu0 0.0
        %9673 = vmatprep.subr.mxu0 0.0
        %9674 = vmatpush1.msra.mxu0 0.0
        %9675 = vmatprep.subr.mxu0 0.0
        %9676 = vmatpush1.msra.mxu0 0.0
        %9677 = vmatprep.subr.mxu0 0.0
        %9678 = vmatpush1.msra.mxu0 0.0
        %9679 = vmatprep.subr.mxu0 0.0
        %9680 = vmatpush1.msra.mxu0 0.0
        %9681 = vmatprep.subr.mxu0 0.0
        %9682 = vmatpush1.msra.mxu0 0.0
        %9683 = vmatprep.subr.mxu0 0.0
        %9684 = vmatpush1.msra.mxu0 0.0
        %9685 = vmatprep.subr.mxu0 0.0
        %9686 = vmatpush1.msra.mxu0 0.0
        %9687 = vmatprep.subr.mxu0 0.0
        %9688 = vmatpush1.msra.mxu0 0.0
        %9689 = vmatprep.subr.mxu0 0.0
        %9690 = vmatpush1.msra.mxu0 0.0
        %9691 = vmatprep.subr.mxu0 0.0
        %9692 = vmatpush1.msra.mxu0 0.0
        %9693 = vmatprep.subr.mxu0 0.0
        %9694 = vmatpush1.msra.mxu0 0.0
        %9695 = vmatprep.subr.mxu0 0.0
        %9696 = vmatpush1.msra.mxu0 0.0
        %9697 = vmatprep.subr.mxu0 0.0
        %9698 = vmatpush1.msra.mxu0 0.0
        %9699 = vmatprep.subr.mxu0 0.0
        %9700 = vmatpush1.msra.mxu0 0.0
        %9701 = vmatprep.subr.mxu0 0.0
        %9702 = vmatpush1.msra.mxu0 0.0
        %9703 = vmatprep.subr.mxu0 0.0
        %9704 = vmatpush1.msra.mxu0 0.0
        %9705 = vmatprep.mubr.f32.mxu0 0.0
        %v9706 = vand.u32 %v9185, 4294901760
        %9707 = vmatmul.mubr.f32.gmra.mrb[0].mxu0 %v9706
        %v9708 = vpop.f32.mrb[0].mxu0
        %v9709 = vadd.f32 %v9628, %v9708
        %v9710 = vpop.f32.mrb[0].mxu0
        %9711 = vmatprep.mubr.f32.mxu0 0.0
        %v9712 = vand.u32 %v9188, 4294901760
        %9713 = vmatmul.mubr.f32.gmra.mrb[0].mxu0 %v9712
        %v9714 = vpop.f32.mrb[0].mxu0
        %v9715 = vadd.f32 %v9634, %v9714
        %v9716 = vpop.f32.mrb[0].mxu0
        %9717 = vdwg.mxu0
        %v9718 = vmul.f32 %v9709, 0.5
        %v9719 = vmul.f32 %v9715, 0.5
        %v9720 = vmul.f32 %v9709, 0.70710677
        %v9721 = vmul.f32 %v9715, 0.70710677
        %v9722 = vand.u32 2147483647, %v9720
        %v9723 = vand.u32 2147483647, %v9721
        %v9724 = vmul.f32 %v9722, 0.3275911
        %v9725 = vmul.f32 %v9723, 0.3275911
        %v9726 = vadd.f32 %v9724, 1.0
        %v9727 = vadd.f32 %v9725, 1.0
        %v9728 = vrcp.pop %v9726
        %v9729 = vmul.f32 1.0, %v9728
        %v9730 = vrcp.pop %v9727
        %v9731 = vmul.f32 1.0, %v9730
        %v9732 = vmul.f32 %v9729, 1.0614054
        %v9733 = vmul.f32 %v9731, 1.0614054
        %v9734 = vadd.f32 %v9732, -1.4531521
        %v9735 = vadd.f32 %v9733, -1.4531521
        %v9736 = vmul.f32 %v9734, %v9729
        %v9737 = vmul.f32 %v9735, %v9731
        %v9738 = vadd.f32 %v9736, 1.4214138
        %v9739 = vadd.f32 %v9737, 1.4214138
        %v9740 = vmul.f32 %v9738, %v9729
        %v9741 = vmul.f32 %v9739, %v9731
        %v9742 = vadd.f32 %v9740, -0.28449672
        %v9743 = vadd.f32 %v9741, -0.28449672
        %v9744 = vmul.f32 %v9742, %v9729
        %v9745 = vmul.f32 %v9743, %v9731
        %v9746 = vadd.f32 %v9744, 0.2548296
        %v9747 = vadd.f32 %v9745, 0.2548296
        %v9748 = vmul.f32 %v9746, %v9729
        %v9749 = vmul.f32 %v9747, %v9731
        %v9750 = vsub.f32 0.0, %v9722
        %v9751 = vsub.f32 0.0, %v9723
        %v9752 = vmul.f32 %v9750, %v9722
        %v9753 = vmul.f32 %v9751, %v9723
        %v9754 = vmul.f32 %v9752, 1.442695
        %v9755 = vpow.pop %v9754
        %v9756 = vmul.f32 %v9753, 1.442695
        %v9757 = vpow.pop %v9756
        %v9758 = vmul.f32 %v9748, %v9755
        %v9759 = vmul.f32 %v9749, %v9757
        %v9760 = vsub.f32 1.0, %v9758
        %v9761 = vsub.f32 1.0, %v9759
        %vm9762 = vcmp.ge.f32.partialorder %v9720, 0.0
        %vm9763 = vcmp.ge.f32.partialorder %v9721, 0.0
        %v9764 = vsub.f32 0.0, %v9760
        %v9765 = vsub.f32 0.0, %v9761
        %v9766 = vsel %vm9762, %v9760, %v9764
        %v9767 = vsel %vm9763, %v9761, %v9765
        %v9768 = vadd.f32 %v9766, 1.0
        %v9769 = vadd.f32 %v9767, 1.0
        %v9770 = vmul.f32 %v9718, %v9768
        %v9771 = vmul.f32 %v9719, %v9769
        %v9772 = vld [vmem:[%s616] sm:$0xff]
        %v9773 = vld [vmem:[%s616 + $0x8] sm:$0xff]
        %v9774 = vld [vmem:[%s616 + $0x10] sm:$0xff]
        %v9775 = vld [vmem:[%s616 + $0x18] sm:$0xff]
        %v9776 = vld [vmem:[%s616 + $0x20] sm:$0xff]
        %v9777 = vld [vmem:[%s616 + $0x28] sm:$0xff]
        %v9778 = vld [vmem:[%s616 + $0x30] sm:$0xff]
        %v9779 = vld [vmem:[%s616 + $0x38] sm:$0xff]
        %v9780 = vld [vmem:[%s616 + $0x40] sm:$0xff]
        %v9781 = vld [vmem:[%s616 + $0x48] sm:$0xff]
        %v9782 = vld [vmem:[%s616 + $0x50] sm:$0xff]
        %v9783 = vld [vmem:[%s616 + $0x58] sm:$0xff]
        %v9784 = vld [vmem:[%s616 + $0x60] sm:$0xff]
        %v9785 = vld [vmem:[%s616 + $0x68] sm:$0xff]
        %v9786 = vld [vmem:[%s616 + $0x70] sm:$0xff]
        %v9787 = vld [vmem:[%s616 + $0x78] sm:$0xff]
        %v9788 = vld [vmem:[%s619] sm:$0x1]
        %v9790 = vlaneseq
        %v9791 = vshrl.u32 %v9790, 7
        %v9792 = vsub.s32 0, %v9791
        %v9793 = vrot.slane %v9788, %v9792
        %9795 = vmatprep.subr.mxu0 0.0
        %v9796 = vand.u32 %v9772, 4294901760
        %9797 = vmatpush1.msra.mxu0 %v9796
        %9798 = vmatprep.subr.mxu0 0.0
        %v9799 = vand.u32 %v9773, 4294901760
        %9800 = vmatpush1.msra.mxu0 %v9799
        %9801 = vmatprep.subr.mxu0 0.0
        %v9802 = vand.u32 %v9774, 4294901760
        %9803 = vmatpush1.msra.mxu0 %v9802
        %9804 = vmatprep.subr.mxu0 0.0
        %v9805 = vand.u32 %v9775, 4294901760
        %9806 = vmatpush1.msra.mxu0 %v9805
        %9807 = vmatprep.subr.mxu0 0.0
        %v9808 = vand.u32 %v9776, 4294901760
        %9809 = vmatpush1.msra.mxu0 %v9808
        %9810 = vmatprep.subr.mxu0 0.0
        %v9811 = vand.u32 %v9777, 4294901760
        %9812 = vmatpush1.msra.mxu0 %v9811
        %9813 = vmatprep.subr.mxu0 0.0
        %v9814 = vand.u32 %v9778, 4294901760
        %9815 = vmatpush1.msra.mxu0 %v9814
        %9816 = vmatprep.subr.mxu0 0.0
        %v9817 = vand.u32 %v9779, 4294901760
        %9818 = vmatpush1.msra.mxu0 %v9817
        %9819 = vmatprep.subr.mxu0 0.0
        %v9820 = vand.u32 %v9780, 4294901760
        %9821 = vmatpush1.msra.mxu0 %v9820
        %9822 = vmatprep.subr.mxu0 0.0
        %v9823 = vand.u32 %v9781, 4294901760
        %9824 = vmatpush1.msra.mxu0 %v9823
        %9825 = vmatprep.subr.mxu0 0.0
        %v9826 = vand.u32 %v9782, 4294901760
        %9827 = vmatpush1.msra.mxu0 %v9826
        %9828 = vmatprep.subr.mxu0 0.0
        %v9829 = vand.u32 %v9783, 4294901760
        %9830 = vmatpush1.msra.mxu0 %v9829
        %9831 = vmatprep.subr.mxu0 0.0
        %v9832 = vand.u32 %v9784, 4294901760
        %9833 = vmatpush1.msra.mxu0 %v9832
        %9834 = vmatprep.subr.mxu0 0.0
        %v9835 = vand.u32 %v9785, 4294901760
        %9836 = vmatpush1.msra.mxu0 %v9835
        %9837 = vmatprep.subr.mxu0 0.0
        %v9838 = vand.u32 %v9786, 4294901760
        %9839 = vmatpush1.msra.mxu0 %v9838
        %9840 = vmatprep.subr.mxu0 0.0
        %v9841 = vand.u32 %v9787, 4294901760
        %9842 = vmatpush1.msra.mxu0 %v9841
        %9843 = vmatprep.subr.mxu0 0.0
        %9844 = vmatpush1.msra.mxu0 0.0
        %9845 = vmatprep.subr.mxu0 0.0
        %9846 = vmatpush1.msra.mxu0 0.0
        %9847 = vmatprep.subr.mxu0 0.0
        %9848 = vmatpush1.msra.mxu0 0.0
        %9849 = vmatprep.subr.mxu0 0.0
        %9850 = vmatpush1.msra.mxu0 0.0
        %9851 = vmatprep.subr.mxu0 0.0
        %9852 = vmatpush1.msra.mxu0 0.0
        %9853 = vmatprep.subr.mxu0 0.0
        %9854 = vmatpush1.msra.mxu0 0.0
        %9855 = vmatprep.subr.mxu0 0.0
        %9856 = vmatpush1.msra.mxu0 0.0
        %9857 = vmatprep.subr.mxu0 0.0
        %9858 = vmatpush1.msra.mxu0 0.0
        %9859 = vmatprep.subr.mxu0 0.0
        %9860 = vmatpush1.msra.mxu0 0.0
        %9861 = vmatprep.subr.mxu0 0.0
        %9862 = vmatpush1.msra.mxu0 0.0
        %9863 = vmatprep.subr.mxu0 0.0
        %9864 = vmatpush1.msra.mxu0 0.0
        %9865 = vmatprep.subr.mxu0 0.0
        %9866 = vmatpush1.msra.mxu0 0.0
        %9867 = vmatprep.subr.mxu0 0.0
        %9868 = vmatpush1.msra.mxu0 0.0
        %9869 = vmatprep.subr.mxu0 0.0
        %9870 = vmatpush1.msra.mxu0 0.0
        %9871 = vmatprep.subr.mxu0 0.0
        %9872 = vmatpush1.msra.mxu0 0.0
        %9873 = vmatprep.subr.mxu0 0.0
        %9874 = vmatpush1.msra.mxu0 0.0
        %9875 = vmatprep.mubr.f32.mxu0 0.0
        %v9876 = vand.u32 %v9770, 4294901760
        %v9877 = vsub.f32 %v9770, %v9876
        %v9878 = vand.u32 %v9877, 4294901760
        %v9879 = vsub.f32 %v9877, %v9878
        %v9880 = vand.u32 %v9879, 4294901760
        %9881 = vmatmul.mubr.f32.gmra.mrb[0].mxu0 %v9880
        %v9882 = vpop.f32.mrb[0].mxu0
        %v9883 = vadd.f32 %v9793, %v9882
        %v9884 = vpop.f32.mrb[0].mxu0
        %9885 = vmatprep.mubr.f32.mxu0 0.0
        %v9886 = vand.u32 %v9771, 4294901760
        %v9887 = vsub.f32 %v9771, %v9886
        %v9888 = vand.u32 %v9887, 4294901760
        %v9889 = vsub.f32 %v9887, %v9888
        %v9890 = vand.u32 %v9889, 4294901760
        %9891 = vmatmul.mubr.f32.gmra.mrb[0].mxu0 %v9890
        %v9892 = vpop.f32.mrb[0].mxu0
        %v9893 = vadd.f32 %v9793, %v9892
        %v9894 = vpop.f32.mrb[0].mxu0
        %9895 = vdwg.mxu0
        %9896 = vmatprep.subr.mxu0 0.0
        %v9897 = vand.u32 %v9772, 4294901760
        %v9898 = vsub.f32 %v9772, %v9897
        %v9899 = vand.u32 %v9898, 4294901760
        %v9900 = vsub.f32 %v9898, %v9899
        %v9901 = vand.u32 %v9900, 4294901760
        %9902 = vmatpush1.msra.mxu0 %v9901
        %9903 = vmatprep.subr.mxu0 0.0
        %v9904 = vand.u32 %v9773, 4294901760
        %v9905 = vsub.f32 %v9773, %v9904
        %v9906 = vand.u32 %v9905, 4294901760
        %v9907 = vsub.f32 %v9905, %v9906
        %v9908 = vand.u32 %v9907, 4294901760
        %9909 = vmatpush1.msra.mxu0 %v9908
        %9910 = vmatprep.subr.mxu0 0.0
        %v9911 = vand.u32 %v9774, 4294901760
        %v9912 = vsub.f32 %v9774, %v9911
        %v9913 = vand.u32 %v9912, 4294901760
        %v9914 = vsub.f32 %v9912, %v9913
        %v9915 = vand.u32 %v9914, 4294901760
        %9916 = vmatpush1.msra.mxu0 %v9915
        %9917 = vmatprep.subr.mxu0 0.0
        %v9918 = vand.u32 %v9775, 4294901760
        %v9919 = vsub.f32 %v9775, %v9918
        %v9920 = vand.u32 %v9919, 4294901760
        %v9921 = vsub.f32 %v9919, %v9920
        %v9922 = vand.u32 %v9921, 4294901760
        %9923 = vmatpush1.msra.mxu0 %v9922
        %9924 = vmatprep.subr.mxu0 0.0
        %v9925 = vand.u32 %v9776, 4294901760
        %v9926 = vsub.f32 %v9776, %v9925
        %v9927 = vand.u32 %v9926, 4294901760
        %v9928 = vsub.f32 %v9926, %v9927
        %v9929 = vand.u32 %v9928, 4294901760
        %9930 = vmatpush1.msra.mxu0 %v9929
        %9931 = vmatprep.subr.mxu0 0.0
        %v9932 = vand.u32 %v9777, 4294901760
        %v9933 = vsub.f32 %v9777, %v9932
        %v9934 = vand.u32 %v9933, 4294901760
        %v9935 = vsub.f32 %v9933, %v9934
        %v9936 = vand.u32 %v9935, 4294901760
        %9937 = vmatpush1.msra.mxu0 %v9936
        %9938 = vmatprep.subr.mxu0 0.0
        %v9939 = vand.u32 %v9778, 4294901760
        %v9940 = vsub.f32 %v9778, %v9939
        %v9941 = vand.u32 %v9940, 4294901760
        %v9942 = vsub.f32 %v9940, %v9941
        %v9943 = vand.u32 %v9942, 4294901760
        %9944 = vmatpush1.msra.mxu0 %v9943
        %9945 = vmatprep.subr.mxu0 0.0
        %v9946 = vand.u32 %v9779, 4294901760
        %v9947 = vsub.f32 %v9779, %v9946
        %v9948 = vand.u32 %v9947, 4294901760
        %v9949 = vsub.f32 %v9947, %v9948
        %v9950 = vand.u32 %v9949, 4294901760
        %9951 = vmatpush1.msra.mxu0 %v9950
        %9952 = vmatprep.subr.mxu0 0.0
        %v9953 = vand.u32 %v9780, 4294901760
        %v9954 = vsub.f32 %v9780, %v9953
        %v9955 = vand.u32 %v9954, 4294901760
        %v9956 = vsub.f32 %v9954, %v9955
        %v9957 = vand.u32 %v9956, 4294901760
        %9958 = vmatpush1.msra.mxu0 %v9957
        %9959 = vmatprep.subr.mxu0 0.0
        %v9960 = vand.u32 %v9781, 4294901760
        %v9961 = vsub.f32 %v9781, %v9960
        %v9962 = vand.u32 %v9961, 4294901760
        %v9963 = vsub.f32 %v9961, %v9962
        %v9964 = vand.u32 %v9963, 4294901760
        %9965 = vmatpush1.msra.mxu0 %v9964
        %9966 = vmatprep.subr.mxu0 0.0
        %v9967 = vand.u32 %v9782, 4294901760
        %v9968 = vsub.f32 %v9782, %v9967
        %v9969 = vand.u32 %v9968, 4294901760
        %v9970 = vsub.f32 %v9968, %v9969
        %v9971 = vand.u32 %v9970, 4294901760
        %9972 = vmatpush1.msra.mxu0 %v9971
        %9973 = vmatprep.subr.mxu0 0.0
        %v9974 = vand.u32 %v9783, 4294901760
        %v9975 = vsub.f32 %v9783, %v9974
        %v9976 = vand.u32 %v9975, 4294901760
        %v9977 = vsub.f32 %v9975, %v9976
        %v9978 = vand.u32 %v9977, 4294901760
        %9979 = vmatpush1.msra.mxu0 %v9978
        %9980 = vmatprep.subr.mxu0 0.0
        %v9981 = vand.u32 %v9784, 4294901760
        %v9982 = vsub.f32 %v9784, %v9981
        %v9983 = vand.u32 %v9982, 4294901760
        %v9984 = vsub.f32 %v9982, %v9983
        %v9985 = vand.u32 %v9984, 4294901760
        %9986 = vmatpush1.msra.mxu0 %v9985
        %9987 = vmatprep.subr.mxu0 0.0
        %v9988 = vand.u32 %v9785, 4294901760
        %v9989 = vsub.f32 %v9785, %v9988
        %v9990 = vand.u32 %v9989, 4294901760
        %v9991 = vsub.f32 %v9989, %v9990
        %v9992 = vand.u32 %v9991, 4294901760
        %9993 = vmatpush1.msra.mxu0 %v9992
        %9994 = vmatprep.subr.mxu0 0.0
        %v9995 = vand.u32 %v9786, 4294901760
        %v9996 = vsub.f32 %v9786, %v9995
        %v9997 = vand.u32 %v9996, 4294901760
        %v9998 = vsub.f32 %v9996, %v9997
        %v9999 = vand.u32 %v9998, 4294901760
        %10000 = vmatpush1.msra.mxu0 %v9999
        %10001 = vmatprep.subr.mxu0 0.0
        %v10002 = vand.u32 %v9787, 4294901760
        %v10003 = vsub.f32 %v9787, %v10002
        %v10004 = vand.u32 %v10003, 4294901760
        %v10005 = vsub.f32 %v10003, %v10004
        %v10006 = vand.u32 %v10005, 4294901760
        %10007 = vmatpush1.msra.mxu0 %v10006
        %10008 = vmatprep.subr.mxu0 0.0
        %10009 = vmatpush1.msra.mxu0 0.0
        %10010 = vmatprep.subr.mxu0 0.0
        %10011 = vmatpush1.msra.mxu0 0.0
        %10012 = vmatprep.subr.mxu0 0.0
        %10013 = vmatpush1.msra.mxu0 0.0
        %10014 = vmatprep.subr.mxu0 0.0
        %10015 = vmatpush1.msra.mxu0 0.0
        %10016 = vmatprep.subr.mxu0 0.0
        %10017 = vmatpush1.msra.mxu0 0.0
        %10018 = vmatprep.subr.mxu0 0.0
        %10019 = vmatpush1.msra.mxu0 0.0
        %10020 = vmatprep.subr.mxu0 0.0
        %10021 = vmatpush1.msra.mxu0 0.0
        %10022 = vmatprep.subr.mxu0 0.0
        %10023 = vmatpush1.msra.mxu0 0.0
        %10024 = vmatprep.subr.mxu0 0.0
        %10025 = vmatpush1.msra.mxu0 0.0
        %10026 = vmatprep.subr.mxu0 0.0
        %10027 = vmatpush1.msra.mxu0 0.0
        %10028 = vmatprep.subr.mxu0 0.0
        %10029 = vmatpush1.msra.mxu0 0.0
        %10030 = vmatprep.subr.mxu0 0.0
        %10031 = vmatpush1.msra.mxu0 0.0
        %10032 = vmatprep.subr.mxu0 0.0
        %10033 = vmatpush1.msra.mxu0 0.0
        %10034 = vmatprep.subr.mxu0 0.0
        %10035 = vmatpush1.msra.mxu0 0.0
        %10036 = vmatprep.subr.mxu0 0.0
        %10037 = vmatpush1.msra.mxu0 0.0
        %10038 = vmatprep.subr.mxu0 0.0
        %10039 = vmatpush1.msra.mxu0 0.0
        %10040 = vmatprep.mubr.f32.mxu0 0.0
        %v10041 = vand.u32 %v9770, 4294901760
        %10042 = vmatmul.mubr.f32.gmra.mrb[0].mxu0 %v10041
        %v10043 = vpop.f32.mrb[0].mxu0
        %v10044 = vadd.f32 %v9883, %v10043
        %v10045 = vpop.f32.mrb[0].mxu0
        %10046 = vmatprep.mubr.f32.mxu0 0.0
        %v10047 = vand.u32 %v9771, 4294901760
        %10048 = vmatmul.mubr.f32.gmra.mrb[0].mxu0 %v10047
        %v10049 = vpop.f32.mrb[0].mxu0
        %v10050 = vadd.f32 %v9893, %v10049
        %v10051 = vpop.f32.mrb[0].mxu0
        %10052 = vdwg.mxu0
        %10053 = vmatprep.subr.mxu0 0.0
        %v10054 = vand.u32 %v9772, 4294901760
        %v10055 = vsub.f32 %v9772, %v10054
        %10056 = vmatpush1.msra.mxu0 %v10055
        %10057 = vmatprep.subr.mxu0 0.0
        %v10058 = vand.u32 %v9773, 4294901760
        %v10059 = vsub.f32 %v9773, %v10058
        %10060 = vmatpush1.msra.mxu0 %v10059
        %10061 = vmatprep.subr.mxu0 0.0
        %v10062 = vand.u32 %v9774, 4294901760
        %v10063 = vsub.f32 %v9774, %v10062
        %10064 = vmatpush1.msra.mxu0 %v10063
        %10065 = vmatprep.subr.mxu0 0.0
        %v10066 = vand.u32 %v9775, 4294901760
        %v10067 = vsub.f32 %v9775, %v10066
        %10068 = vmatpush1.msra.mxu0 %v10067
        %10069 = vmatprep.subr.mxu0 0.0
        %v10070 = vand.u32 %v9776, 4294901760
        %v10071 = vsub.f32 %v9776, %v10070
        %10072 = vmatpush1.msra.mxu0 %v10071
        %10073 = vmatprep.subr.mxu0 0.0
        %v10074 = vand.u32 %v9777, 4294901760
        %v10075 = vsub.f32 %v9777, %v10074
        %10076 = vmatpush1.msra.mxu0 %v10075
        %10077 = vmatprep.subr.mxu0 0.0
        %v10078 = vand.u32 %v9778, 4294901760
        %v10079 = vsub.f32 %v9778, %v10078
        %10080 = vmatpush1.msra.mxu0 %v10079
        %10081 = vmatprep.subr.mxu0 0.0
        %v10082 = vand.u32 %v9779, 4294901760
        %v10083 = vsub.f32 %v9779, %v10082
        %10084 = vmatpush1.msra.mxu0 %v10083
        %10085 = vmatprep.subr.mxu0 0.0
        %v10086 = vand.u32 %v9780, 4294901760
        %v10087 = vsub.f32 %v9780, %v10086
        %10088 = vmatpush1.msra.mxu0 %v10087
        %10089 = vmatprep.subr.mxu0 0.0
        %v10090 = vand.u32 %v9781, 4294901760
        %v10091 = vsub.f32 %v9781, %v10090
        %10092 = vmatpush1.msra.mxu0 %v10091
        %10093 = vmatprep.subr.mxu0 0.0
        %v10094 = vand.u32 %v9782, 4294901760
        %v10095 = vsub.f32 %v9782, %v10094
        %10096 = vmatpush1.msra.mxu0 %v10095
        %10097 = vmatprep.subr.mxu0 0.0
        %v10098 = vand.u32 %v9783, 4294901760
        %v10099 = vsub.f32 %v9783, %v10098
        %10100 = vmatpush1.msra.mxu0 %v10099
        %10101 = vmatprep.subr.mxu0 0.0
        %v10102 = vand.u32 %v9784, 4294901760
        %v10103 = vsub.f32 %v9784, %v10102
        %10104 = vmatpush1.msra.mxu0 %v10103
        %10105 = vmatprep.subr.mxu0 0.0
        %v10106 = vand.u32 %v9785, 4294901760
        %v10107 = vsub.f32 %v9785, %v10106
        %10108 = vmatpush1.msra.mxu0 %v10107
        %10109 = vmatprep.subr.mxu0 0.0
        %v10110 = vand.u32 %v9786, 4294901760
        %v10111 = vsub.f32 %v9786, %v10110
        %10112 = vmatpush1.msra.mxu0 %v10111
        %10113 = vmatprep.subr.mxu0 0.0
        %v10114 = vand.u32 %v9787, 4294901760
        %v10115 = vsub.f32 %v9787, %v10114
        %10116 = vmatpush1.msra.mxu0 %v10115
        %10117 = vmatprep.subr.mxu0 0.0
        %10118 = vmatpush1.msra.mxu0 0.0
        %10119 = vmatprep.subr.mxu0 0.0
        %10120 = vmatpush1.msra.mxu0 0.0
        %10121 = vmatprep.subr.mxu0 0.0
        %10122 = vmatpush1.msra.mxu0 0.0
        %10123 = vmatprep.subr.mxu0 0.0
        %10124 = vmatpush1.msra.mxu0 0.0
        %10125 = vmatprep.subr.mxu0 0.0
        %10126 = vmatpush1.msra.mxu0 0.0
        %10127 = vmatprep.subr.mxu0 0.0
        %10128 = vmatpush1.msra.mxu0 0.0
        %10129 = vmatprep.subr.mxu0 0.0
        %10130 = vmatpush1.msra.mxu0 0.0
        %10131 = vmatprep.subr.mxu0 0.0
        %10132 = vmatpush1.msra.mxu0 0.0
        %10133 = vmatprep.subr.mxu0 0.0
        %10134 = vmatpush1.msra.mxu0 0.0
        %10135 = vmatprep.subr.mxu0 0.0
        %10136 = vmatpush1.msra.mxu0 0.0
        %10137 = vmatprep.subr.mxu0 0.0
        %10138 = vmatpush1.msra.mxu0 0.0
        %10139 = vmatprep.subr.mxu0 0.0
        %10140 = vmatpush1.msra.mxu0 0.0
        %10141 = vmatprep.subr.mxu0 0.0
        %10142 = vmatpush1.msra.mxu0 0.0
        %10143 = vmatprep.subr.mxu0 0.0
        %10144 = vmatpush1.msra.mxu0 0.0
        %10145 = vmatprep.subr.mxu0 0.0
        %10146 = vmatpush1.msra.mxu0 0.0
        %10147 = vmatprep.subr.mxu0 0.0
        %10148 = vmatpush1.msra.mxu0 0.0
        %10149 = vmatprep.mubr.f32.mxu0 0.0
        %v10150 = vand.u32 %v9770, 4294901760
        %v10151 = vsub.f32 %v9770, %v10150
        %10152 = vmatmul.mubr.f32.gmra.mrb[0].mxu0 %v10151
        %v10153 = vpop.f32.mrb[0].mxu0
        %v10154 = vadd.f32 %v10044, %v10153
        %v10155 = vpop.f32.mrb[0].mxu0
        %10156 = vmatprep.mubr.f32.mxu0 0.0
        %v10157 = vand.u32 %v9771, 4294901760
        %v10158 = vsub.f32 %v9771, %v10157
        %10159 = vmatmul.mubr.f32.gmra.mrb[0].mxu0 %v10158
        %v10160 = vpop.f32.mrb[0].mxu0
        %v10161 = vadd.f32 %v10050, %v10160
        %v10162 = vpop.f32.mrb[0].mxu0
        %10163 = vdwg.mxu0
        %10164 = vmatprep.subr.mxu0 0.0
        %v10165 = vand.u32 %v9772, 4294901760
        %10166 = vmatpush1.msra.mxu0 %v10165
        %10167 = vmatprep.subr.mxu0 0.0
        %v10168 = vand.u32 %v9773, 4294901760
        %10169 = vmatpush1.msra.mxu0 %v10168
        %10170 = vmatprep.subr.mxu0 0.0
        %v10171 = vand.u32 %v9774, 4294901760
        %10172 = vmatpush1.msra.mxu0 %v10171
        %10173 = vmatprep.subr.mxu0 0.0
        %v10174 = vand.u32 %v9775, 4294901760
        %10175 = vmatpush1.msra.mxu0 %v10174
        %10176 = vmatprep.subr.mxu0 0.0
        %v10177 = vand.u32 %v9776, 4294901760
        %10178 = vmatpush1.msra.mxu0 %v10177
        %10179 = vmatprep.subr.mxu0 0.0
        %v10180 = vand.u32 %v9777, 4294901760
        %10181 = vmatpush1.msra.mxu0 %v10180
        %10182 = vmatprep.subr.mxu0 0.0
        %v10183 = vand.u32 %v9778, 4294901760
        %10184 = vmatpush1.msra.mxu0 %v10183
        %10185 = vmatprep.subr.mxu0 0.0
        %v10186 = vand.u32 %v9779, 4294901760
        %10187 = vmatpush1.msra.mxu0 %v10186
        %10188 = vmatprep.subr.mxu0 0.0
        %v10189 = vand.u32 %v9780, 4294901760
        %10190 = vmatpush1.msra.mxu0 %v10189
        %10191 = vmatprep.subr.mxu0 0.0
        %v10192 = vand.u32 %v9781, 4294901760
        %10193 = vmatpush1.msra.mxu0 %v10192
        %10194 = vmatprep.subr.mxu0 0.0
        %v10195 = vand.u32 %v9782, 4294901760
        %10196 = vmatpush1.msra.mxu0 %v10195
        %10197 = vmatprep.subr.mxu0 0.0
        %v10198 = vand.u32 %v9783, 4294901760
        %10199 = vmatpush1.msra.mxu0 %v10198
        %10200 = vmatprep.subr.mxu0 0.0
        %v10201 = vand.u32 %v9784, 4294901760
        %10202 = vmatpush1.msra.mxu0 %v10201
        %10203 = vmatprep.subr.mxu0 0.0
        %v10204 = vand.u32 %v9785, 4294901760
        %10205 = vmatpush1.msra.mxu0 %v10204
        %10206 = vmatprep.subr.mxu0 0.0
        %v10207 = vand.u32 %v9786, 4294901760
        %10208 = vmatpush1.msra.mxu0 %v10207
        %10209 = vmatprep.subr.mxu0 0.0
        %v10210 = vand.u32 %v9787, 4294901760
        %10211 = vmatpush1.msra.mxu0 %v10210
        %10212 = vmatprep.subr.mxu0 0.0
        %10213 = vmatpush1.msra.mxu0 0.0
        %10214 = vmatprep.subr.mxu0 0.0
        %10215 = vmatpush1.msra.mxu0 0.0
        %10216 = vmatprep.subr.mxu0 0.0
        %10217 = vmatpush1.msra.mxu0 0.0
        %10218 = vmatprep.subr.mxu0 0.0
        %10219 = vmatpush1.msra.mxu0 0.0
        %10220 = vmatprep.subr.mxu0 0.0
        %10221 = vmatpush1.msra.mxu0 0.0
        %10222 = vmatprep.subr.mxu0 0.0
        %10223 = vmatpush1.msra.mxu0 0.0
        %10224 = vmatprep.subr.mxu0 0.0
        %10225 = vmatpush1.msra.mxu0 0.0
        %10226 = vmatprep.subr.mxu0 0.0
        %10227 = vmatpush1.msra.mxu0 0.0
        %10228 = vmatprep.subr.mxu0 0.0
        %10229 = vmatpush1.msra.mxu0 0.0
        %10230 = vmatprep.subr.mxu0 0.0
        %10231 = vmatpush1.msra.mxu0 0.0
        %10232 = vmatprep.subr.mxu0 0.0
        %10233 = vmatpush1.msra.mxu0 0.0
        %10234 = vmatprep.subr.mxu0 0.0
        %10235 = vmatpush1.msra.mxu0 0.0
        %10236 = vmatprep.subr.mxu0 0.0
        %10237 = vmatpush1.msra.mxu0 0.0
        %10238 = vmatprep.subr.mxu0 0.0
        %10239 = vmatpush1.msra.mxu0 0.0
        %10240 = vmatprep.subr.mxu0 0.0
        %10241 = vmatpush1.msra.mxu0 0.0
        %10242 = vmatprep.subr.mxu0 0.0
        %10243 = vmatpush1.msra.mxu0 0.0
        %10244 = vmatprep.mubr.f32.mxu0 0.0
        %v10245 = vand.u32 %v9770, 4294901760
        %v10246 = vsub.f32 %v9770, %v10245
        %v10247 = vand.u32 %v10246, 4294901760
        %10248 = vmatmul.mubr.f32.gmra.mrb[0].mxu0 %v10247
        %v10249 = vpop.f32.mrb[0].mxu0
        %v10250 = vadd.f32 %v10154, %v10249
        %v10251 = vpop.f32.mrb[0].mxu0
        %10252 = vmatprep.mubr.f32.mxu0 0.0
        %v10253 = vand.u32 %v9771, 4294901760
        %v10254 = vsub.f32 %v9771, %v10253
        %v10255 = vand.u32 %v10254, 4294901760
        %10256 = vmatmul.mubr.f32.gmra.mrb[0].mxu0 %v10255
        %v10257 = vpop.f32.mrb[0].mxu0
        %v10258 = vadd.f32 %v10161, %v10257
        %v10259 = vpop.f32.mrb[0].mxu0
        %10260 = vdwg.mxu0
        %10261 = vmatprep.subr.mxu0 0.0
        %v10262 = vand.u32 %v9772, 4294901760
        %v10263 = vsub.f32 %v9772, %v10262
        %v10264 = vand.u32 %v10263, 4294901760
        %10265 = vmatpush1.msra.mxu0 %v10264
        %10266 = vmatprep.subr.mxu0 0.0
        %v10267 = vand.u32 %v9773, 4294901760
        %v10268 = vsub.f32 %v9773, %v10267
        %v10269 = vand.u32 %v10268, 4294901760
        %10270 = vmatpush1.msra.mxu0 %v10269
        %10271 = vmatprep.subr.mxu0 0.0
        %v10272 = vand.u32 %v9774, 4294901760
        %v10273 = vsub.f32 %v9774, %v10272
        %v10274 = vand.u32 %v10273, 4294901760
        %10275 = vmatpush1.msra.mxu0 %v10274
        %10276 = vmatprep.subr.mxu0 0.0
        %v10277 = vand.u32 %v9775, 4294901760
        %v10278 = vsub.f32 %v9775, %v10277
        %v10279 = vand.u32 %v10278, 4294901760
        %10280 = vmatpush1.msra.mxu0 %v10279
        %10281 = vmatprep.subr.mxu0 0.0
        %v10282 = vand.u32 %v9776, 4294901760
        %v10283 = vsub.f32 %v9776, %v10282
        %v10284 = vand.u32 %v10283, 4294901760
        %10285 = vmatpush1.msra.mxu0 %v10284
        %10286 = vmatprep.subr.mxu0 0.0
        %v10287 = vand.u32 %v9777, 4294901760
        %v10288 = vsub.f32 %v9777, %v10287
        %v10289 = vand.u32 %v10288, 4294901760
        %10290 = vmatpush1.msra.mxu0 %v10289
        %10291 = vmatprep.subr.mxu0 0.0
        %v10292 = vand.u32 %v9778, 4294901760
        %v10293 = vsub.f32 %v9778, %v10292
        %v10294 = vand.u32 %v10293, 4294901760
        %10295 = vmatpush1.msra.mxu0 %v10294
        %10296 = vmatprep.subr.mxu0 0.0
        %v10297 = vand.u32 %v9779, 4294901760
        %v10298 = vsub.f32 %v9779, %v10297
        %v10299 = vand.u32 %v10298, 4294901760
        %10300 = vmatpush1.msra.mxu0 %v10299
        %10301 = vmatprep.subr.mxu0 0.0
        %v10302 = vand.u32 %v9780, 4294901760
        %v10303 = vsub.f32 %v9780, %v10302
        %v10304 = vand.u32 %v10303, 4294901760
        %10305 = vmatpush1.msra.mxu0 %v10304
        %10306 = vmatprep.subr.mxu0 0.0
        %v10307 = vand.u32 %v9781, 4294901760
        %v10308 = vsub.f32 %v9781, %v10307
        %v10309 = vand.u32 %v10308, 4294901760
        %10310 = vmatpush1.msra.mxu0 %v10309
        %10311 = vmatprep.subr.mxu0 0.0
        %v10312 = vand.u32 %v9782, 4294901760
        %v10313 = vsub.f32 %v9782, %v10312
        %v10314 = vand.u32 %v10313, 4294901760
        %10315 = vmatpush1.msra.mxu0 %v10314
        %10316 = vmatprep.subr.mxu0 0.0
        %v10317 = vand.u32 %v9783, 4294901760
        %v10318 = vsub.f32 %v9783, %v10317
        %v10319 = vand.u32 %v10318, 4294901760
        %10320 = vmatpush1.msra.mxu0 %v10319
        %10321 = vmatprep.subr.mxu0 0.0
        %v10322 = vand.u32 %v9784, 4294901760
        %v10323 = vsub.f32 %v9784, %v10322
        %v10324 = vand.u32 %v10323, 4294901760
        %10325 = vmatpush1.msra.mxu0 %v10324
        %10326 = vmatprep.subr.mxu0 0.0
        %v10327 = vand.u32 %v9785, 4294901760
        %v10328 = vsub.f32 %v9785, %v10327
        %v10329 = vand.u32 %v10328, 4294901760
        %10330 = vmatpush1.msra.mxu0 %v10329
        %10331 = vmatprep.subr.mxu0 0.0
        %v10332 = vand.u32 %v9786, 4294901760
        %v10333 = vsub.f32 %v9786, %v10332
        %v10334 = vand.u32 %v10333, 4294901760
        %10335 = vmatpush1.msra.mxu0 %v10334
        %10336 = vmatprep.subr.mxu0 0.0
        %v10337 = vand.u32 %v9787, 4294901760
        %v10338 = vsub.f32 %v9787, %v10337
        %v10339 = vand.u32 %v10338, 4294901760
        %10340 = vmatpush1.msra.mxu0 %v10339
        %10341 = vmatprep.subr.mxu0 0.0
        %10342 = vmatpush1.msra.mxu0 0.0
        %10343 = vmatprep.subr.mxu0 0.0
        %10344 = vmatpush1.msra.mxu0 0.0
        %10345 = vmatprep.subr.mxu0 0.0
        %10346 = vmatpush1.msra.mxu0 0.0
        %10347 = vmatprep.subr.mxu0 0.0
        %10348 = vmatpush1.msra.mxu0 0.0
        %10349 = vmatprep.subr.mxu0 0.0
        %10350 = vmatpush1.msra.mxu0 0.0
        %10351 = vmatprep.subr.mxu0 0.0
        %10352 = vmatpush1.msra.mxu0 0.0
        %10353 = vmatprep.subr.mxu0 0.0
        %10354 = vmatpush1.msra.mxu0 0.0
        %10355 = vmatprep.subr.mxu0 0.0
        %10356 = vmatpush1.msra.mxu0 0.0
        %10357 = vmatprep.subr.mxu0 0.0
        %10358 = vmatpush1.msra.mxu0 0.0
        %10359 = vmatprep.subr.mxu0 0.0
        %10360 = vmatpush1.msra.mxu0 0.0
        %10361 = vmatprep.subr.mxu0 0.0
        %10362 = vmatpush1.msra.mxu0 0.0
        %10363 = vmatprep.subr.mxu0 0.0
        %10364 = vmatpush1.msra.mxu0 0.0
        %10365 = vmatprep.subr.mxu0 0.0
        %10366 = vmatpush1.msra.mxu0 0.0
        %10367 = vmatprep.subr.mxu0 0.0
        %10368 = vmatpush1.msra.mxu0 0.0
        %10369 = vmatprep.subr.mxu0 0.0
        %10370 = vmatpush1.msra.mxu0 0.0
        %10371 = vmatprep.subr.mxu0 0.0
        %10372 = vmatpush1.msra.mxu0 0.0
        %10373 = vmatprep.mubr.f32.mxu0 0.0
        %v10374 = vand.u32 %v9770, 4294901760
        %10375 = vmatmul.mubr.f32.gmra.mrb[0].mxu0 %v10374
        %v10376 = vpop.f32.mrb[0].mxu0
        %v10377 = vadd.f32 %v10250, %v10376
        %v10378 = vpop.f32.mrb[0].mxu0
        %10379 = vmatprep.mubr.f32.mxu0 0.0
        %v10380 = vand.u32 %v9771, 4294901760
        %10381 = vmatmul.mubr.f32.gmra.mrb[0].mxu0 %v10380
        %v10382 = vpop.f32.mrb[0].mxu0
        %v10383 = vadd.f32 %v10258, %v10382
        %v10384 = vpop.f32.mrb[0].mxu0
        %10385 = vdwg.mxu0
        %10386 = vmatprep.subr.mxu0 0.0
        %v10387 = vand.u32 %v9772, 4294901760
        %10388 = vmatpush1.msra.mxu0 %v10387
        %10389 = vmatprep.subr.mxu0 0.0
        %v10390 = vand.u32 %v9773, 4294901760
        %10391 = vmatpush1.msra.mxu0 %v10390
        %10392 = vmatprep.subr.mxu0 0.0
        %v10393 = vand.u32 %v9774, 4294901760
        %10394 = vmatpush1.msra.mxu0 %v10393
        %10395 = vmatprep.subr.mxu0 0.0
        %v10396 = vand.u32 %v9775, 4294901760
        %10397 = vmatpush1.msra.mxu0 %v10396
        %10398 = vmatprep.subr.mxu0 0.0
        %v10399 = vand.u32 %v9776, 4294901760
        %10400 = vmatpush1.msra.mxu0 %v10399
        %10401 = vmatprep.subr.mxu0 0.0
        %v10402 = vand.u32 %v9777, 4294901760
        %10403 = vmatpush1.msra.mxu0 %v10402
        %10404 = vmatprep.subr.mxu0 0.0
        %v10405 = vand.u32 %v9778, 4294901760
        %10406 = vmatpush1.msra.mxu0 %v10405
        %10407 = vmatprep.subr.mxu0 0.0
        %v10408 = vand.u32 %v9779, 4294901760
        %10409 = vmatpush1.msra.mxu0 %v10408
        %10410 = vmatprep.subr.mxu0 0.0
        %v10411 = vand.u32 %v9780, 4294901760
        %10412 = vmatpush1.msra.mxu0 %v10411
        %10413 = vmatprep.subr.mxu0 0.0
        %v10414 = vand.u32 %v9781, 4294901760
        %10415 = vmatpush1.msra.mxu0 %v10414
        %10416 = vmatprep.subr.mxu0 0.0
        %v10417 = vand.u32 %v9782, 4294901760
        %10418 = vmatpush1.msra.mxu0 %v10417
        %10419 = vmatprep.subr.mxu0 0.0
        %v10420 = vand.u32 %v9783, 4294901760
        %10421 = vmatpush1.msra.mxu0 %v10420
        %10422 = vmatprep.subr.mxu0 0.0
        %v10423 = vand.u32 %v9784, 4294901760
        %10424 = vmatpush1.msra.mxu0 %v10423
        %10425 = vmatprep.subr.mxu0 0.0
        %v10426 = vand.u32 %v9785, 4294901760
        %10427 = vmatpush1.msra.mxu0 %v10426
        %10428 = vmatprep.subr.mxu0 0.0
        %v10429 = vand.u32 %v9786, 4294901760
        %10430 = vmatpush1.msra.mxu0 %v10429
        %10431 = vmatprep.subr.mxu0 0.0
        %v10432 = vand.u32 %v9787, 4294901760
        %10433 = vmatpush1.msra.mxu0 %v10432
        %10434 = vmatprep.subr.mxu0 0.0
        %10435 = vmatpush1.msra.mxu0 0.0
        %10436 = vmatprep.subr.mxu0 0.0
        %10437 = vmatpush1.msra.mxu0 0.0
        %10438 = vmatprep.subr.mxu0 0.0
        %10439 = vmatpush1.msra.mxu0 0.0
        %10440 = vmatprep.subr.mxu0 0.0
        %10441 = vmatpush1.msra.mxu0 0.0
        %10442 = vmatprep.subr.mxu0 0.0
        %10443 = vmatpush1.msra.mxu0 0.0
        %10444 = vmatprep.subr.mxu0 0.0
        %10445 = vmatpush1.msra.mxu0 0.0
        %10446 = vmatprep.subr.mxu0 0.0
        %10447 = vmatpush1.msra.mxu0 0.0
        %10448 = vmatprep.subr.mxu0 0.0
        %10449 = vmatpush1.msra.mxu0 0.0
        %10450 = vmatprep.subr.mxu0 0.0
        %10451 = vmatpush1.msra.mxu0 0.0
        %10452 = vmatprep.subr.mxu0 0.0
        %10453 = vmatpush1.msra.mxu0 0.0
        %10454 = vmatprep.subr.mxu0 0.0
        %10455 = vmatpush1.msra.mxu0 0.0
        %10456 = vmatprep.subr.mxu0 0.0
        %10457 = vmatpush1.msra.mxu0 0.0
        %10458 = vmatprep.subr.mxu0 0.0
        %10459 = vmatpush1.msra.mxu0 0.0
        %10460 = vmatprep.subr.mxu0 0.0
        %10461 = vmatpush1.msra.mxu0 0.0
        %10462 = vmatprep.subr.mxu0 0.0
        %10463 = vmatpush1.msra.mxu0 0.0
        %10464 = vmatprep.subr.mxu0 0.0
        %10465 = vmatpush1.msra.mxu0 0.0
        %10466 = vmatprep.mubr.f32.mxu0 0.0
        %v10467 = vand.u32 %v9770, 4294901760
        %10468 = vmatmul.mubr.f32.gmra.mrb[0].mxu0 %v10467
        %v10469 = vpop.f32.mrb[0].mxu0
        %v10470 = vadd.f32 %v10377, %v10469
        %v10471 = vpop.f32.mrb[0].mxu0
        %10472 = vmatprep.mubr.f32.mxu0 0.0
        %v10473 = vand.u32 %v9771, 4294901760
        %10474 = vmatmul.mubr.f32.gmra.mrb[0].mxu0 %v10473
        %v10475 = vpop.f32.mrb[0].mxu0
        %v10476 = vadd.f32 %v10383, %v10475
        %v10477 = vpop.f32.mrb[0].mxu0
        %10478 = vdwg.mxu0
        %v10479 = vadd.f32 %v10470, %v9171
        %v10480 = vadd.f32 %v10476, %v9172
        %v10481 = vld [vmem:[%s622] sm:$0x1]
        %v10482 = vld [vmem:[%s625] sm:$0x1]
        %v10483 = vsel %vm648, %v10479, 0.0
        %10484 = vadd.xlane.f32.xlu0 %v10483
        %v10485 = vpop.xlane.xlu0 %10484
        %v10486 = vsel %vm648, %v10480, 0.0
        %10487 = vadd.xlane.f32.xlu0 %v10486
        %v10488 = vpop.xlane.xlu0 %10487
        %v10489 = vmul.f32 %v10485, %v9136
        %v10490 = vmul.f32 %v10488, %v9136
        %v10491 = vsub.f32 %v10479, %v10489
        %v10492 = vsub.f32 %v10480, %v10490
        %v10493 = vmul.f32 %v10491, %v10491
        %v10494 = vmul.f32 %v10492, %v10492
        %v10495 = vsel %vm648, %v10493, 0.0
        %10496 = vadd.xlane.f32.xlu0 %v10495
        %v10497 = vpop.xlane.xlu0 %10496
        %v10498 = vsel %vm648, %v10494, 0.0
        %10499 = vadd.xlane.f32.xlu0 %v10498
        %v10500 = vpop.xlane.xlu0 %10499
        %v10501 = vmul.f32 %v10497, %v9136
        %v10502 = vmul.f32 %v10500, %v9136
        %v10503 = vadd.f32 %v10501, 1e-12
        %v10504 = vadd.f32 %v10502, 1e-12
        %v10505 = vrsqrt.pop %v10503
        %v10506 = vrsqrt.pop %v10504
        %v10507 = vmul.f32 %v10491, %v10505
        %v10508 = vmul.f32 %v10492, %v10506
        %v10510 = vlaneseq
        %v10511 = vshrl.u32 %v10510, 7
        %v10512 = vsub.s32 0, %v10511
        %v10513 = vrot.slane %v10481, %v10512
        %v10515 = vmul.f32 %v10507, %v10513
        %v10516 = vmul.f32 %v10508, %v10513
        %v10518 = vlaneseq
        %v10519 = vshrl.u32 %v10518, 7
        %v10520 = vsub.s32 0, %v10519
        %v10521 = vrot.slane %v10482, %v10520
        %v10523 = vadd.f32 %v10515, %v10521
        %v10524 = vadd.f32 %v10516, %v10521
        %10525 = vst.msk [vmem:[#allocation3] sm:$0xff] %vm648, %v10523
        %10526 = vst.msk [vmem:[#allocation3 + $0x8] sm:$0xff] %vm648, %v10524
        // Predicated region
        $region81: #{tpu_custom_call.1} parent=75 // pred_check
          %p10527 = pneg %p393
        $region82: #{tpu_custom_call.1} parent=75 // pred_check_branch
          %10529 = sbr.rel (%p10527) target = $region84
        $region83: #{tpu_custom_call.1} parent=75 // pred_region
          %s10531 = ssub.s32 256, 256
          %10532 = vsyncadd [#allocation4], %s10531
          %s10533 = sshll.u32 [#allocation3], 4
          %s10534 = int_to_ptr.vmem [resolvable:$true] %s10533
          %10539 = dma.vmem_to_hbm [thread:$0]  %s10534, 256, %s14, [#allocation4], 128, 128, 8
        $region84: #{tpu_custom_call.1} parent=75 // pred_fallthru
          _
        // Predicated region
        $region85: #{tpu_custom_call.1} parent=75 // pred_check
          %p10540 = pneg %p393
        $region86: #{tpu_custom_call.1} parent=75 // pred_check_branch
          %10542 = sbr.rel (%p10540) target = $region88
        $region87: #{tpu_custom_call.1} parent=75 // pred_region
          %10543 = dma.done [#allocation4], 256
        $region88: #{tpu_custom_call.1} parent=75 // pred_fallthru
          _
      $region76: #{tpu_custom_call.1} parent=5 // pred_fallthru
        _
      %p10544 = scmp.le.s32.totalorder 2, %s21
      // Predicated region
      $region89: #{tpu_custom_call.1} parent=5 // pred_check
        %p10545 = pneg %p10544
      $region90: #{tpu_custom_call.1} parent=5 // pred_check_branch
        %10547 = sbr.rel (%p10545) target = $region92
      $region91: #{tpu_custom_call.1} parent=5 // pred_region
        %s10548 = ssub.s32 %s21, 2
      $region92: #{tpu_custom_call.1} parent=5 // pred_fallthru
        _
    $region6: #{tpu_custom_call.1} parent=1 // loop_footer
      %s25 = sadd.s32 1, %s21
    $region7: #{tpu_custom_call.1} parent=1 // loop_footer_branch
      %20 = sbr.rel target = $region3
    $region8: #{tpu_custom_call.1} parent=1 // loop_exit
      _
    %10549 = vsyncpa [#allocation4], 1
    %s10550 = scalar_lea.sflag [#allocation4], 1
    %10551 = vsyncpa %s10550, 1

</llo_original>
